<compile_context>
chip_gen: v7x
topology: tpu7x:2x2x1
jax: 0.10.0
libtpu: 0.0.40
codegen_flags: <defaults>
</compile_context>

<pallas_src>
import jax
import jax.numpy as jnp
from jax import lax
from jax.experimental import pallas as pl
from jax.experimental.pallas import tpu as pltpu

_EPS = 1e-5


# ---------------------------------------------------------------------------
# helpers
# ---------------------------------------------------------------------------
def _round_up(v, m):
    return ((v + m - 1) // m) * m


def _pick_lane_tile(s, target=4096):
    """Largest lane tile that exactly tiles `s`: a multiple of 128 (<=target) or s."""
    if s <= target or s % 128 != 0:
        return s
    t = (target // 128) * 128
    while t >= 128:
        if s % t == 0:
            return t
        t -= 128
    return s


def _pick_row_tile(oh, wp, target_lanes=2048):
    """Row tile for the conv kernels: a divisor of oh, lane budget ~target."""
    cap = max(1, target_lanes // wp)
    if oh >= 4:
        cap = min(cap, oh // 2)          # keep >= 2 row tiles for pipelining
    cap = max(1, min(cap, oh))
    best = 1
    for t in range(1, cap + 1):
        if oh % t == 0:
            best = t
    return best


def _pick_bn_row_tile(oh, wp, target_lanes=4096):
    """Row tile for the final BN+ReLU kernel: multiple of 8 dividing oh (or oh)."""
    cap = max(8, target_lanes // wp)
    best = None
    t = 8
    while t <= min(oh, cap):
        if oh % t == 0:
            best = t
        t += 8
    return best if best is not None else oh


def _compiler_params(semantics, block_bytes):
    cap = 128 * 2**20
    try:
        cap = int(pltpu.get_tpu_info().vmem_capacity_bytes)
    except Exception:
        pass
    # leave ~25% of physical VMEM as headroom (matters on v7x: 64 MiB / core)
    limit = int(min(max(32 * 2**20, 8 * int(block_bytes)), (3 * cap) // 4))
    return pltpu.CompilerParams(dimension_semantics=semantics,
                                vmem_limit_bytes=limit)


# ---------------------------------------------------------------------------
# kernels
# ---------------------------------------------------------------------------
def _upconv_kernel(x_ref, w_ref, b_ref, o_ref):
    # x: (Cin, TS) bf16   w: (4*Cout, Cin) bf16   b: (4*Cout, 1) f32
    y = jnp.dot(w_ref[...], x_ref[...], preferred_element_type=jnp.float32)
    o_ref[...] = (y + b_ref[...]).astype(o_ref.dtype)


def _conv3x3_taps(win, w9_ref, wp, s):
    """3x3 conv on a row window.

    win: (C, (TH+2)*WP) bf16, layout: row-major with pitch WP, row 0 = top halo,
         row TH+1 = bottom halo; pixel col c sits at lane offset c+1 in its row
         and every pad position holds 0.
    w9_ref: (9, Cout, C) bf16, tap k = dy*3 + dx.
    Returns the f32 accumulator (Cout, s) for the TH interior rows.
    """
    c = win.shape[0]
    lw = win.shape[1]
    z = jnp.zeros((c, 128), jnp.bfloat16)
    wx = jnp.concatenate([z, win, z], axis=1)            # aligned zero aprons
    # 3 dx-shifted views, reused across the 3 dy rows (review item).
    views = [wx[:, 127 + d:127 + d + lw] for d in range(3)]
    cout = w9_ref.shape[1]
    acc = jnp.zeros((cout, s), jnp.float32)
    # TODO(synk): fold into one matmul with contraction K = 9*C.
    for dy in range(3):
        for dx in range(3):
            acc = acc + jnp.dot(w9_ref[dy * 3 + dx],
                                views[dx][:, dy * wp:dy * wp + s],
                                preferred_element_type=jnp.float32)
    return acc


def _make_conv1_kernel(wp, s):
    def kernel(um, upr, unx, sm, spr, snx, wa_ref, wb_ref, mask_ref,
               raw_ref, sum_ref, sq_ref):
        j = pl.program_id(1)
        last = pl.num_programs(1) - 1

        def window(main_ref, prev_ref, next_ref):
            prev = prev_ref[...] * (j > 0).astype(prev_ref.dtype)
            nxt = next_ref[...] * (j < last).astype(next_ref.dtype)
            return jnp.concatenate([prev, main_ref[...], nxt], axis=1)

        # concat([up, skip]) fused via weight split.
        acc = _conv3x3_taps(window(um, upr, unx), wa_ref, wp, s)
        acc = acc + _conv3x3_taps(window(sm, spr, snx), wb_ref, wp, s)

        m = mask_ref[:, wp:wp + s]            # valid-column mask (periodic in WP)
        am = acc * m
        raw_ref[...] = am.astype(raw_ref.dtype)
        sum_ref[...] = jnp.sum(am, axis=1, keepdims=True)
        sq_ref[...] = jnp.sum(am * acc, axis=1, keepdims=True)
    return kernel


def _make_conv2_kernel(wp, s):
    def kernel(xm, xpr, xnx, sc_ref, sh_ref, w9_ref, mask_ref,
               raw_ref, sum_ref, sq_ref):
        j = pl.program_id(1)
        last = pl.num_programs(1) - 1
        sc = sc_ref[...]
        sh = sh_ref[...]

        def act(ref):
            # fused pass-2 of BN1 + ReLU on load
            return jnp.maximum(ref[...].astype(jnp.float32) * sc + sh, 0.0)

        prev = act(xpr) * (j > 0).astype(jnp.float32)
        nxt = act(xnx) * (j < last).astype(jnp.float32)
        # mask zeroes pad columns AFTER the affine (affine(0) != 0)
        win = jnp.concatenate([prev, act(xm), nxt], axis=1) * mask_ref[...]

        acc = _conv3x3_taps(win.astype(jnp.bfloat16), w9_ref, wp, s)
        m = mask_ref[:, wp:wp + s]
        am = acc * m
        raw_ref[...] = am.astype(raw_ref.dtype)
        sum_ref[...] = jnp.sum(am, axis=1, keepdims=True)
        sq_ref[...] = jnp.sum(am * acc, axis=1, keepdims=True)
    return kernel


def _make_bn_relu_kernel(ow):
    def kernel(x_ref, sc_ref, sh_ref, o_ref):
        x = x_ref[...].astype(jnp.float32)                  # (C, TH, WP)
        y = x[:, :, 1:ow + 1] * sc_ref[...] + sh_ref[...]
        o_ref[...] = jnp.maximum(y, 0.0)
    return kernel


# ---------------------------------------------------------------------------
# pallas_call wrappers
# ---------------------------------------------------------------------------
def _call_upconv(x_flat, w_mat, b_col):
    n, cin, s = x_flat.shape
    c4 = w_mat.shape[0]
    ts = _pick_lane_tile(s)
    blk = 2 * (cin * ts + c4 * ts + c4 * cin) + 4 * c4
    return pl.pallas_call(
        _upconv_kernel,
        out_shape=jax.ShapeDtypeStruct((n, c4, s), jnp.bfloat16),
        grid=(n, s // ts),
        in_specs=[
            pl.BlockSpec((None, cin, ts), lambda i, j: (i, 0, j)),
            pl.BlockSpec((c4, cin), lambda i, j: (0, 0)),
            pl.BlockSpec((c4, 1), lambda i, j: (0, 0)),
        ],
        out_specs=pl.BlockSpec((None, c4, ts), lambda i, j: (i, 0, j)),
        compiler_params=_compiler_params(("parallel", "parallel"), blk),
    )(x_flat, w_mat, b_col)


def _conv_row_specs(c, s, wp, th, oh):
    """main + clamped prev/next-row specs for one conv input array."""
    main = pl.BlockSpec((None, c, s), lambda i, j: (i, 0, j))
    prev = pl.BlockSpec((None, c, wp),
                        lambda i, j: (i, 0, jnp.maximum(j * th - 1, 0)))
    nxt = pl.BlockSpec((None, c, wp),
                       lambda i, j: (i, 0, jnp.minimum((j + 1) * th, oh - 1)))
    return main, prev, nxt


def _call_conv1(up_flat, sk_flat, wa9, wb9, mask, wp, th, oh, cout):
    n, c1, _ = up_flat.shape
    c2 = sk_flat.shape[1]
    r = oh // th
    s = th * wp
    lw = (th + 2) * wp
    blk = 2 * (c1 + c2) * (s + 2 * wp) * 4 + 4 * lw + 6 * cout * s
    return pl.pallas_call(
        _make_conv1_kernel(wp, s),
        out_shape=(
            jax.ShapeDtypeStruct((n, cout, oh * wp), jnp.bfloat16),
            jax.ShapeDtypeStruct((n, r, cout, 1), jnp.float32),
            jax.ShapeDtypeStruct((n, r, cout, 1), jnp.float32),
        ),
        grid=(n, r),
        in_specs=[
            *_conv_row_specs(c1, s, wp, th, oh),
            *_conv_row_specs(c2, s, wp, th, oh),
            pl.BlockSpec((9, cout, c1), lambda i, j: (0, 0, 0)),
            pl.BlockSpec((9, cout, c2), lambda i, j: (0, 0, 0)),
            pl.BlockSpec((1, lw), lambda i, j: (0, 0)),
        ],
        out_specs=(
            pl.BlockSpec((None, cout, s), lambda i, j: (i, 0, j)),
            pl.BlockSpec((None, None, cout, 1), lambda i, j: (i, j, 0, 0)),
            pl.BlockSpec((None, None, cout, 1), lambda i, j: (i, j, 0, 0)),
        ),
        compiler_params=_compiler_params(("parallel", "parallel"), blk),
    )(up_flat, up_flat, up_flat, sk_flat, sk_flat, sk_flat, wa9, wb9, mask)


def _call_conv2(x_flat, scale, shift, w9, mask, wp, th, oh, cout):
    n, c, _ = x_flat.shape
    r = oh // th
    s = th * wp
    lw = (th + 2) * wp
    blk = 2 * c * (s + 2 * wp) * 4 + 4 * lw + 6 * cout * s
    return pl.pallas_call(
        _make_conv2_kernel(wp, s),
        out_shape=(
            jax.ShapeDtypeStruct((n, cout, oh * wp), jnp.bfloat16),
            jax.ShapeDtypeStruct((n, r, cout, 1), jnp.float32),
            jax.ShapeDtypeStruct((n, r, cout, 1), jnp.float32),
        ),
        grid=(n, r),
        in_specs=[
            *_conv_row_specs(c, s, wp, th, oh),
            pl.BlockSpec((c, 1), lambda i, j: (0, 0)),
            pl.BlockSpec((c, 1), lambda i, j: (0, 0)),
            pl.BlockSpec((9, cout, c), lambda i, j: (0, 0, 0)),
            pl.BlockSpec((1, lw), lambda i, j: (0, 0)),
        ],
        out_specs=(
            pl.BlockSpec((None, cout, s), lambda i, j: (i, 0, j)),
            pl.BlockSpec((None, None, cout, 1), lambda i, j: (i, j, 0, 0)),
            pl.BlockSpec((None, None, cout, 1), lambda i, j: (i, j, 0, 0)),
        ),
        compiler_params=_compiler_params(("parallel", "parallel"), blk),
    )(x_flat, x_flat, x_flat, scale, shift, w9, mask)


def _call_bn_relu(raw_flat, scale, shift, oh, ow, wp):
    n, c, _ = raw_flat.shape
    th = _pick_bn_row_tile(oh, wp)
    x4 = raw_flat.reshape(n, c, oh, wp)                      # metadata-only
    blk = 2 * c * th * wp + 4 * c * th * ow
    # NOTE: output last dim is ow (<128 here) -> masked stores; final layout is
    # fixed by the module contract. Fuse into the consumer to avoid it.
    return pl.pallas_call(
        _make_bn_relu_kernel(ow),
        out_shape=jax.ShapeDtypeStruct((n, c, oh, ow), jnp.float32),
        grid=(n, oh // th),
        in_specs=[
            pl.BlockSpec((None, c, th, wp), lambda i, j: (i, 0, j, 0)),
            pl.BlockSpec((c, 1, 1), lambda i, j: (0, 0, 0)),
            pl.BlockSpec((c, 1, 1), lambda i, j: (0, 0, 0)),
        ],
        out_specs=pl.BlockSpec((None, c, th, ow), lambda i, j: (i, 0, j, 0)),
        compiler_params=_compiler_params(("parallel", "parallel"), blk),
    )(x4, scale, shift)


def _bn_affine(sums, sqs, gamma, beta, count):
    # Training-mode (biased) batch statistics from exact f32 per-tile partials.
    # NOTE: E[x^2]-E[x]^2 can cancel for huge counts/magnitudes; fine at these
    # post-conv activation scales.
    s = jnp.sum(sums, axis=(0, 1, 3))
    q = jnp.sum(sqs, axis=(0, 1, 3))
    mean = s / count
    var = jnp.maximum(q / count - mean * mean, 0.0)
    scale = gamma * lax.rsqrt(var + _EPS)
    shift = beta - mean * scale
    return scale.astype(jnp.float32), shift.astype(jnp.float32)


# ---------------------------------------------------------------------------
# DecoderBlock forward (NCHW in / NCHW out, like the PyTorch module)
# ---------------------------------------------------------------------------
def decoder_block_forward(x_nchw, skip_nchw, params):
    wt, bt = params["up_w"], params["up_b"]          # (Cin, Cout, 2, 2), (Cout,)
    w1, g1, b1 = params["w1"], params["g1"], params["b1"]
    w2, g2, b2 = params["w2"], params["g2"], params["b2"]

    n, cin, h, w = x_nchw.shape
    cout = wt.shape[1]
    oh, ow = 2 * h, 2 * w
    if (oh, ow) != tuple(skip_nchw.shape[2:]):
        # TODO(synk): bilinear align_corners=True resize fallback not implemented.
        raise NotImplementedError("spatial mismatch path not implemented")

    wp = _round_up(ow + 2, 128)                # 128-aligned row pitch
    th = _pick_row_tile(oh, wp)                # conv row tile (halo handled)

    # ---- ConvTranspose2d(k=2, s=2): lane-dense matmul over spatial tiles ----
    w_up = jnp.transpose(wt, (1, 2, 3, 0)).reshape(4 * cout, cin).astype(jnp.bfloat16)
    b_up = jnp.repeat(bt, 4).reshape(4 * cout, 1).astype(jnp.float32)
    x_flat = x_nchw.astype(jnp.bfloat16).reshape(n, cin, h * w)
    up4 = _call_upconv(x_flat, w_up, b_up)               # (N, 4C, H*W) bf16

    # glue (XLA, bf16): pixel shuffle + column pad to the WP-pitch layout.
    up = up4.reshape(n, cout, 2, 2, h, w)
    up = jnp.transpose(up, (0, 1, 4, 2, 5, 3)).reshape(n, cout, oh, ow)

    def to_pitch(img):                                     # (N,C,OH,OW)->(N,C,OH*WP)
        p = jnp.pad(img.astype(jnp.bfloat16),
                    ((0, 0), (0, 0), (0, 0), (1, wp - ow - 1)))
        return p.reshape(img.shape[0], img.shape[1], oh * wp)

    up_flat = to_pitch(up)
    sk_flat = to_pitch(skip_nchw)

    # precomputed valid-column mask for the (TH+2)-row window
    lw = (th + 2) * wp
    u = jnp.arange(lw, dtype=jnp.int32) % wp
    mask = ((u >= 1) & (u <= ow)).astype(jnp.float32)[None, :]

    # ---- conv1: concat fused via weight split, emits BN1 partial stats ----
    wa9 = jnp.transpose(w1[:, :cout], (2, 3, 0, 1)).reshape(9, cout, cout)
    wb9 = jnp.transpose(w1[:, cout:], (2, 3, 0, 1)).reshape(9, cout, cout)
    raw1, s1, q1 = _call_conv1(up_flat, sk_flat,
                               wa9.astype(jnp.bfloat16), wb9.astype(jnp.bfloat16),
                               mask, wp, th, oh, cout)
    scale1, shift1 = _bn_affine(s1, q1, g1, b1, n * oh * ow)

    # ---- conv2: BN1 + ReLU fused into the load, emits BN2 partial stats ----
    w2_9 = jnp.transpose(w2, (2, 3, 0, 1)).reshape(9, cout, cout)
    raw2, s2, q2 = _call_conv2(raw1, scale1.reshape(cout, 1), shift1.reshape(cout, 1),
                               w2_9.astype(jnp.bfloat16), mask, wp, th, oh, cout)
    scale2, shift2 = _bn_affine(s2, q2, g2, b2, n * oh * ow)

    # ---- final BN2 + ReLU, compacting away the pad columns ----
    out = _call_bn_relu(raw2, scale2.reshape(cout, 1, 1), shift2.reshape(cout, 1, 1),
                        oh, ow, wp)
    return out                                             # NCHW f32


# ---------------------------------------------------------------------------
# Pure-JAX reference (mirrors the PyTorch forward, training-mode BatchNorm)
# ---------------------------------------------------------------------------
def reference_forward(x, skip, params):
    wt, bt = params["up_w"], params["up_b"]
    prec = lax.Precision.HIGHEST
    rhs = jnp.flip(jnp.transpose(wt, (1, 0, 2, 3)), axis=(2, 3))
    y = lax.conv_general_dilated(
        x, rhs, window_strides=(1, 1), padding=((1, 1), (1, 1)),
        lhs_dilation=(2, 2), dimension_numbers=("NCHW", "OIHW", "NCHW"),
        precision=prec)
    y = y + bt[None, :, None, None]
    z = jnp.concatenate([y, skip], axis=1)

    def conv_bn_relu(z, w, g, b):
        c = lax.conv_general_dilated(
            z, w, window_strides=(1, 1), padding=((1, 1), (1, 1)),
            dimension_numbers=("NCHW", "OIHW", "NCHW"), precision=prec)
        mean = c.mean(axis=(0, 2, 3), keepdims=True)
        var = jnp.square(c - mean).mean(axis=(0, 2, 3), keepdims=True)
        c = (c - mean) * lax.rsqrt(var + _EPS)
        c = c * g[None, :, None, None] + b[None, :, None, None]
        return jnp.maximum(c, 0.0)

    z = conv_bn_relu(z, params["w1"], params["g1"], params["b1"])
    z = conv_bn_relu(z, params["w2"], params["g2"], params["b2"])
    return z


# ---------------------------------------------------------------------------
if __name__ == "__main__":
    N, CIN, COUT, H, W = 2, 8, 4, 8, 8       # DecoderBlock(in=8, out=4)

    key = jax.random.PRNGKey(0)
    ks = jax.random.split(key, 10)
    params = {
        "up_w": 0.1 * jax.random.normal(ks[0], (CIN, COUT, 2, 2), jnp.float32),
        "up_b": 0.1 * jax.random.normal(ks[1], (COUT,), jnp.float32),
        "w1":   0.1 * jax.random.normal(ks[2], (COUT, 2 * COUT, 3, 3), jnp.float32),
        "g1":   1.0 + 0.1 * jax.random.normal(ks[3], (COUT,), jnp.float32),
        "b1":   0.1 * jax.random.normal(ks[4], (COUT,), jnp.float32),
        "w2":   0.1 * jax.random.normal(ks[5], (COUT, COUT, 3, 3), jnp.float32),
        "g2":   1.0 + 0.1 * jax.random.normal(ks[6], (COUT,), jnp.float32),
        "b2":   0.1 * jax.random.normal(ks[7], (COUT,), jnp.float32),
    }

    x = jax.random.normal(ks[8], (N, CIN, H, W), jnp.float32)             # NCHW
    skip = jax.random.normal(ks[9], (N, COUT, 2 * H, 2 * W), jnp.float32)

    fwd = jax.jit(decoder_block_forward)
    out = jax.block_until_ready(fwd(x, skip, params))
    assert out.shape == (N, COUT, 2 * H, 2 * W), out.shape

    ref = jax.block_until_ready(reference_forward(x, skip, params))
    max_err = float(jnp.max(jnp.abs(out - ref)))
    # bf16 MXU inputs + bf16 activation storage with f32 accumulation / f32 BN
    # statistics -> tolerance sized accordingly (intentional, documented).
    if max_err > 7.5e-2:
        raise AssertionError(f"mismatch vs reference, max_err={max_err}")

    print("KERNEL_OK")
</pallas_src>

<mosaic_0001>
module attributes {stable_mosaic.version = 11 : i64} {
  func.func @_upconv_kernel(%arg0: i32, %arg1: i32, %arg2: memref<1x8x64xbf16, #tpu.memory_space<vmem>>, %arg3: memref<16x8xbf16, #tpu.memory_space<vmem>>, %arg4: memref<16x1xf32, #tpu.memory_space<vmem>>, %arg5: memref<1x16x64xbf16, #tpu.memory_space<vmem>>) attributes {dimension_semantics = [#tpu.dimension_semantics<parallel>, #tpu.dimension_semantics<parallel>], iteration_bounds = array<i64: 2, 1>, scalar_prefetch = 0 : i64, scratch_operands = 0 : i64, tpu.core_type = #tpu.core_type<tc>, window_params = [{transform_indices = @transform_0, window_bounds = array<i64: 1, 8, 64>}, {pipeline_mode = #tpu.pipeline_mode<synchronous>, transform_indices = @transform_1, window_bounds = array<i64: 16, 8>}, {pipeline_mode = #tpu.pipeline_mode<synchronous>, transform_indices = @transform_2, window_bounds = array<i64: 16, 1>}, {transform_indices = @transform_3, window_bounds = array<i64: 1, 16, 64>}]} {
    %c0 = arith.constant 0 : index
    %c0_0 = arith.constant 0 : index
    %0 = vector.load %arg3[%c0, %c0_0] : memref<16x8xbf16, #tpu.memory_space<vmem>>, vector<16x8xbf16>
    %c0_1 = arith.constant 0 : index
    %c0_2 = arith.constant 0 : index
    %c0_3 = arith.constant 0 : index
    %1 = vector.load %arg2[%c0_1, %c0_2, %c0_3] : memref<1x8x64xbf16, #tpu.memory_space<vmem>>, vector<1x8x64xbf16>
    %2 = vector.shape_cast %1 : vector<1x8x64xbf16> to vector<8x64xbf16>
    %cst = arith.constant dense<0.000000e+00> : vector<16x64xf32>
    %3 = tpu.matmul %0, %2, %cst {dimension_numbers = #tpu.dot_dimension_numbers<[1], [0], [0], [1], [0, 0, 1, 1], [], []>} : vector<16x8xbf16>, vector<8x64xbf16>, vector<16x64xf32> -> vector<16x64xf32>
    %c0_4 = arith.constant 0 : index
    %c0_5 = arith.constant 0 : index
    %4 = vector.load %arg4[%c0_4, %c0_5] : memref<16x1xf32, #tpu.memory_space<vmem>>, vector<16x1xf32>
    %5 = vector.broadcast %4 : vector<16x1xf32> to vector<16x64xf32>
    %6 = arith.addf %3, %5 : vector<16x64xf32>
    %7 = arith.truncf %6 : vector<16x64xf32> to vector<16x64xbf16>
    %c0_6 = arith.constant 0 : index
    %c0_7 = arith.constant 0 : index
    %c0_8 = arith.constant 0 : index
    %8 = vector.load %arg5[%c0_6, %c0_7, %c0_8] : memref<1x16x64xbf16, #tpu.memory_space<vmem>>, vector<1x16x64xbf16>
    %9 = vector.shape_cast %8 : vector<1x16x64xbf16> to vector<16x64xbf16>
    %10 = vector.shape_cast %7 : vector<16x64xbf16> to vector<1x16x64xbf16>
    tpu.vector_store %arg5[%c0_6, %c0_7, %c0_8], %10 {strides = array<i32>} : memref<1x16x64xbf16, #tpu.memory_space<vmem>>, vector<1x16x64xbf16>,
    return
  }
  func.func @transform_0(%arg0: i32, %arg1: i32) -> (i32, i32, i32) {
    %c0_i32 = arith.constant 0 : i32
    %c0_i32_0 = arith.constant 0 : i32
    return %arg0, %c0_i32, %arg1 : i32, i32, i32
  }
  func.func @transform_1(%arg0: i32, %arg1: i32) -> (i32, i32) {
    %c0_i32 = arith.constant 0 : i32
    %c0_i32_0 = arith.constant 0 : i32
    %c0_i32_1 = arith.constant 0 : i32
    return %c0_i32, %c0_i32_0 : i32, i32
  }
  func.func @transform_2(%arg0: i32, %arg1: i32) -> (i32, i32) {
    %c0_i32 = arith.constant 0 : i32
    %c0_i32_0 = arith.constant 0 : i32
    %c0_i32_1 = arith.constant 0 : i32
    return %c0_i32, %c0_i32_0 : i32, i32
  }
  func.func @transform_3(%arg0: i32, %arg1: i32) -> (i32, i32, i32) {
    %c0_i32 = arith.constant 0 : i32
    %c0_i32_0 = arith.constant 0 : i32
    return %arg0, %c0_i32, %arg1 : i32, i32, i32
  }
}

module attributes {stable_mosaic.version = 11 : i64} {
  func.func @kernel(%arg0: i32, %arg1: i32, %arg2: memref<1x4x1024xbf16, #tpu.memory_space<vmem>>, %arg3: memref<1x4x128xbf16, #tpu.memory_space<vmem>>, %arg4: memref<1x4x128xbf16, #tpu.memory_space<vmem>>, %arg5: memref<4x1xf32, #tpu.memory_space<vmem>>, %arg6: memref<4x1xf32, #tpu.memory_space<vmem>>, %arg7: memref<9x4x4xbf16, #tpu.memory_space<vmem>>, %arg8: memref<1x1280xf32, #tpu.memory_space<vmem>>, %arg9: memref<1x4x1024xbf16, #tpu.memory_space<vmem>>, %arg10: memref<1x1x4x1xf32, #tpu.memory_space<vmem>>, %arg11: memref<1x1x4x1xf32, #tpu.memory_space<vmem>>) attributes {dimension_semantics = [#tpu.dimension_semantics<parallel>, #tpu.dimension_semantics<parallel>], iteration_bounds = array<i64: 2, 2>, scalar_prefetch = 0 : i64, scratch_operands = 0 : i64, tpu.core_type = #tpu.core_type<tc>, window_params = [{transform_indices = @transform_0, window_bounds = array<i64: 1, 4, 1024>}, {transform_indices = @transform_1, window_bounds = array<i64: 1, 4, 128>}, {transform_indices = @transform_2, window_bounds = array<i64: 1, 4, 128>}, {pipeline_mode = #tpu.pipeline_mode<synchronous>, transform_indices = @transform_3, window_bounds = array<i64: 4, 1>}, {pipeline_mode = #tpu.pipeline_mode<synchronous>, transform_indices = @transform_4, window_bounds = array<i64: 4, 1>}, {pipeline_mode = #tpu.pipeline_mode<synchronous>, transform_indices = @transform_5, window_bounds = array<i64: 9, 4, 4>}, {pipeline_mode = #tpu.pipeline_mode<synchronous>, transform_indices = @transform_6, window_bounds = array<i64: 1, 1280>}, {transform_indices = @transform_7, window_bounds = array<i64: 1, 4, 1024>}, {transform_indices = @transform_8, window_bounds = array<i64: 1, 1, 4, 1>}, {transform_indices = @transform_9, window_bounds = array<i64: 1, 1, 4, 1>}]} {
    %c0 = arith.constant 0 : index
    %c0_0 = arith.constant 0 : index
    %0 = vector.load %arg5[%c0, %c0_0] : memref<4x1xf32, #tpu.memory_space<vmem>>, vector<4x1xf32>
    %c0_1 = arith.constant 0 : index
    %c0_2 = arith.constant 0 : index
    %1 = vector.load %arg6[%c0_1, %c0_2] : memref<4x1xf32, #tpu.memory_space<vmem>>, vector<4x1xf32>
    %c0_3 = arith.constant 0 : index
    %c0_4 = arith.constant 0 : index
    %c0_5 = arith.constant 0 : index
    %2 = vector.load %arg3[%c0_3, %c0_4, %c0_5] : memref<1x4x128xbf16, #tpu.memory_space<vmem>>, vector<1x4x128xbf16>
    %3 = vector.shape_cast %2 : vector<1x4x128xbf16> to vector<4x128xbf16>
    %4 = arith.extf %3 : vector<4x128xbf16> to vector<4x128xf32>
    %5 = vector.broadcast %0 : vector<4x1xf32> to vector<4x128xf32>
    %6 = arith.mulf %4, %5 : vector<4x128xf32>
    %7 = vector.broadcast %1 : vector<4x1xf32> to vector<4x128xf32>
    %8 = arith.addf %6, %7 : vector<4x128xf32>
    %cst = arith.constant 0.000000e+00 : f32
    %9 = vector.broadcast %cst : f32 to vector<4x128xf32>
    %10 = arith.maximumf %8, %9 : vector<4x128xf32>
    %c0_i32 = arith.constant 0 : i32
    %11 = arith.cmpi sgt, %arg1, %c0_i32 : i32
    %12 = arith.extui %11 : i1 to i32
    %13 = arith.sitofp %12 : i32 to f32
    %14 = vector.broadcast %13 : f32 to vector<4x128xf32>
    %15 = arith.mulf %10, %14 : vector<4x128xf32>
    %c0_6 = arith.constant 0 : index
    %c0_7 = arith.constant 0 : index
    %c0_8 = arith.constant 0 : index
    %16 = vector.load %arg4[%c0_6, %c0_7, %c0_8] : memref<1x4x128xbf16, #tpu.memory_space<vmem>>, vector<1x4x128xbf16>
    %17 = vector.shape_cast %16 : vector<1x4x128xbf16> to vector<4x128xbf16>
    %18 = arith.extf %17 : vector<4x128xbf16> to vector<4x128xf32>
    %19 = vector.broadcast %0 : vector<4x1xf32> to vector<4x128xf32>
    %20 = arith.mulf %18, %19 : vector<4x128xf32>
    %21 = vector.broadcast %1 : vector<4x1xf32> to vector<4x128xf32>
    %22 = arith.addf %20, %21 : vector<4x128xf32>
    %cst_9 = arith.constant 0.000000e+00 : f32
    %23 = vector.broadcast %cst_9 : f32 to vector<4x128xf32>
    %24 = arith.maximumf %22, %23 : vector<4x128xf32>
    %c1_i32 = arith.constant 1 : i32
    %25 = arith.cmpi slt, %arg1, %c1_i32 : i32
    %26 = arith.extui %25 : i1 to i32
    %27 = arith.sitofp %26 : i32 to f32
    %28 = vector.broadcast %27 : f32 to vector<4x128xf32>
    %29 = arith.mulf %24, %28 : vector<4x128xf32>
    %c0_10 = arith.constant 0 : index
    %c0_11 = arith.constant 0 : index
    %c0_12 = arith.constant 0 : index
    %30 = vector.load %arg2[%c0_10, %c0_11, %c0_12] : memref<1x4x1024xbf16, #tpu.memory_space<vmem>>, vector<1x4x1024xbf16>
    %31 = vector.shape_cast %30 : vector<1x4x1024xbf16> to vector<4x1024xbf16>
    %32 = arith.extf %31 : vector<4x1024xbf16> to vector<4x1024xf32>
    %33 = vector.broadcast %0 : vector<4x1xf32> to vector<4x1024xf32>
    %34 = arith.mulf %32, %33 : vector<4x1024xf32>
    %35 = vector.broadcast %1 : vector<4x1xf32> to vector<4x1024xf32>
    %36 = arith.addf %34, %35 : vector<4x1024xf32>
    %cst_13 = arith.constant 0.000000e+00 : f32
    %37 = vector.broadcast %cst_13 : f32 to vector<4x1024xf32>
    %38 = arith.maximumf %36, %37 : vector<4x1024xf32>
    %39 = tpu.concatenate %15, %38, %29 in 1 : vector<4x128xf32>, vector<4x1024xf32>, vector<4x128xf32> -> vector<4x1280xf32>
    %c0_14 = arith.constant 0 : index
    %c0_15 = arith.constant 0 : index
    %40 = vector.load %arg8[%c0_14, %c0_15] : memref<1x1280xf32, #tpu.memory_space<vmem>>, vector<1x1280xf32>
    %41 = vector.broadcast %40 : vector<1x1280xf32> to vector<4x1280xf32>
    %42 = arith.mulf %39, %41 : vector<4x1280xf32>
    %43 = arith.truncf %42 : vector<4x1280xf32> to vector<4x1280xbf16>
    %cst_16 = arith.constant 0.000000e+00 : bf16
    %44 = vector.broadcast %cst_16 : bf16 to vector<4x128xbf16>
    %45 = tpu.concatenate %44, %43, %44 in 1 : vector<4x128xbf16>, vector<4x1280xbf16>, vector<4x128xbf16> -> vector<4x1536xbf16>
    %46 = vector.extract_strided_slice %45 {offsets = [0, 127], sizes = [4, 1280], strides = [1, 1]} : vector<4x1536xbf16> to vector<4x1280xbf16>
    %47 = vector.extract_strided_slice %45 {offsets = [0, 128], sizes = [4, 1280], strides = [1, 1]} : vector<4x1536xbf16> to vector<4x1280xbf16>
    %48 = vector.extract_strided_slice %45 {offsets = [0, 129], sizes = [4, 1280], strides = [1, 1]} : vector<4x1536xbf16> to vector<4x1280xbf16>
    %cst_17 = arith.constant 0.000000e+00 : f32
    %49 = vector.broadcast %cst_17 : f32 to vector<4x1024xf32>
    %c0_18 = arith.constant 0 : index
    %c0_19 = arith.constant 0 : index
    %c0_20 = arith.constant 0 : index
    %50 = vector.load %arg7[%c0_18, %c0_19, %c0_20] : memref<9x4x4xbf16, #tpu.memory_space<vmem>>, vector<1x4x4xbf16>
    %51 = vector.shape_cast %50 : vector<1x4x4xbf16> to vector<4x4xbf16>
    %52 = vector.extract_strided_slice %46 {offsets = [0, 0], sizes = [4, 1024], strides = [1, 1]} : vector<4x1280xbf16> to vector<4x1024xbf16>
    %cst_21 = arith.constant dense<0.000000e+00> : vector<4x1024xf32>
    %53 = tpu.matmul %51, %52, %cst_21 {dimension_numbers = #tpu.dot_dimension_numbers<[1], [0], [0], [1], [0, 0, 1, 1], [], []>} : vector<4x4xbf16>, vector<4x1024xbf16>, vector<4x1024xf32> -> vector<4x1024xf32>
    %54 = arith.addf %49, %53 : vector<4x1024xf32>
    %c1 = arith.constant 1 : index
    %c0_22 = arith.constant 0 : index
    %c0_23 = arith.constant 0 : index
    %55 = vector.load %arg7[%c1, %c0_22, %c0_23] : memref<9x4x4xbf16, #tpu.memory_space<vmem>>, vector<1x4x4xbf16>
    %56 = vector.shape_cast %55 : vector<1x4x4xbf16> to vector<4x4xbf16>
    %57 = vector.extract_strided_slice %47 {offsets = [0, 0], sizes = [4, 1024], strides = [1, 1]} : vector<4x1280xbf16> to vector<4x1024xbf16>
    %cst_24 = arith.constant dense<0.000000e+00> : vector<4x1024xf32>
    %58 = tpu.matmul %56, %57, %cst_24 {dimension_numbers = #tpu.dot_dimension_numbers<[1], [0], [0], [1], [0, 0, 1, 1], [], []>} : vector<4x4xbf16>, vector<4x1024xbf16>, vector<4x1024xf32> -> vector<4x1024xf32>
    %59 = arith.addf %54, %58 : vector<4x1024xf32>
    %c2 = arith.constant 2 : index
    %c0_25 = arith.constant 0 : index
    %c0_26 = arith.constant 0 : index
    %60 = vector.load %arg7[%c2, %c0_25, %c0_26] : memref<9x4x4xbf16, #tpu.memory_space<vmem>>, vector<1x4x4xbf16>
    %61 = vector.shape_cast %60 : vector<1x4x4xbf16> to vector<4x4xbf16>
    %62 = vector.extract_strided_slice %48 {offsets = [0, 0], sizes = [4, 1024], strides = [1, 1]} : vector<4x1280xbf16> to vector<4x1024xbf16>
    %cst_27 = arith.constant dense<0.000000e+00> : vector<4x1024xf32>
    %63 = tpu.matmul %61, %62, %cst_27 {dimension_numbers = #tpu.dot_dimension_numbers<[1], [0], [0], [1], [0, 0, 1, 1], [], []>} : vector<4x4xbf16>, vector<4x1024xbf16>, vector<4x1024xf32> -> vector<4x1024xf32>
    %64 = arith.addf %59, %63 : vector<4x1024xf32>
    %c3 = arith.constant 3 : index
    %c0_28 = arith.constant 0 : index
    %c0_29 = arith.constant 0 : index
    %65 = vector.load %arg7[%c3, %c0_28, %c0_29] : memref<9x4x4xbf16, #tpu.memory_space<vmem>>, vector<1x4x4xbf16>
    %66 = vector.shape_cast %65 : vector<1x4x4xbf16> to vector<4x4xbf16>
    %67 = vector.extract_strided_slice %46 {offsets = [0, 128], sizes = [4, 1024], strides = [1, 1]} : vector<4x1280xbf16> to vector<4x1024xbf16>
    %cst_30 = arith.constant dense<0.000000e+00> : vector<4x1024xf32>
    %68 = tpu.matmul %66, %67, %cst_30 {dimension_numbers = #tpu.dot_dimension_numbers<[1], [0], [0], [1], [0, 0, 1, 1], [], []>} : vector<4x4xbf16>, vector<4x1024xbf16>, vector<4x1024xf32> -> vector<4x1024xf32>
    %69 = arith.addf %64, %68 : vector<4x1024xf32>
    %c4 = arith.constant 4 : index
    %c0_31 = arith.constant 0 : index
    %c0_32 = arith.constant 0 : index
    %70 = vector.load %arg7[%c4, %c0_31, %c0_32] : memref<9x4x4xbf16, #tpu.memory_space<vmem>>, vector<1x4x4xbf16>
    %71 = vector.shape_cast %70 : vector<1x4x4xbf16> to vector<4x4xbf16>
    %72 = vector.extract_strided_slice %47 {offsets = [0, 128], sizes = [4, 1024], strides = [1, 1]} : vector<4x1280xbf16> to vector<4x1024xbf16>
    %cst_33 = arith.constant dense<0.000000e+00> : vector<4x1024xf32>
    %73 = tpu.matmul %71, %72, %cst_33 {dimension_numbers = #tpu.dot_dimension_numbers<[1], [0], [0], [1], [0, 0, 1, 1], [], []>} : vector<4x4xbf16>, vector<4x1024xbf16>, vector<4x1024xf32> -> vector<4x1024xf32>
    %74 = arith.addf %69, %73 : vector<4x1024xf32>
    %c5 = arith.constant 5 : index
    %c0_34 = arith.constant 0 : index
    %c0_35 = arith.constant 0 : index
    %75 = vector.load %arg7[%c5, %c0_34, %c0_35] : memref<9x4x4xbf16, #tpu.memory_space<vmem>>, vector<1x4x4xbf16>
    %76 = vector.shape_cast %75 : vector<1x4x4xbf16> to vector<4x4xbf16>
    %77 = vector.extract_strided_slice %48 {offsets = [0, 128], sizes = [4, 1024], strides = [1, 1]} : vector<4x1280xbf16> to vector<4x1024xbf16>
    %cst_36 = arith.constant dense<0.000000e+00> : vector<4x1024xf32>
    %78 = tpu.matmul %76, %77, %cst_36 {dimension_numbers = #tpu.dot_dimension_numbers<[1], [0], [0], [1], [0, 0, 1, 1], [], []>} : vector<4x4xbf16>, vector<4x1024xbf16>, vector<4x1024xf32> -> vector<4x1024xf32>
    %79 = arith.addf %74, %78 : vector<4x1024xf32>
    %c6 = arith.constant 6 : index
    %c0_37 = arith.constant 0 : index
    %c0_38 = arith.constant 0 : index
    %80 = vector.load %arg7[%c6, %c0_37, %c0_38] : memref<9x4x4xbf16, #tpu.memory_space<vmem>>, vector<1x4x4xbf16>
    %81 = vector.shape_cast %80 : vector<1x4x4xbf16> to vector<4x4xbf16>
    %82 = vector.extract_strided_slice %46 {offsets = [0, 256], sizes = [4, 1024], strides = [1, 1]} : vector<4x1280xbf16> to vector<4x1024xbf16>
    %cst_39 = arith.constant dense<0.000000e+00> : vector<4x1024xf32>
    %83 = tpu.matmul %81, %82, %cst_39 {dimension_numbers = #tpu.dot_dimension_numbers<[1], [0], [0], [1], [0, 0, 1, 1], [], []>} : vector<4x4xbf16>, vector<4x1024xbf16>, vector<4x1024xf32> -> vector<4x1024xf32>
    %84 = arith.addf %79, %83 : vector<4x1024xf32>
    %c7 = arith.constant 7 : index
    %c0_40 = arith.constant 0 : index
    %c0_41 = arith.constant 0 : index
    %85 = vector.load %arg7[%c7, %c0_40, %c0_41] : memref<9x4x4xbf16, #tpu.memory_space<vmem>>, vector<1x4x4xbf16>
    %86 = vector.shape_cast %85 : vector<1x4x4xbf16> to vector<4x4xbf16>
    %87 = vector.extract_strided_slice %47 {offsets = [0, 256], sizes = [4, 1024], strides = [1, 1]} : vector<4x1280xbf16> to vector<4x1024xbf16>
    %cst_42 = arith.constant dense<0.000000e+00> : vector<4x1024xf32>
    %88 = tpu.matmul %86, %87, %cst_42 {dimension_numbers = #tpu.dot_dimension_numbers<[1], [0], [0], [1], [0, 0, 1, 1], [], []>} : vector<4x4xbf16>, vector<4x1024xbf16>, vector<4x1024xf32> -> vector<4x1024xf32>
    %89 = arith.addf %84, %88 : vector<4x1024xf32>
    %c8 = arith.constant 8 : index
    %c0_43 = arith.constant 0 : index
    %c0_44 = arith.constant 0 : index
    %90 = vector.load %arg7[%c8, %c0_43, %c0_44] : memref<9x4x4xbf16, #tpu.memory_space<vmem>>, vector<1x4x4xbf16>
    %91 = vector.shape_cast %90 : vector<1x4x4xbf16> to vector<4x4xbf16>
    %92 = vector.extract_strided_slice %48 {offsets = [0, 256], sizes = [4, 1024], strides = [1, 1]} : vector<4x1280xbf16> to vector<4x1024xbf16>
    %cst_45 = arith.constant dense<0.000000e+00> : vector<4x1024xf32>
    %93 = tpu.matmul %91, %92, %cst_45 {dimension_numbers = #tpu.dot_dimension_numbers<[1], [0], [0], [1], [0, 0, 1, 1], [], []>} : vector<4x4xbf16>, vector<4x1024xbf16>, vector<4x1024xf32> -> vector<4x1024xf32>
    %94 = arith.addf %89, %93 : vector<4x1024xf32>
    %c0_46 = arith.constant 0 : index
    %c128 = arith.constant 128 : index
    %95 = vector.load %arg8[%c0_46, %c128] : memref<1x1280xf32, #tpu.memory_space<vmem>>, vector<1x1024xf32>
    %96 = vector.broadcast %95 : vector<1x1024xf32> to vector<4x1024xf32>
    %97 = arith.mulf %94, %96 : vector<4x1024xf32>
    %98 = arith.truncf %97 : vector<4x1024xf32> to vector<4x1024xbf16>
    %c0_47 = arith.constant 0 : index
    %c0_48 = arith.constant 0 : index
    %c0_49 = arith.constant 0 : index
    %99 = vector.load %arg9[%c0_47, %c0_48, %c0_49] : memref<1x4x1024xbf16, #tpu.memory_space<vmem>>, vector<1x4x1024xbf16>
    %100 = vector.shape_cast %99 : vector<1x4x1024xbf16> to vector<4x1024xbf16>
    %101 = vector.shape_cast %98 : vector<4x1024xbf16> to vector<1x4x1024xbf16>
    tpu.vector_store %arg9[%c0_47, %c0_48, %c0_49], %101 {strides = array<i32>} : memref<1x4x1024xbf16, #tpu.memory_space<vmem>>, vector<1x4x1024xbf16>,
    %cst_50 = arith.constant dense<0.000000e+00> : vector<4xf32>
    %102 = vector.multi_reduction <add>, %97, %cst_50 [1] : vector<4x1024xf32> to vector<4xf32>
    %103 = vector.shape_cast %102 : vector<4xf32> to vector<4x1xf32>
    %c0_51 = arith.constant 0 : index
    %c0_52 = arith.constant 0 : index
    %c0_53 = arith.constant 0 : index
    %c0_54 = arith.constant 0 : index
    %104 = vector.load %arg10[%c0_51, %c0_52, %c0_53, %c0_54] : memref<1x1x4x1xf32, #tpu.memory_space<vmem>>, vector<1x1x4x1xf32>
    %105 = vector.shape_cast %104 : vector<1x1x4x1xf32> to vector<4x1xf32>
    %106 = vector.shape_cast %103 : vector<4x1xf32> to vector<1x1x4x1xf32>
    tpu.vector_store %arg10[%c0_51, %c0_52, %c0_53, %c0_54], %106 {strides = array<i32>} : memref<1x1x4x1xf32, #tpu.memory_space<vmem>>, vector<1x1x4x1xf32>,
    %107 = arith.mulf %97, %94 : vector<4x1024xf32>
    %cst_55 = arith.constant dense<0.000000e+00> : vector<4xf32>
    %108 = vector.multi_reduction <add>, %107, %cst_55 [1] : vector<4x1024xf32> to vector<4xf32>
    %109 = vector.shape_cast %108 : vector<4xf32> to vector<4x1xf32>
    %c0_56 = arith.constant 0 : index
    %c0_57 = arith.constant 0 : index
    %c0_58 = arith.constant 0 : index
    %c0_59 = arith.constant 0 : index
    %110 = vector.load %arg11[%c0_56, %c0_57, %c0_58, %c0_59] : memref<1x1x4x1xf32, #tpu.memory_space<vmem>>, vector<1x1x4x1xf32>
    %111 = vector.shape_cast %110 : vector<1x1x4x1xf32> to vector<4x1xf32>
    %112 = vector.shape_cast %109 : vector<4x1xf32> to vector<1x1x4x1xf32>
    tpu.vector_store %arg11[%c0_56, %c0_57, %c0_58, %c0_59], %112 {strides = array<i32>} : memref<1x1x4x1xf32, #tpu.memory_space<vmem>>, vector<1x1x4x1xf32>,
    return
  }
  func.func @transform_0(%arg0: i32, %arg1: i32) -> (i32, i32, i32) {
    %c0_i32 = arith.constant 0 : i32
    %c0_i32_0 = arith.constant 0 : i32
    return %arg0, %c0_i32, %arg1 : i32, i32, i32
  }
  func.func @transform_1(%arg0: i32, %arg1: i32) -> (i32, i32, i32) {
    %c8_i32 = arith.constant 8 : i32
    %0 = arith.muli %arg1, %c8_i32 : i32
    %c1_i32 = arith.constant 1 : i32
    %1 = arith.subi %0, %c1_i32 : i32
    %c0_i32 = arith.constant 0 : i32
    %2 = arith.maxsi %1, %c0_i32 : i32
    %c0_i32_0 = arith.constant 0 : i32
    %c0_i32_1 = arith.constant 0 : i32
    return %arg0, %c0_i32_0, %2 : i32, i32, i32
  }
  func.func @transform_2(%arg0: i32, %arg1: i32) -> (i32, i32, i32) {
    %c1_i32 = arith.constant 1 : i32
    %0 = arith.addi %arg1, %c1_i32 : i32
    %c8_i32 = arith.constant 8 : i32
    %1 = arith.muli %0, %c8_i32 : i32
    %c15_i32 = arith.constant 15 : i32
    %2 = arith.minsi %1, %c15_i32 : i32
    %c0_i32 = arith.constant 0 : i32
    %c0_i32_0 = arith.constant 0 : i32
    return %arg0, %c0_i32, %2 : i32, i32, i32
  }
  func.func @transform_3(%arg0: i32, %arg1: i32) -> (i32, i32) {
    %c0_i32 = arith.constant 0 : i32
    %c0_i32_0 = arith.constant 0 : i32
    %c0_i32_1 = arith.constant 0 : i32
    return %c0_i32, %c0_i32_0 : i32, i32
  }
  func.func @transform_4(%arg0: i32, %arg1: i32) -> (i32, i32) {
    %c0_i32 = arith.constant 0 : i32
    %c0_i32_0 = arith.constant 0 : i32
    %c0_i32_1 = arith.constant 0 : i32
    return %c0_i32, %c0_i32_0 : i32, i32
  }
  func.func @transform_5(%arg0: i32, %arg1: i32) -> (i32, i32, i32) {
    %c0_i32 = arith.constant 0 : i32
    %c0_i32_0 = arith.constant 0 : i32
    %c0_i32_1 = arith.constant 0 : i32
    %c0_i32_2 = arith.constant 0 : i32
    return %c0_i32, %c0_i32_0, %c0_i32_1 : i32, i32, i32
  }
  func.func @transform_6(%arg0: i32, %arg1: i32) -> (i32, i32) {
    %c0_i32 = arith.constant 0 : i32
    %c0_i32_0 = arith.constant 0 : i32
    %c0_i32_1 = arith.constant 0 : i32
    return %c0_i32, %c0_i32_0 : i32, i32
  }
  func.func @transform_7(%arg0: i32, %arg1: i32) -> (i32, i32, i32) {
    %c0_i32 = arith.constant 0 : i32
    %c0_i32_0 = arith.constant 0 : i32
    return %arg0, %c0_i32, %arg1 : i32, i32, i32
  }
  func.func @transform_8(%arg0: i32, %arg1: i32) -> (i32, i32, i32, i32) {
    %c0_i32 = arith.constant 0 : i32
    %c0_i32_0 = arith.constant 0 : i32
    %c0_i32_1 = arith.constant 0 : i32
    return %arg0, %arg1, %c0_i32, %c0_i32_0 : i32, i32, i32, i32
  }
  func.func @transform_9(%arg0: i32, %arg1: i32) -> (i32, i32, i32, i32) {
    %c0_i32 = arith.constant 0 : i32
    %c0_i32_0 = arith.constant 0 : i32
    %c0_i32_1 = arith.constant 0 : i32
    return %arg0, %arg1, %c0_i32, %c0_i32_0 : i32, i32, i32, i32
  }
}

module attributes {stable_mosaic.version = 11 : i64} {
  func.func @kernel(%arg0: i32, %arg1: i32, %arg2: memref<1x4x1024xbf16, #tpu.memory_space<vmem>>, %arg3: memref<1x4x128xbf16, #tpu.memory_space<vmem>>, %arg4: memref<1x4x128xbf16, #tpu.memory_space<vmem>>, %arg5: memref<1x4x1024xbf16, #tpu.memory_space<vmem>>, %arg6: memref<1x4x128xbf16, #tpu.memory_space<vmem>>, %arg7: memref<1x4x128xbf16, #tpu.memory_space<vmem>>, %arg8: memref<9x4x4xbf16, #tpu.memory_space<vmem>>, %arg9: memref<9x4x4xbf16, #tpu.memory_space<vmem>>, %arg10: memref<1x1280xf32, #tpu.memory_space<vmem>>, %arg11: memref<1x4x1024xbf16, #tpu.memory_space<vmem>>, %arg12: memref<1x1x4x1xf32, #tpu.memory_space<vmem>>, %arg13: memref<1x1x4x1xf32, #tpu.memory_space<vmem>>) attributes {dimension_semantics = [#tpu.dimension_semantics<parallel>, #tpu.dimension_semantics<parallel>], iteration_bounds = array<i64: 2, 2>, scalar_prefetch = 0 : i64, scratch_operands = 0 : i64, tpu.core_type = #tpu.core_type<tc>, window_params = [{transform_indices = @transform_0, window_bounds = array<i64: 1, 4, 1024>}, {transform_indices = @transform_1, window_bounds = array<i64: 1, 4, 128>}, {transform_indices = @transform_2, window_bounds = array<i64: 1, 4, 128>}, {transform_indices = @transform_3, window_bounds = array<i64: 1, 4, 1024>}, {transform_indices = @transform_4, window_bounds = array<i64: 1, 4, 128>}, {transform_indices = @transform_5, window_bounds = array<i64: 1, 4, 128>}, {pipeline_mode = #tpu.pipeline_mode<synchronous>, transform_indices = @transform_6, window_bounds = array<i64: 9, 4, 4>}, {pipeline_mode = #tpu.pipeline_mode<synchronous>, transform_indices = @transform_7, window_bounds = array<i64: 9, 4, 4>}, {pipeline_mode = #tpu.pipeline_mode<synchronous>, transform_indices = @transform_8, window_bounds = array<i64: 1, 1280>}, {transform_indices = @transform_9, window_bounds = array<i64: 1, 4, 1024>}, {transform_indices = @transform_10, window_bounds = array<i64: 1, 1, 4, 1>}, {transform_indices = @transform_11, window_bounds = array<i64: 1, 1, 4, 1>}]} {
    %c0 = arith.constant 0 : index
    %c0_0 = arith.constant 0 : index
    %c0_1 = arith.constant 0 : index
    %0 = vector.load %arg3[%c0, %c0_0, %c0_1] : memref<1x4x128xbf16, #tpu.memory_space<vmem>>, vector<1x4x128xbf16>
    %1 = vector.shape_cast %0 : vector<1x4x128xbf16> to vector<4x128xbf16>
    %c0_i32 = arith.constant 0 : i32
    %2 = arith.cmpi sgt, %arg1, %c0_i32 : i32
    %3 = arith.extui %2 : i1 to i32
    %4 = arith.sitofp %3 : i32 to f32
    %5 = arith.truncf %4 : f32 to bf16
    %6 = vector.broadcast %5 : bf16 to vector<4x128xbf16>
    %7 = arith.mulf %1, %6 : vector<4x128xbf16>
    %c0_2 = arith.constant 0 : index
    %c0_3 = arith.constant 0 : index
    %c0_4 = arith.constant 0 : index
    %8 = vector.load %arg4[%c0_2, %c0_3, %c0_4] : memref<1x4x128xbf16, #tpu.memory_space<vmem>>, vector<1x4x128xbf16>
    %9 = vector.shape_cast %8 : vector<1x4x128xbf16> to vector<4x128xbf16>
    %c1_i32 = arith.constant 1 : i32
    %10 = arith.cmpi slt, %arg1, %c1_i32 : i32
    %11 = arith.extui %10 : i1 to i32
    %12 = arith.sitofp %11 : i32 to f32
    %13 = arith.truncf %12 : f32 to bf16
    %14 = vector.broadcast %13 : bf16 to vector<4x128xbf16>
    %15 = arith.mulf %9, %14 : vector<4x128xbf16>
    %c0_5 = arith.constant 0 : index
    %c0_6 = arith.constant 0 : index
    %c0_7 = arith.constant 0 : index
    %16 = vector.load %arg2[%c0_5, %c0_6, %c0_7] : memref<1x4x1024xbf16, #tpu.memory_space<vmem>>, vector<1x4x1024xbf16>
    %17 = vector.shape_cast %16 : vector<1x4x1024xbf16> to vector<4x1024xbf16>
    %18 = tpu.concatenate %7, %17, %15 in 1 : vector<4x128xbf16>, vector<4x1024xbf16>, vector<4x128xbf16> -> vector<4x1280xbf16>
    %cst = arith.constant 0.000000e+00 : bf16
    %19 = vector.broadcast %cst : bf16 to vector<4x128xbf16>
    %20 = tpu.concatenate %19, %18, %19 in 1 : vector<4x128xbf16>, vector<4x1280xbf16>, vector<4x128xbf16> -> vector<4x1536xbf16>
    %21 = vector.extract_strided_slice %20 {offsets = [0, 127], sizes = [4, 1280], strides = [1, 1]} : vector<4x1536xbf16> to vector<4x1280xbf16>
    %22 = vector.extract_strided_slice %20 {offsets = [0, 128], sizes = [4, 1280], strides = [1, 1]} : vector<4x1536xbf16> to vector<4x1280xbf16>
    %23 = vector.extract_strided_slice %20 {offsets = [0, 129], sizes = [4, 1280], strides = [1, 1]} : vector<4x1536xbf16> to vector<4x1280xbf16>
    %cst_8 = arith.constant 0.000000e+00 : f32
    %24 = vector.broadcast %cst_8 : f32 to vector<4x1024xf32>
    %c0_9 = arith.constant 0 : index
    %c0_10 = arith.constant 0 : index
    %c0_11 = arith.constant 0 : index
    %25 = vector.load %arg8[%c0_9, %c0_10, %c0_11] : memref<9x4x4xbf16, #tpu.memory_space<vmem>>, vector<1x4x4xbf16>
    %26 = vector.shape_cast %25 : vector<1x4x4xbf16> to vector<4x4xbf16>
    %27 = vector.extract_strided_slice %21 {offsets = [0, 0], sizes = [4, 1024], strides = [1, 1]} : vector<4x1280xbf16> to vector<4x1024xbf16>
    %cst_12 = arith.constant dense<0.000000e+00> : vector<4x1024xf32>
    %28 = tpu.matmul %26, %27, %cst_12 {dimension_numbers = #tpu.dot_dimension_numbers<[1], [0], [0], [1], [0, 0, 1, 1], [], []>} : vector<4x4xbf16>, vector<4x1024xbf16>, vector<4x1024xf32> -> vector<4x1024xf32>
    %29 = arith.addf %24, %28 : vector<4x1024xf32>
    %c1 = arith.constant 1 : index
    %c0_13 = arith.constant 0 : index
    %c0_14 = arith.constant 0 : index
    %30 = vector.load %arg8[%c1, %c0_13, %c0_14] : memref<9x4x4xbf16, #tpu.memory_space<vmem>>, vector<1x4x4xbf16>
    %31 = vector.shape_cast %30 : vector<1x4x4xbf16> to vector<4x4xbf16>
    %32 = vector.extract_strided_slice %22 {offsets = [0, 0], sizes = [4, 1024], strides = [1, 1]} : vector<4x1280xbf16> to vector<4x1024xbf16>
    %cst_15 = arith.constant dense<0.000000e+00> : vector<4x1024xf32>
    %33 = tpu.matmul %31, %32, %cst_15 {dimension_numbers = #tpu.dot_dimension_numbers<[1], [0], [0], [1], [0, 0, 1, 1], [], []>} : vector<4x4xbf16>, vector<4x1024xbf16>, vector<4x1024xf32> -> vector<4x1024xf32>
    %34 = arith.addf %29, %33 : vector<4x1024xf32>
    %c2 = arith.constant 2 : index
    %c0_16 = arith.constant 0 : index
    %c0_17 = arith.constant 0 : index
    %35 = vector.load %arg8[%c2, %c0_16, %c0_17] : memref<9x4x4xbf16, #tpu.memory_space<vmem>>, vector<1x4x4xbf16>
    %36 = vector.shape_cast %35 : vector<1x4x4xbf16> to vector<4x4xbf16>
    %37 = vector.extract_strided_slice %23 {offsets = [0, 0], sizes = [4, 1024], strides = [1, 1]} : vector<4x1280xbf16> to vector<4x1024xbf16>
    %cst_18 = arith.constant dense<0.000000e+00> : vector<4x1024xf32>
    %38 = tpu.matmul %36, %37, %cst_18 {dimension_numbers = #tpu.dot_dimension_numbers<[1], [0], [0], [1], [0, 0, 1, 1], [], []>} : vector<4x4xbf16>, vector<4x1024xbf16>, vector<4x1024xf32> -> vector<4x1024xf32>
    %39 = arith.addf %34, %38 : vector<4x1024xf32>
    %c3 = arith.constant 3 : index
    %c0_19 = arith.constant 0 : index
    %c0_20 = arith.constant 0 : index
    %40 = vector.load %arg8[%c3, %c0_19, %c0_20] : memref<9x4x4xbf16, #tpu.memory_space<vmem>>, vector<1x4x4xbf16>
    %41 = vector.shape_cast %40 : vector<1x4x4xbf16> to vector<4x4xbf16>
    %42 = vector.extract_strided_slice %21 {offsets = [0, 128], sizes = [4, 1024], strides = [1, 1]} : vector<4x1280xbf16> to vector<4x1024xbf16>
    %cst_21 = arith.constant dense<0.000000e+00> : vector<4x1024xf32>
    %43 = tpu.matmul %41, %42, %cst_21 {dimension_numbers = #tpu.dot_dimension_numbers<[1], [0], [0], [1], [0, 0, 1, 1], [], []>} : vector<4x4xbf16>, vector<4x1024xbf16>, vector<4x1024xf32> -> vector<4x1024xf32>
    %44 = arith.addf %39, %43 : vector<4x1024xf32>
    %c4 = arith.constant 4 : index
    %c0_22 = arith.constant 0 : index
    %c0_23 = arith.constant 0 : index
    %45 = vector.load %arg8[%c4, %c0_22, %c0_23] : memref<9x4x4xbf16, #tpu.memory_space<vmem>>, vector<1x4x4xbf16>
    %46 = vector.shape_cast %45 : vector<1x4x4xbf16> to vector<4x4xbf16>
    %47 = vector.extract_strided_slice %22 {offsets = [0, 128], sizes = [4, 1024], strides = [1, 1]} : vector<4x1280xbf16> to vector<4x1024xbf16>
    %cst_24 = arith.constant dense<0.000000e+00> : vector<4x1024xf32>
    %48 = tpu.matmul %46, %47, %cst_24 {dimension_numbers = #tpu.dot_dimension_numbers<[1], [0], [0], [1], [0, 0, 1, 1], [], []>} : vector<4x4xbf16>, vector<4x1024xbf16>, vector<4x1024xf32> -> vector<4x1024xf32>
    %49 = arith.addf %44, %48 : vector<4x1024xf32>
    %c5 = arith.constant 5 : index
    %c0_25 = arith.constant 0 : index
    %c0_26 = arith.constant 0 : index
    %50 = vector.load %arg8[%c5, %c0_25, %c0_26] : memref<9x4x4xbf16, #tpu.memory_space<vmem>>, vector<1x4x4xbf16>
    %51 = vector.shape_cast %50 : vector<1x4x4xbf16> to vector<4x4xbf16>
    %52 = vector.extract_strided_slice %23 {offsets = [0, 128], sizes = [4, 1024], strides = [1, 1]} : vector<4x1280xbf16> to vector<4x1024xbf16>
    %cst_27 = arith.constant dense<0.000000e+00> : vector<4x1024xf32>
    %53 = tpu.matmul %51, %52, %cst_27 {dimension_numbers = #tpu.dot_dimension_numbers<[1], [0], [0], [1], [0, 0, 1, 1], [], []>} : vector<4x4xbf16>, vector<4x1024xbf16>, vector<4x1024xf32> -> vector<4x1024xf32>
    %54 = arith.addf %49, %53 : vector<4x1024xf32>
    %c6 = arith.constant 6 : index
    %c0_28 = arith.constant 0 : index
    %c0_29 = arith.constant 0 : index
    %55 = vector.load %arg8[%c6, %c0_28, %c0_29] : memref<9x4x4xbf16, #tpu.memory_space<vmem>>, vector<1x4x4xbf16>
    %56 = vector.shape_cast %55 : vector<1x4x4xbf16> to vector<4x4xbf16>
    %57 = vector.extract_strided_slice %21 {offsets = [0, 256], sizes = [4, 1024], strides = [1, 1]} : vector<4x1280xbf16> to vector<4x1024xbf16>
    %cst_30 = arith.constant dense<0.000000e+00> : vector<4x1024xf32>
    %58 = tpu.matmul %56, %57, %cst_30 {dimension_numbers = #tpu.dot_dimension_numbers<[1], [0], [0], [1], [0, 0, 1, 1], [], []>} : vector<4x4xbf16>, vector<4x1024xbf16>, vector<4x1024xf32> -> vector<4x1024xf32>
    %59 = arith.addf %54, %58 : vector<4x1024xf32>
    %c7 = arith.constant 7 : index
    %c0_31 = arith.constant 0 : index
    %c0_32 = arith.constant 0 : index
    %60 = vector.load %arg8[%c7, %c0_31, %c0_32] : memref<9x4x4xbf16, #tpu.memory_space<vmem>>, vector<1x4x4xbf16>
    %61 = vector.shape_cast %60 : vector<1x4x4xbf16> to vector<4x4xbf16>
    %62 = vector.extract_strided_slice %22 {offsets = [0, 256], sizes = [4, 1024], strides = [1, 1]} : vector<4x1280xbf16> to vector<4x1024xbf16>
    %cst_33 = arith.constant dense<0.000000e+00> : vector<4x1024xf32>
    %63 = tpu.matmul %61, %62, %cst_33 {dimension_numbers = #tpu.dot_dimension_numbers<[1], [0], [0], [1], [0, 0, 1, 1], [], []>} : vector<4x4xbf16>, vector<4x1024xbf16>, vector<4x1024xf32> -> vector<4x1024xf32>
    %64 = arith.addf %59, %63 : vector<4x1024xf32>
    %c8 = arith.constant 8 : index
    %c0_34 = arith.constant 0 : index
    %c0_35 = arith.constant 0 : index
    %65 = vector.load %arg8[%c8, %c0_34, %c0_35] : memref<9x4x4xbf16, #tpu.memory_space<vmem>>, vector<1x4x4xbf16>
    %66 = vector.shape_cast %65 : vector<1x4x4xbf16> to vector<4x4xbf16>
    %67 = vector.extract_strided_slice %23 {offsets = [0, 256], sizes = [4, 1024], strides = [1, 1]} : vector<4x1280xbf16> to vector<4x1024xbf16>
    %cst_36 = arith.constant dense<0.000000e+00> : vector<4x1024xf32>
    %68 = tpu.matmul %66, %67, %cst_36 {dimension_numbers = #tpu.dot_dimension_numbers<[1], [0], [0], [1], [0, 0, 1, 1], [], []>} : vector<4x4xbf16>, vector<4x1024xbf16>, vector<4x1024xf32> -> vector<4x1024xf32>
    %69 = arith.addf %64, %68 : vector<4x1024xf32>
    %c0_37 = arith.constant 0 : index
    %c0_38 = arith.constant 0 : index
    %c0_39 = arith.constant 0 : index
    %70 = vector.load %arg6[%c0_37, %c0_38, %c0_39] : memref<1x4x128xbf16, #tpu.memory_space<vmem>>, vector<1x4x128xbf16>
    %71 = vector.shape_cast %70 : vector<1x4x128xbf16> to vector<4x128xbf16>
    %c0_i32_40 = arith.constant 0 : i32
    %72 = arith.cmpi sgt, %arg1, %c0_i32_40 : i32
    %73 = arith.extui %72 : i1 to i32
    %74 = arith.sitofp %73 : i32 to f32
    %75 = arith.truncf %74 : f32 to bf16
    %76 = vector.broadcast %75 : bf16 to vector<4x128xbf16>
    %77 = arith.mulf %71, %76 : vector<4x128xbf16>
    %c0_41 = arith.constant 0 : index
    %c0_42 = arith.constant 0 : index
    %c0_43 = arith.constant 0 : index
    %78 = vector.load %arg7[%c0_41, %c0_42, %c0_43] : memref<1x4x128xbf16, #tpu.memory_space<vmem>>, vector<1x4x128xbf16>
    %79 = vector.shape_cast %78 : vector<1x4x128xbf16> to vector<4x128xbf16>
    %c1_i32_44 = arith.constant 1 : i32
    %80 = arith.cmpi slt, %arg1, %c1_i32_44 : i32
    %81 = arith.extui %80 : i1 to i32
    %82 = arith.sitofp %81 : i32 to f32
    %83 = arith.truncf %82 : f32 to bf16
    %84 = vector.broadcast %83 : bf16 to vector<4x128xbf16>
    %85 = arith.mulf %79, %84 : vector<4x128xbf16>
    %c0_45 = arith.constant 0 : index
    %c0_46 = arith.constant 0 : index
    %c0_47 = arith.constant 0 : index
    %86 = vector.load %arg5[%c0_45, %c0_46, %c0_47] : memref<1x4x1024xbf16, #tpu.memory_space<vmem>>, vector<1x4x1024xbf16>
    %87 = vector.shape_cast %86 : vector<1x4x1024xbf16> to vector<4x1024xbf16>
    %88 = tpu.concatenate %77, %87, %85 in 1 : vector<4x128xbf16>, vector<4x1024xbf16>, vector<4x128xbf16> -> vector<4x1280xbf16>
    %cst_48 = arith.constant 0.000000e+00 : bf16
    %89 = vector.broadcast %cst_48 : bf16 to vector<4x128xbf16>
    %90 = tpu.concatenate %89, %88, %89 in 1 : vector<4x128xbf16>, vector<4x1280xbf16>, vector<4x128xbf16> -> vector<4x1536xbf16>
    %91 = vector.extract_strided_slice %90 {offsets = [0, 127], sizes = [4, 1280], strides = [1, 1]} : vector<4x1536xbf16> to vector<4x1280xbf16>
    %92 = vector.extract_strided_slice %90 {offsets = [0, 128], sizes = [4, 1280], strides = [1, 1]} : vector<4x1536xbf16> to vector<4x1280xbf16>
    %93 = vector.extract_strided_slice %90 {offsets = [0, 129], sizes = [4, 1280], strides = [1, 1]} : vector<4x1536xbf16> to vector<4x1280xbf16>
    %cst_49 = arith.constant 0.000000e+00 : f32
    %94 = vector.broadcast %cst_49 : f32 to vector<4x1024xf32>
    %c0_50 = arith.constant 0 : index
    %c0_51 = arith.constant 0 : index
    %c0_52 = arith.constant 0 : index
    %95 = vector.load %arg9[%c0_50, %c0_51, %c0_52] : memref<9x4x4xbf16, #tpu.memory_space<vmem>>, vector<1x4x4xbf16>
    %96 = vector.shape_cast %95 : vector<1x4x4xbf16> to vector<4x4xbf16>
    %97 = vector.extract_strided_slice %91 {offsets = [0, 0], sizes = [4, 1024], strides = [1, 1]} : vector<4x1280xbf16> to vector<4x1024xbf16>
    %cst_53 = arith.constant dense<0.000000e+00> : vector<4x1024xf32>
    %98 = tpu.matmul %96, %97, %cst_53 {dimension_numbers = #tpu.dot_dimension_numbers<[1], [0], [0], [1], [0, 0, 1, 1], [], []>} : vector<4x4xbf16>, vector<4x1024xbf16>, vector<4x1024xf32> -> vector<4x1024xf32>
    %99 = arith.addf %94, %98 : vector<4x1024xf32>
    %c1_54 = arith.constant 1 : index
    %c0_55 = arith.constant 0 : index
    %c0_56 = arith.constant 0 : index
    %100 = vector.load %arg9[%c1_54, %c0_55, %c0_56] : memref<9x4x4xbf16, #tpu.memory_space<vmem>>, vector<1x4x4xbf16>
    %101 = vector.shape_cast %100 : vector<1x4x4xbf16> to vector<4x4xbf16>
    %102 = vector.extract_strided_slice %92 {offsets = [0, 0], sizes = [4, 1024], strides = [1, 1]} : vector<4x1280xbf16> to vector<4x1024xbf16>
    %cst_57 = arith.constant dense<0.000000e+00> : vector<4x1024xf32>
    %103 = tpu.matmul %101, %102, %cst_57 {dimension_numbers = #tpu.dot_dimension_numbers<[1], [0], [0], [1], [0, 0, 1, 1], [], []>} : vector<4x4xbf16>, vector<4x1024xbf16>, vector<4x1024xf32> -> vector<4x1024xf32>
    %104 = arith.addf %99, %103 : vector<4x1024xf32>
    %c2_58 = arith.constant 2 : index
    %c0_59 = arith.constant 0 : index
    %c0_60 = arith.constant 0 : index
    %105 = vector.load %arg9[%c2_58, %c0_59, %c0_60] : memref<9x4x4xbf16, #tpu.memory_space<vmem>>, vector<1x4x4xbf16>
    %106 = vector.shape_cast %105 : vector<1x4x4xbf16> to vector<4x4xbf16>
    %107 = vector.extract_strided_slice %93 {offsets = [0, 0], sizes = [4, 1024], strides = [1, 1]} : vector<4x1280xbf16> to vector<4x1024xbf16>
    %cst_61 = arith.constant dense<0.000000e+00> : vector<4x1024xf32>
    %108 = tpu.matmul %106, %107, %cst_61 {dimension_numbers = #tpu.dot_dimension_numbers<[1], [0], [0], [1], [0, 0, 1, 1], [], []>} : vector<4x4xbf16>, vector<4x1024xbf16>, vector<4x1024xf32> -> vector<4x1024xf32>
    %109 = arith.addf %104, %108 : vector<4x1024xf32>
    %c3_62 = arith.constant 3 : index
    %c0_63 = arith.constant 0 : index
    %c0_64 = arith.constant 0 : index
    %110 = vector.load %arg9[%c3_62, %c0_63, %c0_64] : memref<9x4x4xbf16, #tpu.memory_space<vmem>>, vector<1x4x4xbf16>
    %111 = vector.shape_cast %110 : vector<1x4x4xbf16> to vector<4x4xbf16>
    %112 = vector.extract_strided_slice %91 {offsets = [0, 128], sizes = [4, 1024], strides = [1, 1]} : vector<4x1280xbf16> to vector<4x1024xbf16>
    %cst_65 = arith.constant dense<0.000000e+00> : vector<4x1024xf32>
    %113 = tpu.matmul %111, %112, %cst_65 {dimension_numbers = #tpu.dot_dimension_numbers<[1], [0], [0], [1], [0, 0, 1, 1], [], []>} : vector<4x4xbf16>, vector<4x1024xbf16>, vector<4x1024xf32> -> vector<4x1024xf32>
    %114 = arith.addf %109, %113 : vector<4x1024xf32>
    %c4_66 = arith.constant 4 : index
    %c0_67 = arith.constant 0 : index
    %c0_68 = arith.constant 0 : index
    %115 = vector.load %arg9[%c4_66, %c0_67, %c0_68] : memref<9x4x4xbf16, #tpu.memory_space<vmem>>, vector<1x4x4xbf16>
    %116 = vector.shape_cast %115 : vector<1x4x4xbf16> to vector<4x4xbf16>
    %117 = vector.extract_strided_slice %92 {offsets = [0, 128], sizes = [4, 1024], strides = [1, 1]} : vector<4x1280xbf16> to vector<4x1024xbf16>
    %cst_69 = arith.constant dense<0.000000e+00> : vector<4x1024xf32>
    %118 = tpu.matmul %116, %117, %cst_69 {dimension_numbers = #tpu.dot_dimension_numbers<[1], [0], [0], [1], [0, 0, 1, 1], [], []>} : vector<4x4xbf16>, vector<4x1024xbf16>, vector<4x1024xf32> -> vector<4x1024xf32>
    %119 = arith.addf %114, %118 : vector<4x1024xf32>
    %c5_70 = arith.constant 5 : index
    %c0_71 = arith.constant 0 : index
    %c0_72 = arith.constant 0 : index
    %120 = vector.load %arg9[%c5_70, %c0_71, %c0_72] : memref<9x4x4xbf16, #tpu.memory_space<vmem>>, vector<1x4x4xbf16>
    %121 = vector.shape_cast %120 : vector<1x4x4xbf16> to vector<4x4xbf16>
    %122 = vector.extract_strided_slice %93 {offsets = [0, 128], sizes = [4, 1024], strides = [1, 1]} : vector<4x1280xbf16> to vector<4x1024xbf16>
    %cst_73 = arith.constant dense<0.000000e+00> : vector<4x1024xf32>
    %123 = tpu.matmul %121, %122, %cst_73 {dimension_numbers = #tpu.dot_dimension_numbers<[1], [0], [0], [1], [0, 0, 1, 1], [], []>} : vector<4x4xbf16>, vector<4x1024xbf16>, vector<4x1024xf32> -> vector<4x1024xf32>
    %124 = arith.addf %119, %123 : vector<4x1024xf32>
    %c6_74 = arith.constant 6 : index
    %c0_75 = arith.constant 0 : index
    %c0_76 = arith.constant 0 : index
    %125 = vector.load %arg9[%c6_74, %c0_75, %c0_76] : memref<9x4x4xbf16, #tpu.memory_space<vmem>>, vector<1x4x4xbf16>
    %126 = vector.shape_cast %125 : vector<1x4x4xbf16> to vector<4x4xbf16>
    %127 = vector.extract_strided_slice %91 {offsets = [0, 256], sizes = [4, 1024], strides = [1, 1]} : vector<4x1280xbf16> to vector<4x1024xbf16>
    %cst_77 = arith.constant dense<0.000000e+00> : vector<4x1024xf32>
    %128 = tpu.matmul %126, %127, %cst_77 {dimension_numbers = #tpu.dot_dimension_numbers<[1], [0], [0], [1], [0, 0, 1, 1], [], []>} : vector<4x4xbf16>, vector<4x1024xbf16>, vector<4x1024xf32> -> vector<4x1024xf32>
    %129 = arith.addf %124, %128 : vector<4x1024xf32>
    %c7_78 = arith.constant 7 : index
    %c0_79 = arith.constant 0 : index
    %c0_80 = arith.constant 0 : index
    %130 = vector.load %arg9[%c7_78, %c0_79, %c0_80] : memref<9x4x4xbf16, #tpu.memory_space<vmem>>, vector<1x4x4xbf16>
    %131 = vector.shape_cast %130 : vector<1x4x4xbf16> to vector<4x4xbf16>
    %132 = vector.extract_strided_slice %92 {offsets = [0, 256], sizes = [4, 1024], strides = [1, 1]} : vector<4x1280xbf16> to vector<4x1024xbf16>
    %cst_81 = arith.constant dense<0.000000e+00> : vector<4x1024xf32>
    %133 = tpu.matmul %131, %132, %cst_81 {dimension_numbers = #tpu.dot_dimension_numbers<[1], [0], [0], [1], [0, 0, 1, 1], [], []>} : vector<4x4xbf16>, vector<4x1024xbf16>, vector<4x1024xf32> -> vector<4x1024xf32>
    %134 = arith.addf %129, %133 : vector<4x1024xf32>
    %c8_82 = arith.constant 8 : index
    %c0_83 = arith.constant 0 : index
    %c0_84 = arith.constant 0 : index
    %135 = vector.load %arg9[%c8_82, %c0_83, %c0_84] : memref<9x4x4xbf16, #tpu.memory_space<vmem>>, vector<1x4x4xbf16>
    %136 = vector.shape_cast %135 : vector<1x4x4xbf16> to vector<4x4xbf16>
    %137 = vector.extract_strided_slice %93 {offsets = [0, 256], sizes = [4, 1024], strides = [1, 1]} : vector<4x1280xbf16> to vector<4x1024xbf16>
    %cst_85 = arith.constant dense<0.000000e+00> : vector<4x1024xf32>
    %138 = tpu.matmul %136, %137, %cst_85 {dimension_numbers = #tpu.dot_dimension_numbers<[1], [0], [0], [1], [0, 0, 1, 1], [], []>} : vector<4x4xbf16>, vector<4x1024xbf16>, vector<4x1024xf32> -> vector<4x1024xf32>
    %139 = arith.addf %134, %138 : vector<4x1024xf32>
    %140 = arith.addf %69, %139 : vector<4x1024xf32>
    %c0_86 = arith.constant 0 : index
    %c128 = arith.constant 128 : index
    %141 = vector.load %arg10[%c0_86, %c128] : memref<1x1280xf32, #tpu.memory_space<vmem>>, vector<1x1024xf32>
    %142 = vector.broadcast %141 : vector<1x1024xf32> to vector<4x1024xf32>
    %143 = arith.mulf %140, %142 : vector<4x1024xf32>
    %144 = arith.truncf %143 : vector<4x1024xf32> to vector<4x1024xbf16>
    %c0_87 = arith.constant 0 : index
    %c0_88 = arith.constant 0 : index
    %c0_89 = arith.constant 0 : index
    %145 = vector.load %arg11[%c0_87, %c0_88, %c0_89] : memref<1x4x1024xbf16, #tpu.memory_space<vmem>>, vector<1x4x1024xbf16>
    %146 = vector.shape_cast %145 : vector<1x4x1024xbf16> to vector<4x1024xbf16>
    %147 = vector.shape_cast %144 : vector<4x1024xbf16> to vector<1x4x1024xbf16>
    tpu.vector_store %arg11[%c0_87, %c0_88, %c0_89], %147 {strides = array<i32>} : memref<1x4x1024xbf16, #tpu.memory_space<vmem>>, vector<1x4x1024xbf16>,
    %cst_90 = arith.constant dense<0.000000e+00> : vector<4xf32>
    %148 = vector.multi_reduction <add>, %143, %cst_90 [1] : vector<4x1024xf32> to vector<4xf32>
    %149 = vector.shape_cast %148 : vector<4xf32> to vector<4x1xf32>
    %c0_91 = arith.constant 0 : index
    %c0_92 = arith.constant 0 : index
    %c0_93 = arith.constant 0 : index
    %c0_94 = arith.constant 0 : index
    %150 = vector.load %arg12[%c0_91, %c0_92, %c0_93, %c0_94] : memref<1x1x4x1xf32, #tpu.memory_space<vmem>>, vector<1x1x4x1xf32>
    %151 = vector.shape_cast %150 : vector<1x1x4x1xf32> to vector<4x1xf32>
    %152 = vector.shape_cast %149 : vector<4x1xf32> to vector<1x1x4x1xf32>
    tpu.vector_store %arg12[%c0_91, %c0_92, %c0_93, %c0_94], %152 {strides = array<i32>} : memref<1x1x4x1xf32, #tpu.memory_space<vmem>>, vector<1x1x4x1xf32>,
    %153 = arith.mulf %143, %140 : vector<4x1024xf32>
    %cst_95 = arith.constant dense<0.000000e+00> : vector<4xf32>
    %154 = vector.multi_reduction <add>, %153, %cst_95 [1] : vector<4x1024xf32> to vector<4xf32>
    %155 = vector.shape_cast %154 : vector<4xf32> to vector<4x1xf32>
    %c0_96 = arith.constant 0 : index
    %c0_97 = arith.constant 0 : index
    %c0_98 = arith.constant 0 : index
    %c0_99 = arith.constant 0 : index
    %156 = vector.load %arg13[%c0_96, %c0_97, %c0_98, %c0_99] : memref<1x1x4x1xf32, #tpu.memory_space<vmem>>, vector<1x1x4x1xf32>
    %157 = vector.shape_cast %156 : vector<1x1x4x1xf32> to vector<4x1xf32>
    %158 = vector.shape_cast %155 : vector<4x1xf32> to vector<1x1x4x1xf32>
    tpu.vector_store %arg13[%c0_96, %c0_97, %c0_98, %c0_99], %158 {strides = array<i32>} : memref<1x1x4x1xf32, #tpu.memory_space<vmem>>, vector<1x1x4x1xf32>,
    return
  }
  func.func @transform_0(%arg0: i32, %arg1: i32) -> (i32, i32, i32) {
    %c0_i32 = arith.constant 0 : i32
    %c0_i32_0 = arith.constant 0 : i32
    return %arg0, %c0_i32, %arg1 : i32, i32, i32
  }
  func.func @transform_1(%arg0: i32, %arg1: i32) -> (i32, i32, i32) {
    %c8_i32 = arith.constant 8 : i32
    %0 = arith.muli %arg1, %c8_i32 : i32
    %c1_i32 = arith.constant 1 : i32
    %1 = arith.subi %0, %c1_i32 : i32
    %c0_i32 = arith.constant 0 : i32
    %2 = arith.maxsi %1, %c0_i32 : i32
    %c0_i32_0 = arith.constant 0 : i32
    %c0_i32_1 = arith.constant 0 : i32
    return %arg0, %c0_i32_0, %2 : i32, i32, i32
  }
  func.func @transform_2(%arg0: i32, %arg1: i32) -> (i32, i32, i32) {
    %c1_i32 = arith.constant 1 : i32
    %0 = arith.addi %arg1, %c1_i32 : i32
    %c8_i32 = arith.constant 8 : i32
    %1 = arith.muli %0, %c8_i32 : i32
    %c15_i32 = arith.constant 15 : i32
    %2 = arith.minsi %1, %c15_i32 : i32
    %c0_i32 = arith.constant 0 : i32
    %c0_i32_0 = arith.constant 0 : i32
    return %arg0, %c0_i32, %2 : i32, i32, i32
  }
  func.func @transform_3(%arg0: i32, %arg1: i32) -> (i32, i32, i32) {
    %c0_i32 = arith.constant 0 : i32
    %c0_i32_0 = arith.constant 0 : i32
    return %arg0, %c0_i32, %arg1 : i32, i32, i32
  }
  func.func @transform_4(%arg0: i32, %arg1: i32) -> (i32, i32, i32) {
    %c8_i32 = arith.constant 8 : i32
    %0 = arith.muli %arg1, %c8_i32 : i32
    %c1_i32 = arith.constant 1 : i32
    %1 = arith.subi %0, %c1_i32 : i32
    %c0_i32 = arith.constant 0 : i32
    %2 = arith.maxsi %1, %c0_i32 : i32
    %c0_i32_0 = arith.constant 0 : i32
    %c0_i32_1 = arith.constant 0 : i32
    return %arg0, %c0_i32_0, %2 : i32, i32, i32
  }
  func.func @transform_5(%arg0: i32, %arg1: i32) -> (i32, i32, i32) {
    %c1_i32 = arith.constant 1 : i32
    %0 = arith.addi %arg1, %c1_i32 : i32
    %c8_i32 = arith.constant 8 : i32
    %1 = arith.muli %0, %c8_i32 : i32
    %c15_i32 = arith.constant 15 : i32
    %2 = arith.minsi %1, %c15_i32 : i32
    %c0_i32 = arith.constant 0 : i32
    %c0_i32_0 = arith.constant 0 : i32
    return %arg0, %c0_i32, %2 : i32, i32, i32
  }
  func.func @transform_6(%arg0: i32, %arg1: i32) -> (i32, i32, i32) {
    %c0_i32 = arith.constant 0 : i32
    %c0_i32_0 = arith.constant 0 : i32
    %c0_i32_1 = arith.constant 0 : i32
    %c0_i32_2 = arith.constant 0 : i32
    return %c0_i32, %c0_i32_0, %c0_i32_1 : i32, i32, i32
  }
  func.func @transform_7(%arg0: i32, %arg1: i32) -> (i32, i32, i32) {
    %c0_i32 = arith.constant 0 : i32
    %c0_i32_0 = arith.constant 0 : i32
    %c0_i32_1 = arith.constant 0 : i32
    %c0_i32_2 = arith.constant 0 : i32
    return %c0_i32, %c0_i32_0, %c0_i32_1 : i32, i32, i32
  }
  func.func @transform_8(%arg0: i32, %arg1: i32) -> (i32, i32) {
    %c0_i32 = arith.constant 0 : i32
    %c0_i32_0 = arith.constant 0 : i32
    %c0_i32_1 = arith.constant 0 : i32
    return %c0_i32, %c0_i32_0 : i32, i32
  }
  func.func @transform_9(%arg0: i32, %arg1: i32) -> (i32, i32, i32) {
    %c0_i32 = arith.constant 0 : i32
    %c0_i32_0 = arith.constant 0 : i32
    return %arg0, %c0_i32, %arg1 : i32, i32, i32
  }
  func.func @transform_10(%arg0: i32, %arg1: i32) -> (i32, i32, i32, i32) {
    %c0_i32 = arith.constant 0 : i32
    %c0_i32_0 = arith.constant 0 : i32
    %c0_i32_1 = arith.constant 0 : i32
    return %arg0, %arg1, %c0_i32, %c0_i32_0 : i32, i32, i32, i32
  }
  func.func @transform_11(%arg0: i32, %arg1: i32) -> (i32, i32, i32, i32) {
    %c0_i32 = arith.constant 0 : i32
    %c0_i32_0 = arith.constant 0 : i32
    %c0_i32_1 = arith.constant 0 : i32
    return %arg0, %arg1, %c0_i32, %c0_i32_0 : i32, i32, i32, i32
  }
}

module attributes {stable_mosaic.version = 11 : i64} {
  func.func @kernel(%arg0: i32, %arg1: i32, %arg2: memref<1x4x16x128xbf16, #tpu.memory_space<vmem>>, %arg3: memref<4x1x1xf32, #tpu.memory_space<vmem>>, %arg4: memref<4x1x1xf32, #tpu.memory_space<vmem>>, %arg5: memref<1x4x16x16xf32, #tpu.memory_space<vmem>>) attributes {dimension_semantics = [#tpu.dimension_semantics<parallel>, #tpu.dimension_semantics<parallel>], iteration_bounds = array<i64: 2, 1>, scalar_prefetch = 0 : i64, scratch_operands = 0 : i64, tpu.core_type = #tpu.core_type<tc>, window_params = [{transform_indices = @transform_0, window_bounds = array<i64: 1, 4, 16, 128>}, {pipeline_mode = #tpu.pipeline_mode<synchronous>, transform_indices = @transform_1, window_bounds = array<i64: 4, 1, 1>}, {pipeline_mode = #tpu.pipeline_mode<synchronous>, transform_indices = @transform_2, window_bounds = array<i64: 4, 1, 1>}, {transform_indices = @transform_3, window_bounds = array<i64: 1, 4, 16, 16>}]} {
    %c0 = arith.constant 0 : index
    %c0_0 = arith.constant 0 : index
    %c0_1 = arith.constant 0 : index
    %c0_2 = arith.constant 0 : index
    %0 = vector.load %arg2[%c0, %c0_0, %c0_1, %c0_2] : memref<1x4x16x128xbf16, #tpu.memory_space<vmem>>, vector<1x4x16x128xbf16>
    %1 = vector.shape_cast %0 : vector<1x4x16x128xbf16> to vector<4x16x128xbf16>
    %2 = arith.extf %1 : vector<4x16x128xbf16> to vector<4x16x128xf32>
    %3 = vector.extract_strided_slice %2 {offsets = [0, 0, 1], sizes = [4, 16, 16], strides = [1, 1, 1]} : vector<4x16x128xf32> to vector<4x16x16xf32>
    %c0_3 = arith.constant 0 : index
    %c0_4 = arith.constant 0 : index
    %c0_5 = arith.constant 0 : index
    %4 = vector.load %arg3[%c0_3, %c0_4, %c0_5] : memref<4x1x1xf32, #tpu.memory_space<vmem>>, vector<4x1x1xf32>
    %5 = vector.broadcast %4 : vector<4x1x1xf32> to vector<4x16x16xf32>
    %6 = arith.mulf %3, %5 : vector<4x16x16xf32>
    %c0_6 = arith.constant 0 : index
    %c0_7 = arith.constant 0 : index
    %c0_8 = arith.constant 0 : index
    %7 = vector.load %arg4[%c0_6, %c0_7, %c0_8] : memref<4x1x1xf32, #tpu.memory_space<vmem>>, vector<4x1x1xf32>
    %8 = vector.broadcast %7 : vector<4x1x1xf32> to vector<4x16x16xf32>
    %9 = arith.addf %6, %8 : vector<4x16x16xf32>
    %cst = arith.constant 0.000000e+00 : f32
    %10 = vector.broadcast %cst : f32 to vector<4x16x16xf32>
    %11 = arith.maximumf %9, %10 : vector<4x16x16xf32>
    %c0_9 = arith.constant 0 : index
    %c0_10 = arith.constant 0 : index
    %c0_11 = arith.constant 0 : index
    %c0_12 = arith.constant 0 : index
    %12 = vector.load %arg5[%c0_9, %c0_10, %c0_11, %c0_12] : memref<1x4x16x16xf32, #tpu.memory_space<vmem>>, vector<1x4x16x16xf32>
    %13 = vector.shape_cast %12 : vector<1x4x16x16xf32> to vector<4x16x16xf32>
    %14 = vector.shape_cast %11 : vector<4x16x16xf32> to vector<1x4x16x16xf32>
    tpu.vector_store %arg5[%c0_9, %c0_10, %c0_11, %c0_12], %14 {strides = array<i32>} : memref<1x4x16x16xf32, #tpu.memory_space<vmem>>, vector<1x4x16x16xf32>,
    return
  }
  func.func @transform_0(%arg0: i32, %arg1: i32) -> (i32, i32, i32, i32) {
    %c0_i32 = arith.constant 0 : i32
    %c0_i32_0 = arith.constant 0 : i32
    %c0_i32_1 = arith.constant 0 : i32
    return %arg0, %c0_i32, %arg1, %c0_i32_0 : i32, i32, i32, i32
  }
  func.func @transform_1(%arg0: i32, %arg1: i32) -> (i32, i32, i32) {
    %c0_i32 = arith.constant 0 : i32
    %c0_i32_0 = arith.constant 0 : i32
    %c0_i32_1 = arith.constant 0 : i32
    %c0_i32_2 = arith.constant 0 : i32
    return %c0_i32, %c0_i32_0, %c0_i32_1 : i32, i32, i32
  }
  func.func @transform_2(%arg0: i32, %arg1: i32) -> (i32, i32, i32) {
    %c0_i32 = arith.constant 0 : i32
    %c0_i32_0 = arith.constant 0 : i32
    %c0_i32_1 = arith.constant 0 : i32
    %c0_i32_2 = arith.constant 0 : i32
    return %c0_i32, %c0_i32_0, %c0_i32_1 : i32, i32, i32
  }
  func.func @transform_3(%arg0: i32, %arg1: i32) -> (i32, i32, i32, i32) {
    %c0_i32 = arith.constant 0 : i32
    %c0_i32_0 = arith.constant 0 : i32
    %c0_i32_1 = arith.constant 0 : i32
    return %arg0, %c0_i32, %arg1, %c0_i32_0 : i32, i32, i32, i32
  }
}

</mosaic_0001>

<llo_original>
// kernel: decoder_block_forward.4
$region0: #{decoder_block_forward.4}
  #allocation0 [shape = 'u32[]', space=smem, size = 0x4, offset = 0x4, fixed_abs, tag = 'smem constant byte address 0x4 - core index']
  #allocation1 [shape = 'u32[144,128]{1,0:T(1,128)}', space=vmem, size = 0x12000, scoped, tag = 'internal scratch']
  %s0 = inlined_call_operand.vmem [shape: bf16[2,8,64], index: 0, kind: input, shape index: {}]
  %s1 = inlined_call_operand.vmem [shape: bf16[16,8], index: 1, kind: input, shape index: {}]
  %s2 = inlined_call_operand.vmem [shape: f32[16,1], index: 2, kind: input, shape index: {}]
  %s3 = inlined_call_operand.vmem [shape: bf16[2,16,64], index: 3, kind: output, shape index: {}]
  %s4 = sld [smem:[#allocation0]]
  $region45: #{decoder_block_forward.4} parent=0
    _
  %s6 = ssub.s32 1, %s4
  %s7 = scalar_select 0, %s6, %s4
  loop: start=0, step=1, limit=4
  $region2: #{decoder_block_forward.4} parent=0 // loop_pre_header
    _
  $region3: #{decoder_block_forward.4} parent=0 // loop_header
    %s9 = sphi 0, %s13
    %p10 = scmp.ge.s32.totalorder %s9, 4
    %s16 = sphi 0, %s28
    %s17 = sphi 0, %s24
    %s18 = sphi 0, %s16
    %s19 = sphi 0, %s17
    %s20 = sphi 0, %s18
    %s21 = sphi 0, %s19
    %s33 = sphi 0, %s35
    %s36 = sphi 0, %s33
    %s37 = sphi 0, %s36
    %s53 = sphi 0, %s37
    %s57 = sphi 0, %s57
    %s59 = sphi 0, %s57
    %s60 = sphi 0, %s59
    %s74 = sphi 0, %s60
    %s78 = sphi 0, %s78
    %s80 = sphi 0, %s78
    %s81 = sphi 0, %s80
    %s95 = sphi 0, %s81
    %s103 = sphi 0, %s105
    %s106 = sphi 0, %s103
    %s107 = sphi 0, %s106
    %s123 = sphi 0, %s107
  $region4: #{decoder_block_forward.4} parent=0 // loop_header_branch
    %12 = sbr.rel (%p10) target = $region8
  $region5: #{decoder_block_forward.4} parent=0 // loop_body
    %s14 = ssub.s32 %s9, 1
    %s15 = ssub.s32 %s9, 2
    %s22 = sadd.s32 1, %s17
    %p23 = scmp.ge.s32.totalorder %s22, 1
    %s24 = scalar_select %p23, 0, %s22
    %s25 = sadd.s32 1, %s16
    %s26 = scalar_select %p23, %s25, %s16
    %p27 = scmp.ge.s32.totalorder %s26, 2
    %s28 = scalar_select %p27, 0, %s26
    %s29 = ssub.s32 %s16, %s28
    %s30 = ssub.s32 %s17, %s24
    %s31 = sor.u32 %s29, %s30
    %p32 = scmp.eq.s32.totalorder %s31, 0
    %s34 = sadd.s32 %s33, 1
    %s35 = scalar_select %p32, %s33, %s34
    %p38 = pneg %p32
    %p39 = scmp.eq.s32.totalorder %s9, 1
    %p40 = por %p38, %p39
    %p41 = scmp.ne.s32.totalorder %s33, %s36
    %p42 = scmp.eq.s32.totalorder %s9, 0
    %p43 = por %p41, %p42
    %p44 = scmp.ne.s32.totalorder %s33, %s36
    %p45 = scmp.eq.s32.totalorder %s14, 1
    %p46 = por %p44, %p45
    %p47 = scmp.ne.s32.totalorder %s36, %s37
    %p48 = scmp.eq.s32.totalorder %s14, 0
    %p49 = por %p47, %p48
    %p50 = scmp.ne.s32.totalorder %s36, %s37
    %p51 = scmp.eq.s32.totalorder %s15, 1
    %p52 = por %p50, %p51
    %p54 = scmp.ne.s32.totalorder %s37, %s53
    %p55 = scmp.eq.s32.totalorder %s15, 0
    %p56 = por %p54, %p55
    %s58 = sadd.s32 %s57, 1
    %p61 = scmp.eq.s32.totalorder %s9, 1
    %p62 = scmp.ne.s32.totalorder %s57, %s59
    %p63 = scmp.eq.s32.totalorder %s9, 0
    %p64 = por %p62, %p63
    %p65 = scmp.ne.s32.totalorder %s57, %s59
    %p66 = scmp.eq.s32.totalorder %s14, 1
    %p67 = por %p65, %p66
    %p68 = scmp.ne.s32.totalorder %s59, %s60
    %p69 = scmp.eq.s32.totalorder %s14, 0
    %p70 = por %p68, %p69
    %p71 = scmp.ne.s32.totalorder %s59, %s60
    %p72 = scmp.eq.s32.totalorder %s15, 1
    %p73 = por %p71, %p72
    %p75 = scmp.ne.s32.totalorder %s60, %s74
    %p76 = scmp.eq.s32.totalorder %s15, 0
    %p77 = por %p75, %p76
    %s79 = sadd.s32 %s78, 1
    %p82 = scmp.eq.s32.totalorder %s9, 1
    %p83 = scmp.ne.s32.totalorder %s78, %s80
    %p84 = scmp.eq.s32.totalorder %s9, 0
    %p85 = por %p83, %p84
    %p86 = scmp.ne.s32.totalorder %s78, %s80
    %p87 = scmp.eq.s32.totalorder %s14, 1
    %p88 = por %p86, %p87
    %p89 = scmp.ne.s32.totalorder %s80, %s81
    %p90 = scmp.eq.s32.totalorder %s14, 0
    %p91 = por %p89, %p90
    %p92 = scmp.ne.s32.totalorder %s80, %s81
    %p93 = scmp.eq.s32.totalorder %s15, 1
    %p94 = por %p92, %p93
    %p96 = scmp.ne.s32.totalorder %s81, %s95
    %p97 = scmp.eq.s32.totalorder %s15, 0
    %p98 = por %p96, %p97
    %s99 = ssub.s32 %s16, %s28
    %s100 = ssub.s32 %s17, %s24
    %s101 = sor.u32 %s99, %s100
    %p102 = scmp.eq.s32.totalorder %s101, 0
    %s104 = sadd.s32 %s103, 1
    %s105 = scalar_select %p102, %s103, %s104
    %p108 = pneg %p102
    %p109 = scmp.eq.s32.totalorder %s9, 1
    %p110 = por %p108, %p109
    %p111 = scmp.ne.s32.totalorder %s103, %s106
    %p112 = scmp.eq.s32.totalorder %s9, 0
    %p113 = por %p111, %p112
    %p114 = scmp.ne.s32.totalorder %s103, %s106
    %p115 = scmp.eq.s32.totalorder %s14, 1
    %p116 = por %p114, %p115
    %p117 = scmp.ne.s32.totalorder %s106, %s107
    %p118 = scmp.eq.s32.totalorder %s14, 0
    %p119 = por %p117, %p118
    %p120 = scmp.ne.s32.totalorder %s106, %s107
    %p121 = scmp.eq.s32.totalorder %s15, 1
    %p122 = por %p120, %p121
    %p124 = scmp.ne.s32.totalorder %s107, %s123
    %p125 = scmp.eq.s32.totalorder %s15, 0
    %p126 = por %p124, %p125
    %p127 = scmp.le.s32.totalorder 1, %s9
    %p128 = scmp.lt.s32.totalorder %s9, 3
    %p129 = pnand %p127, %p128
    %p130 = pneg %p129
    // Predicated region
    $region9: #{decoder_block_forward.4} parent=5 // pred_check
      _
    $region10: #{decoder_block_forward.4} parent=5 // pred_check_branch
      %132 = sbr.rel (%p129) target = $region12
    $region11: #{decoder_block_forward.4} parent=5 // pred_region
      %s133 = ssub.s32 %s9, 1
      // Predicated region
      $region13: #{decoder_block_forward.4} parent=11 // pred_check
        %p134 = pneg %p70
      $region14: #{decoder_block_forward.4} parent=11 // pred_check_branch
        %136 = sbr.rel (%p134) target = $region16
      $region15: #{decoder_block_forward.4} parent=11 // pred_region
        _
      $region16: #{decoder_block_forward.4} parent=11 // pred_fallthru
        _
      // Predicated region
      $region17: #{decoder_block_forward.4} parent=11 // pred_check
        %p137 = pneg %p91
      $region18: #{decoder_block_forward.4} parent=11 // pred_check_branch
        %139 = sbr.rel (%p137) target = $region20
      $region19: #{decoder_block_forward.4} parent=11 // pred_region
        _
      $region20: #{decoder_block_forward.4} parent=11 // pred_fallthru
        _
    $region12: #{decoder_block_forward.4} parent=5 // pred_fallthru
      _
    %p140 = scmp.lt.s32.totalorder %s9, 2
    // Predicated region
    $region21: #{decoder_block_forward.4} parent=5 // pred_check
      %p141 = pneg %p140
    $region22: #{decoder_block_forward.4} parent=5 // pred_check_branch
      %143 = sbr.rel (%p141) target = $region24
    $region23: #{decoder_block_forward.4} parent=5 // pred_region
      // Predicated region
      $region25: #{decoder_block_forward.4} parent=23 // pred_check
        %p144 = pneg %p43
      $region26: #{decoder_block_forward.4} parent=23 // pred_check_branch
        %146 = sbr.rel (%p144) target = $region28
      $region27: #{decoder_block_forward.4} parent=23 // pred_region
        %p147 = scmp.lt.s32.totalorder %s16, 1
        %s148 = scalar_select %p147, %s16, 1
        %p149 = scmp.lt.s32.totalorder %s17, 0
        %s150 = scalar_select %p149, %s17, 0
        %s151 = sadd.s32 %s150, %s148
        %s152 = smul.addr %s151, 4
        %s153 = scalar_lea.vmem %s0, %s152
      $region28: #{decoder_block_forward.4} parent=23 // pred_fallthru
        _
    $region24: #{decoder_block_forward.4} parent=5 // pred_fallthru
      _
    %p154 = scmp.le.s32.totalorder 1, %s9
    %p155 = scmp.lt.s32.totalorder %s9, 3
    %p156 = pnand %p154, %p155
    %p157 = pneg %p156
    // Predicated region
    $region29: #{decoder_block_forward.4} parent=5 // pred_check
      _
    $region30: #{decoder_block_forward.4} parent=5 // pred_check_branch
      %159 = sbr.rel (%p156) target = $region32
    $region31: #{decoder_block_forward.4} parent=5 // pred_region
      %s160 = ssub.s32 %s9, 1
      %p161 = scmp.lt.s32.totalorder %s18, 1
      %s162 = scalar_select %p161, %s18, 1
      %p163 = scmp.lt.s32.totalorder %s19, 0
      %s164 = scalar_select %p163, %s19, 0
      %s165 = sadd.s32 %s164, %s162
      %s166 = smul.addr %s165, 4
      %s167 = scalar_lea.vmem %s0, %s166
      %p168 = pneg %p49
      %p169 = pneg %p46
      %p170 = pneg %p70
      %p171 = pneg %p67
      %p172 = pneg %p91
      %p173 = pneg %p88
      %p174 = pneg %p119
      %p175 = pneg %p116
      %p176 = scmp.lt.s32.totalorder %s18, 1
      %s177 = scalar_select %p176, %s18, 1
      %p178 = scmp.lt.s32.totalorder %s19, 0
      %s179 = scalar_select %p178, %s19, 0
      %s180 = smul.addr %s177, 2
      %s181 = sadd.s32 %s179, %s180
      %s182 = smul.addr %s181, 4
      %s183 = scalar_lea.vmem %s3, %s182
      %p184 = scmp.lt.s32.totalorder %s18, 1
      %s185 = scalar_select %p184, %s18, 1
      %p186 = scmp.lt.s32.totalorder %s19, 0
      %s187 = scalar_select %p186, %s19, 0
      %s188 = sadd.s32 %s187, %s185
      %s189 = smul.addr %s188, 4
      %s190 = scalar_lea.vmem %s0, %s189
      %p191 = scmp.lt.s32.totalorder %s18, 1
      %s192 = scalar_select %p191, %s18, 1
      %p193 = scmp.lt.s32.totalorder %s19, 0
      %s194 = scalar_select %p193, %s19, 0
      %s195 = smul.addr %s192, 2
      %s196 = sadd.s32 %s194, %s195
      %s197 = smul.addr %s196, 4
      %s198 = scalar_lea.vmem %s3, %s197
      %v200 = vld [vmem:[%s1] sm:$0xf]
      %v201 = vld [vmem:[%s1 + $0x4] sm:$0xf]
      %v202 = vld [vmem:[%s190] sm:$0xf]
      %v203 = vld [vmem:[%s2] sm:$0xff]
      %v204 = vld [vmem:[%s2 + $0x8] sm:$0xff]
      %206 = vset.pattern.permute.xlu0 0
      %207 = vperm.xlu0 %206, %v203
      %v208 = vpop.permute.xlu0 %207
      %211 = vset.pattern.permute.xlu0 0
      %212 = vperm.xlu0 %211, %v204
      %v213 = vpop.permute.xlu0 %212
      %v217 = vunpack.c.l.b16 %v200
      %v218 = vunpack.c.l.b16 %v201
      %v219 = vpack.c.b16 %v218, %v217
      %vm220 = vcmask 64512
      %v222 = vsel %vm220, %v219, 0
      %vm224 = vcmask 1043456
      %v226 = vsel %vm224, %v202, 0
      %228 = vmatprep.subr.bf16.mxu0 0
      %229 = vmatpush1.bf16.msra.mxu0 %v226
      %230 = vmatprep.subr.bf16.mxu0 0
      %231 = vmatpush1.bf16.msra.mxu0 0
      %232 = vmatprep.subr.bf16.mxu0 0
      %233 = vmatpush1.bf16.msra.mxu0 0
      %234 = vmatprep.subr.bf16.mxu0 0
      %235 = vmatpush1.bf16.msra.mxu0 0
      %236 = vmatprep.subr.bf16.mxu0 0
      %237 = vmatpush1.bf16.msra.mxu0 0
      %238 = vmatprep.subr.bf16.mxu0 0
      %239 = vmatpush1.bf16.msra.mxu0 0
      %240 = vmatprep.subr.bf16.mxu0 0
      %241 = vmatpush1.bf16.msra.mxu0 0
      %242 = vmatprep.subr.bf16.mxu0 0
      %243 = vmatpush1.bf16.msra.mxu0 0
      %244 = vmatprep.subr.bf16.mxu0 0
      %245 = vmatpush1.bf16.msra.mxu0 0
      %246 = vmatprep.subr.bf16.mxu0 0
      %247 = vmatpush1.bf16.msra.mxu0 0
      %248 = vmatprep.subr.bf16.mxu0 0
      %249 = vmatpush1.bf16.msra.mxu0 0
      %250 = vmatprep.subr.bf16.mxu0 0
      %251 = vmatpush1.bf16.msra.mxu0 0
      %252 = vmatprep.subr.bf16.mxu0 0
      %253 = vmatpush1.bf16.msra.mxu0 0
      %254 = vmatprep.subr.bf16.mxu0 0
      %255 = vmatpush1.bf16.msra.mxu0 0
      %256 = vmatprep.subr.bf16.mxu0 0
      %257 = vmatpush1.bf16.msra.mxu0 0
      %258 = vmatprep.subr.bf16.mxu0 0
      %259 = vmatpush1.bf16.msra.mxu0 0
      %260 = vmatprep.mubr.bf16.mxu0 0
      %261 = vmatmul.mubr.bf16.gmra.mrb[0].mxu0 %v222
      %v262 = vpop.f32.mrb[0].mxu0
      %v263 = vadd.f32 %v208, %v262
      %v264 = vpop.f32.mrb[0].mxu0
      %v265 = vpop.f32.mrb[0].mxu0
      %v266 = vadd.f32 %v213, %v265
      %v267 = vpop.f32.mrb[0].mxu0
      %268 = vdwg.mxu0
      %v269 = vpack.c.bf16 %v266, %v263
      %v271 = vunpack.c.l.b16 %v269
      %v272 = vunpack.c.h.b16 %v269
      %v273 = vpack.c.b16 %v271, %v271
      %v274 = vpack.c.b16 %v272, %v272
      %vm277 = vcmask 519168
      %278 = vst.msk [vmem:[%s198] sm:$0xf] %vm277, %v273
      %279 = vst.msk [vmem:[%s198 + $0x4] sm:$0xf] %vm277, %v274
      %p280 = scmp.lt.s32.totalorder %s18, 1
      %s281 = scalar_select %p280, %s18, 1
      %p282 = scmp.lt.s32.totalorder %s19, 0
      %s283 = scalar_select %p282, %s19, 0
      %s284 = smul.addr %s281, 2
      %s285 = sadd.s32 %s283, %s284
      %s286 = smul.addr %s285, 4
      %s287 = scalar_lea.vmem %s3, %s286
      // Predicated region
      $region33: #{decoder_block_forward.4} parent=31 // pred_check
        %p288 = pneg %p116
      $region34: #{decoder_block_forward.4} parent=31 // pred_check_branch
        %290 = sbr.rel (%p288) target = $region36
      $region35: #{decoder_block_forward.4} parent=31 // pred_region
        _
      $region36: #{decoder_block_forward.4} parent=31 // pred_fallthru
        _
    $region32: #{decoder_block_forward.4} parent=5 // pred_fallthru
      _
    %p291 = scmp.le.s32.totalorder 2, %s9
    // Predicated region
    $region37: #{decoder_block_forward.4} parent=5 // pred_check
      %p292 = pneg %p291
    $region38: #{decoder_block_forward.4} parent=5 // pred_check_branch
      %294 = sbr.rel (%p292) target = $region40
    $region39: #{decoder_block_forward.4} parent=5 // pred_region
      %s295 = ssub.s32 %s9, 2
      // Predicated region
      $region41: #{decoder_block_forward.4} parent=39 // pred_check
        %p296 = pneg %p122
      $region42: #{decoder_block_forward.4} parent=39 // pred_check_branch
        %298 = sbr.rel (%p296) target = $region44
      $region43: #{decoder_block_forward.4} parent=39 // pred_region
        %p299 = scmp.lt.s32.totalorder %s20, 1
        %s300 = scalar_select %p299, %s20, 1
        %p301 = scmp.lt.s32.totalorder %s21, 0
        %s302 = scalar_select %p301, %s21, 0
        %s303 = smul.addr %s300, 2
        %s304 = sadd.s32 %s302, %s303
        %s305 = smul.addr %s304, 4
        %s306 = scalar_lea.vmem %s3, %s305
      $region44: #{decoder_block_forward.4} parent=39 // pred_fallthru
        _
    $region40: #{decoder_block_forward.4} parent=5 // pred_fallthru
      _
  $region6: #{decoder_block_forward.4} parent=0 // loop_footer
    %s13 = sadd.s32 1, %s9
  $region7: #{decoder_block_forward.4} parent=0 // loop_footer_branch
    %8 = sbr.rel target = $region3
  $region8: #{decoder_block_forward.4} parent=0 // loop_exit
    _

// kernel: decoder_block_forward.7
$region0: #{decoder_block_forward.7}
  #allocation0 [shape = 'u32[]', space=smem, size = 0x4, offset = 0x4, fixed_abs, tag = 'smem constant byte address 0x4 - core index']
  #allocation1 [shape = 'u32[144,128]{1,0:T(1,128)}', space=vmem, size = 0x12000, scoped, tag = 'internal scratch']
  %s0 = inlined_call_operand.vmem [shape: bf16[2,4,16,128], index: 0, kind: input, shape index: {}]
  %s1 = inlined_call_operand.vmem [shape: f32[4,1,1], index: 1, kind: input, shape index: {}]
  %s2 = inlined_call_operand.vmem [shape: f32[4,1,1], index: 2, kind: input, shape index: {}]
  %s3 = inlined_call_operand.hbm [shape: f32[2,4,16,16], index: 3, kind: output, shape index: {}]
  %s4 = sld [smem:[#allocation0]]
  $region45: #{decoder_block_forward.7} parent=0
    _
  %s6 = ssub.s32 1, %s4
  %s7 = scalar_select 0, %s6, %s4
  $region1: #{decoder_block_forward.7} parent=0
    #allocation2 [shape = 'u8[65536]{0}', space=vmem, size = 0x10000, scoped, tag = 'output window, operand 0']
    #allocation3 [shape = 's32[2]{0}', space=sflag, size = 0x8, scoped, tag = 'scoped memory for decoder_block_forward.7']
    %8 = vsyncpa [#allocation3], 0
    %s9 = scalar_lea.sflag [#allocation3], 1
    %10 = vsyncpa %s9, 0
    loop: start=0, step=1, limit=4
    $region2: #{decoder_block_forward.7} parent=1 // loop_pre_header
      _
    $region3: #{decoder_block_forward.7} parent=1 // loop_header
      %s12 = sphi 0, %s16
      %p13 = scmp.ge.s32.totalorder %s12, 4
      %s19 = sphi 0, %s31
      %s20 = sphi 0, %s27
      %s21 = sphi 0, %s19
      %s22 = sphi 0, %s20
      %s23 = sphi 0, %s21
      %s24 = sphi 0, %s22
      %s36 = sphi 0, %s38
      %s39 = sphi 0, %s36
      %s40 = sphi 0, %s39
      %s56 = sphi 0, %s40
      %s60 = sphi 0, %s60
      %s62 = sphi 0, %s60
      %s63 = sphi 0, %s62
      %s77 = sphi 0, %s63
      %s81 = sphi 0, %s81
      %s83 = sphi 0, %s81
      %s84 = sphi 0, %s83
      %s98 = sphi 0, %s84
      %s106 = sphi 0, %s108
      %s109 = sphi 0, %s106
      %s110 = sphi 0, %s109
      %s126 = sphi 0, %s110
    $region4: #{decoder_block_forward.7} parent=1 // loop_header_branch
      %15 = sbr.rel (%p13) target = $region8
    $region5: #{decoder_block_forward.7} parent=1 // loop_body
      %s17 = ssub.s32 %s12, 1
      %s18 = ssub.s32 %s12, 2
      %s25 = sadd.s32 1, %s20
      %p26 = scmp.ge.s32.totalorder %s25, 1
      %s27 = scalar_select %p26, 0, %s25
      %s28 = sadd.s32 1, %s19
      %s29 = scalar_select %p26, %s28, %s19
      %p30 = scmp.ge.s32.totalorder %s29, 2
      %s31 = scalar_select %p30, 0, %s29
      %s32 = ssub.s32 %s19, %s31
      %s33 = ssub.s32 %s20, %s27
      %s34 = sor.u32 %s32, %s33
      %p35 = scmp.eq.s32.totalorder %s34, 0
      %s37 = sadd.s32 %s36, 1
      %s38 = scalar_select %p35, %s36, %s37
      %p41 = pneg %p35
      %p42 = scmp.eq.s32.totalorder %s12, 1
      %p43 = por %p41, %p42
      %p44 = scmp.ne.s32.totalorder %s36, %s39
      %p45 = scmp.eq.s32.totalorder %s12, 0
      %p46 = por %p44, %p45
      %p47 = scmp.ne.s32.totalorder %s36, %s39
      %p48 = scmp.eq.s32.totalorder %s17, 1
      %p49 = por %p47, %p48
      %p50 = scmp.ne.s32.totalorder %s39, %s40
      %p51 = scmp.eq.s32.totalorder %s17, 0
      %p52 = por %p50, %p51
      %p53 = scmp.ne.s32.totalorder %s39, %s40
      %p54 = scmp.eq.s32.totalorder %s18, 1
      %p55 = por %p53, %p54
      %p57 = scmp.ne.s32.totalorder %s40, %s56
      %p58 = scmp.eq.s32.totalorder %s18, 0
      %p59 = por %p57, %p58
      %s61 = sadd.s32 %s60, 1
      %p64 = scmp.eq.s32.totalorder %s12, 1
      %p65 = scmp.ne.s32.totalorder %s60, %s62
      %p66 = scmp.eq.s32.totalorder %s12, 0
      %p67 = por %p65, %p66
      %p68 = scmp.ne.s32.totalorder %s60, %s62
      %p69 = scmp.eq.s32.totalorder %s17, 1
      %p70 = por %p68, %p69
      %p71 = scmp.ne.s32.totalorder %s62, %s63
      %p72 = scmp.eq.s32.totalorder %s17, 0
      %p73 = por %p71, %p72
      %p74 = scmp.ne.s32.totalorder %s62, %s63
      %p75 = scmp.eq.s32.totalorder %s18, 1
      %p76 = por %p74, %p75
      %p78 = scmp.ne.s32.totalorder %s63, %s77
      %p79 = scmp.eq.s32.totalorder %s18, 0
      %p80 = por %p78, %p79
      %s82 = sadd.s32 %s81, 1
      %p85 = scmp.eq.s32.totalorder %s12, 1
      %p86 = scmp.ne.s32.totalorder %s81, %s83
      %p87 = scmp.eq.s32.totalorder %s12, 0
      %p88 = por %p86, %p87
      %p89 = scmp.ne.s32.totalorder %s81, %s83
      %p90 = scmp.eq.s32.totalorder %s17, 1
      %p91 = por %p89, %p90
      %p92 = scmp.ne.s32.totalorder %s83, %s84
      %p93 = scmp.eq.s32.totalorder %s17, 0
      %p94 = por %p92, %p93
      %p95 = scmp.ne.s32.totalorder %s83, %s84
      %p96 = scmp.eq.s32.totalorder %s18, 1
      %p97 = por %p95, %p96
      %p99 = scmp.ne.s32.totalorder %s84, %s98
      %p100 = scmp.eq.s32.totalorder %s18, 0
      %p101 = por %p99, %p100
      %s102 = ssub.s32 %s19, %s31
      %s103 = ssub.s32 %s20, %s27
      %s104 = sor.u32 %s102, %s103
      %p105 = scmp.eq.s32.totalorder %s104, 0
      %s107 = sadd.s32 %s106, 1
      %s108 = scalar_select %p105, %s106, %s107
      %p111 = pneg %p105
      %p112 = scmp.eq.s32.totalorder %s12, 1
      %p113 = por %p111, %p112
      %p114 = scmp.ne.s32.totalorder %s106, %s109
      %p115 = scmp.eq.s32.totalorder %s12, 0
      %p116 = por %p114, %p115
      %p117 = scmp.ne.s32.totalorder %s106, %s109
      %p118 = scmp.eq.s32.totalorder %s17, 1
      %p119 = por %p117, %p118
      %p120 = scmp.ne.s32.totalorder %s109, %s110
      %p121 = scmp.eq.s32.totalorder %s17, 0
      %p122 = por %p120, %p121
      %p123 = scmp.ne.s32.totalorder %s109, %s110
      %p124 = scmp.eq.s32.totalorder %s18, 1
      %p125 = por %p123, %p124
      %p127 = scmp.ne.s32.totalorder %s110, %s126
      %p128 = scmp.eq.s32.totalorder %s18, 0
      %p129 = por %p127, %p128
      %p130 = scmp.le.s32.totalorder 1, %s12
      %p131 = scmp.lt.s32.totalorder %s12, 3
      %p132 = pnand %p130, %p131
      %p133 = pneg %p132
      // Predicated region
      $region9: #{decoder_block_forward.7} parent=5 // pred_check
        _
      $region10: #{decoder_block_forward.7} parent=5 // pred_check_branch
        %135 = sbr.rel (%p132) target = $region12
      $region11: #{decoder_block_forward.7} parent=5 // pred_region
        %s136 = ssub.s32 %s12, 1
        // Predicated region
        $region13: #{decoder_block_forward.7} parent=11 // pred_check
          %p137 = pneg %p73
        $region14: #{decoder_block_forward.7} parent=11 // pred_check_branch
          %139 = sbr.rel (%p137) target = $region16
        $region15: #{decoder_block_forward.7} parent=11 // pred_region
          _
        $region16: #{decoder_block_forward.7} parent=11 // pred_fallthru
          _
        // Predicated region
        $region17: #{decoder_block_forward.7} parent=11 // pred_check
          %p140 = pneg %p94
        $region18: #{decoder_block_forward.7} parent=11 // pred_check_branch
          %142 = sbr.rel (%p140) target = $region20
        $region19: #{decoder_block_forward.7} parent=11 // pred_region
          _
        $region20: #{decoder_block_forward.7} parent=11 // pred_fallthru
          _
      $region12: #{decoder_block_forward.7} parent=5 // pred_fallthru
        _
      %p143 = scmp.lt.s32.totalorder %s12, 2
      // Predicated region
      $region21: #{decoder_block_forward.7} parent=5 // pred_check
        %p144 = pneg %p143
      $region22: #{decoder_block_forward.7} parent=5 // pred_check_branch
        %146 = sbr.rel (%p144) target = $region24
      $region23: #{decoder_block_forward.7} parent=5 // pred_region
        // Predicated region
        $region25: #{decoder_block_forward.7} parent=23 // pred_check
          %p147 = pneg %p46
        $region26: #{decoder_block_forward.7} parent=23 // pred_check_branch
          %149 = sbr.rel (%p147) target = $region28
        $region27: #{decoder_block_forward.7} parent=23 // pred_region
          %s150 = smul.u32 2, %s20
          %p151 = scmp.lt.s32.totalorder %s19, 1
          %s152 = scalar_select %p151, %s19, 1
          %p153 = scmp.lt.s32.totalorder %s150, 1
          %s154 = scalar_select %p153, %s150, 1
          %s155 = smul.addr %s152, 8
          %s156 = sadd.s32 %s154, %s155
          %s157 = smul.addr %s156, 4
          %s158 = scalar_lea.vmem %s0, %s157
          %s159 = smul.u32 2, %s20
        $region28: #{decoder_block_forward.7} parent=23 // pred_fallthru
          _
      $region24: #{decoder_block_forward.7} parent=5 // pred_fallthru
        _
      %p160 = scmp.le.s32.totalorder 1, %s12
      %p161 = scmp.lt.s32.totalorder %s12, 3
      %p162 = pnand %p160, %p161
      %p163 = pneg %p162
      // Predicated region
      $region29: #{decoder_block_forward.7} parent=5 // pred_check
        _
      $region30: #{decoder_block_forward.7} parent=5 // pred_check_branch
        %165 = sbr.rel (%p162) target = $region32
      $region31: #{decoder_block_forward.7} parent=5 // pred_region
        %s166 = ssub.s32 %s12, 1
        %s167 = smul.u32 2, %s22
        %p168 = scmp.lt.s32.totalorder %s21, 1
        %s169 = scalar_select %p168, %s21, 1
        %p170 = scmp.lt.s32.totalorder %s167, 1
        %s171 = scalar_select %p170, %s167, 1
        %s172 = smul.addr %s169, 8
        %s173 = sadd.s32 %s171, %s172
        %s174 = smul.addr %s173, 4
        %s175 = scalar_lea.vmem %s0, %s174
        %p176 = pneg %p52
        %p177 = pneg %p49
        %p178 = pneg %p73
        %p179 = pneg %p70
        %p180 = pneg %p94
        %p181 = pneg %p91
        %p182 = pneg %p122
        %p183 = pneg %p119
        %s184 = sand.u32 %s109, 1
        %s185 = scalar_lea.sflag [#allocation3], %s184
        %s186 = sand.u32 %s109, 1
        %s187 = smul.addr %s186, 64
        %s188 = scalar_lea.vmem [#allocation2], %s187
        %s189 = smul.u32 2, %s22
        %p190 = scmp.lt.s32.totalorder %s21, 1
        %s191 = scalar_select %p190, %s21, 1
        %p192 = scmp.lt.s32.totalorder %s189, 1
        %s193 = scalar_select %p192, %s189, 1
        %s194 = smul.addr %s191, 8
        %s195 = sadd.s32 %s193, %s194
        %s196 = smul.addr %s195, 4
        %s197 = scalar_lea.vmem %s0, %s196
        %s198 = smul.u32 2, %s22
        %s199 = smul.u32 2, %s22
        %v200 = vld [vmem:[%s197] sm:$0xf]
        %v201 = vld [vmem:[%s197 + $0x4] sm:$0xf]
        %v202 = vld [vmem:[%s197 + $0x8] sm:$0xf]
        %v203 = vld [vmem:[%s197 + $0xc] sm:$0xf]
        %v204 = vld [vmem:[%s197 + $0x10] sm:$0xf]
        %v205 = vld [vmem:[%s197 + $0x14] sm:$0xf]
        %v206 = vld [vmem:[%s197 + $0x18] sm:$0xf]
        %v207 = vld [vmem:[%s197 + $0x1c] sm:$0xf]
        %v208 = vunpack.c.l.bf16 %v200
        %v209 = vunpack.c.l.bf16 %v201
        %v210 = vunpack.c.l.bf16 %v202
        %v211 = vunpack.c.l.bf16 %v203
        %v212 = vunpack.c.l.bf16 %v204
        %v213 = vunpack.c.l.bf16 %v205
        %v214 = vunpack.c.l.bf16 %v206
        %v215 = vunpack.c.l.bf16 %v207
        %v216 = vld [vmem:[%s1] sm:$0x1]
        %v217 = vld [vmem:[%s1 + $0x1] sm:$0x1]
        %v218 = vld [vmem:[%s1 + $0x2] sm:$0x1]
        %v219 = vld [vmem:[%s1 + $0x3] sm:$0x1]
        %v224 = vlaneseq
        %v225 = vshrl.u32 %v224, 7
        %v226 = vsub.s32 0, %v225
        %v227 = vrot.slane %v216, %v226
        %v228 = vlaneseq
        %v229 = vshrl.u32 %v228, 7
        %v230 = vsub.s32 0, %v229
        %v231 = vrot.slane %v217, %v230
        %v232 = vlaneseq
        %v233 = vshrl.u32 %v232, 7
        %v234 = vsub.s32 0, %v233
        %v235 = vrot.slane %v218, %v234
        %v236 = vlaneseq
        %v237 = vshrl.u32 %v236, 7
        %v238 = vsub.s32 0, %v237
        %v239 = vrot.slane %v219, %v238
        %240 = vset.pattern.permute.xlu0 0
        %241 = vperm.xlu0 %240, %v227
        %v242 = vpop.permute.xlu0 %241
        %244 = vset.pattern.permute.xlu0 0
        %245 = vperm.xlu0 %244, %v231
        %v246 = vpop.permute.xlu0 %245
        %248 = vset.pattern.permute.xlu0 0
        %249 = vperm.xlu0 %248, %v235
        %v250 = vpop.permute.xlu0 %249
        %252 = vset.pattern.permute.xlu0 0
        %253 = vperm.xlu0 %252, %v239
        %v254 = vpop.permute.xlu0 %253
        %v256 = vmul.f32 %v208, %v242
        %v257 = vmul.f32 %v209, %v242
        %v258 = vmul.f32 %v210, %v246
        %v259 = vmul.f32 %v211, %v246
        %v260 = vmul.f32 %v212, %v250
        %v261 = vmul.f32 %v213, %v250
        %v262 = vmul.f32 %v214, %v254
        %v263 = vmul.f32 %v215, %v254
        %v264 = vld [vmem:[%s2] sm:$0x1]
        %v265 = vld [vmem:[%s2 + $0x1] sm:$0x1]
        %v266 = vld [vmem:[%s2 + $0x2] sm:$0x1]
        %v267 = vld [vmem:[%s2 + $0x3] sm:$0x1]
        %v272 = vlaneseq
        %v273 = vshrl.u32 %v272, 7
        %v274 = vsub.s32 0, %v273
        %v275 = vrot.slane %v264, %v274
        %v276 = vlaneseq
        %v277 = vshrl.u32 %v276, 7
        %v278 = vsub.s32 0, %v277
        %v279 = vrot.slane %v265, %v278
        %v280 = vlaneseq
        %v281 = vshrl.u32 %v280, 7
        %v282 = vsub.s32 0, %v281
        %v283 = vrot.slane %v266, %v282
        %v284 = vlaneseq
        %v285 = vshrl.u32 %v284, 7
        %v286 = vsub.s32 0, %v285
        %v287 = vrot.slane %v267, %v286
        %288 = vset.pattern.permute.xlu0 0
        %289 = vperm.xlu0 %288, %v275
        %v290 = vpop.permute.xlu0 %289
        %292 = vset.pattern.permute.xlu0 0
        %293 = vperm.xlu0 %292, %v279
        %v294 = vpop.permute.xlu0 %293
        %296 = vset.pattern.permute.xlu0 0
        %297 = vperm.xlu0 %296, %v283
        %v298 = vpop.permute.xlu0 %297
        %300 = vset.pattern.permute.xlu0 0
        %301 = vperm.xlu0 %300, %v287
        %v302 = vpop.permute.xlu0 %301
        %v304 = vadd.f32 %v256, %v290
        %v305 = vadd.f32 %v257, %v290
        %v306 = vadd.f32 %v258, %v294
        %v307 = vadd.f32 %v259, %v294
        %v308 = vadd.f32 %v260, %v298
        %v309 = vadd.f32 %v261, %v298
        %v310 = vadd.f32 %v262, %v302
        %v311 = vadd.f32 %v263, %v302
        %v312 = vmax.f32 %v304, 0.0
        %v313 = vmax.f32 %v305, 0.0
        %v314 = vmax.f32 %v306, 0.0
        %v315 = vmax.f32 %v307, 0.0
        %v316 = vmax.f32 %v308, 0.0
        %v317 = vmax.f32 %v309, 0.0
        %v318 = vmax.f32 %v310, 0.0
        %v319 = vmax.f32 %v311, 0.0
        %328 = vrot.lane.b32.xlu0 %v312, 127
        %v329 = vpop.permute.xlu0 %328
        %330 = vrot.lane.b32.xlu0 %v313, 127
        %v331 = vpop.permute.xlu0 %330
        %332 = vrot.lane.b32.xlu0 %v314, 127
        %v333 = vpop.permute.xlu0 %332
        %334 = vrot.lane.b32.xlu0 %v315, 127
        %v335 = vpop.permute.xlu0 %334
        %336 = vrot.lane.b32.xlu0 %v316, 127
        %v337 = vpop.permute.xlu0 %336
        %338 = vrot.lane.b32.xlu0 %v317, 127
        %v339 = vpop.permute.xlu0 %338
        %340 = vrot.lane.b32.xlu0 %v318, 127
        %v341 = vpop.permute.xlu0 %340
        %342 = vrot.lane.b32.xlu0 %v319, 127
        %v343 = vpop.permute.xlu0 %342
        %vm352 = vcmask 130048
        %353 = vst.msk [vmem:[%s188] sm:$0xff] %vm352, %v329
        %354 = vst.msk [vmem:[%s188 + $0x8] sm:$0xff] %vm352, %v331
        %355 = vst.msk [vmem:[%s188 + $0x10] sm:$0xff] %vm352, %v333
        %356 = vst.msk [vmem:[%s188 + $0x18] sm:$0xff] %vm352, %v335
        %357 = vst.msk [vmem:[%s188 + $0x20] sm:$0xff] %vm352, %v337
        %358 = vst.msk [vmem:[%s188 + $0x28] sm:$0xff] %vm352, %v339
        %359 = vst.msk [vmem:[%s188 + $0x30] sm:$0xff] %vm352, %v341
        %360 = vst.msk [vmem:[%s188 + $0x38] sm:$0xff] %vm352, %v343
        %s361 = sand.u32 %s109, 1
        %s362 = scalar_lea.sflag [#allocation3], %s361
        %s363 = sand.u32 %s109, 1
        %s364 = smul.addr %s363, 64
        %s365 = scalar_lea.vmem [#allocation2], %s364
        // Predicated region
        $region33: #{decoder_block_forward.7} parent=31 // pred_check
          %p366 = pneg %p119
        $region34: #{decoder_block_forward.7} parent=31 // pred_check_branch
          %368 = sbr.rel (%p366) target = $region36
        $region35: #{decoder_block_forward.7} parent=31 // pred_region
          %s369 = smul.u32 2, %s22
          %s371 = ssub.s32 1024, 1024
          %372 = vsyncadd %s362, %s371
          %s373 = smul.addr %s21, 8
          %s374 = sadd.s32 %s369, %s373
          %s375 = smul.addr %s374, 128
          %s376 = scalar_lea.hbm %s3, %s375
          %s377 = sshll.u32 %s365, 4
          %s378 = int_to_ptr.vmem [resolvable:$true] %s377
          %383 = dma.vmem_to_hbm [thread:$0]  %s378, 1024, %s376, %s362, 128, 128, 8
        $region36: #{decoder_block_forward.7} parent=31 // pred_fallthru
          _
      $region32: #{decoder_block_forward.7} parent=5 // pred_fallthru
        _
      %p384 = scmp.le.s32.totalorder 2, %s12
      // Predicated region
      $region37: #{decoder_block_forward.7} parent=5 // pred_check
        %p385 = pneg %p384
      $region38: #{decoder_block_forward.7} parent=5 // pred_check_branch
        %387 = sbr.rel (%p385) target = $region40
      $region39: #{decoder_block_forward.7} parent=5 // pred_region
        %s388 = ssub.s32 %s12, 2
        // Predicated region
        $region41: #{decoder_block_forward.7} parent=39 // pred_check
          %p389 = pneg %p125
        $region42: #{decoder_block_forward.7} parent=39 // pred_check_branch
          %391 = sbr.rel (%p389) target = $region44
        $region43: #{decoder_block_forward.7} parent=39 // pred_region
          %s392 = sand.u32 %s110, 1
          %s393 = scalar_lea.sflag [#allocation3], %s392
          %s394 = sand.u32 %s110, 1
          %s395 = smul.addr %s394, 64
          %s396 = scalar_lea.vmem [#allocation2], %s395
          %397 = dma.done %s393, 1024
        $region44: #{decoder_block_forward.7} parent=39 // pred_fallthru
          _
      $region40: #{decoder_block_forward.7} parent=5 // pred_fallthru
        _
    $region6: #{decoder_block_forward.7} parent=1 // loop_footer
      %s16 = sadd.s32 1, %s12
    $region7: #{decoder_block_forward.7} parent=1 // loop_footer_branch
      %11 = sbr.rel target = $region3
    $region8: #{decoder_block_forward.7} parent=1 // loop_exit
      _
    %398 = vsyncpa [#allocation3], 1
    %s399 = scalar_lea.sflag [#allocation3], 1
    %400 = vsyncpa %s399, 1

// kernel: decoder_block_forward.6
$region0: #{decoder_block_forward.6}
  #allocation0 [shape = 'u32[]', space=smem, size = 0x4, offset = 0x4, fixed_abs, tag = 'smem constant byte address 0x4 - core index']
  #allocation1 [shape = 'u32[144,128]{1,0:T(1,128)}', space=vmem, size = 0x12000, scoped, tag = 'internal scratch']
  %s0 = inlined_call_operand.vmem [shape: bf16[2,4,2048], index: 0, kind: input, shape index: {}, may-alias: {0,1,2}]
  %s1 = inlined_call_operand.vmem [shape: bf16[2,4,2048], index: 1, kind: input, shape index: {}, may-alias: {0,1,2}]
  %s2 = inlined_call_operand.vmem [shape: bf16[2,4,2048], index: 2, kind: input, shape index: {}, may-alias: {0,1,2}]
  %s3 = inlined_call_operand.vmem [shape: f32[4,1], index: 3, kind: input, shape index: {}]
  %s4 = inlined_call_operand.vmem [shape: f32[4,1], index: 4, kind: input, shape index: {}]
  %s5 = inlined_call_operand.vmem [shape: bf16[9,4,4], index: 5, kind: input, shape index: {}]
  %s6 = inlined_call_operand.vmem [shape: f32[1,1280], index: 6, kind: input, shape index: {}]
  %s7 = inlined_call_operand.vmem [shape: bf16[2,4,2048], index: 7, kind: output, shape index: {0}]
  %s8 = inlined_call_operand.vmem [shape: f32[2,2,4,1], index: 8, kind: output, shape index: {1}]
  %s9 = inlined_call_operand.vmem [shape: f32[2,2,4,1], index: 9, kind: output, shape index: {2}]
  %10 = xla_tuple %s7, %s8, %s9
  %s11 = sld [smem:[#allocation0]]
  $region77: #{decoder_block_forward.6} parent=0
    _
  %s13 = ssub.s32 1, %s11
  %s14 = scalar_select 0, %s13, %s11
  loop: start=0, step=1, limit=6
  $region2: #{decoder_block_forward.6} parent=0 // loop_pre_header
    _
  $region3: #{decoder_block_forward.6} parent=0 // loop_header
    %s16 = sphi 0, %s20
    %p17 = scmp.ge.s32.totalorder %s16, 6
    %s23 = sphi 0, %s35
    %s24 = sphi 0, %s31
    %s25 = sphi 0, %s23
    %s26 = sphi 0, %s24
    %s27 = sphi 0, %s25
    %s28 = sphi 0, %s26
    %s40 = sphi 0, %s42
    %s43 = sphi 0, %s40
    %s44 = sphi 0, %s43
    %s60 = sphi 0, %s44
    %s76 = sphi 0, %s78
    %s79 = sphi 0, %s76
    %s80 = sphi 0, %s79
    %s96 = sphi 0, %s80
    %s112 = sphi 0, %s114
    %s115 = sphi 0, %s112
    %s116 = sphi 0, %s115
    %s132 = sphi 0, %s116
    %s136 = sphi 0, %s136
    %s138 = sphi 0, %s136
    %s139 = sphi 0, %s138
    %s153 = sphi 0, %s139
    %s157 = sphi 0, %s157
    %s159 = sphi 0, %s157
    %s160 = sphi 0, %s159
    %s174 = sphi 0, %s160
    %s178 = sphi 0, %s178
    %s180 = sphi 0, %s178
    %s181 = sphi 0, %s180
    %s195 = sphi 0, %s181
    %s199 = sphi 0, %s199
    %s201 = sphi 0, %s199
    %s202 = sphi 0, %s201
    %s216 = sphi 0, %s202
    %s224 = sphi 0, %s226
    %s227 = sphi 0, %s224
    %s228 = sphi 0, %s227
    %s244 = sphi 0, %s228
    %s252 = sphi 0, %s254
    %s255 = sphi 0, %s252
    %s256 = sphi 0, %s255
    %s272 = sphi 0, %s256
    %s280 = sphi 0, %s282
    %s283 = sphi 0, %s280
    %s284 = sphi 0, %s283
    %s300 = sphi 0, %s284
  $region4: #{decoder_block_forward.6} parent=0 // loop_header_branch
    %19 = sbr.rel (%p17) target = $region8
  $region5: #{decoder_block_forward.6} parent=0 // loop_body
    %s21 = ssub.s32 %s16, 1
    %s22 = ssub.s32 %s16, 2
    %s29 = sadd.s32 1, %s24
    %p30 = scmp.ge.s32.totalorder %s29, 2
    %s31 = scalar_select %p30, 0, %s29
    %s32 = sadd.s32 1, %s23
    %s33 = scalar_select %p30, %s32, %s23
    %p34 = scmp.ge.s32.totalorder %s33, 2
    %s35 = scalar_select %p34, 0, %s33
    %s36 = ssub.s32 %s23, %s35
    %s37 = ssub.s32 %s24, %s31
    %s38 = sor.u32 %s36, %s37
    %p39 = scmp.eq.s32.totalorder %s38, 0
    %s41 = sadd.s32 %s40, 1
    %s42 = scalar_select %p39, %s40, %s41
    %p45 = pneg %p39
    %p46 = scmp.eq.s32.totalorder %s16, 3
    %p47 = por %p45, %p46
    %p48 = scmp.ne.s32.totalorder %s40, %s43
    %p49 = scmp.eq.s32.totalorder %s16, 0
    %p50 = por %p48, %p49
    %p51 = scmp.ne.s32.totalorder %s40, %s43
    %p52 = scmp.eq.s32.totalorder %s21, 3
    %p53 = por %p51, %p52
    %p54 = scmp.ne.s32.totalorder %s43, %s44
    %p55 = scmp.eq.s32.totalorder %s21, 0
    %p56 = por %p54, %p55
    %p57 = scmp.ne.s32.totalorder %s43, %s44
    %p58 = scmp.eq.s32.totalorder %s22, 3
    %p59 = por %p57, %p58
    %p61 = scmp.ne.s32.totalorder %s44, %s60
    %p62 = scmp.eq.s32.totalorder %s22, 0
    %p63 = por %p61, %p62
    %s64 = smul.u32 %s24, 8
    %s65 = ssub.s32 %s64, 1
    %p66 = scmp.gt.s32.totalorder %s65, 0
    %s67 = scalar_select %p66, %s65, 0
    %s68 = smul.u32 %s31, 8
    %s69 = ssub.s32 %s68, 1
    %p70 = scmp.gt.s32.totalorder %s69, 0
    %s71 = scalar_select %p70, %s69, 0
    %s72 = ssub.s32 %s23, %s35
    %s73 = ssub.s32 %s67, %s71
    %s74 = sor.u32 %s72, %s73
    %p75 = scmp.eq.s32.totalorder %s74, 0
    %s77 = sadd.s32 %s76, 1
    %s78 = scalar_select %p75, %s76, %s77
    %p81 = pneg %p75
    %p82 = scmp.eq.s32.totalorder %s16, 3
    %p83 = por %p81, %p82
    %p84 = scmp.ne.s32.totalorder %s76, %s79
    %p85 = scmp.eq.s32.totalorder %s16, 0
    %p86 = por %p84, %p85
    %p87 = scmp.ne.s32.totalorder %s76, %s79
    %p88 = scmp.eq.s32.totalorder %s21, 3
    %p89 = por %p87, %p88
    %p90 = scmp.ne.s32.totalorder %s79, %s80
    %p91 = scmp.eq.s32.totalorder %s21, 0
    %p92 = por %p90, %p91
    %p93 = scmp.ne.s32.totalorder %s79, %s80
    %p94 = scmp.eq.s32.totalorder %s22, 3
    %p95 = por %p93, %p94
    %p97 = scmp.ne.s32.totalorder %s80, %s96
    %p98 = scmp.eq.s32.totalorder %s22, 0
    %p99 = por %p97, %p98
    %s100 = sadd.s32 %s24, 1
    %s101 = smul.u32 %s100, 8
    %p102 = scmp.lt.s32.totalorder %s101, 15
    %s103 = scalar_select %p102, %s101, 15
    %s104 = sadd.s32 %s31, 1
    %s105 = smul.u32 %s104, 8
    %p106 = scmp.lt.s32.totalorder %s105, 15
    %s107 = scalar_select %p106, %s105, 15
    %s108 = ssub.s32 %s23, %s35
    %s109 = ssub.s32 %s103, %s107
    %s110 = sor.u32 %s108, %s109
    %p111 = scmp.eq.s32.totalorder %s110, 0
    %s113 = sadd.s32 %s112, 1
    %s114 = scalar_select %p111, %s112, %s113
    %p117 = pneg %p111
    %p118 = scmp.eq.s32.totalorder %s16, 3
    %p119 = por %p117, %p118
    %p120 = scmp.ne.s32.totalorder %s112, %s115
    %p121 = scmp.eq.s32.totalorder %s16, 0
    %p122 = por %p120, %p121
    %p123 = scmp.ne.s32.totalorder %s112, %s115
    %p124 = scmp.eq.s32.totalorder %s21, 3
    %p125 = por %p123, %p124
    %p126 = scmp.ne.s32.totalorder %s115, %s116
    %p127 = scmp.eq.s32.totalorder %s21, 0
    %p128 = por %p126, %p127
    %p129 = scmp.ne.s32.totalorder %s115, %s116
    %p130 = scmp.eq.s32.totalorder %s22, 3
    %p131 = por %p129, %p130
    %p133 = scmp.ne.s32.totalorder %s116, %s132
    %p134 = scmp.eq.s32.totalorder %s22, 0
    %p135 = por %p133, %p134
    %s137 = sadd.s32 %s136, 1
    %p140 = scmp.eq.s32.totalorder %s16, 3
    %p141 = scmp.ne.s32.totalorder %s136, %s138
    %p142 = scmp.eq.s32.totalorder %s16, 0
    %p143 = por %p141, %p142
    %p144 = scmp.ne.s32.totalorder %s136, %s138
    %p145 = scmp.eq.s32.totalorder %s21, 3
    %p146 = por %p144, %p145
    %p147 = scmp.ne.s32.totalorder %s138, %s139
    %p148 = scmp.eq.s32.totalorder %s21, 0
    %p149 = por %p147, %p148
    %p150 = scmp.ne.s32.totalorder %s138, %s139
    %p151 = scmp.eq.s32.totalorder %s22, 3
    %p152 = por %p150, %p151
    %p154 = scmp.ne.s32.totalorder %s139, %s153
    %p155 = scmp.eq.s32.totalorder %s22, 0
    %p156 = por %p154, %p155
    %s158 = sadd.s32 %s157, 1
    %p161 = scmp.eq.s32.totalorder %s16, 3
    %p162 = scmp.ne.s32.totalorder %s157, %s159
    %p163 = scmp.eq.s32.totalorder %s16, 0
    %p164 = por %p162, %p163
    %p165 = scmp.ne.s32.totalorder %s157, %s159
    %p166 = scmp.eq.s32.totalorder %s21, 3
    %p167 = por %p165, %p166
    %p168 = scmp.ne.s32.totalorder %s159, %s160
    %p169 = scmp.eq.s32.totalorder %s21, 0
    %p170 = por %p168, %p169
    %p171 = scmp.ne.s32.totalorder %s159, %s160
    %p172 = scmp.eq.s32.totalorder %s22, 3
    %p173 = por %p171, %p172
    %p175 = scmp.ne.s32.totalorder %s160, %s174
    %p176 = scmp.eq.s32.totalorder %s22, 0
    %p177 = por %p175, %p176
    %s179 = sadd.s32 %s178, 1
    %p182 = scmp.eq.s32.totalorder %s16, 3
    %p183 = scmp.ne.s32.totalorder %s178, %s180
    %p184 = scmp.eq.s32.totalorder %s16, 0
    %p185 = por %p183, %p184
    %p186 = scmp.ne.s32.totalorder %s178, %s180
    %p187 = scmp.eq.s32.totalorder %s21, 3
    %p188 = por %p186, %p187
    %p189 = scmp.ne.s32.totalorder %s180, %s181
    %p190 = scmp.eq.s32.totalorder %s21, 0
    %p191 = por %p189, %p190
    %p192 = scmp.ne.s32.totalorder %s180, %s181
    %p193 = scmp.eq.s32.totalorder %s22, 3
    %p194 = por %p192, %p193
    %p196 = scmp.ne.s32.totalorder %s181, %s195
    %p197 = scmp.eq.s32.totalorder %s22, 0
    %p198 = por %p196, %p197
    %s200 = sadd.s32 %s199, 1
    %p203 = scmp.eq.s32.totalorder %s16, 3
    %p204 = scmp.ne.s32.totalorder %s199, %s201
    %p205 = scmp.eq.s32.totalorder %s16, 0
    %p206 = por %p204, %p205
    %p207 = scmp.ne.s32.totalorder %s199, %s201
    %p208 = scmp.eq.s32.totalorder %s21, 3
    %p209 = por %p207, %p208
    %p210 = scmp.ne.s32.totalorder %s201, %s202
    %p211 = scmp.eq.s32.totalorder %s21, 0
    %p212 = por %p210, %p211
    %p213 = scmp.ne.s32.totalorder %s201, %s202
    %p214 = scmp.eq.s32.totalorder %s22, 3
    %p215 = por %p213, %p214
    %p217 = scmp.ne.s32.totalorder %s202, %s216
    %p218 = scmp.eq.s32.totalorder %s22, 0
    %p219 = por %p217, %p218
    %s220 = ssub.s32 %s23, %s35
    %s221 = ssub.s32 %s24, %s31
    %s222 = sor.u32 %s220, %s221
    %p223 = scmp.eq.s32.totalorder %s222, 0
    %s225 = sadd.s32 %s224, 1
    %s226 = scalar_select %p223, %s224, %s225
    %p229 = pneg %p223
    %p230 = scmp.eq.s32.totalorder %s16, 3
    %p231 = por %p229, %p230
    %p232 = scmp.ne.s32.totalorder %s224, %s227
    %p233 = scmp.eq.s32.totalorder %s16, 0
    %p234 = por %p232, %p233
    %p235 = scmp.ne.s32.totalorder %s224, %s227
    %p236 = scmp.eq.s32.totalorder %s21, 3
    %p237 = por %p235, %p236
    %p238 = scmp.ne.s32.totalorder %s227, %s228
    %p239 = scmp.eq.s32.totalorder %s21, 0
    %p240 = por %p238, %p239
    %p241 = scmp.ne.s32.totalorder %s227, %s228
    %p242 = scmp.eq.s32.totalorder %s22, 3
    %p243 = por %p241, %p242
    %p245 = scmp.ne.s32.totalorder %s228, %s244
    %p246 = scmp.eq.s32.totalorder %s22, 0
    %p247 = por %p245, %p246
    %s248 = ssub.s32 %s23, %s35
    %s249 = ssub.s32 %s24, %s31
    %s250 = sor.u32 %s248, %s249
    %p251 = scmp.eq.s32.totalorder %s250, 0
    %s253 = sadd.s32 %s252, 1
    %s254 = scalar_select %p251, %s252, %s253
    %p257 = pneg %p251
    %p258 = scmp.eq.s32.totalorder %s16, 3
    %p259 = por %p257, %p258
    %p260 = scmp.ne.s32.totalorder %s252, %s255
    %p261 = scmp.eq.s32.totalorder %s16, 0
    %p262 = por %p260, %p261
    %p263 = scmp.ne.s32.totalorder %s252, %s255
    %p264 = scmp.eq.s32.totalorder %s21, 3
    %p265 = por %p263, %p264
    %p266 = scmp.ne.s32.totalorder %s255, %s256
    %p267 = scmp.eq.s32.totalorder %s21, 0
    %p268 = por %p266, %p267
    %p269 = scmp.ne.s32.totalorder %s255, %s256
    %p270 = scmp.eq.s32.totalorder %s22, 3
    %p271 = por %p269, %p270
    %p273 = scmp.ne.s32.totalorder %s256, %s272
    %p274 = scmp.eq.s32.totalorder %s22, 0
    %p275 = por %p273, %p274
    %s276 = ssub.s32 %s23, %s35
    %s277 = ssub.s32 %s24, %s31
    %s278 = sor.u32 %s276, %s277
    %p279 = scmp.eq.s32.totalorder %s278, 0
    %s281 = sadd.s32 %s280, 1
    %s282 = scalar_select %p279, %s280, %s281
    %p285 = pneg %p279
    %p286 = scmp.eq.s32.totalorder %s16, 3
    %p287 = por %p285, %p286
    %p288 = scmp.ne.s32.totalorder %s280, %s283
    %p289 = scmp.eq.s32.totalorder %s16, 0
    %p290 = por %p288, %p289
    %p291 = scmp.ne.s32.totalorder %s280, %s283
    %p292 = scmp.eq.s32.totalorder %s21, 3
    %p293 = por %p291, %p292
    %p294 = scmp.ne.s32.totalorder %s283, %s284
    %p295 = scmp.eq.s32.totalorder %s21, 0
    %p296 = por %p294, %p295
    %p297 = scmp.ne.s32.totalorder %s283, %s284
    %p298 = scmp.eq.s32.totalorder %s22, 3
    %p299 = por %p297, %p298
    %p301 = scmp.ne.s32.totalorder %s284, %s300
    %p302 = scmp.eq.s32.totalorder %s22, 0
    %p303 = por %p301, %p302
    %p304 = scmp.le.s32.totalorder 1, %s16
    %p305 = scmp.lt.s32.totalorder %s16, 5
    %p306 = pnand %p304, %p305
    %p307 = pneg %p306
    // Predicated region
    $region9: #{decoder_block_forward.6} parent=5 // pred_check
      _
    $region10: #{decoder_block_forward.6} parent=5 // pred_check_branch
      %309 = sbr.rel (%p306) target = $region12
    $region11: #{decoder_block_forward.6} parent=5 // pred_region
      %s310 = ssub.s32 %s16, 1
      // Predicated region
      $region13: #{decoder_block_forward.6} parent=11 // pred_check
        %p311 = pneg %p149
      $region14: #{decoder_block_forward.6} parent=11 // pred_check_branch
        %313 = sbr.rel (%p311) target = $region16
      $region15: #{decoder_block_forward.6} parent=11 // pred_region
        _
      $region16: #{decoder_block_forward.6} parent=11 // pred_fallthru
        _
      // Predicated region
      $region17: #{decoder_block_forward.6} parent=11 // pred_check
        %p314 = pneg %p170
      $region18: #{decoder_block_forward.6} parent=11 // pred_check_branch
        %316 = sbr.rel (%p314) target = $region20
      $region19: #{decoder_block_forward.6} parent=11 // pred_region
        _
      $region20: #{decoder_block_forward.6} parent=11 // pred_fallthru
        _
      // Predicated region
      $region21: #{decoder_block_forward.6} parent=11 // pred_check
        %p317 = pneg %p191
      $region22: #{decoder_block_forward.6} parent=11 // pred_check_branch
        %319 = sbr.rel (%p317) target = $region24
      $region23: #{decoder_block_forward.6} parent=11 // pred_region
        _
      $region24: #{decoder_block_forward.6} parent=11 // pred_fallthru
        _
      // Predicated region
      $region25: #{decoder_block_forward.6} parent=11 // pred_check
        %p320 = pneg %p212
      $region26: #{decoder_block_forward.6} parent=11 // pred_check_branch
        %322 = sbr.rel (%p320) target = $region28
      $region27: #{decoder_block_forward.6} parent=11 // pred_region
        _
      $region28: #{decoder_block_forward.6} parent=11 // pred_fallthru
        _
    $region12: #{decoder_block_forward.6} parent=5 // pred_fallthru
      _
    %p323 = scmp.lt.s32.totalorder %s16, 4
    // Predicated region
    $region29: #{decoder_block_forward.6} parent=5 // pred_check
      %p324 = pneg %p323
    $region30: #{decoder_block_forward.6} parent=5 // pred_check_branch
      %326 = sbr.rel (%p324) target = $region32
    $region31: #{decoder_block_forward.6} parent=5 // pred_region
      // Predicated region
      $region33: #{decoder_block_forward.6} parent=31 // pred_check
        %p327 = pneg %p50
      $region34: #{decoder_block_forward.6} parent=31 // pred_check_branch
        %329 = sbr.rel (%p327) target = $region36
      $region35: #{decoder_block_forward.6} parent=31 // pred_region
        %s330 = smul.u32 8, %s24
        %p331 = scmp.lt.s32.totalorder %s23, 1
        %s332 = scalar_select %p331, %s23, 1
        %p333 = scmp.lt.s32.totalorder %s330, 15
        %s334 = scalar_select %p333, %s330, 15
        %s335 = smul.addr %s332, 16
        %s336 = sadd.s32 %s334, %s335
        %s337 = smul.addr %s336, 2
        %s338 = scalar_lea.vmem %s0, %s337
        %s339 = smul.u32 8, %s24
      $region36: #{decoder_block_forward.6} parent=31 // pred_fallthru
        _
      // Predicated region
      $region37: #{decoder_block_forward.6} parent=31 // pred_check
        %p340 = pneg %p86
      $region38: #{decoder_block_forward.6} parent=31 // pred_check_branch
        %342 = sbr.rel (%p340) target = $region40
      $region39: #{decoder_block_forward.6} parent=31 // pred_region
        %s343 = smul.u32 %s24, 8
        %s344 = ssub.s32 %s343, 1
        %p345 = scmp.gt.s32.totalorder %s344, 0
        %s346 = scalar_select %p345, %s344, 0
        %p347 = scmp.lt.s32.totalorder %s23, 1
        %s348 = scalar_select %p347, %s23, 1
        %p349 = scmp.lt.s32.totalorder %s346, 15
        %s350 = scalar_select %p349, %s346, 15
        %s351 = smul.addr %s348, 16
        %s352 = sadd.s32 %s350, %s351
        %s353 = smul.addr %s352, 2
        %s354 = scalar_lea.vmem %s1, %s353
        %s355 = smul.u32 %s24, 8
        %s356 = ssub.s32 %s355, 1
        %p357 = scmp.gt.s32.totalorder %s356, 0
        %s358 = scalar_select %p357, %s356, 0
      $region40: #{decoder_block_forward.6} parent=31 // pred_fallthru
        _
      // Predicated region
      $region41: #{decoder_block_forward.6} parent=31 // pred_check
        %p359 = pneg %p122
      $region42: #{decoder_block_forward.6} parent=31 // pred_check_branch
        %361 = sbr.rel (%p359) target = $region44
      $region43: #{decoder_block_forward.6} parent=31 // pred_region
        %s362 = sadd.s32 %s24, 1
        %s363 = smul.u32 %s362, 8
        %p364 = scmp.lt.s32.totalorder %s363, 15
        %s365 = scalar_select %p364, %s363, 15
        %p366 = scmp.lt.s32.totalorder %s23, 1
        %s367 = scalar_select %p366, %s23, 1
        %p368 = scmp.lt.s32.totalorder %s365, 15
        %s369 = scalar_select %p368, %s365, 15
        %s370 = smul.addr %s367, 16
        %s371 = sadd.s32 %s369, %s370
        %s372 = smul.addr %s371, 2
        %s373 = scalar_lea.vmem %s2, %s372
        %s374 = sadd.s32 %s24, 1
        %s375 = smul.u32 %s374, 8
        %p376 = scmp.lt.s32.totalorder %s375, 15
        %s377 = scalar_select %p376, %s375, 15
      $region44: #{decoder_block_forward.6} parent=31 // pred_fallthru
        _
    $region32: #{decoder_block_forward.6} parent=5 // pred_fallthru
      _
    %p378 = scmp.le.s32.totalorder 1, %s16
    %p379 = scmp.lt.s32.totalorder %s16, 5
    %p380 = pnand %p378, %p379
    %p381 = pneg %p380
    // Predicated region
    $region45: #{decoder_block_forward.6} parent=5 // pred_check
      _
    $region46: #{decoder_block_forward.6} parent=5 // pred_check_branch
      %383 = sbr.rel (%p380) target = $region48
    $region47: #{decoder_block_forward.6} parent=5 // pred_region
      %s384 = ssub.s32 %s16, 1
      %s385 = smul.u32 8, %s26
      %p386 = scmp.lt.s32.totalorder %s25, 1
      %s387 = scalar_select %p386, %s25, 1
      %p388 = scmp.lt.s32.totalorder %s385, 15
      %s389 = scalar_select %p388, %s385, 15
      %s390 = smul.addr %s387, 16
      %s391 = sadd.s32 %s389, %s390
      %s392 = smul.addr %s391, 2
      %s393 = scalar_lea.vmem %s0, %s392
      %p394 = pneg %p56
      %p395 = pneg %p53
      %s396 = smul.u32 %s26, 8
      %s397 = ssub.s32 %s396, 1
      %p398 = scmp.gt.s32.totalorder %s397, 0
      %s399 = scalar_select %p398, %s397, 0
      %p400 = scmp.lt.s32.totalorder %s25, 1
      %s401 = scalar_select %p400, %s25, 1
      %p402 = scmp.lt.s32.totalorder %s399, 15
      %s403 = scalar_select %p402, %s399, 15
      %s404 = smul.addr %s401, 16
      %s405 = sadd.s32 %s403, %s404
      %s406 = smul.addr %s405, 2
      %s407 = scalar_lea.vmem %s1, %s406
      %p408 = pneg %p92
      %p409 = pneg %p89
      %s410 = sadd.s32 %s26, 1
      %s411 = smul.u32 %s410, 8
      %p412 = scmp.lt.s32.totalorder %s411, 15
      %s413 = scalar_select %p412, %s411, 15
      %p414 = scmp.lt.s32.totalorder %s25, 1
      %s415 = scalar_select %p414, %s25, 1
      %p416 = scmp.lt.s32.totalorder %s413, 15
      %s417 = scalar_select %p416, %s413, 15
      %s418 = smul.addr %s415, 16
      %s419 = sadd.s32 %s417, %s418
      %s420 = smul.addr %s419, 2
      %s421 = scalar_lea.vmem %s2, %s420
      %p422 = pneg %p128
      %p423 = pneg %p125
      %p424 = pneg %p149
      %p425 = pneg %p146
      %p426 = pneg %p170
      %p427 = pneg %p167
      %p428 = pneg %p191
      %p429 = pneg %p188
      %p430 = pneg %p212
      %p431 = pneg %p209
      %p432 = pneg %p240
      %p433 = pneg %p237
      %s434 = smul.u32 8, %s26
      %p435 = scmp.lt.s32.totalorder %s25, 1
      %s436 = scalar_select %p435, %s25, 1
      %p437 = scmp.lt.s32.totalorder %s434, 15
      %s438 = scalar_select %p437, %s434, 15
      %s439 = smul.addr %s436, 16
      %s440 = sadd.s32 %s438, %s439
      %s441 = smul.addr %s440, 2
      %s442 = scalar_lea.vmem %s7, %s441
      %p443 = pneg %p268
      %p444 = pneg %p265
      %p445 = scmp.lt.s32.totalorder %s25, 1
      %s446 = scalar_select %p445, %s25, 1
      %p447 = scmp.lt.s32.totalorder %s26, 1
      %s448 = scalar_select %p447, %s26, 1
      %s449 = smul.addr %s446, 2
      %s450 = sadd.s32 %s448, %s449
      %s451 = smul.addr %s450, 4
      %s452 = scalar_lea.vmem %s8, %s451
      %p453 = pneg %p296
      %p454 = pneg %p293
      %p455 = scmp.lt.s32.totalorder %s25, 1
      %s456 = scalar_select %p455, %s25, 1
      %p457 = scmp.lt.s32.totalorder %s26, 1
      %s458 = scalar_select %p457, %s26, 1
      %s459 = smul.addr %s456, 2
      %s460 = sadd.s32 %s458, %s459
      %s461 = smul.addr %s460, 4
      %s462 = scalar_lea.vmem %s9, %s461
      %s463 = smul.u32 8, %s26
      %p464 = scmp.lt.s32.totalorder %s25, 1
      %s465 = scalar_select %p464, %s25, 1
      %p466 = scmp.lt.s32.totalorder %s463, 15
      %s467 = scalar_select %p466, %s463, 15
      %s468 = smul.addr %s465, 16
      %s469 = sadd.s32 %s467, %s468
      %s470 = smul.addr %s469, 2
      %s471 = scalar_lea.vmem %s0, %s470
      %s472 = smul.u32 8, %s26
      %s473 = smul.u32 %s26, 8
      %s474 = ssub.s32 %s473, 1
      %p475 = scmp.gt.s32.totalorder %s474, 0
      %s476 = scalar_select %p475, %s474, 0
      %p477 = scmp.lt.s32.totalorder %s25, 1
      %s478 = scalar_select %p477, %s25, 1
      %p479 = scmp.lt.s32.totalorder %s476, 15
      %s480 = scalar_select %p479, %s476, 15
      %s481 = smul.addr %s478, 16
      %s482 = sadd.s32 %s480, %s481
      %s483 = smul.addr %s482, 2
      %s484 = scalar_lea.vmem %s1, %s483
      %s485 = smul.u32 %s26, 8
      %s486 = ssub.s32 %s485, 1
      %p487 = scmp.gt.s32.totalorder %s486, 0
      %s488 = scalar_select %p487, %s486, 0
      %s489 = sadd.s32 %s26, 1
      %s490 = smul.u32 %s489, 8
      %p491 = scmp.lt.s32.totalorder %s490, 15
      %s492 = scalar_select %p491, %s490, 15
      %p493 = scmp.lt.s32.totalorder %s25, 1
      %s494 = scalar_select %p493, %s25, 1
      %p495 = scmp.lt.s32.totalorder %s492, 15
      %s496 = scalar_select %p495, %s492, 15
      %s497 = smul.addr %s494, 16
      %s498 = sadd.s32 %s496, %s497
      %s499 = smul.addr %s498, 2
      %s500 = scalar_lea.vmem %s2, %s499
      %s501 = sadd.s32 %s26, 1
      %s502 = smul.u32 %s501, 8
      %p503 = scmp.lt.s32.totalorder %s502, 15
      %s504 = scalar_select %p503, %s502, 15
      %s505 = smul.u32 8, %s26
      %p506 = scmp.lt.s32.totalorder %s25, 1
      %s507 = scalar_select %p506, %s25, 1
      %p508 = scmp.lt.s32.totalorder %s505, 15
      %s509 = scalar_select %p508, %s505, 15
      %s510 = smul.addr %s507, 16
      %s511 = sadd.s32 %s509, %s510
      %s512 = smul.addr %s511, 2
      %s513 = scalar_lea.vmem %s7, %s512
      %s514 = smul.u32 8, %s26
      %p515 = scmp.lt.s32.totalorder %s25, 1
      %s516 = scalar_select %p515, %s25, 1
      %p517 = scmp.lt.s32.totalorder %s26, 1
      %s518 = scalar_select %p517, %s26, 1
      %s519 = smul.addr %s516, 2
      %s520 = sadd.s32 %s518, %s519
      %s521 = smul.addr %s520, 4
      %s522 = scalar_lea.vmem %s8, %s521
      %p523 = scmp.lt.s32.totalorder %s25, 1
      %s524 = scalar_select %p523, %s25, 1
      %p525 = scmp.lt.s32.totalorder %s26, 1
      %s526 = scalar_select %p525, %s26, 1
      %s527 = smul.addr %s524, 2
      %s528 = sadd.s32 %s526, %s527
      %s529 = smul.addr %s528, 4
      %s530 = scalar_lea.vmem %s9, %s529
      %v532 = vld [vmem:[%s3] sm:$0xf]
      %v533 = vld [vmem:[%s4] sm:$0xf]
      %v534 = vld [vmem:[%s484] sm:$0x3]
      %v535 = vunpack.c.l.bf16 %v534
      %537 = vset.pattern.permute.xlu0 0
      %538 = vperm.xlu0 %537, %v532
      %v539 = vpop.permute.xlu0 %538
      %v541 = vmul.f32 %v535, %v539
      %543 = vset.pattern.permute.xlu0 0
      %544 = vperm.xlu0 %543, %v533
      %v545 = vpop.permute.xlu0 %544
      %v547 = vadd.f32 %v541, %v545
      %v548 = vmax.f32 %v547, 0.0
      %p549 = scmp.gt.s32.totalorder %s26, 0
      %s550 = scalar_select %p549, 1, 0
      %s551 = scvt.s32.f32 %s550
      %v552 = vstv %s551
      %v553 = vmul.f32 %v548, %v552
      %v554 = vld [vmem:[%s500] sm:$0x3]
      %v555 = vunpack.c.l.bf16 %v554
      %v556 = vmul.f32 %v555, %v539
      %v557 = vadd.f32 %v556, %v545
      %v558 = vmax.f32 %v557, 0.0
      %p559 = scmp.lt.s32.totalorder %s26, 1
      %s560 = scalar_select %p559, 1, 0
      %s561 = scvt.s32.f32 %s560
      %v562 = vstv %s561
      %v563 = vmul.f32 %v558, %v562
      %v564 = vld [vmem:[%s471] sm:$0xff]
      %v565 = vld [vmem:[%s471 + $0x8] sm:$0xff]
      %v566 = vunpack.c.l.bf16 %v564
      %v567 = vunpack.c.h.bf16 %v564
      %v568 = vunpack.c.l.bf16 %v565
      %v569 = vunpack.c.h.bf16 %v565
      %v571 = vunpack.c.l.s4 839922192
      %v572 = vunpack.c.0.s8 %v571
      %v573 = vlaneseq
      %v574 = vshrl.u32 %v573, 7
      %v575 = vsub.s32 %v572, %v574
      %v576 = vrot.slane %v539, %v575
      %v578 = vmul.f32 %v566, %v576
      %v579 = vmul.f32 %v567, %v576
      %v580 = vmul.f32 %v568, %v576
      %v581 = vmul.f32 %v569, %v576
      %v583 = vunpack.c.l.s4 839922192
      %v584 = vunpack.c.0.s8 %v583
      %v585 = vlaneseq
      %v586 = vshrl.u32 %v585, 7
      %v587 = vsub.s32 %v584, %v586
      %v588 = vrot.slane %v545, %v587
      %v590 = vadd.f32 %v578, %v588
      %v591 = vadd.f32 %v579, %v588
      %v592 = vadd.f32 %v580, %v588
      %v593 = vadd.f32 %v581, %v588
      %v594 = vmax.f32 %v590, 0.0
      %v595 = vmax.f32 %v591, 0.0
      %v596 = vmax.f32 %v592, 0.0
      %v597 = vmax.f32 %v593, 0.0
      %v602 = vcombine.high %v594, %v594
      %v603 = vcombine.high %v595, %v595
      %v604 = vcombine.high %v596, %v596
      %v605 = vcombine.high %v597, %v597
      %v610 = vld [vmem:[%s6] sm:$0xff]
      %v611 = vld [vmem:[%s6 + $0x8] sm:$0x3]
      %v614 = vlaneseq
      %v615 = vshrl.u32 %v614, 7
      %v616 = vsub.s32 0, %v615
      %v617 = vrot.slane %v610, %v616
      %v618 = vlaneseq
      %v619 = vshrl.u32 %v618, 7
      %v620 = vsub.s32 1, %v619
      %v621 = vrot.slane %v610, %v620
      %v622 = vlaneseq
      %v623 = vshrl.u32 %v622, 7
      %v624 = vsub.s32 2, %v623
      %v625 = vrot.slane %v610, %v624
      %v626 = vlaneseq
      %v627 = vshrl.u32 %v626, 7
      %v628 = vsub.s32 3, %v627
      %v629 = vrot.slane %v610, %v628
      %v630 = vlaneseq
      %v631 = vshrl.u32 %v630, 7
      %v632 = vsub.s32 4, %v631
      %v633 = vrot.slane %v610, %v632
      %v634 = vlaneseq
      %v635 = vshrl.u32 %v634, 7
      %v636 = vsub.s32 5, %v635
      %v637 = vrot.slane %v610, %v636
      %v638 = vlaneseq
      %v639 = vshrl.u32 %v638, 7
      %v640 = vsub.s32 6, %v639
      %v641 = vrot.slane %v610, %v640
      %v642 = vlaneseq
      %v643 = vshrl.u32 %v642, 7
      %v644 = vsub.s32 7, %v643
      %v645 = vrot.slane %v610, %v644
      %v646 = vlaneseq
      %v647 = vshrl.u32 %v646, 7
      %v648 = vsub.s32 0, %v647
      %v649 = vrot.slane %v611, %v648
      %v650 = vlaneseq
      %v651 = vshrl.u32 %v650, 7
      %v652 = vsub.s32 1, %v651
      %v653 = vrot.slane %v611, %v652
      %v664 = vmul.f32 %v553, %v617
      %v665 = vmul.f32 %v594, %v621
      %v666 = vmul.f32 %v602, %v625
      %v667 = vmul.f32 %v595, %v629
      %v668 = vmul.f32 %v603, %v633
      %v669 = vmul.f32 %v596, %v637
      %v670 = vmul.f32 %v604, %v641
      %v671 = vmul.f32 %v597, %v645
      %v672 = vmul.f32 %v605, %v649
      %v673 = vmul.f32 %v563, %v653
      %v674 = vpack.c.bf16 %v664, %v664
      %v675 = vpack.c.bf16 %v665, %v665
      %v676 = vpack.c.bf16 %v666, %v666
      %v677 = vpack.c.bf16 %v667, %v667
      %v678 = vpack.c.bf16 %v668, %v668
      %v679 = vpack.c.bf16 %v669, %v669
      %v680 = vpack.c.bf16 %v670, %v670
      %v681 = vpack.c.bf16 %v671, %v671
      %v682 = vpack.c.bf16 %v672, %v672
      %v683 = vpack.c.bf16 %v673, %v673
      %v684 = vld [vmem:[%s5] sm:$0x3]
      %s685 = scalar_lea.vmem %s5, 2
      %v686 = vld [vmem:[%s685] sm:$0x3]
      %vm687 = vcmask 31744
      %v689 = vsel %vm687, %v686, 0
      %vm691 = vcmask 1041408
      %v693 = vsel %vm691, %v674, 0
      %v696 = vsel %vm691, %v675, 0
      %v699 = vsel %vm691, %v676, 0
      %v702 = vsel %vm691, %v677, 0
      %v705 = vsel %vm691, %v678, 0
      %v708 = vsel %vm691, %v679, 0
      %v711 = vsel %vm691, %v680, 0
      %v714 = vsel %vm691, %v681, 0
      %716 = vmatprep.subr.bf16.mxu0 %v696
      %717 = vmatpush1.bf16.msra.mxu0 %v693
      %718 = vmatprep.subr.bf16.mxu0 0
      %719 = vmatpush1.bf16.msra.mxu0 0
      %720 = vmatprep.subr.bf16.mxu0 0
      %721 = vmatpush1.bf16.msra.mxu0 0
      %722 = vmatprep.subr.bf16.mxu0 0
      %723 = vmatpush1.bf16.msra.mxu0 0
      %724 = vmatprep.subr.bf16.mxu0 0
      %725 = vmatpush1.bf16.msra.mxu0 0
      %726 = vmatprep.subr.bf16.mxu0 0
      %727 = vmatpush1.bf16.msra.mxu0 0
      %728 = vmatprep.subr.bf16.mxu0 0
      %729 = vmatpush1.bf16.msra.mxu0 0
      %730 = vmatprep.subr.bf16.mxu0 0
      %731 = vmatpush1.bf16.msra.mxu0 0
      %732 = vmatprep.subr.bf16.mxu0 0
      %733 = vmatpush1.bf16.msra.mxu0 0
      %734 = vmatprep.subr.bf16.mxu0 0
      %735 = vmatpush1.bf16.msra.mxu0 0
      %736 = vmatprep.subr.bf16.mxu0 0
      %737 = vmatpush1.bf16.msra.mxu0 0
      %738 = vmatprep.subr.bf16.mxu0 0
      %739 = vmatpush1.bf16.msra.mxu0 0
      %740 = vmatprep.subr.bf16.mxu0 0
      %741 = vmatpush1.bf16.msra.mxu0 0
      %742 = vmatprep.subr.bf16.mxu0 0
      %743 = vmatpush1.bf16.msra.mxu0 0
      %744 = vmatprep.subr.bf16.mxu0 0
      %745 = vmatpush1.bf16.msra.mxu0 0
      %746 = vmatprep.subr.bf16.mxu0 0
      %747 = vmatpush1.bf16.msra.mxu0 0
      %748 = vmatprep.mubr.bf16.mxu0 0
      %749 = vmatmul.mubr.bf16.gmra.mrb[0].mxu0 %v689
      %v750 = vpop.f32.mrb[0].mxu0
      %v751 = vadd.f32 0.0, %v750
      %v752 = vpop.f32.mrb[0].mxu0
      %v753 = vadd.f32 0.0, %v752
      %v754 = vpop.f32.mrb[0].mxu0
      %v755 = vpop.f32.mrb[0].mxu0
      %756 = vdwg.mxu0
      %757 = vmatprep.subr.bf16.mxu0 %v702
      %758 = vmatpush1.bf16.msra.mxu0 %v699
      %759 = vmatprep.subr.bf16.mxu0 0
      %760 = vmatpush1.bf16.msra.mxu0 0
      %761 = vmatprep.subr.bf16.mxu0 0
      %762 = vmatpush1.bf16.msra.mxu0 0
      %763 = vmatprep.subr.bf16.mxu0 0
      %764 = vmatpush1.bf16.msra.mxu0 0
      %765 = vmatprep.subr.bf16.mxu0 0
      %766 = vmatpush1.bf16.msra.mxu0 0
      %767 = vmatprep.subr.bf16.mxu0 0
      %768 = vmatpush1.bf16.msra.mxu0 0
      %769 = vmatprep.subr.bf16.mxu0 0
      %770 = vmatpush1.bf16.msra.mxu0 0
      %771 = vmatprep.subr.bf16.mxu0 0
      %772 = vmatpush1.bf16.msra.mxu0 0
      %773 = vmatprep.subr.bf16.mxu0 0
      %774 = vmatpush1.bf16.msra.mxu0 0
      %775 = vmatprep.subr.bf16.mxu0 0
      %776 = vmatpush1.bf16.msra.mxu0 0
      %777 = vmatprep.subr.bf16.mxu0 0
      %778 = vmatpush1.bf16.msra.mxu0 0
      %779 = vmatprep.subr.bf16.mxu0 0
      %780 = vmatpush1.bf16.msra.mxu0 0
      %781 = vmatprep.subr.bf16.mxu0 0
      %782 = vmatpush1.bf16.msra.mxu0 0
      %783 = vmatprep.subr.bf16.mxu0 0
      %784 = vmatpush1.bf16.msra.mxu0 0
      %785 = vmatprep.subr.bf16.mxu0 0
      %786 = vmatpush1.bf16.msra.mxu0 0
      %787 = vmatprep.subr.bf16.mxu0 0
      %788 = vmatpush1.bf16.msra.mxu0 0
      %789 = vmatprep.mubr.bf16.mxu0 0
      %790 = vmatmul.mubr.bf16.gmra.mrb[0].mxu0 %v689
      %v791 = vpop.f32.mrb[0].mxu0
      %v792 = vadd.f32 0.0, %v791
      %v793 = vpop.f32.mrb[0].mxu0
      %v794 = vadd.f32 0.0, %v793
      %v795 = vpop.f32.mrb[0].mxu0
      %v796 = vpop.f32.mrb[0].mxu0
      %797 = vdwg.mxu0
      %798 = vmatprep.subr.bf16.mxu0 %v708
      %799 = vmatpush1.bf16.msra.mxu0 %v705
      %800 = vmatprep.subr.bf16.mxu0 0
      %801 = vmatpush1.bf16.msra.mxu0 0
      %802 = vmatprep.subr.bf16.mxu0 0
      %803 = vmatpush1.bf16.msra.mxu0 0
      %804 = vmatprep.subr.bf16.mxu0 0
      %805 = vmatpush1.bf16.msra.mxu0 0
      %806 = vmatprep.subr.bf16.mxu0 0
      %807 = vmatpush1.bf16.msra.mxu0 0
      %808 = vmatprep.subr.bf16.mxu0 0
      %809 = vmatpush1.bf16.msra.mxu0 0
      %810 = vmatprep.subr.bf16.mxu0 0
      %811 = vmatpush1.bf16.msra.mxu0 0
      %812 = vmatprep.subr.bf16.mxu0 0
      %813 = vmatpush1.bf16.msra.mxu0 0
      %814 = vmatprep.subr.bf16.mxu0 0
      %815 = vmatpush1.bf16.msra.mxu0 0
      %816 = vmatprep.subr.bf16.mxu0 0
      %817 = vmatpush1.bf16.msra.mxu0 0
      %818 = vmatprep.subr.bf16.mxu0 0
      %819 = vmatpush1.bf16.msra.mxu0 0
      %820 = vmatprep.subr.bf16.mxu0 0
      %821 = vmatpush1.bf16.msra.mxu0 0
      %822 = vmatprep.subr.bf16.mxu0 0
      %823 = vmatpush1.bf16.msra.mxu0 0
      %824 = vmatprep.subr.bf16.mxu0 0
      %825 = vmatpush1.bf16.msra.mxu0 0
      %826 = vmatprep.subr.bf16.mxu0 0
      %827 = vmatpush1.bf16.msra.mxu0 0
      %828 = vmatprep.subr.bf16.mxu0 0
      %829 = vmatpush1.bf16.msra.mxu0 0
      %830 = vmatprep.mubr.bf16.mxu0 0
      %831 = vmatmul.mubr.bf16.gmra.mrb[0].mxu0 %v689
      %v832 = vpop.f32.mrb[0].mxu0
      %v833 = vadd.f32 0.0, %v832
      %v834 = vpop.f32.mrb[0].mxu0
      %v835 = vadd.f32 0.0, %v834
      %v836 = vpop.f32.mrb[0].mxu0
      %v837 = vpop.f32.mrb[0].mxu0
      %838 = vdwg.mxu0
      %839 = vmatprep.subr.bf16.mxu0 %v714
      %840 = vmatpush1.bf16.msra.mxu0 %v711
      %841 = vmatprep.subr.bf16.mxu0 0
      %842 = vmatpush1.bf16.msra.mxu0 0
      %843 = vmatprep.subr.bf16.mxu0 0
      %844 = vmatpush1.bf16.msra.mxu0 0
      %845 = vmatprep.subr.bf16.mxu0 0
      %846 = vmatpush1.bf16.msra.mxu0 0
      %847 = vmatprep.subr.bf16.mxu0 0
      %848 = vmatpush1.bf16.msra.mxu0 0
      %849 = vmatprep.subr.bf16.mxu0 0
      %850 = vmatpush1.bf16.msra.mxu0 0
      %851 = vmatprep.subr.bf16.mxu0 0
      %852 = vmatpush1.bf16.msra.mxu0 0
      %853 = vmatprep.subr.bf16.mxu0 0
      %854 = vmatpush1.bf16.msra.mxu0 0
      %855 = vmatprep.subr.bf16.mxu0 0
      %856 = vmatpush1.bf16.msra.mxu0 0
      %857 = vmatprep.subr.bf16.mxu0 0
      %858 = vmatpush1.bf16.msra.mxu0 0
      %859 = vmatprep.subr.bf16.mxu0 0
      %860 = vmatpush1.bf16.msra.mxu0 0
      %861 = vmatprep.subr.bf16.mxu0 0
      %862 = vmatpush1.bf16.msra.mxu0 0
      %863 = vmatprep.subr.bf16.mxu0 0
      %864 = vmatpush1.bf16.msra.mxu0 0
      %865 = vmatprep.subr.bf16.mxu0 0
      %866 = vmatpush1.bf16.msra.mxu0 0
      %867 = vmatprep.subr.bf16.mxu0 0
      %868 = vmatpush1.bf16.msra.mxu0 0
      %869 = vmatprep.subr.bf16.mxu0 0
      %870 = vmatpush1.bf16.msra.mxu0 0
      %871 = vmatprep.mubr.bf16.mxu0 0
      %872 = vmatmul.mubr.bf16.gmra.mrb[0].mxu0 %v689
      %v873 = vpop.f32.mrb[0].mxu0
      %v874 = vadd.f32 0.0, %v873
      %v875 = vpop.f32.mrb[0].mxu0
      %v876 = vadd.f32 0.0, %v875
      %v877 = vpop.f32.mrb[0].mxu0
      %v878 = vpop.f32.mrb[0].mxu0
      %879 = vdwg.mxu0
      %889 = vrot.lane.b32.xlu0 0, 1
      %v890 = vpop.permute.xlu0 %889
      %891 = vrot.lane.b32.xlu0 %v674, 1
      %v892 = vpop.permute.xlu0 %891
      %893 = vrot.lane.b32.xlu0 %v675, 1
      %v894 = vpop.permute.xlu0 %893
      %895 = vrot.lane.b32.xlu0 %v676, 1
      %v896 = vpop.permute.xlu0 %895
      %897 = vrot.lane.b32.xlu0 %v677, 1
      %v898 = vpop.permute.xlu0 %897
      %899 = vrot.lane.b32.xlu0 %v678, 1
      %v900 = vpop.permute.xlu0 %899
      %901 = vrot.lane.b32.xlu0 %v679, 1
      %v902 = vpop.permute.xlu0 %901
      %903 = vrot.lane.b32.xlu0 %v680, 1
      %v904 = vpop.permute.xlu0 %903
      %905 = vrot.lane.b32.xlu0 %v681, 1
      %v906 = vpop.permute.xlu0 %905
      %vm907 = vcmask 7168
      %v908 = vsel %vm907, %v890, %v892
      %v909 = vsel %vm907, %v892, %v894
      %v910 = vsel %vm907, %v894, %v896
      %v911 = vsel %vm907, %v896, %v898
      %v912 = vsel %vm907, %v898, %v900
      %v913 = vsel %vm907, %v900, %v902
      %v914 = vsel %vm907, %v902, %v904
      %v915 = vsel %vm907, %v904, %v906
      %v917 = vsel %vm687, %v684, 0
      %v920 = vsel %vm691, %v908, 0
      %v923 = vsel %vm691, %v909, 0
      %v926 = vsel %vm691, %v910, 0
      %v929 = vsel %vm691, %v911, 0
      %v932 = vsel %vm691, %v912, 0
      %v935 = vsel %vm691, %v913, 0
      %v938 = vsel %vm691, %v914, 0
      %v941 = vsel %vm691, %v915, 0
      %943 = vmatprep.subr.bf16.mxu0 %v923
      %944 = vmatpush1.bf16.msra.mxu0 %v920
      %945 = vmatprep.subr.bf16.mxu0 0
      %946 = vmatpush1.bf16.msra.mxu0 0
      %947 = vmatprep.subr.bf16.mxu0 0
      %948 = vmatpush1.bf16.msra.mxu0 0
      %949 = vmatprep.subr.bf16.mxu0 0
      %950 = vmatpush1.bf16.msra.mxu0 0
      %951 = vmatprep.subr.bf16.mxu0 0
      %952 = vmatpush1.bf16.msra.mxu0 0
      %953 = vmatprep.subr.bf16.mxu0 0
      %954 = vmatpush1.bf16.msra.mxu0 0
      %955 = vmatprep.subr.bf16.mxu0 0
      %956 = vmatpush1.bf16.msra.mxu0 0
      %957 = vmatprep.subr.bf16.mxu0 0
      %958 = vmatpush1.bf16.msra.mxu0 0
      %959 = vmatprep.subr.bf16.mxu0 0
      %960 = vmatpush1.bf16.msra.mxu0 0
      %961 = vmatprep.subr.bf16.mxu0 0
      %962 = vmatpush1.bf16.msra.mxu0 0
      %963 = vmatprep.subr.bf16.mxu0 0
      %964 = vmatpush1.bf16.msra.mxu0 0
      %965 = vmatprep.subr.bf16.mxu0 0
      %966 = vmatpush1.bf16.msra.mxu0 0
      %967 = vmatprep.subr.bf16.mxu0 0
      %968 = vmatpush1.bf16.msra.mxu0 0
      %969 = vmatprep.subr.bf16.mxu0 0
      %970 = vmatpush1.bf16.msra.mxu0 0
      %971 = vmatprep.subr.bf16.mxu0 0
      %972 = vmatpush1.bf16.msra.mxu0 0
      %973 = vmatprep.subr.bf16.mxu0 0
      %974 = vmatpush1.bf16.msra.mxu0 0
      %975 = vmatprep.mubr.bf16.mxu0 0
      %976 = vmatmul.mubr.bf16.gmra.mrb[0].mxu0 %v917
      %v977 = vpop.f32.mrb[0].mxu0
      %v978 = vadd.f32 %v751, %v977
      %v979 = vpop.f32.mrb[0].mxu0
      %v980 = vadd.f32 %v753, %v979
      %v981 = vpop.f32.mrb[0].mxu0
      %v982 = vpop.f32.mrb[0].mxu0
      %983 = vdwg.mxu0
      %984 = vmatprep.subr.bf16.mxu0 %v929
      %985 = vmatpush1.bf16.msra.mxu0 %v926
      %986 = vmatprep.subr.bf16.mxu0 0
      %987 = vmatpush1.bf16.msra.mxu0 0
      %988 = vmatprep.subr.bf16.mxu0 0
      %989 = vmatpush1.bf16.msra.mxu0 0
      %990 = vmatprep.subr.bf16.mxu0 0
      %991 = vmatpush1.bf16.msra.mxu0 0
      %992 = vmatprep.subr.bf16.mxu0 0
      %993 = vmatpush1.bf16.msra.mxu0 0
      %994 = vmatprep.subr.bf16.mxu0 0
      %995 = vmatpush1.bf16.msra.mxu0 0
      %996 = vmatprep.subr.bf16.mxu0 0
      %997 = vmatpush1.bf16.msra.mxu0 0
      %998 = vmatprep.subr.bf16.mxu0 0
      %999 = vmatpush1.bf16.msra.mxu0 0
      %1000 = vmatprep.subr.bf16.mxu0 0
      %1001 = vmatpush1.bf16.msra.mxu0 0
      %1002 = vmatprep.subr.bf16.mxu0 0
      %1003 = vmatpush1.bf16.msra.mxu0 0
      %1004 = vmatprep.subr.bf16.mxu0 0
      %1005 = vmatpush1.bf16.msra.mxu0 0
      %1006 = vmatprep.subr.bf16.mxu0 0
      %1007 = vmatpush1.bf16.msra.mxu0 0
      %1008 = vmatprep.subr.bf16.mxu0 0
      %1009 = vmatpush1.bf16.msra.mxu0 0
      %1010 = vmatprep.subr.bf16.mxu0 0
      %1011 = vmatpush1.bf16.msra.mxu0 0
      %1012 = vmatprep.subr.bf16.mxu0 0
      %1013 = vmatpush1.bf16.msra.mxu0 0
      %1014 = vmatprep.subr.bf16.mxu0 0
      %1015 = vmatpush1.bf16.msra.mxu0 0
      %1016 = vmatprep.mubr.bf16.mxu0 0
      %1017 = vmatmul.mubr.bf16.gmra.mrb[0].mxu0 %v917
      %v1018 = vpop.f32.mrb[0].mxu0
      %v1019 = vadd.f32 %v792, %v1018
      %v1020 = vpop.f32.mrb[0].mxu0
      %v1021 = vadd.f32 %v794, %v1020
      %v1022 = vpop.f32.mrb[0].mxu0
      %v1023 = vpop.f32.mrb[0].mxu0
      %1024 = vdwg.mxu0
      %1025 = vmatprep.subr.bf16.mxu0 %v935
      %1026 = vmatpush1.bf16.msra.mxu0 %v932
      %1027 = vmatprep.subr.bf16.mxu0 0
      %1028 = vmatpush1.bf16.msra.mxu0 0
      %1029 = vmatprep.subr.bf16.mxu0 0
      %1030 = vmatpush1.bf16.msra.mxu0 0
      %1031 = vmatprep.subr.bf16.mxu0 0
      %1032 = vmatpush1.bf16.msra.mxu0 0
      %1033 = vmatprep.subr.bf16.mxu0 0
      %1034 = vmatpush1.bf16.msra.mxu0 0
      %1035 = vmatprep.subr.bf16.mxu0 0
      %1036 = vmatpush1.bf16.msra.mxu0 0
      %1037 = vmatprep.subr.bf16.mxu0 0
      %1038 = vmatpush1.bf16.msra.mxu0 0
      %1039 = vmatprep.subr.bf16.mxu0 0
      %1040 = vmatpush1.bf16.msra.mxu0 0
      %1041 = vmatprep.subr.bf16.mxu0 0
      %1042 = vmatpush1.bf16.msra.mxu0 0
      %1043 = vmatprep.subr.bf16.mxu0 0
      %1044 = vmatpush1.bf16.msra.mxu0 0
      %1045 = vmatprep.subr.bf16.mxu0 0
      %1046 = vmatpush1.bf16.msra.mxu0 0
      %1047 = vmatprep.subr.bf16.mxu0 0
      %1048 = vmatpush1.bf16.msra.mxu0 0
      %1049 = vmatprep.subr.bf16.mxu0 0
      %1050 = vmatpush1.bf16.msra.mxu0 0
      %1051 = vmatprep.subr.bf16.mxu0 0
      %1052 = vmatpush1.bf16.msra.mxu0 0
      %1053 = vmatprep.subr.bf16.mxu0 0
      %1054 = vmatpush1.bf16.msra.mxu0 0
      %1055 = vmatprep.subr.bf16.mxu0 0
      %1056 = vmatpush1.bf16.msra.mxu0 0
      %1057 = vmatprep.mubr.bf16.mxu0 0
      %1058 = vmatmul.mubr.bf16.gmra.mrb[0].mxu0 %v917
      %v1059 = vpop.f32.mrb[0].mxu0
      %v1060 = vadd.f32 %v833, %v1059
      %v1061 = vpop.f32.mrb[0].mxu0
      %v1062 = vadd.f32 %v835, %v1061
      %v1063 = vpop.f32.mrb[0].mxu0
      %v1064 = vpop.f32.mrb[0].mxu0
      %1065 = vdwg.mxu0
      %1066 = vmatprep.subr.bf16.mxu0 %v941
      %1067 = vmatpush1.bf16.msra.mxu0 %v938
      %1068 = vmatprep.subr.bf16.mxu0 0
      %1069 = vmatpush1.bf16.msra.mxu0 0
      %1070 = vmatprep.subr.bf16.mxu0 0
      %1071 = vmatpush1.bf16.msra.mxu0 0
      %1072 = vmatprep.subr.bf16.mxu0 0
      %1073 = vmatpush1.bf16.msra.mxu0 0
      %1074 = vmatprep.subr.bf16.mxu0 0
      %1075 = vmatpush1.bf16.msra.mxu0 0
      %1076 = vmatprep.subr.bf16.mxu0 0
      %1077 = vmatpush1.bf16.msra.mxu0 0
      %1078 = vmatprep.subr.bf16.mxu0 0
      %1079 = vmatpush1.bf16.msra.mxu0 0
      %1080 = vmatprep.subr.bf16.mxu0 0
      %1081 = vmatpush1.bf16.msra.mxu0 0
      %1082 = vmatprep.subr.bf16.mxu0 0
      %1083 = vmatpush1.bf16.msra.mxu0 0
      %1084 = vmatprep.subr.bf16.mxu0 0
      %1085 = vmatpush1.bf16.msra.mxu0 0
      %1086 = vmatprep.subr.bf16.mxu0 0
      %1087 = vmatpush1.bf16.msra.mxu0 0
      %1088 = vmatprep.subr.bf16.mxu0 0
      %1089 = vmatpush1.bf16.msra.mxu0 0
      %1090 = vmatprep.subr.bf16.mxu0 0
      %1091 = vmatpush1.bf16.msra.mxu0 0
      %1092 = vmatprep.subr.bf16.mxu0 0
      %1093 = vmatpush1.bf16.msra.mxu0 0
      %1094 = vmatprep.subr.bf16.mxu0 0
      %1095 = vmatpush1.bf16.msra.mxu0 0
      %1096 = vmatprep.subr.bf16.mxu0 0
      %1097 = vmatpush1.bf16.msra.mxu0 0
      %1098 = vmatprep.mubr.bf16.mxu0 0
      %1099 = vmatmul.mubr.bf16.gmra.mrb[0].mxu0 %v917
      %v1100 = vpop.f32.mrb[0].mxu0
      %v1101 = vadd.f32 %v874, %v1100
      %v1102 = vpop.f32.mrb[0].mxu0
      %v1103 = vadd.f32 %v876, %v1102
      %v1104 = vpop.f32.mrb[0].mxu0
      %v1105 = vpop.f32.mrb[0].mxu0
      %1106 = vdwg.mxu0
      %s1107 = scalar_lea.vmem %s5, 4
      %v1108 = vld [vmem:[%s1107] sm:$0x3]
      %1110 = vrot.lane.b32.xlu0 %v674, 127
      %v1111 = vpop.permute.xlu0 %1110
      %1112 = vrot.lane.b32.xlu0 %v675, 127
      %v1113 = vpop.permute.xlu0 %1112
      %1114 = vrot.lane.b32.xlu0 %v676, 127
      %v1115 = vpop.permute.xlu0 %1114
      %1116 = vrot.lane.b32.xlu0 %v677, 127
      %v1117 = vpop.permute.xlu0 %1116
      %1118 = vrot.lane.b32.xlu0 %v678, 127
      %v1119 = vpop.permute.xlu0 %1118
      %1120 = vrot.lane.b32.xlu0 %v679, 127
      %v1121 = vpop.permute.xlu0 %1120
      %1122 = vrot.lane.b32.xlu0 %v680, 127
      %v1123 = vpop.permute.xlu0 %1122
      %1124 = vrot.lane.b32.xlu0 %v681, 127
      %v1125 = vpop.permute.xlu0 %1124
      %1126 = vrot.lane.b32.xlu0 %v682, 127
      %v1127 = vpop.permute.xlu0 %1126
      %vm1128 = vcmask 1039360
      %v1129 = vsel %vm1128, %v1111, %v1113
      %v1130 = vsel %vm1128, %v1113, %v1115
      %v1131 = vsel %vm1128, %v1115, %v1117
      %v1132 = vsel %vm1128, %v1117, %v1119
      %v1133 = vsel %vm1128, %v1119, %v1121
      %v1134 = vsel %vm1128, %v1121, %v1123
      %v1135 = vsel %vm1128, %v1123, %v1125
      %v1136 = vsel %vm1128, %v1125, %v1127
      %v1138 = vsel %vm687, %v1108, 0
      %v1141 = vsel %vm691, %v1129, 0
      %v1144 = vsel %vm691, %v1130, 0
      %v1147 = vsel %vm691, %v1131, 0
      %v1150 = vsel %vm691, %v1132, 0
      %v1153 = vsel %vm691, %v1133, 0
      %v1156 = vsel %vm691, %v1134, 0
      %v1159 = vsel %vm691, %v1135, 0
      %v1162 = vsel %vm691, %v1136, 0
      %1164 = vmatprep.subr.bf16.mxu0 %v1144
      %1165 = vmatpush1.bf16.msra.mxu0 %v1141
      %1166 = vmatprep.subr.bf16.mxu0 0
      %1167 = vmatpush1.bf16.msra.mxu0 0
      %1168 = vmatprep.subr.bf16.mxu0 0
      %1169 = vmatpush1.bf16.msra.mxu0 0
      %1170 = vmatprep.subr.bf16.mxu0 0
      %1171 = vmatpush1.bf16.msra.mxu0 0
      %1172 = vmatprep.subr.bf16.mxu0 0
      %1173 = vmatpush1.bf16.msra.mxu0 0
      %1174 = vmatprep.subr.bf16.mxu0 0
      %1175 = vmatpush1.bf16.msra.mxu0 0
      %1176 = vmatprep.subr.bf16.mxu0 0
      %1177 = vmatpush1.bf16.msra.mxu0 0
      %1178 = vmatprep.subr.bf16.mxu0 0
      %1179 = vmatpush1.bf16.msra.mxu0 0
      %1180 = vmatprep.subr.bf16.mxu0 0
      %1181 = vmatpush1.bf16.msra.mxu0 0
      %1182 = vmatprep.subr.bf16.mxu0 0
      %1183 = vmatpush1.bf16.msra.mxu0 0
      %1184 = vmatprep.subr.bf16.mxu0 0
      %1185 = vmatpush1.bf16.msra.mxu0 0
      %1186 = vmatprep.subr.bf16.mxu0 0
      %1187 = vmatpush1.bf16.msra.mxu0 0
      %1188 = vmatprep.subr.bf16.mxu0 0
      %1189 = vmatpush1.bf16.msra.mxu0 0
      %1190 = vmatprep.subr.bf16.mxu0 0
      %1191 = vmatpush1.bf16.msra.mxu0 0
      %1192 = vmatprep.subr.bf16.mxu0 0
      %1193 = vmatpush1.bf16.msra.mxu0 0
      %1194 = vmatprep.subr.bf16.mxu0 0
      %1195 = vmatpush1.bf16.msra.mxu0 0
      %1196 = vmatprep.mubr.bf16.mxu0 0
      %1197 = vmatmul.mubr.bf16.gmra.mrb[0].mxu0 %v1138
      %v1198 = vpop.f32.mrb[0].mxu0
      %v1199 = vadd.f32 0.0, %v1198
      %v1200 = vpop.f32.mrb[0].mxu0
      %v1201 = vadd.f32 0.0, %v1200
      %v1202 = vpop.f32.mrb[0].mxu0
      %v1203 = vpop.f32.mrb[0].mxu0
      %1204 = vdwg.mxu0
      %1205 = vmatprep.subr.bf16.mxu0 %v1150
      %1206 = vmatpush1.bf16.msra.mxu0 %v1147
      %1207 = vmatprep.subr.bf16.mxu0 0
      %1208 = vmatpush1.bf16.msra.mxu0 0
      %1209 = vmatprep.subr.bf16.mxu0 0
      %1210 = vmatpush1.bf16.msra.mxu0 0
      %1211 = vmatprep.subr.bf16.mxu0 0
      %1212 = vmatpush1.bf16.msra.mxu0 0
      %1213 = vmatprep.subr.bf16.mxu0 0
      %1214 = vmatpush1.bf16.msra.mxu0 0
      %1215 = vmatprep.subr.bf16.mxu0 0
      %1216 = vmatpush1.bf16.msra.mxu0 0
      %1217 = vmatprep.subr.bf16.mxu0 0
      %1218 = vmatpush1.bf16.msra.mxu0 0
      %1219 = vmatprep.subr.bf16.mxu0 0
      %1220 = vmatpush1.bf16.msra.mxu0 0
      %1221 = vmatprep.subr.bf16.mxu0 0
      %1222 = vmatpush1.bf16.msra.mxu0 0
      %1223 = vmatprep.subr.bf16.mxu0 0
      %1224 = vmatpush1.bf16.msra.mxu0 0
      %1225 = vmatprep.subr.bf16.mxu0 0
      %1226 = vmatpush1.bf16.msra.mxu0 0
      %1227 = vmatprep.subr.bf16.mxu0 0
      %1228 = vmatpush1.bf16.msra.mxu0 0
      %1229 = vmatprep.subr.bf16.mxu0 0
      %1230 = vmatpush1.bf16.msra.mxu0 0
      %1231 = vmatprep.subr.bf16.mxu0 0
      %1232 = vmatpush1.bf16.msra.mxu0 0
      %1233 = vmatprep.subr.bf16.mxu0 0
      %1234 = vmatpush1.bf16.msra.mxu0 0
      %1235 = vmatprep.subr.bf16.mxu0 0
      %1236 = vmatpush1.bf16.msra.mxu0 0
      %1237 = vmatprep.mubr.bf16.mxu0 0
      %1238 = vmatmul.mubr.bf16.gmra.mrb[0].mxu0 %v1138
      %v1239 = vpop.f32.mrb[0].mxu0
      %v1240 = vadd.f32 0.0, %v1239
      %v1241 = vpop.f32.mrb[0].mxu0
      %v1242 = vadd.f32 0.0, %v1241
      %v1243 = vpop.f32.mrb[0].mxu0
      %v1244 = vpop.f32.mrb[0].mxu0
      %1245 = vdwg.mxu0
      %1246 = vmatprep.subr.bf16.mxu0 %v1156
      %1247 = vmatpush1.bf16.msra.mxu0 %v1153
      %1248 = vmatprep.subr.bf16.mxu0 0
      %1249 = vmatpush1.bf16.msra.mxu0 0
      %1250 = vmatprep.subr.bf16.mxu0 0
      %1251 = vmatpush1.bf16.msra.mxu0 0
      %1252 = vmatprep.subr.bf16.mxu0 0
      %1253 = vmatpush1.bf16.msra.mxu0 0
      %1254 = vmatprep.subr.bf16.mxu0 0
      %1255 = vmatpush1.bf16.msra.mxu0 0
      %1256 = vmatprep.subr.bf16.mxu0 0
      %1257 = vmatpush1.bf16.msra.mxu0 0
      %1258 = vmatprep.subr.bf16.mxu0 0
      %1259 = vmatpush1.bf16.msra.mxu0 0
      %1260 = vmatprep.subr.bf16.mxu0 0
      %1261 = vmatpush1.bf16.msra.mxu0 0
      %1262 = vmatprep.subr.bf16.mxu0 0
      %1263 = vmatpush1.bf16.msra.mxu0 0
      %1264 = vmatprep.subr.bf16.mxu0 0
      %1265 = vmatpush1.bf16.msra.mxu0 0
      %1266 = vmatprep.subr.bf16.mxu0 0
      %1267 = vmatpush1.bf16.msra.mxu0 0
      %1268 = vmatprep.subr.bf16.mxu0 0
      %1269 = vmatpush1.bf16.msra.mxu0 0
      %1270 = vmatprep.subr.bf16.mxu0 0
      %1271 = vmatpush1.bf16.msra.mxu0 0
      %1272 = vmatprep.subr.bf16.mxu0 0
      %1273 = vmatpush1.bf16.msra.mxu0 0
      %1274 = vmatprep.subr.bf16.mxu0 0
      %1275 = vmatpush1.bf16.msra.mxu0 0
      %1276 = vmatprep.subr.bf16.mxu0 0
      %1277 = vmatpush1.bf16.msra.mxu0 0
      %1278 = vmatprep.mubr.bf16.mxu0 0
      %1279 = vmatmul.mubr.bf16.gmra.mrb[0].mxu0 %v1138
      %v1280 = vpop.f32.mrb[0].mxu0
      %v1281 = vadd.f32 0.0, %v1280
      %v1282 = vpop.f32.mrb[0].mxu0
      %v1283 = vadd.f32 0.0, %v1282
      %v1284 = vpop.f32.mrb[0].mxu0
      %v1285 = vpop.f32.mrb[0].mxu0
      %1286 = vdwg.mxu0
      %1287 = vmatprep.subr.bf16.mxu0 %v1162
      %1288 = vmatpush1.bf16.msra.mxu0 %v1159
      %1289 = vmatprep.subr.bf16.mxu0 0
      %1290 = vmatpush1.bf16.msra.mxu0 0
      %1291 = vmatprep.subr.bf16.mxu0 0
      %1292 = vmatpush1.bf16.msra.mxu0 0
      %1293 = vmatprep.subr.bf16.mxu0 0
      %1294 = vmatpush1.bf16.msra.mxu0 0
      %1295 = vmatprep.subr.bf16.mxu0 0
      %1296 = vmatpush1.bf16.msra.mxu0 0
      %1297 = vmatprep.subr.bf16.mxu0 0
      %1298 = vmatpush1.bf16.msra.mxu0 0
      %1299 = vmatprep.subr.bf16.mxu0 0
      %1300 = vmatpush1.bf16.msra.mxu0 0
      %1301 = vmatprep.subr.bf16.mxu0 0
      %1302 = vmatpush1.bf16.msra.mxu0 0
      %1303 = vmatprep.subr.bf16.mxu0 0
      %1304 = vmatpush1.bf16.msra.mxu0 0
      %1305 = vmatprep.subr.bf16.mxu0 0
      %1306 = vmatpush1.bf16.msra.mxu0 0
      %1307 = vmatprep.subr.bf16.mxu0 0
      %1308 = vmatpush1.bf16.msra.mxu0 0
      %1309 = vmatprep.subr.bf16.mxu0 0
      %1310 = vmatpush1.bf16.msra.mxu0 0
      %1311 = vmatprep.subr.bf16.mxu0 0
      %1312 = vmatpush1.bf16.msra.mxu0 0
      %1313 = vmatprep.subr.bf16.mxu0 0
      %1314 = vmatpush1.bf16.msra.mxu0 0
      %1315 = vmatprep.subr.bf16.mxu0 0
      %1316 = vmatpush1.bf16.msra.mxu0 0
      %1317 = vmatprep.subr.bf16.mxu0 0
      %1318 = vmatpush1.bf16.msra.mxu0 0
      %1319 = vmatprep.mubr.bf16.mxu0 0
      %1320 = vmatmul.mubr.bf16.gmra.mrb[0].mxu0 %v1138
      %v1321 = vpop.f32.mrb[0].mxu0
      %v1322 = vadd.f32 0.0, %v1321
      %v1323 = vpop.f32.mrb[0].mxu0
      %v1324 = vadd.f32 0.0, %v1323
      %v1325 = vpop.f32.mrb[0].mxu0
      %v1326 = vpop.f32.mrb[0].mxu0
      %1327 = vdwg.mxu0
      %v1328 = vadd.f32 %v978, %v1199
      %v1329 = vadd.f32 %v980, %v1201
      %v1330 = vadd.f32 %v1019, %v1240
      %v1331 = vadd.f32 %v1021, %v1242
      %v1332 = vadd.f32 %v1060, %v1281
      %v1333 = vadd.f32 %v1062, %v1283
      %v1334 = vadd.f32 %v1101, %v1322
      %v1335 = vadd.f32 %v1103, %v1324
      %s1336 = scalar_lea.vmem %s5, 6
      %v1337 = vld [vmem:[%s1336] sm:$0x3]
      %1338 = vrot.lane.b32.xlu0 %v682, 1
      %v1339 = vpop.permute.xlu0 %1338
      %v1340 = vsel %vm907, %v906, %v1339
      %v1342 = vsel %vm687, %v1337, 0
      %v1345 = vsel %vm691, %v1340, 0
      %1347 = vmatprep.subr.bf16.mxu0 %v926
      %1348 = vmatpush1.bf16.msra.mxu0 %v923
      %1349 = vmatprep.subr.bf16.mxu0 0
      %1350 = vmatpush1.bf16.msra.mxu0 0
      %1351 = vmatprep.subr.bf16.mxu0 0
      %1352 = vmatpush1.bf16.msra.mxu0 0
      %1353 = vmatprep.subr.bf16.mxu0 0
      %1354 = vmatpush1.bf16.msra.mxu0 0
      %1355 = vmatprep.subr.bf16.mxu0 0
      %1356 = vmatpush1.bf16.msra.mxu0 0
      %1357 = vmatprep.subr.bf16.mxu0 0
      %1358 = vmatpush1.bf16.msra.mxu0 0
      %1359 = vmatprep.subr.bf16.mxu0 0
      %1360 = vmatpush1.bf16.msra.mxu0 0
      %1361 = vmatprep.subr.bf16.mxu0 0
      %1362 = vmatpush1.bf16.msra.mxu0 0
      %1363 = vmatprep.subr.bf16.mxu0 0
      %1364 = vmatpush1.bf16.msra.mxu0 0
      %1365 = vmatprep.subr.bf16.mxu0 0
      %1366 = vmatpush1.bf16.msra.mxu0 0
      %1367 = vmatprep.subr.bf16.mxu0 0
      %1368 = vmatpush1.bf16.msra.mxu0 0
      %1369 = vmatprep.subr.bf16.mxu0 0
      %1370 = vmatpush1.bf16.msra.mxu0 0
      %1371 = vmatprep.subr.bf16.mxu0 0
      %1372 = vmatpush1.bf16.msra.mxu0 0
      %1373 = vmatprep.subr.bf16.mxu0 0
      %1374 = vmatpush1.bf16.msra.mxu0 0
      %1375 = vmatprep.subr.bf16.mxu0 0
      %1376 = vmatpush1.bf16.msra.mxu0 0
      %1377 = vmatprep.subr.bf16.mxu0 0
      %1378 = vmatpush1.bf16.msra.mxu0 0
      %1379 = vmatprep.mubr.bf16.mxu0 0
      %1380 = vmatmul.mubr.bf16.gmra.mrb[0].mxu0 %v1342
      %v1381 = vpop.f32.mrb[0].mxu0
      %v1382 = vadd.f32 0.0, %v1381
      %v1383 = vpop.f32.mrb[0].mxu0
      %v1384 = vadd.f32 0.0, %v1383
      %v1385 = vpop.f32.mrb[0].mxu0
      %v1386 = vpop.f32.mrb[0].mxu0
      %1387 = vdwg.mxu0
      %1388 = vmatprep.subr.bf16.mxu0 %v932
      %1389 = vmatpush1.bf16.msra.mxu0 %v929
      %1390 = vmatprep.subr.bf16.mxu0 0
      %1391 = vmatpush1.bf16.msra.mxu0 0
      %1392 = vmatprep.subr.bf16.mxu0 0
      %1393 = vmatpush1.bf16.msra.mxu0 0
      %1394 = vmatprep.subr.bf16.mxu0 0
      %1395 = vmatpush1.bf16.msra.mxu0 0
      %1396 = vmatprep.subr.bf16.mxu0 0
      %1397 = vmatpush1.bf16.msra.mxu0 0
      %1398 = vmatprep.subr.bf16.mxu0 0
      %1399 = vmatpush1.bf16.msra.mxu0 0
      %1400 = vmatprep.subr.bf16.mxu0 0
      %1401 = vmatpush1.bf16.msra.mxu0 0
      %1402 = vmatprep.subr.bf16.mxu0 0
      %1403 = vmatpush1.bf16.msra.mxu0 0
      %1404 = vmatprep.subr.bf16.mxu0 0
      %1405 = vmatpush1.bf16.msra.mxu0 0
      %1406 = vmatprep.subr.bf16.mxu0 0
      %1407 = vmatpush1.bf16.msra.mxu0 0
      %1408 = vmatprep.subr.bf16.mxu0 0
      %1409 = vmatpush1.bf16.msra.mxu0 0
      %1410 = vmatprep.subr.bf16.mxu0 0
      %1411 = vmatpush1.bf16.msra.mxu0 0
      %1412 = vmatprep.subr.bf16.mxu0 0
      %1413 = vmatpush1.bf16.msra.mxu0 0
      %1414 = vmatprep.subr.bf16.mxu0 0
      %1415 = vmatpush1.bf16.msra.mxu0 0
      %1416 = vmatprep.subr.bf16.mxu0 0
      %1417 = vmatpush1.bf16.msra.mxu0 0
      %1418 = vmatprep.subr.bf16.mxu0 0
      %1419 = vmatpush1.bf16.msra.mxu0 0
      %1420 = vmatprep.mubr.bf16.mxu0 0
      %1421 = vmatmul.mubr.bf16.gmra.mrb[0].mxu0 %v1342
      %v1422 = vpop.f32.mrb[0].mxu0
      %v1423 = vadd.f32 0.0, %v1422
      %v1424 = vpop.f32.mrb[0].mxu0
      %v1425 = vadd.f32 0.0, %v1424
      %v1426 = vpop.f32.mrb[0].mxu0
      %v1427 = vpop.f32.mrb[0].mxu0
      %1428 = vdwg.mxu0
      %1429 = vmatprep.subr.bf16.mxu0 %v938
      %1430 = vmatpush1.bf16.msra.mxu0 %v935
      %1431 = vmatprep.subr.bf16.mxu0 0
      %1432 = vmatpush1.bf16.msra.mxu0 0
      %1433 = vmatprep.subr.bf16.mxu0 0
      %1434 = vmatpush1.bf16.msra.mxu0 0
      %1435 = vmatprep.subr.bf16.mxu0 0
      %1436 = vmatpush1.bf16.msra.mxu0 0
      %1437 = vmatprep.subr.bf16.mxu0 0
      %1438 = vmatpush1.bf16.msra.mxu0 0
      %1439 = vmatprep.subr.bf16.mxu0 0
      %1440 = vmatpush1.bf16.msra.mxu0 0
      %1441 = vmatprep.subr.bf16.mxu0 0
      %1442 = vmatpush1.bf16.msra.mxu0 0
      %1443 = vmatprep.subr.bf16.mxu0 0
      %1444 = vmatpush1.bf16.msra.mxu0 0
      %1445 = vmatprep.subr.bf16.mxu0 0
      %1446 = vmatpush1.bf16.msra.mxu0 0
      %1447 = vmatprep.subr.bf16.mxu0 0
      %1448 = vmatpush1.bf16.msra.mxu0 0
      %1449 = vmatprep.subr.bf16.mxu0 0
      %1450 = vmatpush1.bf16.msra.mxu0 0
      %1451 = vmatprep.subr.bf16.mxu0 0
      %1452 = vmatpush1.bf16.msra.mxu0 0
      %1453 = vmatprep.subr.bf16.mxu0 0
      %1454 = vmatpush1.bf16.msra.mxu0 0
      %1455 = vmatprep.subr.bf16.mxu0 0
      %1456 = vmatpush1.bf16.msra.mxu0 0
      %1457 = vmatprep.subr.bf16.mxu0 0
      %1458 = vmatpush1.bf16.msra.mxu0 0
      %1459 = vmatprep.subr.bf16.mxu0 0
      %1460 = vmatpush1.bf16.msra.mxu0 0
      %1461 = vmatprep.mubr.bf16.mxu0 0
      %1462 = vmatmul.mubr.bf16.gmra.mrb[0].mxu0 %v1342
      %v1463 = vpop.f32.mrb[0].mxu0
      %v1464 = vadd.f32 0.0, %v1463
      %v1465 = vpop.f32.mrb[0].mxu0
      %v1466 = vadd.f32 0.0, %v1465
      %v1467 = vpop.f32.mrb[0].mxu0
      %v1468 = vpop.f32.mrb[0].mxu0
      %1469 = vdwg.mxu0
      %1470 = vmatprep.subr.bf16.mxu0 %v1345
      %1471 = vmatpush1.bf16.msra.mxu0 %v941
      %1472 = vmatprep.subr.bf16.mxu0 0
      %1473 = vmatpush1.bf16.msra.mxu0 0
      %1474 = vmatprep.subr.bf16.mxu0 0
      %1475 = vmatpush1.bf16.msra.mxu0 0
      %1476 = vmatprep.subr.bf16.mxu0 0
      %1477 = vmatpush1.bf16.msra.mxu0 0
      %1478 = vmatprep.subr.bf16.mxu0 0
      %1479 = vmatpush1.bf16.msra.mxu0 0
      %1480 = vmatprep.subr.bf16.mxu0 0
      %1481 = vmatpush1.bf16.msra.mxu0 0
      %1482 = vmatprep.subr.bf16.mxu0 0
      %1483 = vmatpush1.bf16.msra.mxu0 0
      %1484 = vmatprep.subr.bf16.mxu0 0
      %1485 = vmatpush1.bf16.msra.mxu0 0
      %1486 = vmatprep.subr.bf16.mxu0 0
      %1487 = vmatpush1.bf16.msra.mxu0 0
      %1488 = vmatprep.subr.bf16.mxu0 0
      %1489 = vmatpush1.bf16.msra.mxu0 0
      %1490 = vmatprep.subr.bf16.mxu0 0
      %1491 = vmatpush1.bf16.msra.mxu0 0
      %1492 = vmatprep.subr.bf16.mxu0 0
      %1493 = vmatpush1.bf16.msra.mxu0 0
      %1494 = vmatprep.subr.bf16.mxu0 0
      %1495 = vmatpush1.bf16.msra.mxu0 0
      %1496 = vmatprep.subr.bf16.mxu0 0
      %1497 = vmatpush1.bf16.msra.mxu0 0
      %1498 = vmatprep.subr.bf16.mxu0 0
      %1499 = vmatpush1.bf16.msra.mxu0 0
      %1500 = vmatprep.subr.bf16.mxu0 0
      %1501 = vmatpush1.bf16.msra.mxu0 0
      %1502 = vmatprep.mubr.bf16.mxu0 0
      %1503 = vmatmul.mubr.bf16.gmra.mrb[0].mxu0 %v1342
      %v1504 = vpop.f32.mrb[0].mxu0
      %v1505 = vadd.f32 0.0, %v1504
      %v1506 = vpop.f32.mrb[0].mxu0
      %v1507 = vadd.f32 0.0, %v1506
      %v1508 = vpop.f32.mrb[0].mxu0
      %v1509 = vpop.f32.mrb[0].mxu0
      %1510 = vdwg.mxu0
      %v1511 = vadd.f32 %v1328, %v1382
      %v1512 = vadd.f32 %v1329, %v1384
      %v1513 = vadd.f32 %v1330, %v1423
      %v1514 = vadd.f32 %v1331, %v1425
      %v1515 = vadd.f32 %v1332, %v1464
      %v1516 = vadd.f32 %v1333, %v1466
      %v1517 = vadd.f32 %v1334, %v1505
      %v1518 = vadd.f32 %v1335, %v1507
      %s1519 = scalar_lea.vmem %s5, 8
      %v1520 = vld [vmem:[%s1519] sm:$0x3]
      %v1522 = vsel %vm687, %v1520, 0
      %v1525 = vsel %vm691, %v682, 0
      %1527 = vmatprep.subr.bf16.mxu0 %v699
      %1528 = vmatpush1.bf16.msra.mxu0 %v696
      %1529 = vmatprep.subr.bf16.mxu0 0
      %1530 = vmatpush1.bf16.msra.mxu0 0
      %1531 = vmatprep.subr.bf16.mxu0 0
      %1532 = vmatpush1.bf16.msra.mxu0 0
      %1533 = vmatprep.subr.bf16.mxu0 0
      %1534 = vmatpush1.bf16.msra.mxu0 0
      %1535 = vmatprep.subr.bf16.mxu0 0
      %1536 = vmatpush1.bf16.msra.mxu0 0
      %1537 = vmatprep.subr.bf16.mxu0 0
      %1538 = vmatpush1.bf16.msra.mxu0 0
      %1539 = vmatprep.subr.bf16.mxu0 0
      %1540 = vmatpush1.bf16.msra.mxu0 0
      %1541 = vmatprep.subr.bf16.mxu0 0
      %1542 = vmatpush1.bf16.msra.mxu0 0
      %1543 = vmatprep.subr.bf16.mxu0 0
      %1544 = vmatpush1.bf16.msra.mxu0 0
      %1545 = vmatprep.subr.bf16.mxu0 0
      %1546 = vmatpush1.bf16.msra.mxu0 0
      %1547 = vmatprep.subr.bf16.mxu0 0
      %1548 = vmatpush1.bf16.msra.mxu0 0
      %1549 = vmatprep.subr.bf16.mxu0 0
      %1550 = vmatpush1.bf16.msra.mxu0 0
      %1551 = vmatprep.subr.bf16.mxu0 0
      %1552 = vmatpush1.bf16.msra.mxu0 0
      %1553 = vmatprep.subr.bf16.mxu0 0
      %1554 = vmatpush1.bf16.msra.mxu0 0
      %1555 = vmatprep.subr.bf16.mxu0 0
      %1556 = vmatpush1.bf16.msra.mxu0 0
      %1557 = vmatprep.subr.bf16.mxu0 0
      %1558 = vmatpush1.bf16.msra.mxu0 0
      %1559 = vmatprep.mubr.bf16.mxu0 0
      %1560 = vmatmul.mubr.bf16.gmra.mrb[0].mxu0 %v1522
      %v1561 = vpop.f32.mrb[0].mxu0
      %v1562 = vadd.f32 0.0, %v1561
      %v1563 = vpop.f32.mrb[0].mxu0
      %v1564 = vadd.f32 0.0, %v1563
      %v1565 = vpop.f32.mrb[0].mxu0
      %v1566 = vpop.f32.mrb[0].mxu0
      %1567 = vdwg.mxu0
      %1568 = vmatprep.subr.bf16.mxu0 %v705
      %1569 = vmatpush1.bf16.msra.mxu0 %v702
      %1570 = vmatprep.subr.bf16.mxu0 0
      %1571 = vmatpush1.bf16.msra.mxu0 0
      %1572 = vmatprep.subr.bf16.mxu0 0
      %1573 = vmatpush1.bf16.msra.mxu0 0
      %1574 = vmatprep.subr.bf16.mxu0 0
      %1575 = vmatpush1.bf16.msra.mxu0 0
      %1576 = vmatprep.subr.bf16.mxu0 0
      %1577 = vmatpush1.bf16.msra.mxu0 0
      %1578 = vmatprep.subr.bf16.mxu0 0
      %1579 = vmatpush1.bf16.msra.mxu0 0
      %1580 = vmatprep.subr.bf16.mxu0 0
      %1581 = vmatpush1.bf16.msra.mxu0 0
      %1582 = vmatprep.subr.bf16.mxu0 0
      %1583 = vmatpush1.bf16.msra.mxu0 0
      %1584 = vmatprep.subr.bf16.mxu0 0
      %1585 = vmatpush1.bf16.msra.mxu0 0
      %1586 = vmatprep.subr.bf16.mxu0 0
      %1587 = vmatpush1.bf16.msra.mxu0 0
      %1588 = vmatprep.subr.bf16.mxu0 0
      %1589 = vmatpush1.bf16.msra.mxu0 0
      %1590 = vmatprep.subr.bf16.mxu0 0
      %1591 = vmatpush1.bf16.msra.mxu0 0
      %1592 = vmatprep.subr.bf16.mxu0 0
      %1593 = vmatpush1.bf16.msra.mxu0 0
      %1594 = vmatprep.subr.bf16.mxu0 0
      %1595 = vmatpush1.bf16.msra.mxu0 0
      %1596 = vmatprep.subr.bf16.mxu0 0
      %1597 = vmatpush1.bf16.msra.mxu0 0
      %1598 = vmatprep.subr.bf16.mxu0 0
      %1599 = vmatpush1.bf16.msra.mxu0 0
      %1600 = vmatprep.mubr.bf16.mxu0 0
      %1601 = vmatmul.mubr.bf16.gmra.mrb[0].mxu0 %v1522
      %v1602 = vpop.f32.mrb[0].mxu0
      %v1603 = vadd.f32 0.0, %v1602
      %v1604 = vpop.f32.mrb[0].mxu0
      %v1605 = vadd.f32 0.0, %v1604
      %v1606 = vpop.f32.mrb[0].mxu0
      %v1607 = vpop.f32.mrb[0].mxu0
      %1608 = vdwg.mxu0
      %1609 = vmatprep.subr.bf16.mxu0 %v711
      %1610 = vmatpush1.bf16.msra.mxu0 %v708
      %1611 = vmatprep.subr.bf16.mxu0 0
      %1612 = vmatpush1.bf16.msra.mxu0 0
      %1613 = vmatprep.subr.bf16.mxu0 0
      %1614 = vmatpush1.bf16.msra.mxu0 0
      %1615 = vmatprep.subr.bf16.mxu0 0
      %1616 = vmatpush1.bf16.msra.mxu0 0
      %1617 = vmatprep.subr.bf16.mxu0 0
      %1618 = vmatpush1.bf16.msra.mxu0 0
      %1619 = vmatprep.subr.bf16.mxu0 0
      %1620 = vmatpush1.bf16.msra.mxu0 0
      %1621 = vmatprep.subr.bf16.mxu0 0
      %1622 = vmatpush1.bf16.msra.mxu0 0
      %1623 = vmatprep.subr.bf16.mxu0 0
      %1624 = vmatpush1.bf16.msra.mxu0 0
      %1625 = vmatprep.subr.bf16.mxu0 0
      %1626 = vmatpush1.bf16.msra.mxu0 0
      %1627 = vmatprep.subr.bf16.mxu0 0
      %1628 = vmatpush1.bf16.msra.mxu0 0
      %1629 = vmatprep.subr.bf16.mxu0 0
      %1630 = vmatpush1.bf16.msra.mxu0 0
      %1631 = vmatprep.subr.bf16.mxu0 0
      %1632 = vmatpush1.bf16.msra.mxu0 0
      %1633 = vmatprep.subr.bf16.mxu0 0
      %1634 = vmatpush1.bf16.msra.mxu0 0
      %1635 = vmatprep.subr.bf16.mxu0 0
      %1636 = vmatpush1.bf16.msra.mxu0 0
      %1637 = vmatprep.subr.bf16.mxu0 0
      %1638 = vmatpush1.bf16.msra.mxu0 0
      %1639 = vmatprep.subr.bf16.mxu0 0
      %1640 = vmatpush1.bf16.msra.mxu0 0
      %1641 = vmatprep.mubr.bf16.mxu0 0
      %1642 = vmatmul.mubr.bf16.gmra.mrb[0].mxu0 %v1522
      %v1643 = vpop.f32.mrb[0].mxu0
      %v1644 = vadd.f32 0.0, %v1643
      %v1645 = vpop.f32.mrb[0].mxu0
      %v1646 = vadd.f32 0.0, %v1645
      %v1647 = vpop.f32.mrb[0].mxu0
      %v1648 = vpop.f32.mrb[0].mxu0
      %1649 = vdwg.mxu0
      %1650 = vmatprep.subr.bf16.mxu0 %v1525
      %1651 = vmatpush1.bf16.msra.mxu0 %v714
      %1652 = vmatprep.subr.bf16.mxu0 0
      %1653 = vmatpush1.bf16.msra.mxu0 0
      %1654 = vmatprep.subr.bf16.mxu0 0
      %1655 = vmatpush1.bf16.msra.mxu0 0
      %1656 = vmatprep.subr.bf16.mxu0 0
      %1657 = vmatpush1.bf16.msra.mxu0 0
      %1658 = vmatprep.subr.bf16.mxu0 0
      %1659 = vmatpush1.bf16.msra.mxu0 0
      %1660 = vmatprep.subr.bf16.mxu0 0
      %1661 = vmatpush1.bf16.msra.mxu0 0
      %1662 = vmatprep.subr.bf16.mxu0 0
      %1663 = vmatpush1.bf16.msra.mxu0 0
      %1664 = vmatprep.subr.bf16.mxu0 0
      %1665 = vmatpush1.bf16.msra.mxu0 0
      %1666 = vmatprep.subr.bf16.mxu0 0
      %1667 = vmatpush1.bf16.msra.mxu0 0
      %1668 = vmatprep.subr.bf16.mxu0 0
      %1669 = vmatpush1.bf16.msra.mxu0 0
      %1670 = vmatprep.subr.bf16.mxu0 0
      %1671 = vmatpush1.bf16.msra.mxu0 0
      %1672 = vmatprep.subr.bf16.mxu0 0
      %1673 = vmatpush1.bf16.msra.mxu0 0
      %1674 = vmatprep.subr.bf16.mxu0 0
      %1675 = vmatpush1.bf16.msra.mxu0 0
      %1676 = vmatprep.subr.bf16.mxu0 0
      %1677 = vmatpush1.bf16.msra.mxu0 0
      %1678 = vmatprep.subr.bf16.mxu0 0
      %1679 = vmatpush1.bf16.msra.mxu0 0
      %1680 = vmatprep.subr.bf16.mxu0 0
      %1681 = vmatpush1.bf16.msra.mxu0 0
      %1682 = vmatprep.mubr.bf16.mxu0 0
      %1683 = vmatmul.mubr.bf16.gmra.mrb[0].mxu0 %v1522
      %v1684 = vpop.f32.mrb[0].mxu0
      %v1685 = vadd.f32 0.0, %v1684
      %v1686 = vpop.f32.mrb[0].mxu0
      %v1687 = vadd.f32 0.0, %v1686
      %v1688 = vpop.f32.mrb[0].mxu0
      %v1689 = vpop.f32.mrb[0].mxu0
      %1690 = vdwg.mxu0
      %v1691 = vadd.f32 %v1511, %v1562
      %v1692 = vadd.f32 %v1512, %v1564
      %v1693 = vadd.f32 %v1513, %v1603
      %v1694 = vadd.f32 %v1514, %v1605
      %v1695 = vadd.f32 %v1515, %v1644
      %v1696 = vadd.f32 %v1516, %v1646
      %v1697 = vadd.f32 %v1517, %v1685
      %v1698 = vadd.f32 %v1518, %v1687
      %s1699 = scalar_lea.vmem %s5, 10
      %v1700 = vld [vmem:[%s1699] sm:$0x3]
      %1702 = vrot.lane.b32.xlu0 %v683, 127
      %v1703 = vpop.permute.xlu0 %1702
      %v1704 = vsel %vm1128, %v1127, %v1703
      %v1706 = vsel %vm687, %v1700, 0
      %v1709 = vsel %vm691, %v1704, 0
      %1711 = vmatprep.subr.bf16.mxu0 %v1147
      %1712 = vmatpush1.bf16.msra.mxu0 %v1144
      %1713 = vmatprep.subr.bf16.mxu0 0
      %1714 = vmatpush1.bf16.msra.mxu0 0
      %1715 = vmatprep.subr.bf16.mxu0 0
      %1716 = vmatpush1.bf16.msra.mxu0 0
      %1717 = vmatprep.subr.bf16.mxu0 0
      %1718 = vmatpush1.bf16.msra.mxu0 0
      %1719 = vmatprep.subr.bf16.mxu0 0
      %1720 = vmatpush1.bf16.msra.mxu0 0
      %1721 = vmatprep.subr.bf16.mxu0 0
      %1722 = vmatpush1.bf16.msra.mxu0 0
      %1723 = vmatprep.subr.bf16.mxu0 0
      %1724 = vmatpush1.bf16.msra.mxu0 0
      %1725 = vmatprep.subr.bf16.mxu0 0
      %1726 = vmatpush1.bf16.msra.mxu0 0
      %1727 = vmatprep.subr.bf16.mxu0 0
      %1728 = vmatpush1.bf16.msra.mxu0 0
      %1729 = vmatprep.subr.bf16.mxu0 0
      %1730 = vmatpush1.bf16.msra.mxu0 0
      %1731 = vmatprep.subr.bf16.mxu0 0
      %1732 = vmatpush1.bf16.msra.mxu0 0
      %1733 = vmatprep.subr.bf16.mxu0 0
      %1734 = vmatpush1.bf16.msra.mxu0 0
      %1735 = vmatprep.subr.bf16.mxu0 0
      %1736 = vmatpush1.bf16.msra.mxu0 0
      %1737 = vmatprep.subr.bf16.mxu0 0
      %1738 = vmatpush1.bf16.msra.mxu0 0
      %1739 = vmatprep.subr.bf16.mxu0 0
      %1740 = vmatpush1.bf16.msra.mxu0 0
      %1741 = vmatprep.subr.bf16.mxu0 0
      %1742 = vmatpush1.bf16.msra.mxu0 0
      %1743 = vmatprep.mubr.bf16.mxu0 0
      %1744 = vmatmul.mubr.bf16.gmra.mrb[0].mxu0 %v1706
      %v1745 = vpop.f32.mrb[0].mxu0
      %v1746 = vadd.f32 0.0, %v1745
      %v1747 = vpop.f32.mrb[0].mxu0
      %v1748 = vadd.f32 0.0, %v1747
      %v1749 = vpop.f32.mrb[0].mxu0
      %v1750 = vpop.f32.mrb[0].mxu0
      %1751 = vdwg.mxu0
      %1752 = vmatprep.subr.bf16.mxu0 %v1153
      %1753 = vmatpush1.bf16.msra.mxu0 %v1150
      %1754 = vmatprep.subr.bf16.mxu0 0
      %1755 = vmatpush1.bf16.msra.mxu0 0
      %1756 = vmatprep.subr.bf16.mxu0 0
      %1757 = vmatpush1.bf16.msra.mxu0 0
      %1758 = vmatprep.subr.bf16.mxu0 0
      %1759 = vmatpush1.bf16.msra.mxu0 0
      %1760 = vmatprep.subr.bf16.mxu0 0
      %1761 = vmatpush1.bf16.msra.mxu0 0
      %1762 = vmatprep.subr.bf16.mxu0 0
      %1763 = vmatpush1.bf16.msra.mxu0 0
      %1764 = vmatprep.subr.bf16.mxu0 0
      %1765 = vmatpush1.bf16.msra.mxu0 0
      %1766 = vmatprep.subr.bf16.mxu0 0
      %1767 = vmatpush1.bf16.msra.mxu0 0
      %1768 = vmatprep.subr.bf16.mxu0 0
      %1769 = vmatpush1.bf16.msra.mxu0 0
      %1770 = vmatprep.subr.bf16.mxu0 0
      %1771 = vmatpush1.bf16.msra.mxu0 0
      %1772 = vmatprep.subr.bf16.mxu0 0
      %1773 = vmatpush1.bf16.msra.mxu0 0
      %1774 = vmatprep.subr.bf16.mxu0 0
      %1775 = vmatpush1.bf16.msra.mxu0 0
      %1776 = vmatprep.subr.bf16.mxu0 0
      %1777 = vmatpush1.bf16.msra.mxu0 0
      %1778 = vmatprep.subr.bf16.mxu0 0
      %1779 = vmatpush1.bf16.msra.mxu0 0
      %1780 = vmatprep.subr.bf16.mxu0 0
      %1781 = vmatpush1.bf16.msra.mxu0 0
      %1782 = vmatprep.subr.bf16.mxu0 0
      %1783 = vmatpush1.bf16.msra.mxu0 0
      %1784 = vmatprep.mubr.bf16.mxu0 0
      %1785 = vmatmul.mubr.bf16.gmra.mrb[0].mxu0 %v1706
      %v1786 = vpop.f32.mrb[0].mxu0
      %v1787 = vadd.f32 0.0, %v1786
      %v1788 = vpop.f32.mrb[0].mxu0
      %v1789 = vadd.f32 0.0, %v1788
      %v1790 = vpop.f32.mrb[0].mxu0
      %v1791 = vpop.f32.mrb[0].mxu0
      %1792 = vdwg.mxu0
      %1793 = vmatprep.subr.bf16.mxu0 %v1159
      %1794 = vmatpush1.bf16.msra.mxu0 %v1156
      %1795 = vmatprep.subr.bf16.mxu0 0
      %1796 = vmatpush1.bf16.msra.mxu0 0
      %1797 = vmatprep.subr.bf16.mxu0 0
      %1798 = vmatpush1.bf16.msra.mxu0 0
      %1799 = vmatprep.subr.bf16.mxu0 0
      %1800 = vmatpush1.bf16.msra.mxu0 0
      %1801 = vmatprep.subr.bf16.mxu0 0
      %1802 = vmatpush1.bf16.msra.mxu0 0
      %1803 = vmatprep.subr.bf16.mxu0 0
      %1804 = vmatpush1.bf16.msra.mxu0 0
      %1805 = vmatprep.subr.bf16.mxu0 0
      %1806 = vmatpush1.bf16.msra.mxu0 0
      %1807 = vmatprep.subr.bf16.mxu0 0
      %1808 = vmatpush1.bf16.msra.mxu0 0
      %1809 = vmatprep.subr.bf16.mxu0 0
      %1810 = vmatpush1.bf16.msra.mxu0 0
      %1811 = vmatprep.subr.bf16.mxu0 0
      %1812 = vmatpush1.bf16.msra.mxu0 0
      %1813 = vmatprep.subr.bf16.mxu0 0
      %1814 = vmatpush1.bf16.msra.mxu0 0
      %1815 = vmatprep.subr.bf16.mxu0 0
      %1816 = vmatpush1.bf16.msra.mxu0 0
      %1817 = vmatprep.subr.bf16.mxu0 0
      %1818 = vmatpush1.bf16.msra.mxu0 0
      %1819 = vmatprep.subr.bf16.mxu0 0
      %1820 = vmatpush1.bf16.msra.mxu0 0
      %1821 = vmatprep.subr.bf16.mxu0 0
      %1822 = vmatpush1.bf16.msra.mxu0 0
      %1823 = vmatprep.subr.bf16.mxu0 0
      %1824 = vmatpush1.bf16.msra.mxu0 0
      %1825 = vmatprep.mubr.bf16.mxu0 0
      %1826 = vmatmul.mubr.bf16.gmra.mrb[0].mxu0 %v1706
      %v1827 = vpop.f32.mrb[0].mxu0
      %v1828 = vadd.f32 0.0, %v1827
      %v1829 = vpop.f32.mrb[0].mxu0
      %v1830 = vadd.f32 0.0, %v1829
      %v1831 = vpop.f32.mrb[0].mxu0
      %v1832 = vpop.f32.mrb[0].mxu0
      %1833 = vdwg.mxu0
      %1834 = vmatprep.subr.bf16.mxu0 %v1709
      %1835 = vmatpush1.bf16.msra.mxu0 %v1162
      %1836 = vmatprep.subr.bf16.mxu0 0
      %1837 = vmatpush1.bf16.msra.mxu0 0
      %1838 = vmatprep.subr.bf16.mxu0 0
      %1839 = vmatpush1.bf16.msra.mxu0 0
      %1840 = vmatprep.subr.bf16.mxu0 0
      %1841 = vmatpush1.bf16.msra.mxu0 0
      %1842 = vmatprep.subr.bf16.mxu0 0
      %1843 = vmatpush1.bf16.msra.mxu0 0
      %1844 = vmatprep.subr.bf16.mxu0 0
      %1845 = vmatpush1.bf16.msra.mxu0 0
      %1846 = vmatprep.subr.bf16.mxu0 0
      %1847 = vmatpush1.bf16.msra.mxu0 0
      %1848 = vmatprep.subr.bf16.mxu0 0
      %1849 = vmatpush1.bf16.msra.mxu0 0
      %1850 = vmatprep.subr.bf16.mxu0 0
      %1851 = vmatpush1.bf16.msra.mxu0 0
      %1852 = vmatprep.subr.bf16.mxu0 0
      %1853 = vmatpush1.bf16.msra.mxu0 0
      %1854 = vmatprep.subr.bf16.mxu0 0
      %1855 = vmatpush1.bf16.msra.mxu0 0
      %1856 = vmatprep.subr.bf16.mxu0 0
      %1857 = vmatpush1.bf16.msra.mxu0 0
      %1858 = vmatprep.subr.bf16.mxu0 0
      %1859 = vmatpush1.bf16.msra.mxu0 0
      %1860 = vmatprep.subr.bf16.mxu0 0
      %1861 = vmatpush1.bf16.msra.mxu0 0
      %1862 = vmatprep.subr.bf16.mxu0 0
      %1863 = vmatpush1.bf16.msra.mxu0 0
      %1864 = vmatprep.subr.bf16.mxu0 0
      %1865 = vmatpush1.bf16.msra.mxu0 0
      %1866 = vmatprep.mubr.bf16.mxu0 0
      %1867 = vmatmul.mubr.bf16.gmra.mrb[0].mxu0 %v1706
      %v1868 = vpop.f32.mrb[0].mxu0
      %v1869 = vadd.f32 0.0, %v1868
      %v1870 = vpop.f32.mrb[0].mxu0
      %v1871 = vadd.f32 0.0, %v1870
      %v1872 = vpop.f32.mrb[0].mxu0
      %v1873 = vpop.f32.mrb[0].mxu0
      %1874 = vdwg.mxu0
      %v1875 = vadd.f32 %v1691, %v1746
      %v1876 = vadd.f32 %v1692, %v1748
      %v1877 = vadd.f32 %v1693, %v1787
      %v1878 = vadd.f32 %v1694, %v1789
      %v1879 = vadd.f32 %v1695, %v1828
      %v1880 = vadd.f32 %v1696, %v1830
      %v1881 = vadd.f32 %v1697, %v1869
      %v1882 = vadd.f32 %v1698, %v1871
      %s1883 = scalar_lea.vmem %s5, 12
      %v1884 = vld [vmem:[%s1883] sm:$0x3]
      %1885 = vrot.lane.b32.xlu0 %v683, 1
      %v1886 = vpop.permute.xlu0 %1885
      %v1887 = vsel %vm907, %v1339, %v1886
      %v1889 = vsel %vm687, %v1884, 0
      %v1892 = vsel %vm691, %v1887, 0
      %1894 = vmatprep.subr.bf16.mxu0 %v929
      %1895 = vmatpush1.bf16.msra.mxu0 %v926
      %1896 = vmatprep.subr.bf16.mxu0 0
      %1897 = vmatpush1.bf16.msra.mxu0 0
      %1898 = vmatprep.subr.bf16.mxu0 0
      %1899 = vmatpush1.bf16.msra.mxu0 0
      %1900 = vmatprep.subr.bf16.mxu0 0
      %1901 = vmatpush1.bf16.msra.mxu0 0
      %1902 = vmatprep.subr.bf16.mxu0 0
      %1903 = vmatpush1.bf16.msra.mxu0 0
      %1904 = vmatprep.subr.bf16.mxu0 0
      %1905 = vmatpush1.bf16.msra.mxu0 0
      %1906 = vmatprep.subr.bf16.mxu0 0
      %1907 = vmatpush1.bf16.msra.mxu0 0
      %1908 = vmatprep.subr.bf16.mxu0 0
      %1909 = vmatpush1.bf16.msra.mxu0 0
      %1910 = vmatprep.subr.bf16.mxu0 0
      %1911 = vmatpush1.bf16.msra.mxu0 0
      %1912 = vmatprep.subr.bf16.mxu0 0
      %1913 = vmatpush1.bf16.msra.mxu0 0
      %1914 = vmatprep.subr.bf16.mxu0 0
      %1915 = vmatpush1.bf16.msra.mxu0 0
      %1916 = vmatprep.subr.bf16.mxu0 0
      %1917 = vmatpush1.bf16.msra.mxu0 0
      %1918 = vmatprep.subr.bf16.mxu0 0
      %1919 = vmatpush1.bf16.msra.mxu0 0
      %1920 = vmatprep.subr.bf16.mxu0 0
      %1921 = vmatpush1.bf16.msra.mxu0 0
      %1922 = vmatprep.subr.bf16.mxu0 0
      %1923 = vmatpush1.bf16.msra.mxu0 0
      %1924 = vmatprep.subr.bf16.mxu0 0
      %1925 = vmatpush1.bf16.msra.mxu0 0
      %1926 = vmatprep.mubr.bf16.mxu0 0
      %1927 = vmatmul.mubr.bf16.gmra.mrb[0].mxu0 %v1889
      %v1928 = vpop.f32.mrb[0].mxu0
      %v1929 = vadd.f32 0.0, %v1928
      %v1930 = vpop.f32.mrb[0].mxu0
      %v1931 = vadd.f32 0.0, %v1930
      %v1932 = vpop.f32.mrb[0].mxu0
      %v1933 = vpop.f32.mrb[0].mxu0
      %1934 = vdwg.mxu0
      %1935 = vmatprep.subr.bf16.mxu0 %v935
      %1936 = vmatpush1.bf16.msra.mxu0 %v932
      %1937 = vmatprep.subr.bf16.mxu0 0
      %1938 = vmatpush1.bf16.msra.mxu0 0
      %1939 = vmatprep.subr.bf16.mxu0 0
      %1940 = vmatpush1.bf16.msra.mxu0 0
      %1941 = vmatprep.subr.bf16.mxu0 0
      %1942 = vmatpush1.bf16.msra.mxu0 0
      %1943 = vmatprep.subr.bf16.mxu0 0
      %1944 = vmatpush1.bf16.msra.mxu0 0
      %1945 = vmatprep.subr.bf16.mxu0 0
      %1946 = vmatpush1.bf16.msra.mxu0 0
      %1947 = vmatprep.subr.bf16.mxu0 0
      %1948 = vmatpush1.bf16.msra.mxu0 0
      %1949 = vmatprep.subr.bf16.mxu0 0
      %1950 = vmatpush1.bf16.msra.mxu0 0
      %1951 = vmatprep.subr.bf16.mxu0 0
      %1952 = vmatpush1.bf16.msra.mxu0 0
      %1953 = vmatprep.subr.bf16.mxu0 0
      %1954 = vmatpush1.bf16.msra.mxu0 0
      %1955 = vmatprep.subr.bf16.mxu0 0
      %1956 = vmatpush1.bf16.msra.mxu0 0
      %1957 = vmatprep.subr.bf16.mxu0 0
      %1958 = vmatpush1.bf16.msra.mxu0 0
      %1959 = vmatprep.subr.bf16.mxu0 0
      %1960 = vmatpush1.bf16.msra.mxu0 0
      %1961 = vmatprep.subr.bf16.mxu0 0
      %1962 = vmatpush1.bf16.msra.mxu0 0
      %1963 = vmatprep.subr.bf16.mxu0 0
      %1964 = vmatpush1.bf16.msra.mxu0 0
      %1965 = vmatprep.subr.bf16.mxu0 0
      %1966 = vmatpush1.bf16.msra.mxu0 0
      %1967 = vmatprep.mubr.bf16.mxu0 0
      %1968 = vmatmul.mubr.bf16.gmra.mrb[0].mxu0 %v1889
      %v1969 = vpop.f32.mrb[0].mxu0
      %v1970 = vadd.f32 0.0, %v1969
      %v1971 = vpop.f32.mrb[0].mxu0
      %v1972 = vadd.f32 0.0, %v1971
      %v1973 = vpop.f32.mrb[0].mxu0
      %v1974 = vpop.f32.mrb[0].mxu0
      %1975 = vdwg.mxu0
      %1976 = vmatprep.subr.bf16.mxu0 %v941
      %1977 = vmatpush1.bf16.msra.mxu0 %v938
      %1978 = vmatprep.subr.bf16.mxu0 0
      %1979 = vmatpush1.bf16.msra.mxu0 0
      %1980 = vmatprep.subr.bf16.mxu0 0
      %1981 = vmatpush1.bf16.msra.mxu0 0
      %1982 = vmatprep.subr.bf16.mxu0 0
      %1983 = vmatpush1.bf16.msra.mxu0 0
      %1984 = vmatprep.subr.bf16.mxu0 0
      %1985 = vmatpush1.bf16.msra.mxu0 0
      %1986 = vmatprep.subr.bf16.mxu0 0
      %1987 = vmatpush1.bf16.msra.mxu0 0
      %1988 = vmatprep.subr.bf16.mxu0 0
      %1989 = vmatpush1.bf16.msra.mxu0 0
      %1990 = vmatprep.subr.bf16.mxu0 0
      %1991 = vmatpush1.bf16.msra.mxu0 0
      %1992 = vmatprep.subr.bf16.mxu0 0
      %1993 = vmatpush1.bf16.msra.mxu0 0
      %1994 = vmatprep.subr.bf16.mxu0 0
      %1995 = vmatpush1.bf16.msra.mxu0 0
      %1996 = vmatprep.subr.bf16.mxu0 0
      %1997 = vmatpush1.bf16.msra.mxu0 0
      %1998 = vmatprep.subr.bf16.mxu0 0
      %1999 = vmatpush1.bf16.msra.mxu0 0
      %2000 = vmatprep.subr.bf16.mxu0 0
      %2001 = vmatpush1.bf16.msra.mxu0 0
      %2002 = vmatprep.subr.bf16.mxu0 0
      %2003 = vmatpush1.bf16.msra.mxu0 0
      %2004 = vmatprep.subr.bf16.mxu0 0
      %2005 = vmatpush1.bf16.msra.mxu0 0
      %2006 = vmatprep.subr.bf16.mxu0 0
      %2007 = vmatpush1.bf16.msra.mxu0 0
      %2008 = vmatprep.mubr.bf16.mxu0 0
      %2009 = vmatmul.mubr.bf16.gmra.mrb[0].mxu0 %v1889
      %v2010 = vpop.f32.mrb[0].mxu0
      %v2011 = vadd.f32 0.0, %v2010
      %v2012 = vpop.f32.mrb[0].mxu0
      %v2013 = vadd.f32 0.0, %v2012
      %v2014 = vpop.f32.mrb[0].mxu0
      %v2015 = vpop.f32.mrb[0].mxu0
      %2016 = vdwg.mxu0
      %2017 = vmatprep.subr.bf16.mxu0 %v1892
      %2018 = vmatpush1.bf16.msra.mxu0 %v1345
      %2019 = vmatprep.subr.bf16.mxu0 0
      %2020 = vmatpush1.bf16.msra.mxu0 0
      %2021 = vmatprep.subr.bf16.mxu0 0
      %2022 = vmatpush1.bf16.msra.mxu0 0
      %2023 = vmatprep.subr.bf16.mxu0 0
      %2024 = vmatpush1.bf16.msra.mxu0 0
      %2025 = vmatprep.subr.bf16.mxu0 0
      %2026 = vmatpush1.bf16.msra.mxu0 0
      %2027 = vmatprep.subr.bf16.mxu0 0
      %2028 = vmatpush1.bf16.msra.mxu0 0
      %2029 = vmatprep.subr.bf16.mxu0 0
      %2030 = vmatpush1.bf16.msra.mxu0 0
      %2031 = vmatprep.subr.bf16.mxu0 0
      %2032 = vmatpush1.bf16.msra.mxu0 0
      %2033 = vmatprep.subr.bf16.mxu0 0
      %2034 = vmatpush1.bf16.msra.mxu0 0
      %2035 = vmatprep.subr.bf16.mxu0 0
      %2036 = vmatpush1.bf16.msra.mxu0 0
      %2037 = vmatprep.subr.bf16.mxu0 0
      %2038 = vmatpush1.bf16.msra.mxu0 0
      %2039 = vmatprep.subr.bf16.mxu0 0
      %2040 = vmatpush1.bf16.msra.mxu0 0
      %2041 = vmatprep.subr.bf16.mxu0 0
      %2042 = vmatpush1.bf16.msra.mxu0 0
      %2043 = vmatprep.subr.bf16.mxu0 0
      %2044 = vmatpush1.bf16.msra.mxu0 0
      %2045 = vmatprep.subr.bf16.mxu0 0
      %2046 = vmatpush1.bf16.msra.mxu0 0
      %2047 = vmatprep.subr.bf16.mxu0 0
      %2048 = vmatpush1.bf16.msra.mxu0 0
      %2049 = vmatprep.mubr.bf16.mxu0 0
      %2050 = vmatmul.mubr.bf16.gmra.mrb[0].mxu0 %v1889
      %v2051 = vpop.f32.mrb[0].mxu0
      %v2052 = vadd.f32 0.0, %v2051
      %v2053 = vpop.f32.mrb[0].mxu0
      %v2054 = vadd.f32 0.0, %v2053
      %v2055 = vpop.f32.mrb[0].mxu0
      %v2056 = vpop.f32.mrb[0].mxu0
      %2057 = vdwg.mxu0
      %v2058 = vadd.f32 %v1875, %v1929
      %v2059 = vadd.f32 %v1876, %v1931
      %v2060 = vadd.f32 %v1877, %v1970
      %v2061 = vadd.f32 %v1878, %v1972
      %v2062 = vadd.f32 %v1879, %v2011
      %v2063 = vadd.f32 %v1880, %v2013
      %v2064 = vadd.f32 %v1881, %v2052
      %v2065 = vadd.f32 %v1882, %v2054
      %s2066 = scalar_lea.vmem %s5, 14
      %v2067 = vld [vmem:[%s2066] sm:$0x3]
      %v2069 = vsel %vm687, %v2067, 0
      %v2072 = vsel %vm691, %v683, 0
      %2074 = vmatprep.subr.bf16.mxu0 %v702
      %2075 = vmatpush1.bf16.msra.mxu0 %v699
      %2076 = vmatprep.subr.bf16.mxu0 0
      %2077 = vmatpush1.bf16.msra.mxu0 0
      %2078 = vmatprep.subr.bf16.mxu0 0
      %2079 = vmatpush1.bf16.msra.mxu0 0
      %2080 = vmatprep.subr.bf16.mxu0 0
      %2081 = vmatpush1.bf16.msra.mxu0 0
      %2082 = vmatprep.subr.bf16.mxu0 0
      %2083 = vmatpush1.bf16.msra.mxu0 0
      %2084 = vmatprep.subr.bf16.mxu0 0
      %2085 = vmatpush1.bf16.msra.mxu0 0
      %2086 = vmatprep.subr.bf16.mxu0 0
      %2087 = vmatpush1.bf16.msra.mxu0 0
      %2088 = vmatprep.subr.bf16.mxu0 0
      %2089 = vmatpush1.bf16.msra.mxu0 0
      %2090 = vmatprep.subr.bf16.mxu0 0
      %2091 = vmatpush1.bf16.msra.mxu0 0
      %2092 = vmatprep.subr.bf16.mxu0 0
      %2093 = vmatpush1.bf16.msra.mxu0 0
      %2094 = vmatprep.subr.bf16.mxu0 0
      %2095 = vmatpush1.bf16.msra.mxu0 0
      %2096 = vmatprep.subr.bf16.mxu0 0
      %2097 = vmatpush1.bf16.msra.mxu0 0
      %2098 = vmatprep.subr.bf16.mxu0 0
      %2099 = vmatpush1.bf16.msra.mxu0 0
      %2100 = vmatprep.subr.bf16.mxu0 0
      %2101 = vmatpush1.bf16.msra.mxu0 0
      %2102 = vmatprep.subr.bf16.mxu0 0
      %2103 = vmatpush1.bf16.msra.mxu0 0
      %2104 = vmatprep.subr.bf16.mxu0 0
      %2105 = vmatpush1.bf16.msra.mxu0 0
      %2106 = vmatprep.mubr.bf16.mxu0 0
      %2107 = vmatmul.mubr.bf16.gmra.mrb[0].mxu0 %v2069
      %v2108 = vpop.f32.mrb[0].mxu0
      %v2109 = vadd.f32 0.0, %v2108
      %v2110 = vpop.f32.mrb[0].mxu0
      %v2111 = vadd.f32 0.0, %v2110
      %v2112 = vpop.f32.mrb[0].mxu0
      %v2113 = vpop.f32.mrb[0].mxu0
      %2114 = vdwg.mxu0
      %2115 = vmatprep.subr.bf16.mxu0 %v708
      %2116 = vmatpush1.bf16.msra.mxu0 %v705
      %2117 = vmatprep.subr.bf16.mxu0 0
      %2118 = vmatpush1.bf16.msra.mxu0 0
      %2119 = vmatprep.subr.bf16.mxu0 0
      %2120 = vmatpush1.bf16.msra.mxu0 0
      %2121 = vmatprep.subr.bf16.mxu0 0
      %2122 = vmatpush1.bf16.msra.mxu0 0
      %2123 = vmatprep.subr.bf16.mxu0 0
      %2124 = vmatpush1.bf16.msra.mxu0 0
      %2125 = vmatprep.subr.bf16.mxu0 0
      %2126 = vmatpush1.bf16.msra.mxu0 0
      %2127 = vmatprep.subr.bf16.mxu0 0
      %2128 = vmatpush1.bf16.msra.mxu0 0
      %2129 = vmatprep.subr.bf16.mxu0 0
      %2130 = vmatpush1.bf16.msra.mxu0 0
      %2131 = vmatprep.subr.bf16.mxu0 0
      %2132 = vmatpush1.bf16.msra.mxu0 0
      %2133 = vmatprep.subr.bf16.mxu0 0
      %2134 = vmatpush1.bf16.msra.mxu0 0
      %2135 = vmatprep.subr.bf16.mxu0 0
      %2136 = vmatpush1.bf16.msra.mxu0 0
      %2137 = vmatprep.subr.bf16.mxu0 0
      %2138 = vmatpush1.bf16.msra.mxu0 0
      %2139 = vmatprep.subr.bf16.mxu0 0
      %2140 = vmatpush1.bf16.msra.mxu0 0
      %2141 = vmatprep.subr.bf16.mxu0 0
      %2142 = vmatpush1.bf16.msra.mxu0 0
      %2143 = vmatprep.subr.bf16.mxu0 0
      %2144 = vmatpush1.bf16.msra.mxu0 0
      %2145 = vmatprep.subr.bf16.mxu0 0
      %2146 = vmatpush1.bf16.msra.mxu0 0
      %2147 = vmatprep.mubr.bf16.mxu0 0
      %2148 = vmatmul.mubr.bf16.gmra.mrb[0].mxu0 %v2069
      %v2149 = vpop.f32.mrb[0].mxu0
      %v2150 = vadd.f32 0.0, %v2149
      %v2151 = vpop.f32.mrb[0].mxu0
      %v2152 = vadd.f32 0.0, %v2151
      %v2153 = vpop.f32.mrb[0].mxu0
      %v2154 = vpop.f32.mrb[0].mxu0
      %2155 = vdwg.mxu0
      %2156 = vmatprep.subr.bf16.mxu0 %v714
      %2157 = vmatpush1.bf16.msra.mxu0 %v711
      %2158 = vmatprep.subr.bf16.mxu0 0
      %2159 = vmatpush1.bf16.msra.mxu0 0
      %2160 = vmatprep.subr.bf16.mxu0 0
      %2161 = vmatpush1.bf16.msra.mxu0 0
      %2162 = vmatprep.subr.bf16.mxu0 0
      %2163 = vmatpush1.bf16.msra.mxu0 0
      %2164 = vmatprep.subr.bf16.mxu0 0
      %2165 = vmatpush1.bf16.msra.mxu0 0
      %2166 = vmatprep.subr.bf16.mxu0 0
      %2167 = vmatpush1.bf16.msra.mxu0 0
      %2168 = vmatprep.subr.bf16.mxu0 0
      %2169 = vmatpush1.bf16.msra.mxu0 0
      %2170 = vmatprep.subr.bf16.mxu0 0
      %2171 = vmatpush1.bf16.msra.mxu0 0
      %2172 = vmatprep.subr.bf16.mxu0 0
      %2173 = vmatpush1.bf16.msra.mxu0 0
      %2174 = vmatprep.subr.bf16.mxu0 0
      %2175 = vmatpush1.bf16.msra.mxu0 0
      %2176 = vmatprep.subr.bf16.mxu0 0
      %2177 = vmatpush1.bf16.msra.mxu0 0
      %2178 = vmatprep.subr.bf16.mxu0 0
      %2179 = vmatpush1.bf16.msra.mxu0 0
      %2180 = vmatprep.subr.bf16.mxu0 0
      %2181 = vmatpush1.bf16.msra.mxu0 0
      %2182 = vmatprep.subr.bf16.mxu0 0
      %2183 = vmatpush1.bf16.msra.mxu0 0
      %2184 = vmatprep.subr.bf16.mxu0 0
      %2185 = vmatpush1.bf16.msra.mxu0 0
      %2186 = vmatprep.subr.bf16.mxu0 0
      %2187 = vmatpush1.bf16.msra.mxu0 0
      %2188 = vmatprep.mubr.bf16.mxu0 0
      %2189 = vmatmul.mubr.bf16.gmra.mrb[0].mxu0 %v2069
      %v2190 = vpop.f32.mrb[0].mxu0
      %v2191 = vadd.f32 0.0, %v2190
      %v2192 = vpop.f32.mrb[0].mxu0
      %v2193 = vadd.f32 0.0, %v2192
      %v2194 = vpop.f32.mrb[0].mxu0
      %v2195 = vpop.f32.mrb[0].mxu0
      %2196 = vdwg.mxu0
      %2197 = vmatprep.subr.bf16.mxu0 %v2072
      %2198 = vmatpush1.bf16.msra.mxu0 %v1525
      %2199 = vmatprep.subr.bf16.mxu0 0
      %2200 = vmatpush1.bf16.msra.mxu0 0
      %2201 = vmatprep.subr.bf16.mxu0 0
      %2202 = vmatpush1.bf16.msra.mxu0 0
      %2203 = vmatprep.subr.bf16.mxu0 0
      %2204 = vmatpush1.bf16.msra.mxu0 0
      %2205 = vmatprep.subr.bf16.mxu0 0
      %2206 = vmatpush1.bf16.msra.mxu0 0
      %2207 = vmatprep.subr.bf16.mxu0 0
      %2208 = vmatpush1.bf16.msra.mxu0 0
      %2209 = vmatprep.subr.bf16.mxu0 0
      %2210 = vmatpush1.bf16.msra.mxu0 0
      %2211 = vmatprep.subr.bf16.mxu0 0
      %2212 = vmatpush1.bf16.msra.mxu0 0
      %2213 = vmatprep.subr.bf16.mxu0 0
      %2214 = vmatpush1.bf16.msra.mxu0 0
      %2215 = vmatprep.subr.bf16.mxu0 0
      %2216 = vmatpush1.bf16.msra.mxu0 0
      %2217 = vmatprep.subr.bf16.mxu0 0
      %2218 = vmatpush1.bf16.msra.mxu0 0
      %2219 = vmatprep.subr.bf16.mxu0 0
      %2220 = vmatpush1.bf16.msra.mxu0 0
      %2221 = vmatprep.subr.bf16.mxu0 0
      %2222 = vmatpush1.bf16.msra.mxu0 0
      %2223 = vmatprep.subr.bf16.mxu0 0
      %2224 = vmatpush1.bf16.msra.mxu0 0
      %2225 = vmatprep.subr.bf16.mxu0 0
      %2226 = vmatpush1.bf16.msra.mxu0 0
      %2227 = vmatprep.subr.bf16.mxu0 0
      %2228 = vmatpush1.bf16.msra.mxu0 0
      %2229 = vmatprep.mubr.bf16.mxu0 0
      %2230 = vmatmul.mubr.bf16.gmra.mrb[0].mxu0 %v2069
      %v2231 = vpop.f32.mrb[0].mxu0
      %v2232 = vadd.f32 0.0, %v2231
      %v2233 = vpop.f32.mrb[0].mxu0
      %v2234 = vadd.f32 0.0, %v2233
      %v2235 = vpop.f32.mrb[0].mxu0
      %v2236 = vpop.f32.mrb[0].mxu0
      %2237 = vdwg.mxu0
      %v2238 = vadd.f32 %v2058, %v2109
      %v2239 = vadd.f32 %v2059, %v2111
      %v2240 = vadd.f32 %v2060, %v2150
      %v2241 = vadd.f32 %v2061, %v2152
      %v2242 = vadd.f32 %v2062, %v2191
      %v2243 = vadd.f32 %v2063, %v2193
      %v2244 = vadd.f32 %v2064, %v2232
      %v2245 = vadd.f32 %v2065, %v2234
      %s2246 = scalar_lea.vmem %s5, 16
      %v2247 = vld [vmem:[%s2246] sm:$0x3]
      %2248 = vrot.lane.b32.xlu0 0, 127
      %v2249 = vpop.permute.xlu0 %2248
      %v2250 = vsel %vm1128, %v1703, %v2249
      %v2252 = vsel %vm687, %v2247, 0
      %v2255 = vsel %vm691, %v2250, 0
      %2257 = vmatprep.subr.bf16.mxu0 %v1150
      %2258 = vmatpush1.bf16.msra.mxu0 %v1147
      %2259 = vmatprep.subr.bf16.mxu0 0
      %2260 = vmatpush1.bf16.msra.mxu0 0
      %2261 = vmatprep.subr.bf16.mxu0 0
      %2262 = vmatpush1.bf16.msra.mxu0 0
      %2263 = vmatprep.subr.bf16.mxu0 0
      %2264 = vmatpush1.bf16.msra.mxu0 0
      %2265 = vmatprep.subr.bf16.mxu0 0
      %2266 = vmatpush1.bf16.msra.mxu0 0
      %2267 = vmatprep.subr.bf16.mxu0 0
      %2268 = vmatpush1.bf16.msra.mxu0 0
      %2269 = vmatprep.subr.bf16.mxu0 0
      %2270 = vmatpush1.bf16.msra.mxu0 0
      %2271 = vmatprep.subr.bf16.mxu0 0
      %2272 = vmatpush1.bf16.msra.mxu0 0
      %2273 = vmatprep.subr.bf16.mxu0 0
      %2274 = vmatpush1.bf16.msra.mxu0 0
      %2275 = vmatprep.subr.bf16.mxu0 0
      %2276 = vmatpush1.bf16.msra.mxu0 0
      %2277 = vmatprep.subr.bf16.mxu0 0
      %2278 = vmatpush1.bf16.msra.mxu0 0
      %2279 = vmatprep.subr.bf16.mxu0 0
      %2280 = vmatpush1.bf16.msra.mxu0 0
      %2281 = vmatprep.subr.bf16.mxu0 0
      %2282 = vmatpush1.bf16.msra.mxu0 0
      %2283 = vmatprep.subr.bf16.mxu0 0
      %2284 = vmatpush1.bf16.msra.mxu0 0
      %2285 = vmatprep.subr.bf16.mxu0 0
      %2286 = vmatpush1.bf16.msra.mxu0 0
      %2287 = vmatprep.subr.bf16.mxu0 0
      %2288 = vmatpush1.bf16.msra.mxu0 0
      %2289 = vmatprep.mubr.bf16.mxu0 0
      %2290 = vmatmul.mubr.bf16.gmra.mrb[0].mxu0 %v2252
      %v2291 = vpop.f32.mrb[0].mxu0
      %v2292 = vadd.f32 0.0, %v2291
      %v2293 = vpop.f32.mrb[0].mxu0
      %v2294 = vadd.f32 0.0, %v2293
      %v2295 = vpop.f32.mrb[0].mxu0
      %v2296 = vpop.f32.mrb[0].mxu0
      %2297 = vdwg.mxu0
      %2298 = vmatprep.subr.bf16.mxu0 %v1156
      %2299 = vmatpush1.bf16.msra.mxu0 %v1153
      %2300 = vmatprep.subr.bf16.mxu0 0
      %2301 = vmatpush1.bf16.msra.mxu0 0
      %2302 = vmatprep.subr.bf16.mxu0 0
      %2303 = vmatpush1.bf16.msra.mxu0 0
      %2304 = vmatprep.subr.bf16.mxu0 0
      %2305 = vmatpush1.bf16.msra.mxu0 0
      %2306 = vmatprep.subr.bf16.mxu0 0
      %2307 = vmatpush1.bf16.msra.mxu0 0
      %2308 = vmatprep.subr.bf16.mxu0 0
      %2309 = vmatpush1.bf16.msra.mxu0 0
      %2310 = vmatprep.subr.bf16.mxu0 0
      %2311 = vmatpush1.bf16.msra.mxu0 0
      %2312 = vmatprep.subr.bf16.mxu0 0
      %2313 = vmatpush1.bf16.msra.mxu0 0
      %2314 = vmatprep.subr.bf16.mxu0 0
      %2315 = vmatpush1.bf16.msra.mxu0 0
      %2316 = vmatprep.subr.bf16.mxu0 0
      %2317 = vmatpush1.bf16.msra.mxu0 0
      %2318 = vmatprep.subr.bf16.mxu0 0
      %2319 = vmatpush1.bf16.msra.mxu0 0
      %2320 = vmatprep.subr.bf16.mxu0 0
      %2321 = vmatpush1.bf16.msra.mxu0 0
      %2322 = vmatprep.subr.bf16.mxu0 0
      %2323 = vmatpush1.bf16.msra.mxu0 0
      %2324 = vmatprep.subr.bf16.mxu0 0
      %2325 = vmatpush1.bf16.msra.mxu0 0
      %2326 = vmatprep.subr.bf16.mxu0 0
      %2327 = vmatpush1.bf16.msra.mxu0 0
      %2328 = vmatprep.subr.bf16.mxu0 0
      %2329 = vmatpush1.bf16.msra.mxu0 0
      %2330 = vmatprep.mubr.bf16.mxu0 0
      %2331 = vmatmul.mubr.bf16.gmra.mrb[0].mxu0 %v2252
      %v2332 = vpop.f32.mrb[0].mxu0
      %v2333 = vadd.f32 0.0, %v2332
      %v2334 = vpop.f32.mrb[0].mxu0
      %v2335 = vadd.f32 0.0, %v2334
      %v2336 = vpop.f32.mrb[0].mxu0
      %v2337 = vpop.f32.mrb[0].mxu0
      %2338 = vdwg.mxu0
      %2339 = vmatprep.subr.bf16.mxu0 %v1162
      %2340 = vmatpush1.bf16.msra.mxu0 %v1159
      %2341 = vmatprep.subr.bf16.mxu0 0
      %2342 = vmatpush1.bf16.msra.mxu0 0
      %2343 = vmatprep.subr.bf16.mxu0 0
      %2344 = vmatpush1.bf16.msra.mxu0 0
      %2345 = vmatprep.subr.bf16.mxu0 0
      %2346 = vmatpush1.bf16.msra.mxu0 0
      %2347 = vmatprep.subr.bf16.mxu0 0
      %2348 = vmatpush1.bf16.msra.mxu0 0
      %2349 = vmatprep.subr.bf16.mxu0 0
      %2350 = vmatpush1.bf16.msra.mxu0 0
      %2351 = vmatprep.subr.bf16.mxu0 0
      %2352 = vmatpush1.bf16.msra.mxu0 0
      %2353 = vmatprep.subr.bf16.mxu0 0
      %2354 = vmatpush1.bf16.msra.mxu0 0
      %2355 = vmatprep.subr.bf16.mxu0 0
      %2356 = vmatpush1.bf16.msra.mxu0 0
      %2357 = vmatprep.subr.bf16.mxu0 0
      %2358 = vmatpush1.bf16.msra.mxu0 0
      %2359 = vmatprep.subr.bf16.mxu0 0
      %2360 = vmatpush1.bf16.msra.mxu0 0
      %2361 = vmatprep.subr.bf16.mxu0 0
      %2362 = vmatpush1.bf16.msra.mxu0 0
      %2363 = vmatprep.subr.bf16.mxu0 0
      %2364 = vmatpush1.bf16.msra.mxu0 0
      %2365 = vmatprep.subr.bf16.mxu0 0
      %2366 = vmatpush1.bf16.msra.mxu0 0
      %2367 = vmatprep.subr.bf16.mxu0 0
      %2368 = vmatpush1.bf16.msra.mxu0 0
      %2369 = vmatprep.subr.bf16.mxu0 0
      %2370 = vmatpush1.bf16.msra.mxu0 0
      %2371 = vmatprep.mubr.bf16.mxu0 0
      %2372 = vmatmul.mubr.bf16.gmra.mrb[0].mxu0 %v2252
      %v2373 = vpop.f32.mrb[0].mxu0
      %v2374 = vadd.f32 0.0, %v2373
      %v2375 = vpop.f32.mrb[0].mxu0
      %v2376 = vadd.f32 0.0, %v2375
      %v2377 = vpop.f32.mrb[0].mxu0
      %v2378 = vpop.f32.mrb[0].mxu0
      %2379 = vdwg.mxu0
      %2380 = vmatprep.subr.bf16.mxu0 %v2255
      %2381 = vmatpush1.bf16.msra.mxu0 %v1709
      %2382 = vmatprep.subr.bf16.mxu0 0
      %2383 = vmatpush1.bf16.msra.mxu0 0
      %2384 = vmatprep.subr.bf16.mxu0 0
      %2385 = vmatpush1.bf16.msra.mxu0 0
      %2386 = vmatprep.subr.bf16.mxu0 0
      %2387 = vmatpush1.bf16.msra.mxu0 0
      %2388 = vmatprep.subr.bf16.mxu0 0
      %2389 = vmatpush1.bf16.msra.mxu0 0
      %2390 = vmatprep.subr.bf16.mxu0 0
      %2391 = vmatpush1.bf16.msra.mxu0 0
      %2392 = vmatprep.subr.bf16.mxu0 0
      %2393 = vmatpush1.bf16.msra.mxu0 0
      %2394 = vmatprep.subr.bf16.mxu0 0
      %2395 = vmatpush1.bf16.msra.mxu0 0
      %2396 = vmatprep.subr.bf16.mxu0 0
      %2397 = vmatpush1.bf16.msra.mxu0 0
      %2398 = vmatprep.subr.bf16.mxu0 0
      %2399 = vmatpush1.bf16.msra.mxu0 0
      %2400 = vmatprep.subr.bf16.mxu0 0
      %2401 = vmatpush1.bf16.msra.mxu0 0
      %2402 = vmatprep.subr.bf16.mxu0 0
      %2403 = vmatpush1.bf16.msra.mxu0 0
      %2404 = vmatprep.subr.bf16.mxu0 0
      %2405 = vmatpush1.bf16.msra.mxu0 0
      %2406 = vmatprep.subr.bf16.mxu0 0
      %2407 = vmatpush1.bf16.msra.mxu0 0
      %2408 = vmatprep.subr.bf16.mxu0 0
      %2409 = vmatpush1.bf16.msra.mxu0 0
      %2410 = vmatprep.subr.bf16.mxu0 0
      %2411 = vmatpush1.bf16.msra.mxu0 0
      %2412 = vmatprep.mubr.bf16.mxu0 0
      %2413 = vmatmul.mubr.bf16.gmra.mrb[0].mxu0 %v2252
      %v2414 = vpop.f32.mrb[0].mxu0
      %v2415 = vadd.f32 0.0, %v2414
      %v2416 = vpop.f32.mrb[0].mxu0
      %v2417 = vadd.f32 0.0, %v2416
      %v2418 = vpop.f32.mrb[0].mxu0
      %v2419 = vpop.f32.mrb[0].mxu0
      %2420 = vdwg.mxu0
      %v2421 = vadd.f32 %v2238, %v2292
      %v2422 = vadd.f32 %v2239, %v2294
      %v2423 = vadd.f32 %v2240, %v2333
      %v2424 = vadd.f32 %v2241, %v2335
      %v2425 = vadd.f32 %v2242, %v2374
      %v2426 = vadd.f32 %v2243, %v2376
      %v2427 = vadd.f32 %v2244, %v2415
      %v2428 = vadd.f32 %v2245, %v2417
      %v2429 = vld [vmem:[%s6 + $0x1] sm:$0xff]
      %v2431 = vlaneseq
      %v2432 = vshrl.u32 %v2431, 7
      %v2433 = vsub.s32 0, %v2432
      %v2434 = vrot.slane %v2429, %v2433
      %v2435 = vlaneseq
      %v2436 = vshrl.u32 %v2435, 7
      %v2437 = vsub.s32 1, %v2436
      %v2438 = vrot.slane %v2429, %v2437
      %v2439 = vlaneseq
      %v2440 = vshrl.u32 %v2439, 7
      %v2441 = vsub.s32 2, %v2440
      %v2442 = vrot.slane %v2429, %v2441
      %v2443 = vlaneseq
      %v2444 = vshrl.u32 %v2443, 7
      %v2445 = vsub.s32 3, %v2444
      %v2446 = vrot.slane %v2429, %v2445
      %v2447 = vlaneseq
      %v2448 = vshrl.u32 %v2447, 7
      %v2449 = vsub.s32 4, %v2448
      %v2450 = vrot.slane %v2429, %v2449
      %v2451 = vlaneseq
      %v2452 = vshrl.u32 %v2451, 7
      %v2453 = vsub.s32 5, %v2452
      %v2454 = vrot.slane %v2429, %v2453
      %v2455 = vlaneseq
      %v2456 = vshrl.u32 %v2455, 7
      %v2457 = vsub.s32 6, %v2456
      %v2458 = vrot.slane %v2429, %v2457
      %v2459 = vlaneseq
      %v2460 = vshrl.u32 %v2459, 7
      %v2461 = vsub.s32 7, %v2460
      %v2462 = vrot.slane %v2429, %v2461
      %v2471 = vmul.f32 %v2421, %v2434
      %v2472 = vmul.f32 %v2422, %v2438
      %v2473 = vmul.f32 %v2423, %v2442
      %v2474 = vmul.f32 %v2424, %v2446
      %v2475 = vmul.f32 %v2425, %v2450
      %v2476 = vmul.f32 %v2426, %v2454
      %v2477 = vmul.f32 %v2427, %v2458
      %v2478 = vmul.f32 %v2428, %v2462
      %v2479 = vpack.c.bf16 %v2471, %v2471
      %v2480 = vpack.c.bf16 %v2472, %v2472
      %v2481 = vpack.c.bf16 %v2473, %v2473
      %v2482 = vpack.c.bf16 %v2474, %v2474
      %v2483 = vpack.c.bf16 %v2475, %v2475
      %v2484 = vpack.c.bf16 %v2476, %v2476
      %v2485 = vpack.c.bf16 %v2477, %v2477
      %v2486 = vpack.c.bf16 %v2478, %v2478
      %v2495 = vcombine.low %v2479, %v2480
      %v2496 = vcombine.low %v2481, %v2482
      %v2498 = vunpack.c.l.s4 1983009808
      %v2499 = vunpack.c.0.s8 %v2498
      %v2500 = vlaneseq
      %v2501 = vshrl.u32 %v2500, 7
      %v2502 = vsub.s32 %v2499, %v2501
      %v2503 = vrot.slane %v2495, %v2502
      %v2505 = vunpack.c.l.s4 1983009808
      %v2506 = vunpack.c.0.s8 %v2505
      %v2507 = vlaneseq
      %v2508 = vshrl.u32 %v2507, 7
      %v2509 = vsub.s32 %v2506, %v2508
      %v2510 = vrot.slane %v2496, %v2509
      %v2511 = vcombine.low %v2503, %v2510
      %v2512 = vcombine.low %v2483, %v2484
      %v2513 = vcombine.low %v2485, %v2486
      %v2515 = vunpack.c.l.s4 1983009808
      %v2516 = vunpack.c.0.s8 %v2515
      %v2517 = vlaneseq
      %v2518 = vshrl.u32 %v2517, 7
      %v2519 = vsub.s32 %v2516, %v2518
      %v2520 = vrot.slane %v2512, %v2519
      %v2522 = vunpack.c.l.s4 1983009808
      %v2523 = vunpack.c.0.s8 %v2522
      %v2524 = vlaneseq
      %v2525 = vshrl.u32 %v2524, 7
      %v2526 = vsub.s32 %v2523, %v2525
      %v2527 = vrot.slane %v2513, %v2526
      %v2528 = vcombine.low %v2520, %v2527
      %2531 = vst [vmem:[%s513] sm:$0xff] %v2511
      %2532 = vst [vmem:[%s513 + $0x8] sm:$0xff] %v2528
      %vm2533 = vcmask 1043456
      %v2534 = vsel %vm2533, %v2471, 0.0
      %v2535 = vsel %vm2533, %v2472, 0.0
      %v2536 = vadd.f32 %v2534, %v2535
      %v2537 = vsel %vm2533, %v2473, 0.0
      %v2538 = vadd.f32 %v2536, %v2537
      %v2539 = vsel %vm2533, %v2474, 0.0
      %v2540 = vadd.f32 %v2538, %v2539
      %v2541 = vsel %vm2533, %v2475, 0.0
      %v2542 = vadd.f32 %v2540, %v2541
      %v2543 = vsel %vm2533, %v2476, 0.0
      %v2544 = vadd.f32 %v2542, %v2543
      %v2545 = vsel %vm2533, %v2477, 0.0
      %v2546 = vadd.f32 %v2544, %v2545
      %v2547 = vsel %vm2533, %v2478, 0.0
      %v2548 = vadd.f32 %v2546, %v2547
      %2549 = vadd.xlane.f32.xlu0 %v2548
      %v2550 = vpop.xlane.xlu0 %2549
      %vm2551 = vcmask 3072
      %2552 = vst.msk [vmem:[%s522] sm:$0xf] %vm2551, %v2550
      %v2553 = vmul.f32 %v2471, %v2421
      %v2554 = vmul.f32 %v2472, %v2422
      %v2555 = vmul.f32 %v2473, %v2423
      %v2556 = vmul.f32 %v2474, %v2424
      %v2557 = vmul.f32 %v2475, %v2425
      %v2558 = vmul.f32 %v2476, %v2426
      %v2559 = vmul.f32 %v2477, %v2427
      %v2560 = vmul.f32 %v2478, %v2428
      %v2561 = vsel %vm2533, %v2553, 0.0
      %v2562 = vsel %vm2533, %v2554, 0.0
      %v2563 = vadd.f32 %v2561, %v2562
      %v2564 = vsel %vm2533, %v2555, 0.0
      %v2565 = vadd.f32 %v2563, %v2564
      %v2566 = vsel %vm2533, %v2556, 0.0
      %v2567 = vadd.f32 %v2565, %v2566
      %v2568 = vsel %vm2533, %v2557, 0.0
      %v2569 = vadd.f32 %v2567, %v2568
      %v2570 = vsel %vm2533, %v2558, 0.0
      %v2571 = vadd.f32 %v2569, %v2570
      %v2572 = vsel %vm2533, %v2559, 0.0
      %v2573 = vadd.f32 %v2571, %v2572
      %v2574 = vsel %vm2533, %v2560, 0.0
      %v2575 = vadd.f32 %v2573, %v2574
      %2576 = vadd.xlane.f32.xlu0 %v2575
      %v2577 = vpop.xlane.xlu0 %2576
      %2578 = vst.msk [vmem:[%s530] sm:$0xf] %vm2551, %v2577
      %s2579 = smul.u32 8, %s26
      %p2580 = scmp.lt.s32.totalorder %s25, 1
      %s2581 = scalar_select %p2580, %s25, 1
      %p2582 = scmp.lt.s32.totalorder %s2579, 15
      %s2583 = scalar_select %p2582, %s2579, 15
      %s2584 = smul.addr %s2581, 16
      %s2585 = sadd.s32 %s2583, %s2584
      %s2586 = smul.addr %s2585, 2
      %s2587 = scalar_lea.vmem %s7, %s2586
      %p2588 = scmp.lt.s32.totalorder %s25, 1
      %s2589 = scalar_select %p2588, %s25, 1
      %p2590 = scmp.lt.s32.totalorder %s26, 1
      %s2591 = scalar_select %p2590, %s26, 1
      %s2592 = smul.addr %s2589, 2
      %s2593 = sadd.s32 %s2591, %s2592
      %s2594 = smul.addr %s2593, 4
      %s2595 = scalar_lea.vmem %s8, %s2594
      %p2596 = scmp.lt.s32.totalorder %s25, 1
      %s2597 = scalar_select %p2596, %s25, 1
      %p2598 = scmp.lt.s32.totalorder %s26, 1
      %s2599 = scalar_select %p2598, %s26, 1
      %s2600 = smul.addr %s2597, 2
      %s2601 = sadd.s32 %s2599, %s2600
      %s2602 = smul.addr %s2601, 4
      %s2603 = scalar_lea.vmem %s9, %s2602
      // Predicated region
      $region49: #{decoder_block_forward.6} parent=47 // pred_check
        %p2604 = pneg %p237
      $region50: #{decoder_block_forward.6} parent=47 // pred_check_branch
        %2606 = sbr.rel (%p2604) target = $region52
      $region51: #{decoder_block_forward.6} parent=47 // pred_region
        %s2607 = smul.u32 8, %s26
      $region52: #{decoder_block_forward.6} parent=47 // pred_fallthru
        _
      // Predicated region
      $region53: #{decoder_block_forward.6} parent=47 // pred_check
        %p2608 = pneg %p265
      $region54: #{decoder_block_forward.6} parent=47 // pred_check_branch
        %2610 = sbr.rel (%p2608) target = $region56
      $region55: #{decoder_block_forward.6} parent=47 // pred_region
        _
      $region56: #{decoder_block_forward.6} parent=47 // pred_fallthru
        _
      // Predicated region
      $region57: #{decoder_block_forward.6} parent=47 // pred_check
        %p2611 = pneg %p293
      $region58: #{decoder_block_forward.6} parent=47 // pred_check_branch
        %2613 = sbr.rel (%p2611) target = $region60
      $region59: #{decoder_block_forward.6} parent=47 // pred_region
        _
      $region60: #{decoder_block_forward.6} parent=47 // pred_fallthru
        _
    $region48: #{decoder_block_forward.6} parent=5 // pred_fallthru
      _
    %p2614 = scmp.le.s32.totalorder 2, %s16
    // Predicated region
    $region61: #{decoder_block_forward.6} parent=5 // pred_check
      %p2615 = pneg %p2614
    $region62: #{decoder_block_forward.6} parent=5 // pred_check_branch
      %2617 = sbr.rel (%p2615) target = $region64
    $region63: #{decoder_block_forward.6} parent=5 // pred_region
      %s2618 = ssub.s32 %s16, 2
      // Predicated region
      $region65: #{decoder_block_forward.6} parent=63 // pred_check
        %p2619 = pneg %p243
      $region66: #{decoder_block_forward.6} parent=63 // pred_check_branch
        %2621 = sbr.rel (%p2619) target = $region68
      $region67: #{decoder_block_forward.6} parent=63 // pred_region
        %s2622 = smul.u32 8, %s28
        %p2623 = scmp.lt.s32.totalorder %s27, 1
        %s2624 = scalar_select %p2623, %s27, 1
        %p2625 = scmp.lt.s32.totalorder %s2622, 15
        %s2626 = scalar_select %p2625, %s2622, 15
        %s2627 = smul.addr %s2624, 16
        %s2628 = sadd.s32 %s2626, %s2627
        %s2629 = smul.addr %s2628, 2
        %s2630 = scalar_lea.vmem %s7, %s2629
      $region68: #{decoder_block_forward.6} parent=63 // pred_fallthru
        _
      // Predicated region
      $region69: #{decoder_block_forward.6} parent=63 // pred_check
        %p2631 = pneg %p271
      $region70: #{decoder_block_forward.6} parent=63 // pred_check_branch
        %2633 = sbr.rel (%p2631) target = $region72
      $region71: #{decoder_block_forward.6} parent=63 // pred_region
        %p2634 = scmp.lt.s32.totalorder %s27, 1
        %s2635 = scalar_select %p2634, %s27, 1
        %p2636 = scmp.lt.s32.totalorder %s28, 1
        %s2637 = scalar_select %p2636, %s28, 1
        %s2638 = smul.addr %s2635, 2
        %s2639 = sadd.s32 %s2637, %s2638
        %s2640 = smul.addr %s2639, 4
        %s2641 = scalar_lea.vmem %s8, %s2640
      $region72: #{decoder_block_forward.6} parent=63 // pred_fallthru
        _
      // Predicated region
      $region73: #{decoder_block_forward.6} parent=63 // pred_check
        %p2642 = pneg %p299
      $region74: #{decoder_block_forward.6} parent=63 // pred_check_branch
        %2644 = sbr.rel (%p2642) target = $region76
      $region75: #{decoder_block_forward.6} parent=63 // pred_region
        %p2645 = scmp.lt.s32.totalorder %s27, 1
        %s2646 = scalar_select %p2645, %s27, 1
        %p2647 = scmp.lt.s32.totalorder %s28, 1
        %s2648 = scalar_select %p2647, %s28, 1
        %s2649 = smul.addr %s2646, 2
        %s2650 = sadd.s32 %s2648, %s2649
        %s2651 = smul.addr %s2650, 4
        %s2652 = scalar_lea.vmem %s9, %s2651
      $region76: #{decoder_block_forward.6} parent=63 // pred_fallthru
        _
    $region64: #{decoder_block_forward.6} parent=5 // pred_fallthru
      _
  $region6: #{decoder_block_forward.6} parent=0 // loop_footer
    %s20 = sadd.s32 1, %s16
  $region7: #{decoder_block_forward.6} parent=0 // loop_footer_branch
    %15 = sbr.rel target = $region3
  $region8: #{decoder_block_forward.6} parent=0 // loop_exit
    _

// kernel: decoder_block_forward.5
$region0: #{decoder_block_forward.5}
  #allocation0 [shape = 'u32[]', space=smem, size = 0x4, offset = 0x4, fixed_abs, tag = 'smem constant byte address 0x4 - core index']
  #allocation1 [shape = 'u32[144,128]{1,0:T(1,128)}', space=vmem, size = 0x12000, scoped, tag = 'internal scratch']
  %s0 = inlined_call_operand.vmem [shape: bf16[2,4,2048], index: 0, kind: input, shape index: {}, may-alias: {0,1,2}]
  %s1 = inlined_call_operand.vmem [shape: bf16[2,4,2048], index: 1, kind: input, shape index: {}, may-alias: {0,1,2}]
  %s2 = inlined_call_operand.vmem [shape: bf16[2,4,2048], index: 2, kind: input, shape index: {}, may-alias: {0,1,2}]
  %s3 = inlined_call_operand.vmem [shape: bf16[2,4,2048], index: 3, kind: input, shape index: {}, may-alias: {3,4,5}]
  %s4 = inlined_call_operand.vmem [shape: bf16[2,4,2048], index: 4, kind: input, shape index: {}, may-alias: {3,4,5}]
  %s5 = inlined_call_operand.vmem [shape: bf16[2,4,2048], index: 5, kind: input, shape index: {}, may-alias: {3,4,5}]
  %s6 = inlined_call_operand.vmem [shape: bf16[9,4,4], index: 6, kind: input, shape index: {}]
  %s7 = inlined_call_operand.vmem [shape: bf16[9,4,4], index: 7, kind: input, shape index: {}]
  %s8 = inlined_call_operand.vmem [shape: f32[1,1280], index: 8, kind: input, shape index: {}]
  %s9 = inlined_call_operand.vmem [shape: bf16[2,4,2048], index: 9, kind: output, shape index: {0}]
  %s10 = inlined_call_operand.vmem [shape: f32[2,2,4,1], index: 10, kind: output, shape index: {1}]
  %s11 = inlined_call_operand.vmem [shape: f32[2,2,4,1], index: 11, kind: output, shape index: {2}]
  %12 = xla_tuple %s9, %s10, %s11
  %s13 = sld [smem:[#allocation0]]
  $region85: #{decoder_block_forward.5} parent=0
    _
  %s15 = ssub.s32 1, %s13
  %s16 = scalar_select 0, %s15, %s13
  loop: start=0, step=1, limit=6
  $region2: #{decoder_block_forward.5} parent=0 // loop_pre_header
    _
  $region3: #{decoder_block_forward.5} parent=0 // loop_header
    %s18 = sphi 0, %s22
    %p19 = scmp.ge.s32.totalorder %s18, 6
    %s25 = sphi 0, %s37
    %s26 = sphi 0, %s33
    %s27 = sphi 0, %s25
    %s28 = sphi 0, %s26
    %s29 = sphi 0, %s27
    %s30 = sphi 0, %s28
    %s42 = sphi 0, %s44
    %s45 = sphi 0, %s42
    %s46 = sphi 0, %s45
    %s62 = sphi 0, %s46
    %s78 = sphi 0, %s80
    %s81 = sphi 0, %s78
    %s82 = sphi 0, %s81
    %s98 = sphi 0, %s82
    %s114 = sphi 0, %s116
    %s117 = sphi 0, %s114
    %s118 = sphi 0, %s117
    %s134 = sphi 0, %s118
    %s142 = sphi 0, %s144
    %s145 = sphi 0, %s142
    %s146 = sphi 0, %s145
    %s162 = sphi 0, %s146
    %s178 = sphi 0, %s180
    %s181 = sphi 0, %s178
    %s182 = sphi 0, %s181
    %s198 = sphi 0, %s182
    %s214 = sphi 0, %s216
    %s217 = sphi 0, %s214
    %s218 = sphi 0, %s217
    %s234 = sphi 0, %s218
    %s238 = sphi 0, %s238
    %s240 = sphi 0, %s238
    %s241 = sphi 0, %s240
    %s255 = sphi 0, %s241
    %s259 = sphi 0, %s259
    %s261 = sphi 0, %s259
    %s262 = sphi 0, %s261
    %s276 = sphi 0, %s262
    %s280 = sphi 0, %s280
    %s282 = sphi 0, %s280
    %s283 = sphi 0, %s282
    %s297 = sphi 0, %s283
    %s305 = sphi 0, %s307
    %s308 = sphi 0, %s305
    %s309 = sphi 0, %s308
    %s325 = sphi 0, %s309
    %s333 = sphi 0, %s335
    %s336 = sphi 0, %s333
    %s337 = sphi 0, %s336
    %s353 = sphi 0, %s337
    %s361 = sphi 0, %s363
    %s364 = sphi 0, %s361
    %s365 = sphi 0, %s364
    %s381 = sphi 0, %s365
  $region4: #{decoder_block_forward.5} parent=0 // loop_header_branch
    %21 = sbr.rel (%p19) target = $region8
  $region5: #{decoder_block_forward.5} parent=0 // loop_body
    %s23 = ssub.s32 %s18, 1
    %s24 = ssub.s32 %s18, 2
    %s31 = sadd.s32 1, %s26
    %p32 = scmp.ge.s32.totalorder %s31, 2
    %s33 = scalar_select %p32, 0, %s31
    %s34 = sadd.s32 1, %s25
    %s35 = scalar_select %p32, %s34, %s25
    %p36 = scmp.ge.s32.totalorder %s35, 2
    %s37 = scalar_select %p36, 0, %s35
    %s38 = ssub.s32 %s25, %s37
    %s39 = ssub.s32 %s26, %s33
    %s40 = sor.u32 %s38, %s39
    %p41 = scmp.eq.s32.totalorder %s40, 0
    %s43 = sadd.s32 %s42, 1
    %s44 = scalar_select %p41, %s42, %s43
    %p47 = pneg %p41
    %p48 = scmp.eq.s32.totalorder %s18, 3
    %p49 = por %p47, %p48
    %p50 = scmp.ne.s32.totalorder %s42, %s45
    %p51 = scmp.eq.s32.totalorder %s18, 0
    %p52 = por %p50, %p51
    %p53 = scmp.ne.s32.totalorder %s42, %s45
    %p54 = scmp.eq.s32.totalorder %s23, 3
    %p55 = por %p53, %p54
    %p56 = scmp.ne.s32.totalorder %s45, %s46
    %p57 = scmp.eq.s32.totalorder %s23, 0
    %p58 = por %p56, %p57
    %p59 = scmp.ne.s32.totalorder %s45, %s46
    %p60 = scmp.eq.s32.totalorder %s24, 3
    %p61 = por %p59, %p60
    %p63 = scmp.ne.s32.totalorder %s46, %s62
    %p64 = scmp.eq.s32.totalorder %s24, 0
    %p65 = por %p63, %p64
    %s66 = smul.u32 %s26, 8
    %s67 = ssub.s32 %s66, 1
    %p68 = scmp.gt.s32.totalorder %s67, 0
    %s69 = scalar_select %p68, %s67, 0
    %s70 = smul.u32 %s33, 8
    %s71 = ssub.s32 %s70, 1
    %p72 = scmp.gt.s32.totalorder %s71, 0
    %s73 = scalar_select %p72, %s71, 0
    %s74 = ssub.s32 %s25, %s37
    %s75 = ssub.s32 %s69, %s73
    %s76 = sor.u32 %s74, %s75
    %p77 = scmp.eq.s32.totalorder %s76, 0
    %s79 = sadd.s32 %s78, 1
    %s80 = scalar_select %p77, %s78, %s79
    %p83 = pneg %p77
    %p84 = scmp.eq.s32.totalorder %s18, 3
    %p85 = por %p83, %p84
    %p86 = scmp.ne.s32.totalorder %s78, %s81
    %p87 = scmp.eq.s32.totalorder %s18, 0
    %p88 = por %p86, %p87
    %p89 = scmp.ne.s32.totalorder %s78, %s81
    %p90 = scmp.eq.s32.totalorder %s23, 3
    %p91 = por %p89, %p90
    %p92 = scmp.ne.s32.totalorder %s81, %s82
    %p93 = scmp.eq.s32.totalorder %s23, 0
    %p94 = por %p92, %p93
    %p95 = scmp.ne.s32.totalorder %s81, %s82
    %p96 = scmp.eq.s32.totalorder %s24, 3
    %p97 = por %p95, %p96
    %p99 = scmp.ne.s32.totalorder %s82, %s98
    %p100 = scmp.eq.s32.totalorder %s24, 0
    %p101 = por %p99, %p100
    %s102 = sadd.s32 %s26, 1
    %s103 = smul.u32 %s102, 8
    %p104 = scmp.lt.s32.totalorder %s103, 15
    %s105 = scalar_select %p104, %s103, 15
    %s106 = sadd.s32 %s33, 1
    %s107 = smul.u32 %s106, 8
    %p108 = scmp.lt.s32.totalorder %s107, 15
    %s109 = scalar_select %p108, %s107, 15
    %s110 = ssub.s32 %s25, %s37
    %s111 = ssub.s32 %s105, %s109
    %s112 = sor.u32 %s110, %s111
    %p113 = scmp.eq.s32.totalorder %s112, 0
    %s115 = sadd.s32 %s114, 1
    %s116 = scalar_select %p113, %s114, %s115
    %p119 = pneg %p113
    %p120 = scmp.eq.s32.totalorder %s18, 3
    %p121 = por %p119, %p120
    %p122 = scmp.ne.s32.totalorder %s114, %s117
    %p123 = scmp.eq.s32.totalorder %s18, 0
    %p124 = por %p122, %p123
    %p125 = scmp.ne.s32.totalorder %s114, %s117
    %p126 = scmp.eq.s32.totalorder %s23, 3
    %p127 = por %p125, %p126
    %p128 = scmp.ne.s32.totalorder %s117, %s118
    %p129 = scmp.eq.s32.totalorder %s23, 0
    %p130 = por %p128, %p129
    %p131 = scmp.ne.s32.totalorder %s117, %s118
    %p132 = scmp.eq.s32.totalorder %s24, 3
    %p133 = por %p131, %p132
    %p135 = scmp.ne.s32.totalorder %s118, %s134
    %p136 = scmp.eq.s32.totalorder %s24, 0
    %p137 = por %p135, %p136
    %s138 = ssub.s32 %s25, %s37
    %s139 = ssub.s32 %s26, %s33
    %s140 = sor.u32 %s138, %s139
    %p141 = scmp.eq.s32.totalorder %s140, 0
    %s143 = sadd.s32 %s142, 1
    %s144 = scalar_select %p141, %s142, %s143
    %p147 = pneg %p141
    %p148 = scmp.eq.s32.totalorder %s18, 3
    %p149 = por %p147, %p148
    %p150 = scmp.ne.s32.totalorder %s142, %s145
    %p151 = scmp.eq.s32.totalorder %s18, 0
    %p152 = por %p150, %p151
    %p153 = scmp.ne.s32.totalorder %s142, %s145
    %p154 = scmp.eq.s32.totalorder %s23, 3
    %p155 = por %p153, %p154
    %p156 = scmp.ne.s32.totalorder %s145, %s146
    %p157 = scmp.eq.s32.totalorder %s23, 0
    %p158 = por %p156, %p157
    %p159 = scmp.ne.s32.totalorder %s145, %s146
    %p160 = scmp.eq.s32.totalorder %s24, 3
    %p161 = por %p159, %p160
    %p163 = scmp.ne.s32.totalorder %s146, %s162
    %p164 = scmp.eq.s32.totalorder %s24, 0
    %p165 = por %p163, %p164
    %s166 = smul.u32 %s26, 8
    %s167 = ssub.s32 %s166, 1
    %p168 = scmp.gt.s32.totalorder %s167, 0
    %s169 = scalar_select %p168, %s167, 0
    %s170 = smul.u32 %s33, 8
    %s171 = ssub.s32 %s170, 1
    %p172 = scmp.gt.s32.totalorder %s171, 0
    %s173 = scalar_select %p172, %s171, 0
    %s174 = ssub.s32 %s25, %s37
    %s175 = ssub.s32 %s169, %s173
    %s176 = sor.u32 %s174, %s175
    %p177 = scmp.eq.s32.totalorder %s176, 0
    %s179 = sadd.s32 %s178, 1
    %s180 = scalar_select %p177, %s178, %s179
    %p183 = pneg %p177
    %p184 = scmp.eq.s32.totalorder %s18, 3
    %p185 = por %p183, %p184
    %p186 = scmp.ne.s32.totalorder %s178, %s181
    %p187 = scmp.eq.s32.totalorder %s18, 0
    %p188 = por %p186, %p187
    %p189 = scmp.ne.s32.totalorder %s178, %s181
    %p190 = scmp.eq.s32.totalorder %s23, 3
    %p191 = por %p189, %p190
    %p192 = scmp.ne.s32.totalorder %s181, %s182
    %p193 = scmp.eq.s32.totalorder %s23, 0
    %p194 = por %p192, %p193
    %p195 = scmp.ne.s32.totalorder %s181, %s182
    %p196 = scmp.eq.s32.totalorder %s24, 3
    %p197 = por %p195, %p196
    %p199 = scmp.ne.s32.totalorder %s182, %s198
    %p200 = scmp.eq.s32.totalorder %s24, 0
    %p201 = por %p199, %p200
    %s202 = sadd.s32 %s26, 1
    %s203 = smul.u32 %s202, 8
    %p204 = scmp.lt.s32.totalorder %s203, 15
    %s205 = scalar_select %p204, %s203, 15
    %s206 = sadd.s32 %s33, 1
    %s207 = smul.u32 %s206, 8
    %p208 = scmp.lt.s32.totalorder %s207, 15
    %s209 = scalar_select %p208, %s207, 15
    %s210 = ssub.s32 %s25, %s37
    %s211 = ssub.s32 %s205, %s209
    %s212 = sor.u32 %s210, %s211
    %p213 = scmp.eq.s32.totalorder %s212, 0
    %s215 = sadd.s32 %s214, 1
    %s216 = scalar_select %p213, %s214, %s215
    %p219 = pneg %p213
    %p220 = scmp.eq.s32.totalorder %s18, 3
    %p221 = por %p219, %p220
    %p222 = scmp.ne.s32.totalorder %s214, %s217
    %p223 = scmp.eq.s32.totalorder %s18, 0
    %p224 = por %p222, %p223
    %p225 = scmp.ne.s32.totalorder %s214, %s217
    %p226 = scmp.eq.s32.totalorder %s23, 3
    %p227 = por %p225, %p226
    %p228 = scmp.ne.s32.totalorder %s217, %s218
    %p229 = scmp.eq.s32.totalorder %s23, 0
    %p230 = por %p228, %p229
    %p231 = scmp.ne.s32.totalorder %s217, %s218
    %p232 = scmp.eq.s32.totalorder %s24, 3
    %p233 = por %p231, %p232
    %p235 = scmp.ne.s32.totalorder %s218, %s234
    %p236 = scmp.eq.s32.totalorder %s24, 0
    %p237 = por %p235, %p236
    %s239 = sadd.s32 %s238, 1
    %p242 = scmp.eq.s32.totalorder %s18, 3
    %p243 = scmp.ne.s32.totalorder %s238, %s240
    %p244 = scmp.eq.s32.totalorder %s18, 0
    %p245 = por %p243, %p244
    %p246 = scmp.ne.s32.totalorder %s238, %s240
    %p247 = scmp.eq.s32.totalorder %s23, 3
    %p248 = por %p246, %p247
    %p249 = scmp.ne.s32.totalorder %s240, %s241
    %p250 = scmp.eq.s32.totalorder %s23, 0
    %p251 = por %p249, %p250
    %p252 = scmp.ne.s32.totalorder %s240, %s241
    %p253 = scmp.eq.s32.totalorder %s24, 3
    %p254 = por %p252, %p253
    %p256 = scmp.ne.s32.totalorder %s241, %s255
    %p257 = scmp.eq.s32.totalorder %s24, 0
    %p258 = por %p256, %p257
    %s260 = sadd.s32 %s259, 1
    %p263 = scmp.eq.s32.totalorder %s18, 3
    %p264 = scmp.ne.s32.totalorder %s259, %s261
    %p265 = scmp.eq.s32.totalorder %s18, 0
    %p266 = por %p264, %p265
    %p267 = scmp.ne.s32.totalorder %s259, %s261
    %p268 = scmp.eq.s32.totalorder %s23, 3
    %p269 = por %p267, %p268
    %p270 = scmp.ne.s32.totalorder %s261, %s262
    %p271 = scmp.eq.s32.totalorder %s23, 0
    %p272 = por %p270, %p271
    %p273 = scmp.ne.s32.totalorder %s261, %s262
    %p274 = scmp.eq.s32.totalorder %s24, 3
    %p275 = por %p273, %p274
    %p277 = scmp.ne.s32.totalorder %s262, %s276
    %p278 = scmp.eq.s32.totalorder %s24, 0
    %p279 = por %p277, %p278
    %s281 = sadd.s32 %s280, 1
    %p284 = scmp.eq.s32.totalorder %s18, 3
    %p285 = scmp.ne.s32.totalorder %s280, %s282
    %p286 = scmp.eq.s32.totalorder %s18, 0
    %p287 = por %p285, %p286
    %p288 = scmp.ne.s32.totalorder %s280, %s282
    %p289 = scmp.eq.s32.totalorder %s23, 3
    %p290 = por %p288, %p289
    %p291 = scmp.ne.s32.totalorder %s282, %s283
    %p292 = scmp.eq.s32.totalorder %s23, 0
    %p293 = por %p291, %p292
    %p294 = scmp.ne.s32.totalorder %s282, %s283
    %p295 = scmp.eq.s32.totalorder %s24, 3
    %p296 = por %p294, %p295
    %p298 = scmp.ne.s32.totalorder %s283, %s297
    %p299 = scmp.eq.s32.totalorder %s24, 0
    %p300 = por %p298, %p299
    %s301 = ssub.s32 %s25, %s37
    %s302 = ssub.s32 %s26, %s33
    %s303 = sor.u32 %s301, %s302
    %p304 = scmp.eq.s32.totalorder %s303, 0
    %s306 = sadd.s32 %s305, 1
    %s307 = scalar_select %p304, %s305, %s306
    %p310 = pneg %p304
    %p311 = scmp.eq.s32.totalorder %s18, 3
    %p312 = por %p310, %p311
    %p313 = scmp.ne.s32.totalorder %s305, %s308
    %p314 = scmp.eq.s32.totalorder %s18, 0
    %p315 = por %p313, %p314
    %p316 = scmp.ne.s32.totalorder %s305, %s308
    %p317 = scmp.eq.s32.totalorder %s23, 3
    %p318 = por %p316, %p317
    %p319 = scmp.ne.s32.totalorder %s308, %s309
    %p320 = scmp.eq.s32.totalorder %s23, 0
    %p321 = por %p319, %p320
    %p322 = scmp.ne.s32.totalorder %s308, %s309
    %p323 = scmp.eq.s32.totalorder %s24, 3
    %p324 = por %p322, %p323
    %p326 = scmp.ne.s32.totalorder %s309, %s325
    %p327 = scmp.eq.s32.totalorder %s24, 0
    %p328 = por %p326, %p327
    %s329 = ssub.s32 %s25, %s37
    %s330 = ssub.s32 %s26, %s33
    %s331 = sor.u32 %s329, %s330
    %p332 = scmp.eq.s32.totalorder %s331, 0
    %s334 = sadd.s32 %s333, 1
    %s335 = scalar_select %p332, %s333, %s334
    %p338 = pneg %p332
    %p339 = scmp.eq.s32.totalorder %s18, 3
    %p340 = por %p338, %p339
    %p341 = scmp.ne.s32.totalorder %s333, %s336
    %p342 = scmp.eq.s32.totalorder %s18, 0
    %p343 = por %p341, %p342
    %p344 = scmp.ne.s32.totalorder %s333, %s336
    %p345 = scmp.eq.s32.totalorder %s23, 3
    %p346 = por %p344, %p345
    %p347 = scmp.ne.s32.totalorder %s336, %s337
    %p348 = scmp.eq.s32.totalorder %s23, 0
    %p349 = por %p347, %p348
    %p350 = scmp.ne.s32.totalorder %s336, %s337
    %p351 = scmp.eq.s32.totalorder %s24, 3
    %p352 = por %p350, %p351
    %p354 = scmp.ne.s32.totalorder %s337, %s353
    %p355 = scmp.eq.s32.totalorder %s24, 0
    %p356 = por %p354, %p355
    %s357 = ssub.s32 %s25, %s37
    %s358 = ssub.s32 %s26, %s33
    %s359 = sor.u32 %s357, %s358
    %p360 = scmp.eq.s32.totalorder %s359, 0
    %s362 = sadd.s32 %s361, 1
    %s363 = scalar_select %p360, %s361, %s362
    %p366 = pneg %p360
    %p367 = scmp.eq.s32.totalorder %s18, 3
    %p368 = por %p366, %p367
    %p369 = scmp.ne.s32.totalorder %s361, %s364
    %p370 = scmp.eq.s32.totalorder %s18, 0
    %p371 = por %p369, %p370
    %p372 = scmp.ne.s32.totalorder %s361, %s364
    %p373 = scmp.eq.s32.totalorder %s23, 3
    %p374 = por %p372, %p373
    %p375 = scmp.ne.s32.totalorder %s364, %s365
    %p376 = scmp.eq.s32.totalorder %s23, 0
    %p377 = por %p375, %p376
    %p378 = scmp.ne.s32.totalorder %s364, %s365
    %p379 = scmp.eq.s32.totalorder %s24, 3
    %p380 = por %p378, %p379
    %p382 = scmp.ne.s32.totalorder %s365, %s381
    %p383 = scmp.eq.s32.totalorder %s24, 0
    %p384 = por %p382, %p383
    %p385 = scmp.le.s32.totalorder 1, %s18
    %p386 = scmp.lt.s32.totalorder %s18, 5
    %p387 = pnand %p385, %p386
    %p388 = pneg %p387
    // Predicated region
    $region9: #{decoder_block_forward.5} parent=5 // pred_check
      _
    $region10: #{decoder_block_forward.5} parent=5 // pred_check_branch
      %390 = sbr.rel (%p387) target = $region12
    $region11: #{decoder_block_forward.5} parent=5 // pred_region
      %s391 = ssub.s32 %s18, 1
      // Predicated region
      $region13: #{decoder_block_forward.5} parent=11 // pred_check
        %p392 = pneg %p251
      $region14: #{decoder_block_forward.5} parent=11 // pred_check_branch
        %394 = sbr.rel (%p392) target = $region16
      $region15: #{decoder_block_forward.5} parent=11 // pred_region
        _
      $region16: #{decoder_block_forward.5} parent=11 // pred_fallthru
        _
      // Predicated region
      $region17: #{decoder_block_forward.5} parent=11 // pred_check
        %p395 = pneg %p272
      $region18: #{decoder_block_forward.5} parent=11 // pred_check_branch
        %397 = sbr.rel (%p395) target = $region20
      $region19: #{decoder_block_forward.5} parent=11 // pred_region
        _
      $region20: #{decoder_block_forward.5} parent=11 // pred_fallthru
        _
      // Predicated region
      $region21: #{decoder_block_forward.5} parent=11 // pred_check
        %p398 = pneg %p293
      $region22: #{decoder_block_forward.5} parent=11 // pred_check_branch
        %400 = sbr.rel (%p398) target = $region24
      $region23: #{decoder_block_forward.5} parent=11 // pred_region
        _
      $region24: #{decoder_block_forward.5} parent=11 // pred_fallthru
        _
    $region12: #{decoder_block_forward.5} parent=5 // pred_fallthru
      _
    %p401 = scmp.lt.s32.totalorder %s18, 4
    // Predicated region
    $region25: #{decoder_block_forward.5} parent=5 // pred_check
      %p402 = pneg %p401
    $region26: #{decoder_block_forward.5} parent=5 // pred_check_branch
      %404 = sbr.rel (%p402) target = $region28
    $region27: #{decoder_block_forward.5} parent=5 // pred_region
      // Predicated region
      $region29: #{decoder_block_forward.5} parent=27 // pred_check
        %p405 = pneg %p52
      $region30: #{decoder_block_forward.5} parent=27 // pred_check_branch
        %407 = sbr.rel (%p405) target = $region32
      $region31: #{decoder_block_forward.5} parent=27 // pred_region
        %s408 = smul.u32 8, %s26
        %p409 = scmp.lt.s32.totalorder %s25, 1
        %s410 = scalar_select %p409, %s25, 1
        %p411 = scmp.lt.s32.totalorder %s408, 15
        %s412 = scalar_select %p411, %s408, 15
        %s413 = smul.addr %s410, 16
        %s414 = sadd.s32 %s412, %s413
        %s415 = smul.addr %s414, 2
        %s416 = scalar_lea.vmem %s0, %s415
        %s417 = smul.u32 8, %s26
      $region32: #{decoder_block_forward.5} parent=27 // pred_fallthru
        _
      // Predicated region
      $region33: #{decoder_block_forward.5} parent=27 // pred_check
        %p418 = pneg %p88
      $region34: #{decoder_block_forward.5} parent=27 // pred_check_branch
        %420 = sbr.rel (%p418) target = $region36
      $region35: #{decoder_block_forward.5} parent=27 // pred_region
        %s421 = smul.u32 %s26, 8
        %s422 = ssub.s32 %s421, 1
        %p423 = scmp.gt.s32.totalorder %s422, 0
        %s424 = scalar_select %p423, %s422, 0
        %p425 = scmp.lt.s32.totalorder %s25, 1
        %s426 = scalar_select %p425, %s25, 1
        %p427 = scmp.lt.s32.totalorder %s424, 15
        %s428 = scalar_select %p427, %s424, 15
        %s429 = smul.addr %s426, 16
        %s430 = sadd.s32 %s428, %s429
        %s431 = smul.addr %s430, 2
        %s432 = scalar_lea.vmem %s1, %s431
        %s433 = smul.u32 %s26, 8
        %s434 = ssub.s32 %s433, 1
        %p435 = scmp.gt.s32.totalorder %s434, 0
        %s436 = scalar_select %p435, %s434, 0
      $region36: #{decoder_block_forward.5} parent=27 // pred_fallthru
        _
      // Predicated region
      $region37: #{decoder_block_forward.5} parent=27 // pred_check
        %p437 = pneg %p124
      $region38: #{decoder_block_forward.5} parent=27 // pred_check_branch
        %439 = sbr.rel (%p437) target = $region40
      $region39: #{decoder_block_forward.5} parent=27 // pred_region
        %s440 = sadd.s32 %s26, 1
        %s441 = smul.u32 %s440, 8
        %p442 = scmp.lt.s32.totalorder %s441, 15
        %s443 = scalar_select %p442, %s441, 15
        %p444 = scmp.lt.s32.totalorder %s25, 1
        %s445 = scalar_select %p444, %s25, 1
        %p446 = scmp.lt.s32.totalorder %s443, 15
        %s447 = scalar_select %p446, %s443, 15
        %s448 = smul.addr %s445, 16
        %s449 = sadd.s32 %s447, %s448
        %s450 = smul.addr %s449, 2
        %s451 = scalar_lea.vmem %s2, %s450
        %s452 = sadd.s32 %s26, 1
        %s453 = smul.u32 %s452, 8
        %p454 = scmp.lt.s32.totalorder %s453, 15
        %s455 = scalar_select %p454, %s453, 15
      $region40: #{decoder_block_forward.5} parent=27 // pred_fallthru
        _
      // Predicated region
      $region41: #{decoder_block_forward.5} parent=27 // pred_check
        %p456 = pneg %p152
      $region42: #{decoder_block_forward.5} parent=27 // pred_check_branch
        %458 = sbr.rel (%p456) target = $region44
      $region43: #{decoder_block_forward.5} parent=27 // pred_region
        %s459 = smul.u32 8, %s26
        %p460 = scmp.lt.s32.totalorder %s25, 1
        %s461 = scalar_select %p460, %s25, 1
        %p462 = scmp.lt.s32.totalorder %s459, 15
        %s463 = scalar_select %p462, %s459, 15
        %s464 = smul.addr %s461, 16
        %s465 = sadd.s32 %s463, %s464
        %s466 = smul.addr %s465, 2
        %s467 = scalar_lea.vmem %s3, %s466
        %s468 = smul.u32 8, %s26
      $region44: #{decoder_block_forward.5} parent=27 // pred_fallthru
        _
      // Predicated region
      $region45: #{decoder_block_forward.5} parent=27 // pred_check
        %p469 = pneg %p188
      $region46: #{decoder_block_forward.5} parent=27 // pred_check_branch
        %471 = sbr.rel (%p469) target = $region48
      $region47: #{decoder_block_forward.5} parent=27 // pred_region
        %s472 = smul.u32 %s26, 8
        %s473 = ssub.s32 %s472, 1
        %p474 = scmp.gt.s32.totalorder %s473, 0
        %s475 = scalar_select %p474, %s473, 0
        %p476 = scmp.lt.s32.totalorder %s25, 1
        %s477 = scalar_select %p476, %s25, 1
        %p478 = scmp.lt.s32.totalorder %s475, 15
        %s479 = scalar_select %p478, %s475, 15
        %s480 = smul.addr %s477, 16
        %s481 = sadd.s32 %s479, %s480
        %s482 = smul.addr %s481, 2
        %s483 = scalar_lea.vmem %s4, %s482
        %s484 = smul.u32 %s26, 8
        %s485 = ssub.s32 %s484, 1
        %p486 = scmp.gt.s32.totalorder %s485, 0
        %s487 = scalar_select %p486, %s485, 0
      $region48: #{decoder_block_forward.5} parent=27 // pred_fallthru
        _
      // Predicated region
      $region49: #{decoder_block_forward.5} parent=27 // pred_check
        %p488 = pneg %p224
      $region50: #{decoder_block_forward.5} parent=27 // pred_check_branch
        %490 = sbr.rel (%p488) target = $region52
      $region51: #{decoder_block_forward.5} parent=27 // pred_region
        %s491 = sadd.s32 %s26, 1
        %s492 = smul.u32 %s491, 8
        %p493 = scmp.lt.s32.totalorder %s492, 15
        %s494 = scalar_select %p493, %s492, 15
        %p495 = scmp.lt.s32.totalorder %s25, 1
        %s496 = scalar_select %p495, %s25, 1
        %p497 = scmp.lt.s32.totalorder %s494, 15
        %s498 = scalar_select %p497, %s494, 15
        %s499 = smul.addr %s496, 16
        %s500 = sadd.s32 %s498, %s499
        %s501 = smul.addr %s500, 2
        %s502 = scalar_lea.vmem %s5, %s501
        %s503 = sadd.s32 %s26, 1
        %s504 = smul.u32 %s503, 8
        %p505 = scmp.lt.s32.totalorder %s504, 15
        %s506 = scalar_select %p505, %s504, 15
      $region52: #{decoder_block_forward.5} parent=27 // pred_fallthru
        _
    $region28: #{decoder_block_forward.5} parent=5 // pred_fallthru
      _
    %p507 = scmp.le.s32.totalorder 1, %s18
    %p508 = scmp.lt.s32.totalorder %s18, 5
    %p509 = pnand %p507, %p508
    %p510 = pneg %p509
    // Predicated region
    $region53: #{decoder_block_forward.5} parent=5 // pred_check
      _
    $region54: #{decoder_block_forward.5} parent=5 // pred_check_branch
      %512 = sbr.rel (%p509) target = $region56
    $region55: #{decoder_block_forward.5} parent=5 // pred_region
      %s513 = ssub.s32 %s18, 1
      %s514 = smul.u32 8, %s28
      %p515 = scmp.lt.s32.totalorder %s27, 1
      %s516 = scalar_select %p515, %s27, 1
      %p517 = scmp.lt.s32.totalorder %s514, 15
      %s518 = scalar_select %p517, %s514, 15
      %s519 = smul.addr %s516, 16
      %s520 = sadd.s32 %s518, %s519
      %s521 = smul.addr %s520, 2
      %s522 = scalar_lea.vmem %s0, %s521
      %p523 = pneg %p58
      %p524 = pneg %p55
      %s525 = smul.u32 %s28, 8
      %s526 = ssub.s32 %s525, 1
      %p527 = scmp.gt.s32.totalorder %s526, 0
      %s528 = scalar_select %p527, %s526, 0
      %p529 = scmp.lt.s32.totalorder %s27, 1
      %s530 = scalar_select %p529, %s27, 1
      %p531 = scmp.lt.s32.totalorder %s528, 15
      %s532 = scalar_select %p531, %s528, 15
      %s533 = smul.addr %s530, 16
      %s534 = sadd.s32 %s532, %s533
      %s535 = smul.addr %s534, 2
      %s536 = scalar_lea.vmem %s1, %s535
      %p537 = pneg %p94
      %p538 = pneg %p91
      %s539 = sadd.s32 %s28, 1
      %s540 = smul.u32 %s539, 8
      %p541 = scmp.lt.s32.totalorder %s540, 15
      %s542 = scalar_select %p541, %s540, 15
      %p543 = scmp.lt.s32.totalorder %s27, 1
      %s544 = scalar_select %p543, %s27, 1
      %p545 = scmp.lt.s32.totalorder %s542, 15
      %s546 = scalar_select %p545, %s542, 15
      %s547 = smul.addr %s544, 16
      %s548 = sadd.s32 %s546, %s547
      %s549 = smul.addr %s548, 2
      %s550 = scalar_lea.vmem %s2, %s549
      %p551 = pneg %p130
      %p552 = pneg %p127
      %s553 = smul.u32 8, %s28
      %p554 = scmp.lt.s32.totalorder %s27, 1
      %s555 = scalar_select %p554, %s27, 1
      %p556 = scmp.lt.s32.totalorder %s553, 15
      %s557 = scalar_select %p556, %s553, 15
      %s558 = smul.addr %s555, 16
      %s559 = sadd.s32 %s557, %s558
      %s560 = smul.addr %s559, 2
      %s561 = scalar_lea.vmem %s3, %s560
      %p562 = pneg %p158
      %p563 = pneg %p155
      %s564 = smul.u32 %s28, 8
      %s565 = ssub.s32 %s564, 1
      %p566 = scmp.gt.s32.totalorder %s565, 0
      %s567 = scalar_select %p566, %s565, 0
      %p568 = scmp.lt.s32.totalorder %s27, 1
      %s569 = scalar_select %p568, %s27, 1
      %p570 = scmp.lt.s32.totalorder %s567, 15
      %s571 = scalar_select %p570, %s567, 15
      %s572 = smul.addr %s569, 16
      %s573 = sadd.s32 %s571, %s572
      %s574 = smul.addr %s573, 2
      %s575 = scalar_lea.vmem %s4, %s574
      %p576 = pneg %p194
      %p577 = pneg %p191
      %s578 = sadd.s32 %s28, 1
      %s579 = smul.u32 %s578, 8
      %p580 = scmp.lt.s32.totalorder %s579, 15
      %s581 = scalar_select %p580, %s579, 15
      %p582 = scmp.lt.s32.totalorder %s27, 1
      %s583 = scalar_select %p582, %s27, 1
      %p584 = scmp.lt.s32.totalorder %s581, 15
      %s585 = scalar_select %p584, %s581, 15
      %s586 = smul.addr %s583, 16
      %s587 = sadd.s32 %s585, %s586
      %s588 = smul.addr %s587, 2
      %s589 = scalar_lea.vmem %s5, %s588
      %p590 = pneg %p230
      %p591 = pneg %p227
      %p592 = pneg %p251
      %p593 = pneg %p248
      %p594 = pneg %p272
      %p595 = pneg %p269
      %p596 = pneg %p293
      %p597 = pneg %p290
      %p598 = pneg %p321
      %p599 = pneg %p318
      %s600 = smul.u32 8, %s28
      %p601 = scmp.lt.s32.totalorder %s27, 1
      %s602 = scalar_select %p601, %s27, 1
      %p603 = scmp.lt.s32.totalorder %s600, 15
      %s604 = scalar_select %p603, %s600, 15
      %s605 = smul.addr %s602, 16
      %s606 = sadd.s32 %s604, %s605
      %s607 = smul.addr %s606, 2
      %s608 = scalar_lea.vmem %s9, %s607
      %p609 = pneg %p349
      %p610 = pneg %p346
      %p611 = scmp.lt.s32.totalorder %s27, 1
      %s612 = scalar_select %p611, %s27, 1
      %p613 = scmp.lt.s32.totalorder %s28, 1
      %s614 = scalar_select %p613, %s28, 1
      %s615 = smul.addr %s612, 2
      %s616 = sadd.s32 %s614, %s615
      %s617 = smul.addr %s616, 4
      %s618 = scalar_lea.vmem %s10, %s617
      %p619 = pneg %p377
      %p620 = pneg %p374
      %p621 = scmp.lt.s32.totalorder %s27, 1
      %s622 = scalar_select %p621, %s27, 1
      %p623 = scmp.lt.s32.totalorder %s28, 1
      %s624 = scalar_select %p623, %s28, 1
      %s625 = smul.addr %s622, 2
      %s626 = sadd.s32 %s624, %s625
      %s627 = smul.addr %s626, 4
      %s628 = scalar_lea.vmem %s11, %s627
      %s629 = smul.u32 8, %s28
      %p630 = scmp.lt.s32.totalorder %s27, 1
      %s631 = scalar_select %p630, %s27, 1
      %p632 = scmp.lt.s32.totalorder %s629, 15
      %s633 = scalar_select %p632, %s629, 15
      %s634 = smul.addr %s631, 16
      %s635 = sadd.s32 %s633, %s634
      %s636 = smul.addr %s635, 2
      %s637 = scalar_lea.vmem %s0, %s636
      %s638 = smul.u32 8, %s28
      %s639 = smul.u32 %s28, 8
      %s640 = ssub.s32 %s639, 1
      %p641 = scmp.gt.s32.totalorder %s640, 0
      %s642 = scalar_select %p641, %s640, 0
      %p643 = scmp.lt.s32.totalorder %s27, 1
      %s644 = scalar_select %p643, %s27, 1
      %p645 = scmp.lt.s32.totalorder %s642, 15
      %s646 = scalar_select %p645, %s642, 15
      %s647 = smul.addr %s644, 16
      %s648 = sadd.s32 %s646, %s647
      %s649 = smul.addr %s648, 2
      %s650 = scalar_lea.vmem %s1, %s649
      %s651 = smul.u32 %s28, 8
      %s652 = ssub.s32 %s651, 1
      %p653 = scmp.gt.s32.totalorder %s652, 0
      %s654 = scalar_select %p653, %s652, 0
      %s655 = sadd.s32 %s28, 1
      %s656 = smul.u32 %s655, 8
      %p657 = scmp.lt.s32.totalorder %s656, 15
      %s658 = scalar_select %p657, %s656, 15
      %p659 = scmp.lt.s32.totalorder %s27, 1
      %s660 = scalar_select %p659, %s27, 1
      %p661 = scmp.lt.s32.totalorder %s658, 15
      %s662 = scalar_select %p661, %s658, 15
      %s663 = smul.addr %s660, 16
      %s664 = sadd.s32 %s662, %s663
      %s665 = smul.addr %s664, 2
      %s666 = scalar_lea.vmem %s2, %s665
      %s667 = sadd.s32 %s28, 1
      %s668 = smul.u32 %s667, 8
      %p669 = scmp.lt.s32.totalorder %s668, 15
      %s670 = scalar_select %p669, %s668, 15
      %s671 = smul.u32 8, %s28
      %p672 = scmp.lt.s32.totalorder %s27, 1
      %s673 = scalar_select %p672, %s27, 1
      %p674 = scmp.lt.s32.totalorder %s671, 15
      %s675 = scalar_select %p674, %s671, 15
      %s676 = smul.addr %s673, 16
      %s677 = sadd.s32 %s675, %s676
      %s678 = smul.addr %s677, 2
      %s679 = scalar_lea.vmem %s3, %s678
      %s680 = smul.u32 8, %s28
      %s681 = smul.u32 %s28, 8
      %s682 = ssub.s32 %s681, 1
      %p683 = scmp.gt.s32.totalorder %s682, 0
      %s684 = scalar_select %p683, %s682, 0
      %p685 = scmp.lt.s32.totalorder %s27, 1
      %s686 = scalar_select %p685, %s27, 1
      %p687 = scmp.lt.s32.totalorder %s684, 15
      %s688 = scalar_select %p687, %s684, 15
      %s689 = smul.addr %s686, 16
      %s690 = sadd.s32 %s688, %s689
      %s691 = smul.addr %s690, 2
      %s692 = scalar_lea.vmem %s4, %s691
      %s693 = smul.u32 %s28, 8
      %s694 = ssub.s32 %s693, 1
      %p695 = scmp.gt.s32.totalorder %s694, 0
      %s696 = scalar_select %p695, %s694, 0
      %s697 = sadd.s32 %s28, 1
      %s698 = smul.u32 %s697, 8
      %p699 = scmp.lt.s32.totalorder %s698, 15
      %s700 = scalar_select %p699, %s698, 15
      %p701 = scmp.lt.s32.totalorder %s27, 1
      %s702 = scalar_select %p701, %s27, 1
      %p703 = scmp.lt.s32.totalorder %s700, 15
      %s704 = scalar_select %p703, %s700, 15
      %s705 = smul.addr %s702, 16
      %s706 = sadd.s32 %s704, %s705
      %s707 = smul.addr %s706, 2
      %s708 = scalar_lea.vmem %s5, %s707
      %s709 = sadd.s32 %s28, 1
      %s710 = smul.u32 %s709, 8
      %p711 = scmp.lt.s32.totalorder %s710, 15
      %s712 = scalar_select %p711, %s710, 15
      %s713 = smul.u32 8, %s28
      %p714 = scmp.lt.s32.totalorder %s27, 1
      %s715 = scalar_select %p714, %s27, 1
      %p716 = scmp.lt.s32.totalorder %s713, 15
      %s717 = scalar_select %p716, %s713, 15
      %s718 = smul.addr %s715, 16
      %s719 = sadd.s32 %s717, %s718
      %s720 = smul.addr %s719, 2
      %s721 = scalar_lea.vmem %s9, %s720
      %s722 = smul.u32 8, %s28
      %p723 = scmp.lt.s32.totalorder %s27, 1
      %s724 = scalar_select %p723, %s27, 1
      %p725 = scmp.lt.s32.totalorder %s28, 1
      %s726 = scalar_select %p725, %s28, 1
      %s727 = smul.addr %s724, 2
      %s728 = sadd.s32 %s726, %s727
      %s729 = smul.addr %s728, 4
      %s730 = scalar_lea.vmem %s10, %s729
      %p731 = scmp.lt.s32.totalorder %s27, 1
      %s732 = scalar_select %p731, %s27, 1
      %p733 = scmp.lt.s32.totalorder %s28, 1
      %s734 = scalar_select %p733, %s28, 1
      %s735 = smul.addr %s732, 2
      %s736 = sadd.s32 %s734, %s735
      %s737 = smul.addr %s736, 4
      %s738 = scalar_lea.vmem %s11, %s737
      %v740 = vld [vmem:[%s650] sm:$0x3]
      %p741 = scmp.gt.s32.totalorder %s28, 0
      %s742 = scalar_select %p741, 1, 0
      %s743 = scvt.s32.f32 %s742
      %p745 = scmp.ne.f32.partialorder %s743, %s743
      %s746 = sshrl.u32 %s743, 16
      %s747 = sand.u32 %s746, 1
      %s748 = sadd.s32 32767, %s747
      %s749 = sadd.s32 %s743, %s748
      %s750 = sand.u32 %s749, 4294901760
      %s751 = scalar_select %p745, 2143289344, %s750
      %s753 = sshrl.u32 %s751, 16
      %s754 = sshll.u32 %s753, 16
      %s755 = sor.u32 %s753, %s754
      %v756 = vstv %s755
      %v758 = vmul.bf16 %v740, %v756
      %v759 = vld [vmem:[%s666] sm:$0x3]
      %p760 = scmp.lt.s32.totalorder %s28, 1
      %s761 = scalar_select %p760, 1, 0
      %s762 = scvt.s32.f32 %s761
      %p764 = scmp.ne.f32.partialorder %s762, %s762
      %s765 = sshrl.u32 %s762, 16
      %s766 = sand.u32 %s765, 1
      %s767 = sadd.s32 32767, %s766
      %s768 = sadd.s32 %s762, %s767
      %s769 = sand.u32 %s768, 4294901760
      %s770 = scalar_select %p764, 2143289344, %s769
      %s772 = sshrl.u32 %s770, 16
      %s773 = sshll.u32 %s772, 16
      %s774 = sor.u32 %s772, %s773
      %v775 = vstv %s774
      %v777 = vmul.bf16 %v759, %v775
      %v778 = vld [vmem:[%s637] sm:$0xff]
      %v779 = vld [vmem:[%s637 + $0x8] sm:$0xff]
      %v782 = vcombine.high %v778, %v778
      %v784 = vunpack.c.l.s4 1983009808
      %v785 = vunpack.c.0.s8 %v784
      %v786 = vlaneseq
      %v787 = vshrl.u32 %v786, 7
      %v788 = vsub.s32 %v785, %v787
      %v789 = vrot.slane %v778, %v788
      %v791 = vunpack.c.l.s4 1983009808
      %v792 = vunpack.c.0.s8 %v791
      %v793 = vlaneseq
      %v794 = vshrl.u32 %v793, 7
      %v795 = vsub.s32 %v792, %v794
      %v796 = vrot.slane %v782, %v795
      %v797 = vcombine.high %v789, %v789
      %v798 = vcombine.high %v796, %v796
      %v799 = vcombine.high %v779, %v779
      %v801 = vunpack.c.l.s4 1983009808
      %v802 = vunpack.c.0.s8 %v801
      %v803 = vlaneseq
      %v804 = vshrl.u32 %v803, 7
      %v805 = vsub.s32 %v802, %v804
      %v806 = vrot.slane %v779, %v805
      %v808 = vunpack.c.l.s4 1983009808
      %v809 = vunpack.c.0.s8 %v808
      %v810 = vlaneseq
      %v811 = vshrl.u32 %v810, 7
      %v812 = vsub.s32 %v809, %v811
      %v813 = vrot.slane %v799, %v812
      %v814 = vcombine.high %v806, %v806
      %v815 = vcombine.high %v813, %v813
      %v816 = vld [vmem:[%s6] sm:$0x3]
      %s817 = scalar_lea.vmem %s6, 2
      %v818 = vld [vmem:[%s817] sm:$0x3]
      %vm819 = vcmask 31744
      %v821 = vsel %vm819, %v818, 0
      %vm823 = vcmask 1041408
      %v825 = vsel %vm823, %v758, 0
      %v828 = vsel %vm823, %v789, 0
      %v831 = vsel %vm823, %v797, 0
      %v834 = vsel %vm823, %v796, 0
      %v837 = vsel %vm823, %v798, 0
      %v840 = vsel %vm823, %v806, 0
      %v843 = vsel %vm823, %v814, 0
      %v846 = vsel %vm823, %v813, 0
      %848 = vmatprep.subr.bf16.mxu0 %v828
      %849 = vmatpush1.bf16.msra.mxu0 %v825
      %850 = vmatprep.subr.bf16.mxu0 0
      %851 = vmatpush1.bf16.msra.mxu0 0
      %852 = vmatprep.subr.bf16.mxu0 0
      %853 = vmatpush1.bf16.msra.mxu0 0
      %854 = vmatprep.subr.bf16.mxu0 0
      %855 = vmatpush1.bf16.msra.mxu0 0
      %856 = vmatprep.subr.bf16.mxu0 0
      %857 = vmatpush1.bf16.msra.mxu0 0
      %858 = vmatprep.subr.bf16.mxu0 0
      %859 = vmatpush1.bf16.msra.mxu0 0
      %860 = vmatprep.subr.bf16.mxu0 0
      %861 = vmatpush1.bf16.msra.mxu0 0
      %862 = vmatprep.subr.bf16.mxu0 0
      %863 = vmatpush1.bf16.msra.mxu0 0
      %864 = vmatprep.subr.bf16.mxu0 0
      %865 = vmatpush1.bf16.msra.mxu0 0
      %866 = vmatprep.subr.bf16.mxu0 0
      %867 = vmatpush1.bf16.msra.mxu0 0
      %868 = vmatprep.subr.bf16.mxu0 0
      %869 = vmatpush1.bf16.msra.mxu0 0
      %870 = vmatprep.subr.bf16.mxu0 0
      %871 = vmatpush1.bf16.msra.mxu0 0
      %872 = vmatprep.subr.bf16.mxu0 0
      %873 = vmatpush1.bf16.msra.mxu0 0
      %874 = vmatprep.subr.bf16.mxu0 0
      %875 = vmatpush1.bf16.msra.mxu0 0
      %876 = vmatprep.subr.bf16.mxu0 0
      %877 = vmatpush1.bf16.msra.mxu0 0
      %878 = vmatprep.subr.bf16.mxu0 0
      %879 = vmatpush1.bf16.msra.mxu0 0
      %880 = vmatprep.mubr.bf16.mxu0 0
      %881 = vmatmul.mubr.bf16.gmra.mrb[0].mxu0 %v821
      %v882 = vpop.f32.mrb[0].mxu0
      %v883 = vadd.f32 0.0, %v882
      %v884 = vpop.f32.mrb[0].mxu0
      %v885 = vadd.f32 0.0, %v884
      %v886 = vpop.f32.mrb[0].mxu0
      %v887 = vpop.f32.mrb[0].mxu0
      %888 = vdwg.mxu0
      %889 = vmatprep.subr.bf16.mxu0 %v834
      %890 = vmatpush1.bf16.msra.mxu0 %v831
      %891 = vmatprep.subr.bf16.mxu0 0
      %892 = vmatpush1.bf16.msra.mxu0 0
      %893 = vmatprep.subr.bf16.mxu0 0
      %894 = vmatpush1.bf16.msra.mxu0 0
      %895 = vmatprep.subr.bf16.mxu0 0
      %896 = vmatpush1.bf16.msra.mxu0 0
      %897 = vmatprep.subr.bf16.mxu0 0
      %898 = vmatpush1.bf16.msra.mxu0 0
      %899 = vmatprep.subr.bf16.mxu0 0
      %900 = vmatpush1.bf16.msra.mxu0 0
      %901 = vmatprep.subr.bf16.mxu0 0
      %902 = vmatpush1.bf16.msra.mxu0 0
      %903 = vmatprep.subr.bf16.mxu0 0
      %904 = vmatpush1.bf16.msra.mxu0 0
      %905 = vmatprep.subr.bf16.mxu0 0
      %906 = vmatpush1.bf16.msra.mxu0 0
      %907 = vmatprep.subr.bf16.mxu0 0
      %908 = vmatpush1.bf16.msra.mxu0 0
      %909 = vmatprep.subr.bf16.mxu0 0
      %910 = vmatpush1.bf16.msra.mxu0 0
      %911 = vmatprep.subr.bf16.mxu0 0
      %912 = vmatpush1.bf16.msra.mxu0 0
      %913 = vmatprep.subr.bf16.mxu0 0
      %914 = vmatpush1.bf16.msra.mxu0 0
      %915 = vmatprep.subr.bf16.mxu0 0
      %916 = vmatpush1.bf16.msra.mxu0 0
      %917 = vmatprep.subr.bf16.mxu0 0
      %918 = vmatpush1.bf16.msra.mxu0 0
      %919 = vmatprep.subr.bf16.mxu0 0
      %920 = vmatpush1.bf16.msra.mxu0 0
      %921 = vmatprep.mubr.bf16.mxu0 0
      %922 = vmatmul.mubr.bf16.gmra.mrb[0].mxu0 %v821
      %v923 = vpop.f32.mrb[0].mxu0
      %v924 = vadd.f32 0.0, %v923
      %v925 = vpop.f32.mrb[0].mxu0
      %v926 = vadd.f32 0.0, %v925
      %v927 = vpop.f32.mrb[0].mxu0
      %v928 = vpop.f32.mrb[0].mxu0
      %929 = vdwg.mxu0
      %930 = vmatprep.subr.bf16.mxu0 %v840
      %931 = vmatpush1.bf16.msra.mxu0 %v837
      %932 = vmatprep.subr.bf16.mxu0 0
      %933 = vmatpush1.bf16.msra.mxu0 0
      %934 = vmatprep.subr.bf16.mxu0 0
      %935 = vmatpush1.bf16.msra.mxu0 0
      %936 = vmatprep.subr.bf16.mxu0 0
      %937 = vmatpush1.bf16.msra.mxu0 0
      %938 = vmatprep.subr.bf16.mxu0 0
      %939 = vmatpush1.bf16.msra.mxu0 0
      %940 = vmatprep.subr.bf16.mxu0 0
      %941 = vmatpush1.bf16.msra.mxu0 0
      %942 = vmatprep.subr.bf16.mxu0 0
      %943 = vmatpush1.bf16.msra.mxu0 0
      %944 = vmatprep.subr.bf16.mxu0 0
      %945 = vmatpush1.bf16.msra.mxu0 0
      %946 = vmatprep.subr.bf16.mxu0 0
      %947 = vmatpush1.bf16.msra.mxu0 0
      %948 = vmatprep.subr.bf16.mxu0 0
      %949 = vmatpush1.bf16.msra.mxu0 0
      %950 = vmatprep.subr.bf16.mxu0 0
      %951 = vmatpush1.bf16.msra.mxu0 0
      %952 = vmatprep.subr.bf16.mxu0 0
      %953 = vmatpush1.bf16.msra.mxu0 0
      %954 = vmatprep.subr.bf16.mxu0 0
      %955 = vmatpush1.bf16.msra.mxu0 0
      %956 = vmatprep.subr.bf16.mxu0 0
      %957 = vmatpush1.bf16.msra.mxu0 0
      %958 = vmatprep.subr.bf16.mxu0 0
      %959 = vmatpush1.bf16.msra.mxu0 0
      %960 = vmatprep.subr.bf16.mxu0 0
      %961 = vmatpush1.bf16.msra.mxu0 0
      %962 = vmatprep.mubr.bf16.mxu0 0
      %963 = vmatmul.mubr.bf16.gmra.mrb[0].mxu0 %v821
      %v964 = vpop.f32.mrb[0].mxu0
      %v965 = vadd.f32 0.0, %v964
      %v966 = vpop.f32.mrb[0].mxu0
      %v967 = vadd.f32 0.0, %v966
      %v968 = vpop.f32.mrb[0].mxu0
      %v969 = vpop.f32.mrb[0].mxu0
      %970 = vdwg.mxu0
      %971 = vmatprep.subr.bf16.mxu0 %v846
      %972 = vmatpush1.bf16.msra.mxu0 %v843
      %973 = vmatprep.subr.bf16.mxu0 0
      %974 = vmatpush1.bf16.msra.mxu0 0
      %975 = vmatprep.subr.bf16.mxu0 0
      %976 = vmatpush1.bf16.msra.mxu0 0
      %977 = vmatprep.subr.bf16.mxu0 0
      %978 = vmatpush1.bf16.msra.mxu0 0
      %979 = vmatprep.subr.bf16.mxu0 0
      %980 = vmatpush1.bf16.msra.mxu0 0
      %981 = vmatprep.subr.bf16.mxu0 0
      %982 = vmatpush1.bf16.msra.mxu0 0
      %983 = vmatprep.subr.bf16.mxu0 0
      %984 = vmatpush1.bf16.msra.mxu0 0
      %985 = vmatprep.subr.bf16.mxu0 0
      %986 = vmatpush1.bf16.msra.mxu0 0
      %987 = vmatprep.subr.bf16.mxu0 0
      %988 = vmatpush1.bf16.msra.mxu0 0
      %989 = vmatprep.subr.bf16.mxu0 0
      %990 = vmatpush1.bf16.msra.mxu0 0
      %991 = vmatprep.subr.bf16.mxu0 0
      %992 = vmatpush1.bf16.msra.mxu0 0
      %993 = vmatprep.subr.bf16.mxu0 0
      %994 = vmatpush1.bf16.msra.mxu0 0
      %995 = vmatprep.subr.bf16.mxu0 0
      %996 = vmatpush1.bf16.msra.mxu0 0
      %997 = vmatprep.subr.bf16.mxu0 0
      %998 = vmatpush1.bf16.msra.mxu0 0
      %999 = vmatprep.subr.bf16.mxu0 0
      %1000 = vmatpush1.bf16.msra.mxu0 0
      %1001 = vmatprep.subr.bf16.mxu0 0
      %1002 = vmatpush1.bf16.msra.mxu0 0
      %1003 = vmatprep.mubr.bf16.mxu0 0
      %1004 = vmatmul.mubr.bf16.gmra.mrb[0].mxu0 %v821
      %v1005 = vpop.f32.mrb[0].mxu0
      %v1006 = vadd.f32 0.0, %v1005
      %v1007 = vpop.f32.mrb[0].mxu0
      %v1008 = vadd.f32 0.0, %v1007
      %v1009 = vpop.f32.mrb[0].mxu0
      %v1010 = vpop.f32.mrb[0].mxu0
      %1011 = vdwg.mxu0
      %1014 = vrot.lane.b32.xlu0 0, 1
      %v1015 = vpop.permute.xlu0 %1014
      %1016 = vrot.lane.b32.xlu0 %v758, 1
      %v1017 = vpop.permute.xlu0 %1016
      %1018 = vrot.lane.b32.xlu0 %v789, 1
      %v1019 = vpop.permute.xlu0 %1018
      %1020 = vrot.lane.b32.xlu0 %v797, 1
      %v1021 = vpop.permute.xlu0 %1020
      %1022 = vrot.lane.b32.xlu0 %v796, 1
      %v1023 = vpop.permute.xlu0 %1022
      %1024 = vrot.lane.b32.xlu0 %v798, 1
      %v1025 = vpop.permute.xlu0 %1024
      %1026 = vrot.lane.b32.xlu0 %v806, 1
      %v1027 = vpop.permute.xlu0 %1026
      %1028 = vrot.lane.b32.xlu0 %v814, 1
      %v1029 = vpop.permute.xlu0 %1028
      %1030 = vrot.lane.b32.xlu0 %v813, 1
      %v1031 = vpop.permute.xlu0 %1030
      %vm1032 = vcmask 7168
      %v1033 = vsel %vm1032, %v1015, %v1017
      %v1034 = vsel %vm1032, %v1017, %v1019
      %v1035 = vsel %vm1032, %v1019, %v1021
      %v1036 = vsel %vm1032, %v1021, %v1023
      %v1037 = vsel %vm1032, %v1023, %v1025
      %v1038 = vsel %vm1032, %v1025, %v1027
      %v1039 = vsel %vm1032, %v1027, %v1029
      %v1040 = vsel %vm1032, %v1029, %v1031
      %v1042 = vsel %vm819, %v816, 0
      %v1045 = vsel %vm823, %v1033, 0
      %v1048 = vsel %vm823, %v1034, 0
      %v1051 = vsel %vm823, %v1035, 0
      %v1054 = vsel %vm823, %v1036, 0
      %v1057 = vsel %vm823, %v1037, 0
      %v1060 = vsel %vm823, %v1038, 0
      %v1063 = vsel %vm823, %v1039, 0
      %v1066 = vsel %vm823, %v1040, 0
      %1068 = vmatprep.subr.bf16.mxu0 %v1048
      %1069 = vmatpush1.bf16.msra.mxu0 %v1045
      %1070 = vmatprep.subr.bf16.mxu0 0
      %1071 = vmatpush1.bf16.msra.mxu0 0
      %1072 = vmatprep.subr.bf16.mxu0 0
      %1073 = vmatpush1.bf16.msra.mxu0 0
      %1074 = vmatprep.subr.bf16.mxu0 0
      %1075 = vmatpush1.bf16.msra.mxu0 0
      %1076 = vmatprep.subr.bf16.mxu0 0
      %1077 = vmatpush1.bf16.msra.mxu0 0
      %1078 = vmatprep.subr.bf16.mxu0 0
      %1079 = vmatpush1.bf16.msra.mxu0 0
      %1080 = vmatprep.subr.bf16.mxu0 0
      %1081 = vmatpush1.bf16.msra.mxu0 0
      %1082 = vmatprep.subr.bf16.mxu0 0
      %1083 = vmatpush1.bf16.msra.mxu0 0
      %1084 = vmatprep.subr.bf16.mxu0 0
      %1085 = vmatpush1.bf16.msra.mxu0 0
      %1086 = vmatprep.subr.bf16.mxu0 0
      %1087 = vmatpush1.bf16.msra.mxu0 0
      %1088 = vmatprep.subr.bf16.mxu0 0
      %1089 = vmatpush1.bf16.msra.mxu0 0
      %1090 = vmatprep.subr.bf16.mxu0 0
      %1091 = vmatpush1.bf16.msra.mxu0 0
      %1092 = vmatprep.subr.bf16.mxu0 0
      %1093 = vmatpush1.bf16.msra.mxu0 0
      %1094 = vmatprep.subr.bf16.mxu0 0
      %1095 = vmatpush1.bf16.msra.mxu0 0
      %1096 = vmatprep.subr.bf16.mxu0 0
      %1097 = vmatpush1.bf16.msra.mxu0 0
      %1098 = vmatprep.subr.bf16.mxu0 0
      %1099 = vmatpush1.bf16.msra.mxu0 0
      %1100 = vmatprep.mubr.bf16.mxu0 0
      %1101 = vmatmul.mubr.bf16.gmra.mrb[0].mxu0 %v1042
      %v1102 = vpop.f32.mrb[0].mxu0
      %v1103 = vadd.f32 %v883, %v1102
      %v1104 = vpop.f32.mrb[0].mxu0
      %v1105 = vadd.f32 %v885, %v1104
      %v1106 = vpop.f32.mrb[0].mxu0
      %v1107 = vpop.f32.mrb[0].mxu0
      %1108 = vdwg.mxu0
      %1109 = vmatprep.subr.bf16.mxu0 %v1054
      %1110 = vmatpush1.bf16.msra.mxu0 %v1051
      %1111 = vmatprep.subr.bf16.mxu0 0
      %1112 = vmatpush1.bf16.msra.mxu0 0
      %1113 = vmatprep.subr.bf16.mxu0 0
      %1114 = vmatpush1.bf16.msra.mxu0 0
      %1115 = vmatprep.subr.bf16.mxu0 0
      %1116 = vmatpush1.bf16.msra.mxu0 0
      %1117 = vmatprep.subr.bf16.mxu0 0
      %1118 = vmatpush1.bf16.msra.mxu0 0
      %1119 = vmatprep.subr.bf16.mxu0 0
      %1120 = vmatpush1.bf16.msra.mxu0 0
      %1121 = vmatprep.subr.bf16.mxu0 0
      %1122 = vmatpush1.bf16.msra.mxu0 0
      %1123 = vmatprep.subr.bf16.mxu0 0
      %1124 = vmatpush1.bf16.msra.mxu0 0
      %1125 = vmatprep.subr.bf16.mxu0 0
      %1126 = vmatpush1.bf16.msra.mxu0 0
      %1127 = vmatprep.subr.bf16.mxu0 0
      %1128 = vmatpush1.bf16.msra.mxu0 0
      %1129 = vmatprep.subr.bf16.mxu0 0
      %1130 = vmatpush1.bf16.msra.mxu0 0
      %1131 = vmatprep.subr.bf16.mxu0 0
      %1132 = vmatpush1.bf16.msra.mxu0 0
      %1133 = vmatprep.subr.bf16.mxu0 0
      %1134 = vmatpush1.bf16.msra.mxu0 0
      %1135 = vmatprep.subr.bf16.mxu0 0
      %1136 = vmatpush1.bf16.msra.mxu0 0
      %1137 = vmatprep.subr.bf16.mxu0 0
      %1138 = vmatpush1.bf16.msra.mxu0 0
      %1139 = vmatprep.subr.bf16.mxu0 0
      %1140 = vmatpush1.bf16.msra.mxu0 0
      %1141 = vmatprep.mubr.bf16.mxu0 0
      %1142 = vmatmul.mubr.bf16.gmra.mrb[0].mxu0 %v1042
      %v1143 = vpop.f32.mrb[0].mxu0
      %v1144 = vadd.f32 %v924, %v1143
      %v1145 = vpop.f32.mrb[0].mxu0
      %v1146 = vadd.f32 %v926, %v1145
      %v1147 = vpop.f32.mrb[0].mxu0
      %v1148 = vpop.f32.mrb[0].mxu0
      %1149 = vdwg.mxu0
      %1150 = vmatprep.subr.bf16.mxu0 %v1060
      %1151 = vmatpush1.bf16.msra.mxu0 %v1057
      %1152 = vmatprep.subr.bf16.mxu0 0
      %1153 = vmatpush1.bf16.msra.mxu0 0
      %1154 = vmatprep.subr.bf16.mxu0 0
      %1155 = vmatpush1.bf16.msra.mxu0 0
      %1156 = vmatprep.subr.bf16.mxu0 0
      %1157 = vmatpush1.bf16.msra.mxu0 0
      %1158 = vmatprep.subr.bf16.mxu0 0
      %1159 = vmatpush1.bf16.msra.mxu0 0
      %1160 = vmatprep.subr.bf16.mxu0 0
      %1161 = vmatpush1.bf16.msra.mxu0 0
      %1162 = vmatprep.subr.bf16.mxu0 0
      %1163 = vmatpush1.bf16.msra.mxu0 0
      %1164 = vmatprep.subr.bf16.mxu0 0
      %1165 = vmatpush1.bf16.msra.mxu0 0
      %1166 = vmatprep.subr.bf16.mxu0 0
      %1167 = vmatpush1.bf16.msra.mxu0 0
      %1168 = vmatprep.subr.bf16.mxu0 0
      %1169 = vmatpush1.bf16.msra.mxu0 0
      %1170 = vmatprep.subr.bf16.mxu0 0
      %1171 = vmatpush1.bf16.msra.mxu0 0
      %1172 = vmatprep.subr.bf16.mxu0 0
      %1173 = vmatpush1.bf16.msra.mxu0 0
      %1174 = vmatprep.subr.bf16.mxu0 0
      %1175 = vmatpush1.bf16.msra.mxu0 0
      %1176 = vmatprep.subr.bf16.mxu0 0
      %1177 = vmatpush1.bf16.msra.mxu0 0
      %1178 = vmatprep.subr.bf16.mxu0 0
      %1179 = vmatpush1.bf16.msra.mxu0 0
      %1180 = vmatprep.subr.bf16.mxu0 0
      %1181 = vmatpush1.bf16.msra.mxu0 0
      %1182 = vmatprep.mubr.bf16.mxu0 0
      %1183 = vmatmul.mubr.bf16.gmra.mrb[0].mxu0 %v1042
      %v1184 = vpop.f32.mrb[0].mxu0
      %v1185 = vadd.f32 %v965, %v1184
      %v1186 = vpop.f32.mrb[0].mxu0
      %v1187 = vadd.f32 %v967, %v1186
      %v1188 = vpop.f32.mrb[0].mxu0
      %v1189 = vpop.f32.mrb[0].mxu0
      %1190 = vdwg.mxu0
      %1191 = vmatprep.subr.bf16.mxu0 %v1066
      %1192 = vmatpush1.bf16.msra.mxu0 %v1063
      %1193 = vmatprep.subr.bf16.mxu0 0
      %1194 = vmatpush1.bf16.msra.mxu0 0
      %1195 = vmatprep.subr.bf16.mxu0 0
      %1196 = vmatpush1.bf16.msra.mxu0 0
      %1197 = vmatprep.subr.bf16.mxu0 0
      %1198 = vmatpush1.bf16.msra.mxu0 0
      %1199 = vmatprep.subr.bf16.mxu0 0
      %1200 = vmatpush1.bf16.msra.mxu0 0
      %1201 = vmatprep.subr.bf16.mxu0 0
      %1202 = vmatpush1.bf16.msra.mxu0 0
      %1203 = vmatprep.subr.bf16.mxu0 0
      %1204 = vmatpush1.bf16.msra.mxu0 0
      %1205 = vmatprep.subr.bf16.mxu0 0
      %1206 = vmatpush1.bf16.msra.mxu0 0
      %1207 = vmatprep.subr.bf16.mxu0 0
      %1208 = vmatpush1.bf16.msra.mxu0 0
      %1209 = vmatprep.subr.bf16.mxu0 0
      %1210 = vmatpush1.bf16.msra.mxu0 0
      %1211 = vmatprep.subr.bf16.mxu0 0
      %1212 = vmatpush1.bf16.msra.mxu0 0
      %1213 = vmatprep.subr.bf16.mxu0 0
      %1214 = vmatpush1.bf16.msra.mxu0 0
      %1215 = vmatprep.subr.bf16.mxu0 0
      %1216 = vmatpush1.bf16.msra.mxu0 0
      %1217 = vmatprep.subr.bf16.mxu0 0
      %1218 = vmatpush1.bf16.msra.mxu0 0
      %1219 = vmatprep.subr.bf16.mxu0 0
      %1220 = vmatpush1.bf16.msra.mxu0 0
      %1221 = vmatprep.subr.bf16.mxu0 0
      %1222 = vmatpush1.bf16.msra.mxu0 0
      %1223 = vmatprep.mubr.bf16.mxu0 0
      %1224 = vmatmul.mubr.bf16.gmra.mrb[0].mxu0 %v1042
      %v1225 = vpop.f32.mrb[0].mxu0
      %v1226 = vadd.f32 %v1006, %v1225
      %v1227 = vpop.f32.mrb[0].mxu0
      %v1228 = vadd.f32 %v1008, %v1227
      %v1229 = vpop.f32.mrb[0].mxu0
      %v1230 = vpop.f32.mrb[0].mxu0
      %1231 = vdwg.mxu0
      %s1232 = scalar_lea.vmem %s6, 4
      %v1233 = vld [vmem:[%s1232] sm:$0x3]
      %1234 = vrot.lane.b32.xlu0 %v758, 127
      %v1235 = vpop.permute.xlu0 %1234
      %1236 = vrot.lane.b32.xlu0 %v789, 127
      %v1237 = vpop.permute.xlu0 %1236
      %1238 = vrot.lane.b32.xlu0 %v797, 127
      %v1239 = vpop.permute.xlu0 %1238
      %1240 = vrot.lane.b32.xlu0 %v796, 127
      %v1241 = vpop.permute.xlu0 %1240
      %1242 = vrot.lane.b32.xlu0 %v798, 127
      %v1243 = vpop.permute.xlu0 %1242
      %1244 = vrot.lane.b32.xlu0 %v806, 127
      %v1245 = vpop.permute.xlu0 %1244
      %1246 = vrot.lane.b32.xlu0 %v814, 127
      %v1247 = vpop.permute.xlu0 %1246
      %1248 = vrot.lane.b32.xlu0 %v813, 127
      %v1249 = vpop.permute.xlu0 %1248
      %1250 = vrot.lane.b32.xlu0 %v815, 127
      %v1251 = vpop.permute.xlu0 %1250
      %vm1252 = vcmask 1039360
      %v1253 = vsel %vm1252, %v1235, %v1237
      %v1254 = vsel %vm1252, %v1237, %v1239
      %v1255 = vsel %vm1252, %v1239, %v1241
      %v1256 = vsel %vm1252, %v1241, %v1243
      %v1257 = vsel %vm1252, %v1243, %v1245
      %v1258 = vsel %vm1252, %v1245, %v1247
      %v1259 = vsel %vm1252, %v1247, %v1249
      %v1260 = vsel %vm1252, %v1249, %v1251
      %v1262 = vsel %vm819, %v1233, 0
      %v1265 = vsel %vm823, %v1253, 0
      %v1268 = vsel %vm823, %v1254, 0
      %v1271 = vsel %vm823, %v1255, 0
      %v1274 = vsel %vm823, %v1256, 0
      %v1277 = vsel %vm823, %v1257, 0
      %v1280 = vsel %vm823, %v1258, 0
      %v1283 = vsel %vm823, %v1259, 0
      %v1286 = vsel %vm823, %v1260, 0
      %1288 = vmatprep.subr.bf16.mxu0 %v1268
      %1289 = vmatpush1.bf16.msra.mxu0 %v1265
      %1290 = vmatprep.subr.bf16.mxu0 0
      %1291 = vmatpush1.bf16.msra.mxu0 0
      %1292 = vmatprep.subr.bf16.mxu0 0
      %1293 = vmatpush1.bf16.msra.mxu0 0
      %1294 = vmatprep.subr.bf16.mxu0 0
      %1295 = vmatpush1.bf16.msra.mxu0 0
      %1296 = vmatprep.subr.bf16.mxu0 0
      %1297 = vmatpush1.bf16.msra.mxu0 0
      %1298 = vmatprep.subr.bf16.mxu0 0
      %1299 = vmatpush1.bf16.msra.mxu0 0
      %1300 = vmatprep.subr.bf16.mxu0 0
      %1301 = vmatpush1.bf16.msra.mxu0 0
      %1302 = vmatprep.subr.bf16.mxu0 0
      %1303 = vmatpush1.bf16.msra.mxu0 0
      %1304 = vmatprep.subr.bf16.mxu0 0
      %1305 = vmatpush1.bf16.msra.mxu0 0
      %1306 = vmatprep.subr.bf16.mxu0 0
      %1307 = vmatpush1.bf16.msra.mxu0 0
      %1308 = vmatprep.subr.bf16.mxu0 0
      %1309 = vmatpush1.bf16.msra.mxu0 0
      %1310 = vmatprep.subr.bf16.mxu0 0
      %1311 = vmatpush1.bf16.msra.mxu0 0
      %1312 = vmatprep.subr.bf16.mxu0 0
      %1313 = vmatpush1.bf16.msra.mxu0 0
      %1314 = vmatprep.subr.bf16.mxu0 0
      %1315 = vmatpush1.bf16.msra.mxu0 0
      %1316 = vmatprep.subr.bf16.mxu0 0
      %1317 = vmatpush1.bf16.msra.mxu0 0
      %1318 = vmatprep.subr.bf16.mxu0 0
      %1319 = vmatpush1.bf16.msra.mxu0 0
      %1320 = vmatprep.mubr.bf16.mxu0 0
      %1321 = vmatmul.mubr.bf16.gmra.mrb[0].mxu0 %v1262
      %v1322 = vpop.f32.mrb[0].mxu0
      %v1323 = vadd.f32 0.0, %v1322
      %v1324 = vpop.f32.mrb[0].mxu0
      %v1325 = vadd.f32 0.0, %v1324
      %v1326 = vpop.f32.mrb[0].mxu0
      %v1327 = vpop.f32.mrb[0].mxu0
      %1328 = vdwg.mxu0
      %1329 = vmatprep.subr.bf16.mxu0 %v1274
      %1330 = vmatpush1.bf16.msra.mxu0 %v1271
      %1331 = vmatprep.subr.bf16.mxu0 0
      %1332 = vmatpush1.bf16.msra.mxu0 0
      %1333 = vmatprep.subr.bf16.mxu0 0
      %1334 = vmatpush1.bf16.msra.mxu0 0
      %1335 = vmatprep.subr.bf16.mxu0 0
      %1336 = vmatpush1.bf16.msra.mxu0 0
      %1337 = vmatprep.subr.bf16.mxu0 0
      %1338 = vmatpush1.bf16.msra.mxu0 0
      %1339 = vmatprep.subr.bf16.mxu0 0
      %1340 = vmatpush1.bf16.msra.mxu0 0
      %1341 = vmatprep.subr.bf16.mxu0 0
      %1342 = vmatpush1.bf16.msra.mxu0 0
      %1343 = vmatprep.subr.bf16.mxu0 0
      %1344 = vmatpush1.bf16.msra.mxu0 0
      %1345 = vmatprep.subr.bf16.mxu0 0
      %1346 = vmatpush1.bf16.msra.mxu0 0
      %1347 = vmatprep.subr.bf16.mxu0 0
      %1348 = vmatpush1.bf16.msra.mxu0 0
      %1349 = vmatprep.subr.bf16.mxu0 0
      %1350 = vmatpush1.bf16.msra.mxu0 0
      %1351 = vmatprep.subr.bf16.mxu0 0
      %1352 = vmatpush1.bf16.msra.mxu0 0
      %1353 = vmatprep.subr.bf16.mxu0 0
      %1354 = vmatpush1.bf16.msra.mxu0 0
      %1355 = vmatprep.subr.bf16.mxu0 0
      %1356 = vmatpush1.bf16.msra.mxu0 0
      %1357 = vmatprep.subr.bf16.mxu0 0
      %1358 = vmatpush1.bf16.msra.mxu0 0
      %1359 = vmatprep.subr.bf16.mxu0 0
      %1360 = vmatpush1.bf16.msra.mxu0 0
      %1361 = vmatprep.mubr.bf16.mxu0 0
      %1362 = vmatmul.mubr.bf16.gmra.mrb[0].mxu0 %v1262
      %v1363 = vpop.f32.mrb[0].mxu0
      %v1364 = vadd.f32 0.0, %v1363
      %v1365 = vpop.f32.mrb[0].mxu0
      %v1366 = vadd.f32 0.0, %v1365
      %v1367 = vpop.f32.mrb[0].mxu0
      %v1368 = vpop.f32.mrb[0].mxu0
      %1369 = vdwg.mxu0
      %1370 = vmatprep.subr.bf16.mxu0 %v1280
      %1371 = vmatpush1.bf16.msra.mxu0 %v1277
      %1372 = vmatprep.subr.bf16.mxu0 0
      %1373 = vmatpush1.bf16.msra.mxu0 0
      %1374 = vmatprep.subr.bf16.mxu0 0
      %1375 = vmatpush1.bf16.msra.mxu0 0
      %1376 = vmatprep.subr.bf16.mxu0 0
      %1377 = vmatpush1.bf16.msra.mxu0 0
      %1378 = vmatprep.subr.bf16.mxu0 0
      %1379 = vmatpush1.bf16.msra.mxu0 0
      %1380 = vmatprep.subr.bf16.mxu0 0
      %1381 = vmatpush1.bf16.msra.mxu0 0
      %1382 = vmatprep.subr.bf16.mxu0 0
      %1383 = vmatpush1.bf16.msra.mxu0 0
      %1384 = vmatprep.subr.bf16.mxu0 0
      %1385 = vmatpush1.bf16.msra.mxu0 0
      %1386 = vmatprep.subr.bf16.mxu0 0
      %1387 = vmatpush1.bf16.msra.mxu0 0
      %1388 = vmatprep.subr.bf16.mxu0 0
      %1389 = vmatpush1.bf16.msra.mxu0 0
      %1390 = vmatprep.subr.bf16.mxu0 0
      %1391 = vmatpush1.bf16.msra.mxu0 0
      %1392 = vmatprep.subr.bf16.mxu0 0
      %1393 = vmatpush1.bf16.msra.mxu0 0
      %1394 = vmatprep.subr.bf16.mxu0 0
      %1395 = vmatpush1.bf16.msra.mxu0 0
      %1396 = vmatprep.subr.bf16.mxu0 0
      %1397 = vmatpush1.bf16.msra.mxu0 0
      %1398 = vmatprep.subr.bf16.mxu0 0
      %1399 = vmatpush1.bf16.msra.mxu0 0
      %1400 = vmatprep.subr.bf16.mxu0 0
      %1401 = vmatpush1.bf16.msra.mxu0 0
      %1402 = vmatprep.mubr.bf16.mxu0 0
      %1403 = vmatmul.mubr.bf16.gmra.mrb[0].mxu0 %v1262
      %v1404 = vpop.f32.mrb[0].mxu0
      %v1405 = vadd.f32 0.0, %v1404
      %v1406 = vpop.f32.mrb[0].mxu0
      %v1407 = vadd.f32 0.0, %v1406
      %v1408 = vpop.f32.mrb[0].mxu0
      %v1409 = vpop.f32.mrb[0].mxu0
      %1410 = vdwg.mxu0
      %1411 = vmatprep.subr.bf16.mxu0 %v1286
      %1412 = vmatpush1.bf16.msra.mxu0 %v1283
      %1413 = vmatprep.subr.bf16.mxu0 0
      %1414 = vmatpush1.bf16.msra.mxu0 0
      %1415 = vmatprep.subr.bf16.mxu0 0
      %1416 = vmatpush1.bf16.msra.mxu0 0
      %1417 = vmatprep.subr.bf16.mxu0 0
      %1418 = vmatpush1.bf16.msra.mxu0 0
      %1419 = vmatprep.subr.bf16.mxu0 0
      %1420 = vmatpush1.bf16.msra.mxu0 0
      %1421 = vmatprep.subr.bf16.mxu0 0
      %1422 = vmatpush1.bf16.msra.mxu0 0
      %1423 = vmatprep.subr.bf16.mxu0 0
      %1424 = vmatpush1.bf16.msra.mxu0 0
      %1425 = vmatprep.subr.bf16.mxu0 0
      %1426 = vmatpush1.bf16.msra.mxu0 0
      %1427 = vmatprep.subr.bf16.mxu0 0
      %1428 = vmatpush1.bf16.msra.mxu0 0
      %1429 = vmatprep.subr.bf16.mxu0 0
      %1430 = vmatpush1.bf16.msra.mxu0 0
      %1431 = vmatprep.subr.bf16.mxu0 0
      %1432 = vmatpush1.bf16.msra.mxu0 0
      %1433 = vmatprep.subr.bf16.mxu0 0
      %1434 = vmatpush1.bf16.msra.mxu0 0
      %1435 = vmatprep.subr.bf16.mxu0 0
      %1436 = vmatpush1.bf16.msra.mxu0 0
      %1437 = vmatprep.subr.bf16.mxu0 0
      %1438 = vmatpush1.bf16.msra.mxu0 0
      %1439 = vmatprep.subr.bf16.mxu0 0
      %1440 = vmatpush1.bf16.msra.mxu0 0
      %1441 = vmatprep.subr.bf16.mxu0 0
      %1442 = vmatpush1.bf16.msra.mxu0 0
      %1443 = vmatprep.mubr.bf16.mxu0 0
      %1444 = vmatmul.mubr.bf16.gmra.mrb[0].mxu0 %v1262
      %v1445 = vpop.f32.mrb[0].mxu0
      %v1446 = vadd.f32 0.0, %v1445
      %v1447 = vpop.f32.mrb[0].mxu0
      %v1448 = vadd.f32 0.0, %v1447
      %v1449 = vpop.f32.mrb[0].mxu0
      %v1450 = vpop.f32.mrb[0].mxu0
      %1451 = vdwg.mxu0
      %v1452 = vadd.f32 %v1103, %v1323
      %v1453 = vadd.f32 %v1105, %v1325
      %v1454 = vadd.f32 %v1144, %v1364
      %v1455 = vadd.f32 %v1146, %v1366
      %v1456 = vadd.f32 %v1185, %v1405
      %v1457 = vadd.f32 %v1187, %v1407
      %v1458 = vadd.f32 %v1226, %v1446
      %v1459 = vadd.f32 %v1228, %v1448
      %s1460 = scalar_lea.vmem %s6, 6
      %v1461 = vld [vmem:[%s1460] sm:$0x3]
      %1462 = vrot.lane.b32.xlu0 %v815, 1
      %v1463 = vpop.permute.xlu0 %1462
      %v1464 = vsel %vm1032, %v1031, %v1463
      %v1466 = vsel %vm819, %v1461, 0
      %v1469 = vsel %vm823, %v1464, 0
      %1471 = vmatprep.subr.bf16.mxu0 %v1051
      %1472 = vmatpush1.bf16.msra.mxu0 %v1048
      %1473 = vmatprep.subr.bf16.mxu0 0
      %1474 = vmatpush1.bf16.msra.mxu0 0
      %1475 = vmatprep.subr.bf16.mxu0 0
      %1476 = vmatpush1.bf16.msra.mxu0 0
      %1477 = vmatprep.subr.bf16.mxu0 0
      %1478 = vmatpush1.bf16.msra.mxu0 0
      %1479 = vmatprep.subr.bf16.mxu0 0
      %1480 = vmatpush1.bf16.msra.mxu0 0
      %1481 = vmatprep.subr.bf16.mxu0 0
      %1482 = vmatpush1.bf16.msra.mxu0 0
      %1483 = vmatprep.subr.bf16.mxu0 0
      %1484 = vmatpush1.bf16.msra.mxu0 0
      %1485 = vmatprep.subr.bf16.mxu0 0
      %1486 = vmatpush1.bf16.msra.mxu0 0
      %1487 = vmatprep.subr.bf16.mxu0 0
      %1488 = vmatpush1.bf16.msra.mxu0 0
      %1489 = vmatprep.subr.bf16.mxu0 0
      %1490 = vmatpush1.bf16.msra.mxu0 0
      %1491 = vmatprep.subr.bf16.mxu0 0
      %1492 = vmatpush1.bf16.msra.mxu0 0
      %1493 = vmatprep.subr.bf16.mxu0 0
      %1494 = vmatpush1.bf16.msra.mxu0 0
      %1495 = vmatprep.subr.bf16.mxu0 0
      %1496 = vmatpush1.bf16.msra.mxu0 0
      %1497 = vmatprep.subr.bf16.mxu0 0
      %1498 = vmatpush1.bf16.msra.mxu0 0
      %1499 = vmatprep.subr.bf16.mxu0 0
      %1500 = vmatpush1.bf16.msra.mxu0 0
      %1501 = vmatprep.subr.bf16.mxu0 0
      %1502 = vmatpush1.bf16.msra.mxu0 0
      %1503 = vmatprep.mubr.bf16.mxu0 0
      %1504 = vmatmul.mubr.bf16.gmra.mrb[0].mxu0 %v1466
      %v1505 = vpop.f32.mrb[0].mxu0
      %v1506 = vadd.f32 0.0, %v1505
      %v1507 = vpop.f32.mrb[0].mxu0
      %v1508 = vadd.f32 0.0, %v1507
      %v1509 = vpop.f32.mrb[0].mxu0
      %v1510 = vpop.f32.mrb[0].mxu0
      %1511 = vdwg.mxu0
      %1512 = vmatprep.subr.bf16.mxu0 %v1057
      %1513 = vmatpush1.bf16.msra.mxu0 %v1054
      %1514 = vmatprep.subr.bf16.mxu0 0
      %1515 = vmatpush1.bf16.msra.mxu0 0
      %1516 = vmatprep.subr.bf16.mxu0 0
      %1517 = vmatpush1.bf16.msra.mxu0 0
      %1518 = vmatprep.subr.bf16.mxu0 0
      %1519 = vmatpush1.bf16.msra.mxu0 0
      %1520 = vmatprep.subr.bf16.mxu0 0
      %1521 = vmatpush1.bf16.msra.mxu0 0
      %1522 = vmatprep.subr.bf16.mxu0 0
      %1523 = vmatpush1.bf16.msra.mxu0 0
      %1524 = vmatprep.subr.bf16.mxu0 0
      %1525 = vmatpush1.bf16.msra.mxu0 0
      %1526 = vmatprep.subr.bf16.mxu0 0
      %1527 = vmatpush1.bf16.msra.mxu0 0
      %1528 = vmatprep.subr.bf16.mxu0 0
      %1529 = vmatpush1.bf16.msra.mxu0 0
      %1530 = vmatprep.subr.bf16.mxu0 0
      %1531 = vmatpush1.bf16.msra.mxu0 0
      %1532 = vmatprep.subr.bf16.mxu0 0
      %1533 = vmatpush1.bf16.msra.mxu0 0
      %1534 = vmatprep.subr.bf16.mxu0 0
      %1535 = vmatpush1.bf16.msra.mxu0 0
      %1536 = vmatprep.subr.bf16.mxu0 0
      %1537 = vmatpush1.bf16.msra.mxu0 0
      %1538 = vmatprep.subr.bf16.mxu0 0
      %1539 = vmatpush1.bf16.msra.mxu0 0
      %1540 = vmatprep.subr.bf16.mxu0 0
      %1541 = vmatpush1.bf16.msra.mxu0 0
      %1542 = vmatprep.subr.bf16.mxu0 0
      %1543 = vmatpush1.bf16.msra.mxu0 0
      %1544 = vmatprep.mubr.bf16.mxu0 0
      %1545 = vmatmul.mubr.bf16.gmra.mrb[0].mxu0 %v1466
      %v1546 = vpop.f32.mrb[0].mxu0
      %v1547 = vadd.f32 0.0, %v1546
      %v1548 = vpop.f32.mrb[0].mxu0
      %v1549 = vadd.f32 0.0, %v1548
      %v1550 = vpop.f32.mrb[0].mxu0
      %v1551 = vpop.f32.mrb[0].mxu0
      %1552 = vdwg.mxu0
      %1553 = vmatprep.subr.bf16.mxu0 %v1063
      %1554 = vmatpush1.bf16.msra.mxu0 %v1060
      %1555 = vmatprep.subr.bf16.mxu0 0
      %1556 = vmatpush1.bf16.msra.mxu0 0
      %1557 = vmatprep.subr.bf16.mxu0 0
      %1558 = vmatpush1.bf16.msra.mxu0 0
      %1559 = vmatprep.subr.bf16.mxu0 0
      %1560 = vmatpush1.bf16.msra.mxu0 0
      %1561 = vmatprep.subr.bf16.mxu0 0
      %1562 = vmatpush1.bf16.msra.mxu0 0
      %1563 = vmatprep.subr.bf16.mxu0 0
      %1564 = vmatpush1.bf16.msra.mxu0 0
      %1565 = vmatprep.subr.bf16.mxu0 0
      %1566 = vmatpush1.bf16.msra.mxu0 0
      %1567 = vmatprep.subr.bf16.mxu0 0
      %1568 = vmatpush1.bf16.msra.mxu0 0
      %1569 = vmatprep.subr.bf16.mxu0 0
      %1570 = vmatpush1.bf16.msra.mxu0 0
      %1571 = vmatprep.subr.bf16.mxu0 0
      %1572 = vmatpush1.bf16.msra.mxu0 0
      %1573 = vmatprep.subr.bf16.mxu0 0
      %1574 = vmatpush1.bf16.msra.mxu0 0
      %1575 = vmatprep.subr.bf16.mxu0 0
      %1576 = vmatpush1.bf16.msra.mxu0 0
      %1577 = vmatprep.subr.bf16.mxu0 0
      %1578 = vmatpush1.bf16.msra.mxu0 0
      %1579 = vmatprep.subr.bf16.mxu0 0
      %1580 = vmatpush1.bf16.msra.mxu0 0
      %1581 = vmatprep.subr.bf16.mxu0 0
      %1582 = vmatpush1.bf16.msra.mxu0 0
      %1583 = vmatprep.subr.bf16.mxu0 0
      %1584 = vmatpush1.bf16.msra.mxu0 0
      %1585 = vmatprep.mubr.bf16.mxu0 0
      %1586 = vmatmul.mubr.bf16.gmra.mrb[0].mxu0 %v1466
      %v1587 = vpop.f32.mrb[0].mxu0
      %v1588 = vadd.f32 0.0, %v1587
      %v1589 = vpop.f32.mrb[0].mxu0
      %v1590 = vadd.f32 0.0, %v1589
      %v1591 = vpop.f32.mrb[0].mxu0
      %v1592 = vpop.f32.mrb[0].mxu0
      %1593 = vdwg.mxu0
      %1594 = vmatprep.subr.bf16.mxu0 %v1469
      %1595 = vmatpush1.bf16.msra.mxu0 %v1066
      %1596 = vmatprep.subr.bf16.mxu0 0
      %1597 = vmatpush1.bf16.msra.mxu0 0
      %1598 = vmatprep.subr.bf16.mxu0 0
      %1599 = vmatpush1.bf16.msra.mxu0 0
      %1600 = vmatprep.subr.bf16.mxu0 0
      %1601 = vmatpush1.bf16.msra.mxu0 0
      %1602 = vmatprep.subr.bf16.mxu0 0
      %1603 = vmatpush1.bf16.msra.mxu0 0
      %1604 = vmatprep.subr.bf16.mxu0 0
      %1605 = vmatpush1.bf16.msra.mxu0 0
      %1606 = vmatprep.subr.bf16.mxu0 0
      %1607 = vmatpush1.bf16.msra.mxu0 0
      %1608 = vmatprep.subr.bf16.mxu0 0
      %1609 = vmatpush1.bf16.msra.mxu0 0
      %1610 = vmatprep.subr.bf16.mxu0 0
      %1611 = vmatpush1.bf16.msra.mxu0 0
      %1612 = vmatprep.subr.bf16.mxu0 0
      %1613 = vmatpush1.bf16.msra.mxu0 0
      %1614 = vmatprep.subr.bf16.mxu0 0
      %1615 = vmatpush1.bf16.msra.mxu0 0
      %1616 = vmatprep.subr.bf16.mxu0 0
      %1617 = vmatpush1.bf16.msra.mxu0 0
      %1618 = vmatprep.subr.bf16.mxu0 0
      %1619 = vmatpush1.bf16.msra.mxu0 0
      %1620 = vmatprep.subr.bf16.mxu0 0
      %1621 = vmatpush1.bf16.msra.mxu0 0
      %1622 = vmatprep.subr.bf16.mxu0 0
      %1623 = vmatpush1.bf16.msra.mxu0 0
      %1624 = vmatprep.subr.bf16.mxu0 0
      %1625 = vmatpush1.bf16.msra.mxu0 0
      %1626 = vmatprep.mubr.bf16.mxu0 0
      %1627 = vmatmul.mubr.bf16.gmra.mrb[0].mxu0 %v1466
      %v1628 = vpop.f32.mrb[0].mxu0
      %v1629 = vadd.f32 0.0, %v1628
      %v1630 = vpop.f32.mrb[0].mxu0
      %v1631 = vadd.f32 0.0, %v1630
      %v1632 = vpop.f32.mrb[0].mxu0
      %v1633 = vpop.f32.mrb[0].mxu0
      %1634 = vdwg.mxu0
      %v1635 = vadd.f32 %v1452, %v1506
      %v1636 = vadd.f32 %v1453, %v1508
      %v1637 = vadd.f32 %v1454, %v1547
      %v1638 = vadd.f32 %v1455, %v1549
      %v1639 = vadd.f32 %v1456, %v1588
      %v1640 = vadd.f32 %v1457, %v1590
      %v1641 = vadd.f32 %v1458, %v1629
      %v1642 = vadd.f32 %v1459, %v1631
      %s1643 = scalar_lea.vmem %s6, 8
      %v1644 = vld [vmem:[%s1643] sm:$0x3]
      %v1646 = vsel %vm819, %v1644, 0
      %v1649 = vsel %vm823, %v815, 0
      %1651 = vmatprep.subr.bf16.mxu0 %v831
      %1652 = vmatpush1.bf16.msra.mxu0 %v828
      %1653 = vmatprep.subr.bf16.mxu0 0
      %1654 = vmatpush1.bf16.msra.mxu0 0
      %1655 = vmatprep.subr.bf16.mxu0 0
      %1656 = vmatpush1.bf16.msra.mxu0 0
      %1657 = vmatprep.subr.bf16.mxu0 0
      %1658 = vmatpush1.bf16.msra.mxu0 0
      %1659 = vmatprep.subr.bf16.mxu0 0
      %1660 = vmatpush1.bf16.msra.mxu0 0
      %1661 = vmatprep.subr.bf16.mxu0 0
      %1662 = vmatpush1.bf16.msra.mxu0 0
      %1663 = vmatprep.subr.bf16.mxu0 0
      %1664 = vmatpush1.bf16.msra.mxu0 0
      %1665 = vmatprep.subr.bf16.mxu0 0
      %1666 = vmatpush1.bf16.msra.mxu0 0
      %1667 = vmatprep.subr.bf16.mxu0 0
      %1668 = vmatpush1.bf16.msra.mxu0 0
      %1669 = vmatprep.subr.bf16.mxu0 0
      %1670 = vmatpush1.bf16.msra.mxu0 0
      %1671 = vmatprep.subr.bf16.mxu0 0
      %1672 = vmatpush1.bf16.msra.mxu0 0
      %1673 = vmatprep.subr.bf16.mxu0 0
      %1674 = vmatpush1.bf16.msra.mxu0 0
      %1675 = vmatprep.subr.bf16.mxu0 0
      %1676 = vmatpush1.bf16.msra.mxu0 0
      %1677 = vmatprep.subr.bf16.mxu0 0
      %1678 = vmatpush1.bf16.msra.mxu0 0
      %1679 = vmatprep.subr.bf16.mxu0 0
      %1680 = vmatpush1.bf16.msra.mxu0 0
      %1681 = vmatprep.subr.bf16.mxu0 0
      %1682 = vmatpush1.bf16.msra.mxu0 0
      %1683 = vmatprep.mubr.bf16.mxu0 0
      %1684 = vmatmul.mubr.bf16.gmra.mrb[0].mxu0 %v1646
      %v1685 = vpop.f32.mrb[0].mxu0
      %v1686 = vadd.f32 0.0, %v1685
      %v1687 = vpop.f32.mrb[0].mxu0
      %v1688 = vadd.f32 0.0, %v1687
      %v1689 = vpop.f32.mrb[0].mxu0
      %v1690 = vpop.f32.mrb[0].mxu0
      %1691 = vdwg.mxu0
      %1692 = vmatprep.subr.bf16.mxu0 %v837
      %1693 = vmatpush1.bf16.msra.mxu0 %v834
      %1694 = vmatprep.subr.bf16.mxu0 0
      %1695 = vmatpush1.bf16.msra.mxu0 0
      %1696 = vmatprep.subr.bf16.mxu0 0
      %1697 = vmatpush1.bf16.msra.mxu0 0
      %1698 = vmatprep.subr.bf16.mxu0 0
      %1699 = vmatpush1.bf16.msra.mxu0 0
      %1700 = vmatprep.subr.bf16.mxu0 0
      %1701 = vmatpush1.bf16.msra.mxu0 0
      %1702 = vmatprep.subr.bf16.mxu0 0
      %1703 = vmatpush1.bf16.msra.mxu0 0
      %1704 = vmatprep.subr.bf16.mxu0 0
      %1705 = vmatpush1.bf16.msra.mxu0 0
      %1706 = vmatprep.subr.bf16.mxu0 0
      %1707 = vmatpush1.bf16.msra.mxu0 0
      %1708 = vmatprep.subr.bf16.mxu0 0
      %1709 = vmatpush1.bf16.msra.mxu0 0
      %1710 = vmatprep.subr.bf16.mxu0 0
      %1711 = vmatpush1.bf16.msra.mxu0 0
      %1712 = vmatprep.subr.bf16.mxu0 0
      %1713 = vmatpush1.bf16.msra.mxu0 0
      %1714 = vmatprep.subr.bf16.mxu0 0
      %1715 = vmatpush1.bf16.msra.mxu0 0
      %1716 = vmatprep.subr.bf16.mxu0 0
      %1717 = vmatpush1.bf16.msra.mxu0 0
      %1718 = vmatprep.subr.bf16.mxu0 0
      %1719 = vmatpush1.bf16.msra.mxu0 0
      %1720 = vmatprep.subr.bf16.mxu0 0
      %1721 = vmatpush1.bf16.msra.mxu0 0
      %1722 = vmatprep.subr.bf16.mxu0 0
      %1723 = vmatpush1.bf16.msra.mxu0 0
      %1724 = vmatprep.mubr.bf16.mxu0 0
      %1725 = vmatmul.mubr.bf16.gmra.mrb[0].mxu0 %v1646
      %v1726 = vpop.f32.mrb[0].mxu0
      %v1727 = vadd.f32 0.0, %v1726
      %v1728 = vpop.f32.mrb[0].mxu0
      %v1729 = vadd.f32 0.0, %v1728
      %v1730 = vpop.f32.mrb[0].mxu0
      %v1731 = vpop.f32.mrb[0].mxu0
      %1732 = vdwg.mxu0
      %1733 = vmatprep.subr.bf16.mxu0 %v843
      %1734 = vmatpush1.bf16.msra.mxu0 %v840
      %1735 = vmatprep.subr.bf16.mxu0 0
      %1736 = vmatpush1.bf16.msra.mxu0 0
      %1737 = vmatprep.subr.bf16.mxu0 0
      %1738 = vmatpush1.bf16.msra.mxu0 0
      %1739 = vmatprep.subr.bf16.mxu0 0
      %1740 = vmatpush1.bf16.msra.mxu0 0
      %1741 = vmatprep.subr.bf16.mxu0 0
      %1742 = vmatpush1.bf16.msra.mxu0 0
      %1743 = vmatprep.subr.bf16.mxu0 0
      %1744 = vmatpush1.bf16.msra.mxu0 0
      %1745 = vmatprep.subr.bf16.mxu0 0
      %1746 = vmatpush1.bf16.msra.mxu0 0
      %1747 = vmatprep.subr.bf16.mxu0 0
      %1748 = vmatpush1.bf16.msra.mxu0 0
      %1749 = vmatprep.subr.bf16.mxu0 0
      %1750 = vmatpush1.bf16.msra.mxu0 0
      %1751 = vmatprep.subr.bf16.mxu0 0
      %1752 = vmatpush1.bf16.msra.mxu0 0
      %1753 = vmatprep.subr.bf16.mxu0 0
      %1754 = vmatpush1.bf16.msra.mxu0 0
      %1755 = vmatprep.subr.bf16.mxu0 0
      %1756 = vmatpush1.bf16.msra.mxu0 0
      %1757 = vmatprep.subr.bf16.mxu0 0
      %1758 = vmatpush1.bf16.msra.mxu0 0
      %1759 = vmatprep.subr.bf16.mxu0 0
      %1760 = vmatpush1.bf16.msra.mxu0 0
      %1761 = vmatprep.subr.bf16.mxu0 0
      %1762 = vmatpush1.bf16.msra.mxu0 0
      %1763 = vmatprep.subr.bf16.mxu0 0
      %1764 = vmatpush1.bf16.msra.mxu0 0
      %1765 = vmatprep.mubr.bf16.mxu0 0
      %1766 = vmatmul.mubr.bf16.gmra.mrb[0].mxu0 %v1646
      %v1767 = vpop.f32.mrb[0].mxu0
      %v1768 = vadd.f32 0.0, %v1767
      %v1769 = vpop.f32.mrb[0].mxu0
      %v1770 = vadd.f32 0.0, %v1769
      %v1771 = vpop.f32.mrb[0].mxu0
      %v1772 = vpop.f32.mrb[0].mxu0
      %1773 = vdwg.mxu0
      %1774 = vmatprep.subr.bf16.mxu0 %v1649
      %1775 = vmatpush1.bf16.msra.mxu0 %v846
      %1776 = vmatprep.subr.bf16.mxu0 0
      %1777 = vmatpush1.bf16.msra.mxu0 0
      %1778 = vmatprep.subr.bf16.mxu0 0
      %1779 = vmatpush1.bf16.msra.mxu0 0
      %1780 = vmatprep.subr.bf16.mxu0 0
      %1781 = vmatpush1.bf16.msra.mxu0 0
      %1782 = vmatprep.subr.bf16.mxu0 0
      %1783 = vmatpush1.bf16.msra.mxu0 0
      %1784 = vmatprep.subr.bf16.mxu0 0
      %1785 = vmatpush1.bf16.msra.mxu0 0
      %1786 = vmatprep.subr.bf16.mxu0 0
      %1787 = vmatpush1.bf16.msra.mxu0 0
      %1788 = vmatprep.subr.bf16.mxu0 0
      %1789 = vmatpush1.bf16.msra.mxu0 0
      %1790 = vmatprep.subr.bf16.mxu0 0
      %1791 = vmatpush1.bf16.msra.mxu0 0
      %1792 = vmatprep.subr.bf16.mxu0 0
      %1793 = vmatpush1.bf16.msra.mxu0 0
      %1794 = vmatprep.subr.bf16.mxu0 0
      %1795 = vmatpush1.bf16.msra.mxu0 0
      %1796 = vmatprep.subr.bf16.mxu0 0
      %1797 = vmatpush1.bf16.msra.mxu0 0
      %1798 = vmatprep.subr.bf16.mxu0 0
      %1799 = vmatpush1.bf16.msra.mxu0 0
      %1800 = vmatprep.subr.bf16.mxu0 0
      %1801 = vmatpush1.bf16.msra.mxu0 0
      %1802 = vmatprep.subr.bf16.mxu0 0
      %1803 = vmatpush1.bf16.msra.mxu0 0
      %1804 = vmatprep.subr.bf16.mxu0 0
      %1805 = vmatpush1.bf16.msra.mxu0 0
      %1806 = vmatprep.mubr.bf16.mxu0 0
      %1807 = vmatmul.mubr.bf16.gmra.mrb[0].mxu0 %v1646
      %v1808 = vpop.f32.mrb[0].mxu0
      %v1809 = vadd.f32 0.0, %v1808
      %v1810 = vpop.f32.mrb[0].mxu0
      %v1811 = vadd.f32 0.0, %v1810
      %v1812 = vpop.f32.mrb[0].mxu0
      %v1813 = vpop.f32.mrb[0].mxu0
      %1814 = vdwg.mxu0
      %v1815 = vadd.f32 %v1635, %v1686
      %v1816 = vadd.f32 %v1636, %v1688
      %v1817 = vadd.f32 %v1637, %v1727
      %v1818 = vadd.f32 %v1638, %v1729
      %v1819 = vadd.f32 %v1639, %v1768
      %v1820 = vadd.f32 %v1640, %v1770
      %v1821 = vadd.f32 %v1641, %v1809
      %v1822 = vadd.f32 %v1642, %v1811
      %s1823 = scalar_lea.vmem %s6, 10
      %v1824 = vld [vmem:[%s1823] sm:$0x3]
      %1826 = vrot.lane.b32.xlu0 %v777, 127
      %v1827 = vpop.permute.xlu0 %1826
      %v1828 = vsel %vm1252, %v1251, %v1827
      %v1830 = vsel %vm819, %v1824, 0
      %v1833 = vsel %vm823, %v1828, 0
      %1835 = vmatprep.subr.bf16.mxu0 %v1271
      %1836 = vmatpush1.bf16.msra.mxu0 %v1268
      %1837 = vmatprep.subr.bf16.mxu0 0
      %1838 = vmatpush1.bf16.msra.mxu0 0
      %1839 = vmatprep.subr.bf16.mxu0 0
      %1840 = vmatpush1.bf16.msra.mxu0 0
      %1841 = vmatprep.subr.bf16.mxu0 0
      %1842 = vmatpush1.bf16.msra.mxu0 0
      %1843 = vmatprep.subr.bf16.mxu0 0
      %1844 = vmatpush1.bf16.msra.mxu0 0
      %1845 = vmatprep.subr.bf16.mxu0 0
      %1846 = vmatpush1.bf16.msra.mxu0 0
      %1847 = vmatprep.subr.bf16.mxu0 0
      %1848 = vmatpush1.bf16.msra.mxu0 0
      %1849 = vmatprep.subr.bf16.mxu0 0
      %1850 = vmatpush1.bf16.msra.mxu0 0
      %1851 = vmatprep.subr.bf16.mxu0 0
      %1852 = vmatpush1.bf16.msra.mxu0 0
      %1853 = vmatprep.subr.bf16.mxu0 0
      %1854 = vmatpush1.bf16.msra.mxu0 0
      %1855 = vmatprep.subr.bf16.mxu0 0
      %1856 = vmatpush1.bf16.msra.mxu0 0
      %1857 = vmatprep.subr.bf16.mxu0 0
      %1858 = vmatpush1.bf16.msra.mxu0 0
      %1859 = vmatprep.subr.bf16.mxu0 0
      %1860 = vmatpush1.bf16.msra.mxu0 0
      %1861 = vmatprep.subr.bf16.mxu0 0
      %1862 = vmatpush1.bf16.msra.mxu0 0
      %1863 = vmatprep.subr.bf16.mxu0 0
      %1864 = vmatpush1.bf16.msra.mxu0 0
      %1865 = vmatprep.subr.bf16.mxu0 0
      %1866 = vmatpush1.bf16.msra.mxu0 0
      %1867 = vmatprep.mubr.bf16.mxu0 0
      %1868 = vmatmul.mubr.bf16.gmra.mrb[0].mxu0 %v1830
      %v1869 = vpop.f32.mrb[0].mxu0
      %v1870 = vadd.f32 0.0, %v1869
      %v1871 = vpop.f32.mrb[0].mxu0
      %v1872 = vadd.f32 0.0, %v1871
      %v1873 = vpop.f32.mrb[0].mxu0
      %v1874 = vpop.f32.mrb[0].mxu0
      %1875 = vdwg.mxu0
      %1876 = vmatprep.subr.bf16.mxu0 %v1277
      %1877 = vmatpush1.bf16.msra.mxu0 %v1274
      %1878 = vmatprep.subr.bf16.mxu0 0
      %1879 = vmatpush1.bf16.msra.mxu0 0
      %1880 = vmatprep.subr.bf16.mxu0 0
      %1881 = vmatpush1.bf16.msra.mxu0 0
      %1882 = vmatprep.subr.bf16.mxu0 0
      %1883 = vmatpush1.bf16.msra.mxu0 0
      %1884 = vmatprep.subr.bf16.mxu0 0
      %1885 = vmatpush1.bf16.msra.mxu0 0
      %1886 = vmatprep.subr.bf16.mxu0 0
      %1887 = vmatpush1.bf16.msra.mxu0 0
      %1888 = vmatprep.subr.bf16.mxu0 0
      %1889 = vmatpush1.bf16.msra.mxu0 0
      %1890 = vmatprep.subr.bf16.mxu0 0
      %1891 = vmatpush1.bf16.msra.mxu0 0
      %1892 = vmatprep.subr.bf16.mxu0 0
      %1893 = vmatpush1.bf16.msra.mxu0 0
      %1894 = vmatprep.subr.bf16.mxu0 0
      %1895 = vmatpush1.bf16.msra.mxu0 0
      %1896 = vmatprep.subr.bf16.mxu0 0
      %1897 = vmatpush1.bf16.msra.mxu0 0
      %1898 = vmatprep.subr.bf16.mxu0 0
      %1899 = vmatpush1.bf16.msra.mxu0 0
      %1900 = vmatprep.subr.bf16.mxu0 0
      %1901 = vmatpush1.bf16.msra.mxu0 0
      %1902 = vmatprep.subr.bf16.mxu0 0
      %1903 = vmatpush1.bf16.msra.mxu0 0
      %1904 = vmatprep.subr.bf16.mxu0 0
      %1905 = vmatpush1.bf16.msra.mxu0 0
      %1906 = vmatprep.subr.bf16.mxu0 0
      %1907 = vmatpush1.bf16.msra.mxu0 0
      %1908 = vmatprep.mubr.bf16.mxu0 0
      %1909 = vmatmul.mubr.bf16.gmra.mrb[0].mxu0 %v1830
      %v1910 = vpop.f32.mrb[0].mxu0
      %v1911 = vadd.f32 0.0, %v1910
      %v1912 = vpop.f32.mrb[0].mxu0
      %v1913 = vadd.f32 0.0, %v1912
      %v1914 = vpop.f32.mrb[0].mxu0
      %v1915 = vpop.f32.mrb[0].mxu0
      %1916 = vdwg.mxu0
      %1917 = vmatprep.subr.bf16.mxu0 %v1283
      %1918 = vmatpush1.bf16.msra.mxu0 %v1280
      %1919 = vmatprep.subr.bf16.mxu0 0
      %1920 = vmatpush1.bf16.msra.mxu0 0
      %1921 = vmatprep.subr.bf16.mxu0 0
      %1922 = vmatpush1.bf16.msra.mxu0 0
      %1923 = vmatprep.subr.bf16.mxu0 0
      %1924 = vmatpush1.bf16.msra.mxu0 0
      %1925 = vmatprep.subr.bf16.mxu0 0
      %1926 = vmatpush1.bf16.msra.mxu0 0
      %1927 = vmatprep.subr.bf16.mxu0 0
      %1928 = vmatpush1.bf16.msra.mxu0 0
      %1929 = vmatprep.subr.bf16.mxu0 0
      %1930 = vmatpush1.bf16.msra.mxu0 0
      %1931 = vmatprep.subr.bf16.mxu0 0
      %1932 = vmatpush1.bf16.msra.mxu0 0
      %1933 = vmatprep.subr.bf16.mxu0 0
      %1934 = vmatpush1.bf16.msra.mxu0 0
      %1935 = vmatprep.subr.bf16.mxu0 0
      %1936 = vmatpush1.bf16.msra.mxu0 0
      %1937 = vmatprep.subr.bf16.mxu0 0
      %1938 = vmatpush1.bf16.msra.mxu0 0
      %1939 = vmatprep.subr.bf16.mxu0 0
      %1940 = vmatpush1.bf16.msra.mxu0 0
      %1941 = vmatprep.subr.bf16.mxu0 0
      %1942 = vmatpush1.bf16.msra.mxu0 0
      %1943 = vmatprep.subr.bf16.mxu0 0
      %1944 = vmatpush1.bf16.msra.mxu0 0
      %1945 = vmatprep.subr.bf16.mxu0 0
      %1946 = vmatpush1.bf16.msra.mxu0 0
      %1947 = vmatprep.subr.bf16.mxu0 0
      %1948 = vmatpush1.bf16.msra.mxu0 0
      %1949 = vmatprep.mubr.bf16.mxu0 0
      %1950 = vmatmul.mubr.bf16.gmra.mrb[0].mxu0 %v1830
      %v1951 = vpop.f32.mrb[0].mxu0
      %v1952 = vadd.f32 0.0, %v1951
      %v1953 = vpop.f32.mrb[0].mxu0
      %v1954 = vadd.f32 0.0, %v1953
      %v1955 = vpop.f32.mrb[0].mxu0
      %v1956 = vpop.f32.mrb[0].mxu0
      %1957 = vdwg.mxu0
      %1958 = vmatprep.subr.bf16.mxu0 %v1833
      %1959 = vmatpush1.bf16.msra.mxu0 %v1286
      %1960 = vmatprep.subr.bf16.mxu0 0
      %1961 = vmatpush1.bf16.msra.mxu0 0
      %1962 = vmatprep.subr.bf16.mxu0 0
      %1963 = vmatpush1.bf16.msra.mxu0 0
      %1964 = vmatprep.subr.bf16.mxu0 0
      %1965 = vmatpush1.bf16.msra.mxu0 0
      %1966 = vmatprep.subr.bf16.mxu0 0
      %1967 = vmatpush1.bf16.msra.mxu0 0
      %1968 = vmatprep.subr.bf16.mxu0 0
      %1969 = vmatpush1.bf16.msra.mxu0 0
      %1970 = vmatprep.subr.bf16.mxu0 0
      %1971 = vmatpush1.bf16.msra.mxu0 0
      %1972 = vmatprep.subr.bf16.mxu0 0
      %1973 = vmatpush1.bf16.msra.mxu0 0
      %1974 = vmatprep.subr.bf16.mxu0 0
      %1975 = vmatpush1.bf16.msra.mxu0 0
      %1976 = vmatprep.subr.bf16.mxu0 0
      %1977 = vmatpush1.bf16.msra.mxu0 0
      %1978 = vmatprep.subr.bf16.mxu0 0
      %1979 = vmatpush1.bf16.msra.mxu0 0
      %1980 = vmatprep.subr.bf16.mxu0 0
      %1981 = vmatpush1.bf16.msra.mxu0 0
      %1982 = vmatprep.subr.bf16.mxu0 0
      %1983 = vmatpush1.bf16.msra.mxu0 0
      %1984 = vmatprep.subr.bf16.mxu0 0
      %1985 = vmatpush1.bf16.msra.mxu0 0
      %1986 = vmatprep.subr.bf16.mxu0 0
      %1987 = vmatpush1.bf16.msra.mxu0 0
      %1988 = vmatprep.subr.bf16.mxu0 0
      %1989 = vmatpush1.bf16.msra.mxu0 0
      %1990 = vmatprep.mubr.bf16.mxu0 0
      %1991 = vmatmul.mubr.bf16.gmra.mrb[0].mxu0 %v1830
      %v1992 = vpop.f32.mrb[0].mxu0
      %v1993 = vadd.f32 0.0, %v1992
      %v1994 = vpop.f32.mrb[0].mxu0
      %v1995 = vadd.f32 0.0, %v1994
      %v1996 = vpop.f32.mrb[0].mxu0
      %v1997 = vpop.f32.mrb[0].mxu0
      %1998 = vdwg.mxu0
      %v1999 = vadd.f32 %v1815, %v1870
      %v2000 = vadd.f32 %v1816, %v1872
      %v2001 = vadd.f32 %v1817, %v1911
      %v2002 = vadd.f32 %v1818, %v1913
      %v2003 = vadd.f32 %v1819, %v1952
      %v2004 = vadd.f32 %v1820, %v1954
      %v2005 = vadd.f32 %v1821, %v1993
      %v2006 = vadd.f32 %v1822, %v1995
      %s2007 = scalar_lea.vmem %s6, 12
      %v2008 = vld [vmem:[%s2007] sm:$0x3]
      %2009 = vrot.lane.b32.xlu0 %v777, 1
      %v2010 = vpop.permute.xlu0 %2009
      %v2011 = vsel %vm1032, %v1463, %v2010
      %v2013 = vsel %vm819, %v2008, 0
      %v2016 = vsel %vm823, %v2011, 0
      %2018 = vmatprep.subr.bf16.mxu0 %v1054
      %2019 = vmatpush1.bf16.msra.mxu0 %v1051
      %2020 = vmatprep.subr.bf16.mxu0 0
      %2021 = vmatpush1.bf16.msra.mxu0 0
      %2022 = vmatprep.subr.bf16.mxu0 0
      %2023 = vmatpush1.bf16.msra.mxu0 0
      %2024 = vmatprep.subr.bf16.mxu0 0
      %2025 = vmatpush1.bf16.msra.mxu0 0
      %2026 = vmatprep.subr.bf16.mxu0 0
      %2027 = vmatpush1.bf16.msra.mxu0 0
      %2028 = vmatprep.subr.bf16.mxu0 0
      %2029 = vmatpush1.bf16.msra.mxu0 0
      %2030 = vmatprep.subr.bf16.mxu0 0
      %2031 = vmatpush1.bf16.msra.mxu0 0
      %2032 = vmatprep.subr.bf16.mxu0 0
      %2033 = vmatpush1.bf16.msra.mxu0 0
      %2034 = vmatprep.subr.bf16.mxu0 0
      %2035 = vmatpush1.bf16.msra.mxu0 0
      %2036 = vmatprep.subr.bf16.mxu0 0
      %2037 = vmatpush1.bf16.msra.mxu0 0
      %2038 = vmatprep.subr.bf16.mxu0 0
      %2039 = vmatpush1.bf16.msra.mxu0 0
      %2040 = vmatprep.subr.bf16.mxu0 0
      %2041 = vmatpush1.bf16.msra.mxu0 0
      %2042 = vmatprep.subr.bf16.mxu0 0
      %2043 = vmatpush1.bf16.msra.mxu0 0
      %2044 = vmatprep.subr.bf16.mxu0 0
      %2045 = vmatpush1.bf16.msra.mxu0 0
      %2046 = vmatprep.subr.bf16.mxu0 0
      %2047 = vmatpush1.bf16.msra.mxu0 0
      %2048 = vmatprep.subr.bf16.mxu0 0
      %2049 = vmatpush1.bf16.msra.mxu0 0
      %2050 = vmatprep.mubr.bf16.mxu0 0
      %2051 = vmatmul.mubr.bf16.gmra.mrb[0].mxu0 %v2013
      %v2052 = vpop.f32.mrb[0].mxu0
      %v2053 = vadd.f32 0.0, %v2052
      %v2054 = vpop.f32.mrb[0].mxu0
      %v2055 = vadd.f32 0.0, %v2054
      %v2056 = vpop.f32.mrb[0].mxu0
      %v2057 = vpop.f32.mrb[0].mxu0
      %2058 = vdwg.mxu0
      %2059 = vmatprep.subr.bf16.mxu0 %v1060
      %2060 = vmatpush1.bf16.msra.mxu0 %v1057
      %2061 = vmatprep.subr.bf16.mxu0 0
      %2062 = vmatpush1.bf16.msra.mxu0 0
      %2063 = vmatprep.subr.bf16.mxu0 0
      %2064 = vmatpush1.bf16.msra.mxu0 0
      %2065 = vmatprep.subr.bf16.mxu0 0
      %2066 = vmatpush1.bf16.msra.mxu0 0
      %2067 = vmatprep.subr.bf16.mxu0 0
      %2068 = vmatpush1.bf16.msra.mxu0 0
      %2069 = vmatprep.subr.bf16.mxu0 0
      %2070 = vmatpush1.bf16.msra.mxu0 0
      %2071 = vmatprep.subr.bf16.mxu0 0
      %2072 = vmatpush1.bf16.msra.mxu0 0
      %2073 = vmatprep.subr.bf16.mxu0 0
      %2074 = vmatpush1.bf16.msra.mxu0 0
      %2075 = vmatprep.subr.bf16.mxu0 0
      %2076 = vmatpush1.bf16.msra.mxu0 0
      %2077 = vmatprep.subr.bf16.mxu0 0
      %2078 = vmatpush1.bf16.msra.mxu0 0
      %2079 = vmatprep.subr.bf16.mxu0 0
      %2080 = vmatpush1.bf16.msra.mxu0 0
      %2081 = vmatprep.subr.bf16.mxu0 0
      %2082 = vmatpush1.bf16.msra.mxu0 0
      %2083 = vmatprep.subr.bf16.mxu0 0
      %2084 = vmatpush1.bf16.msra.mxu0 0
      %2085 = vmatprep.subr.bf16.mxu0 0
      %2086 = vmatpush1.bf16.msra.mxu0 0
      %2087 = vmatprep.subr.bf16.mxu0 0
      %2088 = vmatpush1.bf16.msra.mxu0 0
      %2089 = vmatprep.subr.bf16.mxu0 0
      %2090 = vmatpush1.bf16.msra.mxu0 0
      %2091 = vmatprep.mubr.bf16.mxu0 0
      %2092 = vmatmul.mubr.bf16.gmra.mrb[0].mxu0 %v2013
      %v2093 = vpop.f32.mrb[0].mxu0
      %v2094 = vadd.f32 0.0, %v2093
      %v2095 = vpop.f32.mrb[0].mxu0
      %v2096 = vadd.f32 0.0, %v2095
      %v2097 = vpop.f32.mrb[0].mxu0
      %v2098 = vpop.f32.mrb[0].mxu0
      %2099 = vdwg.mxu0
      %2100 = vmatprep.subr.bf16.mxu0 %v1066
      %2101 = vmatpush1.bf16.msra.mxu0 %v1063
      %2102 = vmatprep.subr.bf16.mxu0 0
      %2103 = vmatpush1.bf16.msra.mxu0 0
      %2104 = vmatprep.subr.bf16.mxu0 0
      %2105 = vmatpush1.bf16.msra.mxu0 0
      %2106 = vmatprep.subr.bf16.mxu0 0
      %2107 = vmatpush1.bf16.msra.mxu0 0
      %2108 = vmatprep.subr.bf16.mxu0 0
      %2109 = vmatpush1.bf16.msra.mxu0 0
      %2110 = vmatprep.subr.bf16.mxu0 0
      %2111 = vmatpush1.bf16.msra.mxu0 0
      %2112 = vmatprep.subr.bf16.mxu0 0
      %2113 = vmatpush1.bf16.msra.mxu0 0
      %2114 = vmatprep.subr.bf16.mxu0 0
      %2115 = vmatpush1.bf16.msra.mxu0 0
      %2116 = vmatprep.subr.bf16.mxu0 0
      %2117 = vmatpush1.bf16.msra.mxu0 0
      %2118 = vmatprep.subr.bf16.mxu0 0
      %2119 = vmatpush1.bf16.msra.mxu0 0
      %2120 = vmatprep.subr.bf16.mxu0 0
      %2121 = vmatpush1.bf16.msra.mxu0 0
      %2122 = vmatprep.subr.bf16.mxu0 0
      %2123 = vmatpush1.bf16.msra.mxu0 0
      %2124 = vmatprep.subr.bf16.mxu0 0
      %2125 = vmatpush1.bf16.msra.mxu0 0
      %2126 = vmatprep.subr.bf16.mxu0 0
      %2127 = vmatpush1.bf16.msra.mxu0 0
      %2128 = vmatprep.subr.bf16.mxu0 0
      %2129 = vmatpush1.bf16.msra.mxu0 0
      %2130 = vmatprep.subr.bf16.mxu0 0
      %2131 = vmatpush1.bf16.msra.mxu0 0
      %2132 = vmatprep.mubr.bf16.mxu0 0
      %2133 = vmatmul.mubr.bf16.gmra.mrb[0].mxu0 %v2013
      %v2134 = vpop.f32.mrb[0].mxu0
      %v2135 = vadd.f32 0.0, %v2134
      %v2136 = vpop.f32.mrb[0].mxu0
      %v2137 = vadd.f32 0.0, %v2136
      %v2138 = vpop.f32.mrb[0].mxu0
      %v2139 = vpop.f32.mrb[0].mxu0
      %2140 = vdwg.mxu0
      %2141 = vmatprep.subr.bf16.mxu0 %v2016
      %2142 = vmatpush1.bf16.msra.mxu0 %v1469
      %2143 = vmatprep.subr.bf16.mxu0 0
      %2144 = vmatpush1.bf16.msra.mxu0 0
      %2145 = vmatprep.subr.bf16.mxu0 0
      %2146 = vmatpush1.bf16.msra.mxu0 0
      %2147 = vmatprep.subr.bf16.mxu0 0
      %2148 = vmatpush1.bf16.msra.mxu0 0
      %2149 = vmatprep.subr.bf16.mxu0 0
      %2150 = vmatpush1.bf16.msra.mxu0 0
      %2151 = vmatprep.subr.bf16.mxu0 0
      %2152 = vmatpush1.bf16.msra.mxu0 0
      %2153 = vmatprep.subr.bf16.mxu0 0
      %2154 = vmatpush1.bf16.msra.mxu0 0
      %2155 = vmatprep.subr.bf16.mxu0 0
      %2156 = vmatpush1.bf16.msra.mxu0 0
      %2157 = vmatprep.subr.bf16.mxu0 0
      %2158 = vmatpush1.bf16.msra.mxu0 0
      %2159 = vmatprep.subr.bf16.mxu0 0
      %2160 = vmatpush1.bf16.msra.mxu0 0
      %2161 = vmatprep.subr.bf16.mxu0 0
      %2162 = vmatpush1.bf16.msra.mxu0 0
      %2163 = vmatprep.subr.bf16.mxu0 0
      %2164 = vmatpush1.bf16.msra.mxu0 0
      %2165 = vmatprep.subr.bf16.mxu0 0
      %2166 = vmatpush1.bf16.msra.mxu0 0
      %2167 = vmatprep.subr.bf16.mxu0 0
      %2168 = vmatpush1.bf16.msra.mxu0 0
      %2169 = vmatprep.subr.bf16.mxu0 0
      %2170 = vmatpush1.bf16.msra.mxu0 0
      %2171 = vmatprep.subr.bf16.mxu0 0
      %2172 = vmatpush1.bf16.msra.mxu0 0
      %2173 = vmatprep.mubr.bf16.mxu0 0
      %2174 = vmatmul.mubr.bf16.gmra.mrb[0].mxu0 %v2013
      %v2175 = vpop.f32.mrb[0].mxu0
      %v2176 = vadd.f32 0.0, %v2175
      %v2177 = vpop.f32.mrb[0].mxu0
      %v2178 = vadd.f32 0.0, %v2177
      %v2179 = vpop.f32.mrb[0].mxu0
      %v2180 = vpop.f32.mrb[0].mxu0
      %2181 = vdwg.mxu0
      %v2182 = vadd.f32 %v1999, %v2053
      %v2183 = vadd.f32 %v2000, %v2055
      %v2184 = vadd.f32 %v2001, %v2094
      %v2185 = vadd.f32 %v2002, %v2096
      %v2186 = vadd.f32 %v2003, %v2135
      %v2187 = vadd.f32 %v2004, %v2137
      %v2188 = vadd.f32 %v2005, %v2176
      %v2189 = vadd.f32 %v2006, %v2178
      %s2190 = scalar_lea.vmem %s6, 14
      %v2191 = vld [vmem:[%s2190] sm:$0x3]
      %v2193 = vsel %vm819, %v2191, 0
      %v2196 = vsel %vm823, %v777, 0
      %2198 = vmatprep.subr.bf16.mxu0 %v834
      %2199 = vmatpush1.bf16.msra.mxu0 %v831
      %2200 = vmatprep.subr.bf16.mxu0 0
      %2201 = vmatpush1.bf16.msra.mxu0 0
      %2202 = vmatprep.subr.bf16.mxu0 0
      %2203 = vmatpush1.bf16.msra.mxu0 0
      %2204 = vmatprep.subr.bf16.mxu0 0
      %2205 = vmatpush1.bf16.msra.mxu0 0
      %2206 = vmatprep.subr.bf16.mxu0 0
      %2207 = vmatpush1.bf16.msra.mxu0 0
      %2208 = vmatprep.subr.bf16.mxu0 0
      %2209 = vmatpush1.bf16.msra.mxu0 0
      %2210 = vmatprep.subr.bf16.mxu0 0
      %2211 = vmatpush1.bf16.msra.mxu0 0
      %2212 = vmatprep.subr.bf16.mxu0 0
      %2213 = vmatpush1.bf16.msra.mxu0 0
      %2214 = vmatprep.subr.bf16.mxu0 0
      %2215 = vmatpush1.bf16.msra.mxu0 0
      %2216 = vmatprep.subr.bf16.mxu0 0
      %2217 = vmatpush1.bf16.msra.mxu0 0
      %2218 = vmatprep.subr.bf16.mxu0 0
      %2219 = vmatpush1.bf16.msra.mxu0 0
      %2220 = vmatprep.subr.bf16.mxu0 0
      %2221 = vmatpush1.bf16.msra.mxu0 0
      %2222 = vmatprep.subr.bf16.mxu0 0
      %2223 = vmatpush1.bf16.msra.mxu0 0
      %2224 = vmatprep.subr.bf16.mxu0 0
      %2225 = vmatpush1.bf16.msra.mxu0 0
      %2226 = vmatprep.subr.bf16.mxu0 0
      %2227 = vmatpush1.bf16.msra.mxu0 0
      %2228 = vmatprep.subr.bf16.mxu0 0
      %2229 = vmatpush1.bf16.msra.mxu0 0
      %2230 = vmatprep.mubr.bf16.mxu0 0
      %2231 = vmatmul.mubr.bf16.gmra.mrb[0].mxu0 %v2193
      %v2232 = vpop.f32.mrb[0].mxu0
      %v2233 = vadd.f32 0.0, %v2232
      %v2234 = vpop.f32.mrb[0].mxu0
      %v2235 = vadd.f32 0.0, %v2234
      %v2236 = vpop.f32.mrb[0].mxu0
      %v2237 = vpop.f32.mrb[0].mxu0
      %2238 = vdwg.mxu0
      %2239 = vmatprep.subr.bf16.mxu0 %v840
      %2240 = vmatpush1.bf16.msra.mxu0 %v837
      %2241 = vmatprep.subr.bf16.mxu0 0
      %2242 = vmatpush1.bf16.msra.mxu0 0
      %2243 = vmatprep.subr.bf16.mxu0 0
      %2244 = vmatpush1.bf16.msra.mxu0 0
      %2245 = vmatprep.subr.bf16.mxu0 0
      %2246 = vmatpush1.bf16.msra.mxu0 0
      %2247 = vmatprep.subr.bf16.mxu0 0
      %2248 = vmatpush1.bf16.msra.mxu0 0
      %2249 = vmatprep.subr.bf16.mxu0 0
      %2250 = vmatpush1.bf16.msra.mxu0 0
      %2251 = vmatprep.subr.bf16.mxu0 0
      %2252 = vmatpush1.bf16.msra.mxu0 0
      %2253 = vmatprep.subr.bf16.mxu0 0
      %2254 = vmatpush1.bf16.msra.mxu0 0
      %2255 = vmatprep.subr.bf16.mxu0 0
      %2256 = vmatpush1.bf16.msra.mxu0 0
      %2257 = vmatprep.subr.bf16.mxu0 0
      %2258 = vmatpush1.bf16.msra.mxu0 0
      %2259 = vmatprep.subr.bf16.mxu0 0
      %2260 = vmatpush1.bf16.msra.mxu0 0
      %2261 = vmatprep.subr.bf16.mxu0 0
      %2262 = vmatpush1.bf16.msra.mxu0 0
      %2263 = vmatprep.subr.bf16.mxu0 0
      %2264 = vmatpush1.bf16.msra.mxu0 0
      %2265 = vmatprep.subr.bf16.mxu0 0
      %2266 = vmatpush1.bf16.msra.mxu0 0
      %2267 = vmatprep.subr.bf16.mxu0 0
      %2268 = vmatpush1.bf16.msra.mxu0 0
      %2269 = vmatprep.subr.bf16.mxu0 0
      %2270 = vmatpush1.bf16.msra.mxu0 0
      %2271 = vmatprep.mubr.bf16.mxu0 0
      %2272 = vmatmul.mubr.bf16.gmra.mrb[0].mxu0 %v2193
      %v2273 = vpop.f32.mrb[0].mxu0
      %v2274 = vadd.f32 0.0, %v2273
      %v2275 = vpop.f32.mrb[0].mxu0
      %v2276 = vadd.f32 0.0, %v2275
      %v2277 = vpop.f32.mrb[0].mxu0
      %v2278 = vpop.f32.mrb[0].mxu0
      %2279 = vdwg.mxu0
      %2280 = vmatprep.subr.bf16.mxu0 %v846
      %2281 = vmatpush1.bf16.msra.mxu0 %v843
      %2282 = vmatprep.subr.bf16.mxu0 0
      %2283 = vmatpush1.bf16.msra.mxu0 0
      %2284 = vmatprep.subr.bf16.mxu0 0
      %2285 = vmatpush1.bf16.msra.mxu0 0
      %2286 = vmatprep.subr.bf16.mxu0 0
      %2287 = vmatpush1.bf16.msra.mxu0 0
      %2288 = vmatprep.subr.bf16.mxu0 0
      %2289 = vmatpush1.bf16.msra.mxu0 0
      %2290 = vmatprep.subr.bf16.mxu0 0
      %2291 = vmatpush1.bf16.msra.mxu0 0
      %2292 = vmatprep.subr.bf16.mxu0 0
      %2293 = vmatpush1.bf16.msra.mxu0 0
      %2294 = vmatprep.subr.bf16.mxu0 0
      %2295 = vmatpush1.bf16.msra.mxu0 0
      %2296 = vmatprep.subr.bf16.mxu0 0
      %2297 = vmatpush1.bf16.msra.mxu0 0
      %2298 = vmatprep.subr.bf16.mxu0 0
      %2299 = vmatpush1.bf16.msra.mxu0 0
      %2300 = vmatprep.subr.bf16.mxu0 0
      %2301 = vmatpush1.bf16.msra.mxu0 0
      %2302 = vmatprep.subr.bf16.mxu0 0
      %2303 = vmatpush1.bf16.msra.mxu0 0
      %2304 = vmatprep.subr.bf16.mxu0 0
      %2305 = vmatpush1.bf16.msra.mxu0 0
      %2306 = vmatprep.subr.bf16.mxu0 0
      %2307 = vmatpush1.bf16.msra.mxu0 0
      %2308 = vmatprep.subr.bf16.mxu0 0
      %2309 = vmatpush1.bf16.msra.mxu0 0
      %2310 = vmatprep.subr.bf16.mxu0 0
      %2311 = vmatpush1.bf16.msra.mxu0 0
      %2312 = vmatprep.mubr.bf16.mxu0 0
      %2313 = vmatmul.mubr.bf16.gmra.mrb[0].mxu0 %v2193
      %v2314 = vpop.f32.mrb[0].mxu0
      %v2315 = vadd.f32 0.0, %v2314
      %v2316 = vpop.f32.mrb[0].mxu0
      %v2317 = vadd.f32 0.0, %v2316
      %v2318 = vpop.f32.mrb[0].mxu0
      %v2319 = vpop.f32.mrb[0].mxu0
      %2320 = vdwg.mxu0
      %2321 = vmatprep.subr.bf16.mxu0 %v2196
      %2322 = vmatpush1.bf16.msra.mxu0 %v1649
      %2323 = vmatprep.subr.bf16.mxu0 0
      %2324 = vmatpush1.bf16.msra.mxu0 0
      %2325 = vmatprep.subr.bf16.mxu0 0
      %2326 = vmatpush1.bf16.msra.mxu0 0
      %2327 = vmatprep.subr.bf16.mxu0 0
      %2328 = vmatpush1.bf16.msra.mxu0 0
      %2329 = vmatprep.subr.bf16.mxu0 0
      %2330 = vmatpush1.bf16.msra.mxu0 0
      %2331 = vmatprep.subr.bf16.mxu0 0
      %2332 = vmatpush1.bf16.msra.mxu0 0
      %2333 = vmatprep.subr.bf16.mxu0 0
      %2334 = vmatpush1.bf16.msra.mxu0 0
      %2335 = vmatprep.subr.bf16.mxu0 0
      %2336 = vmatpush1.bf16.msra.mxu0 0
      %2337 = vmatprep.subr.bf16.mxu0 0
      %2338 = vmatpush1.bf16.msra.mxu0 0
      %2339 = vmatprep.subr.bf16.mxu0 0
      %2340 = vmatpush1.bf16.msra.mxu0 0
      %2341 = vmatprep.subr.bf16.mxu0 0
      %2342 = vmatpush1.bf16.msra.mxu0 0
      %2343 = vmatprep.subr.bf16.mxu0 0
      %2344 = vmatpush1.bf16.msra.mxu0 0
      %2345 = vmatprep.subr.bf16.mxu0 0
      %2346 = vmatpush1.bf16.msra.mxu0 0
      %2347 = vmatprep.subr.bf16.mxu0 0
      %2348 = vmatpush1.bf16.msra.mxu0 0
      %2349 = vmatprep.subr.bf16.mxu0 0
      %2350 = vmatpush1.bf16.msra.mxu0 0
      %2351 = vmatprep.subr.bf16.mxu0 0
      %2352 = vmatpush1.bf16.msra.mxu0 0
      %2353 = vmatprep.mubr.bf16.mxu0 0
      %2354 = vmatmul.mubr.bf16.gmra.mrb[0].mxu0 %v2193
      %v2355 = vpop.f32.mrb[0].mxu0
      %v2356 = vadd.f32 0.0, %v2355
      %v2357 = vpop.f32.mrb[0].mxu0
      %v2358 = vadd.f32 0.0, %v2357
      %v2359 = vpop.f32.mrb[0].mxu0
      %v2360 = vpop.f32.mrb[0].mxu0
      %2361 = vdwg.mxu0
      %v2362 = vadd.f32 %v2182, %v2233
      %v2363 = vadd.f32 %v2183, %v2235
      %v2364 = vadd.f32 %v2184, %v2274
      %v2365 = vadd.f32 %v2185, %v2276
      %v2366 = vadd.f32 %v2186, %v2315
      %v2367 = vadd.f32 %v2187, %v2317
      %v2368 = vadd.f32 %v2188, %v2356
      %v2369 = vadd.f32 %v2189, %v2358
      %s2370 = scalar_lea.vmem %s6, 16
      %v2371 = vld [vmem:[%s2370] sm:$0x3]
      %2372 = vrot.lane.b32.xlu0 0, 127
      %v2373 = vpop.permute.xlu0 %2372
      %v2374 = vsel %vm1252, %v1827, %v2373
      %v2376 = vsel %vm819, %v2371, 0
      %v2379 = vsel %vm823, %v2374, 0
      %2381 = vmatprep.subr.bf16.mxu0 %v1274
      %2382 = vmatpush1.bf16.msra.mxu0 %v1271
      %2383 = vmatprep.subr.bf16.mxu0 0
      %2384 = vmatpush1.bf16.msra.mxu0 0
      %2385 = vmatprep.subr.bf16.mxu0 0
      %2386 = vmatpush1.bf16.msra.mxu0 0
      %2387 = vmatprep.subr.bf16.mxu0 0
      %2388 = vmatpush1.bf16.msra.mxu0 0
      %2389 = vmatprep.subr.bf16.mxu0 0
      %2390 = vmatpush1.bf16.msra.mxu0 0
      %2391 = vmatprep.subr.bf16.mxu0 0
      %2392 = vmatpush1.bf16.msra.mxu0 0
      %2393 = vmatprep.subr.bf16.mxu0 0
      %2394 = vmatpush1.bf16.msra.mxu0 0
      %2395 = vmatprep.subr.bf16.mxu0 0
      %2396 = vmatpush1.bf16.msra.mxu0 0
      %2397 = vmatprep.subr.bf16.mxu0 0
      %2398 = vmatpush1.bf16.msra.mxu0 0
      %2399 = vmatprep.subr.bf16.mxu0 0
      %2400 = vmatpush1.bf16.msra.mxu0 0
      %2401 = vmatprep.subr.bf16.mxu0 0
      %2402 = vmatpush1.bf16.msra.mxu0 0
      %2403 = vmatprep.subr.bf16.mxu0 0
      %2404 = vmatpush1.bf16.msra.mxu0 0
      %2405 = vmatprep.subr.bf16.mxu0 0
      %2406 = vmatpush1.bf16.msra.mxu0 0
      %2407 = vmatprep.subr.bf16.mxu0 0
      %2408 = vmatpush1.bf16.msra.mxu0 0
      %2409 = vmatprep.subr.bf16.mxu0 0
      %2410 = vmatpush1.bf16.msra.mxu0 0
      %2411 = vmatprep.subr.bf16.mxu0 0
      %2412 = vmatpush1.bf16.msra.mxu0 0
      %2413 = vmatprep.mubr.bf16.mxu0 0
      %2414 = vmatmul.mubr.bf16.gmra.mrb[0].mxu0 %v2376
      %v2415 = vpop.f32.mrb[0].mxu0
      %v2416 = vadd.f32 0.0, %v2415
      %v2417 = vpop.f32.mrb[0].mxu0
      %v2418 = vadd.f32 0.0, %v2417
      %v2419 = vpop.f32.mrb[0].mxu0
      %v2420 = vpop.f32.mrb[0].mxu0
      %2421 = vdwg.mxu0
      %2422 = vmatprep.subr.bf16.mxu0 %v1280
      %2423 = vmatpush1.bf16.msra.mxu0 %v1277
      %2424 = vmatprep.subr.bf16.mxu0 0
      %2425 = vmatpush1.bf16.msra.mxu0 0
      %2426 = vmatprep.subr.bf16.mxu0 0
      %2427 = vmatpush1.bf16.msra.mxu0 0
      %2428 = vmatprep.subr.bf16.mxu0 0
      %2429 = vmatpush1.bf16.msra.mxu0 0
      %2430 = vmatprep.subr.bf16.mxu0 0
      %2431 = vmatpush1.bf16.msra.mxu0 0
      %2432 = vmatprep.subr.bf16.mxu0 0
      %2433 = vmatpush1.bf16.msra.mxu0 0
      %2434 = vmatprep.subr.bf16.mxu0 0
      %2435 = vmatpush1.bf16.msra.mxu0 0
      %2436 = vmatprep.subr.bf16.mxu0 0
      %2437 = vmatpush1.bf16.msra.mxu0 0
      %2438 = vmatprep.subr.bf16.mxu0 0
      %2439 = vmatpush1.bf16.msra.mxu0 0
      %2440 = vmatprep.subr.bf16.mxu0 0
      %2441 = vmatpush1.bf16.msra.mxu0 0
      %2442 = vmatprep.subr.bf16.mxu0 0
      %2443 = vmatpush1.bf16.msra.mxu0 0
      %2444 = vmatprep.subr.bf16.mxu0 0
      %2445 = vmatpush1.bf16.msra.mxu0 0
      %2446 = vmatprep.subr.bf16.mxu0 0
      %2447 = vmatpush1.bf16.msra.mxu0 0
      %2448 = vmatprep.subr.bf16.mxu0 0
      %2449 = vmatpush1.bf16.msra.mxu0 0
      %2450 = vmatprep.subr.bf16.mxu0 0
      %2451 = vmatpush1.bf16.msra.mxu0 0
      %2452 = vmatprep.subr.bf16.mxu0 0
      %2453 = vmatpush1.bf16.msra.mxu0 0
      %2454 = vmatprep.mubr.bf16.mxu0 0
      %2455 = vmatmul.mubr.bf16.gmra.mrb[0].mxu0 %v2376
      %v2456 = vpop.f32.mrb[0].mxu0
      %v2457 = vadd.f32 0.0, %v2456
      %v2458 = vpop.f32.mrb[0].mxu0
      %v2459 = vadd.f32 0.0, %v2458
      %v2460 = vpop.f32.mrb[0].mxu0
      %v2461 = vpop.f32.mrb[0].mxu0
      %2462 = vdwg.mxu0
      %2463 = vmatprep.subr.bf16.mxu0 %v1286
      %2464 = vmatpush1.bf16.msra.mxu0 %v1283
      %2465 = vmatprep.subr.bf16.mxu0 0
      %2466 = vmatpush1.bf16.msra.mxu0 0
      %2467 = vmatprep.subr.bf16.mxu0 0
      %2468 = vmatpush1.bf16.msra.mxu0 0
      %2469 = vmatprep.subr.bf16.mxu0 0
      %2470 = vmatpush1.bf16.msra.mxu0 0
      %2471 = vmatprep.subr.bf16.mxu0 0
      %2472 = vmatpush1.bf16.msra.mxu0 0
      %2473 = vmatprep.subr.bf16.mxu0 0
      %2474 = vmatpush1.bf16.msra.mxu0 0
      %2475 = vmatprep.subr.bf16.mxu0 0
      %2476 = vmatpush1.bf16.msra.mxu0 0
      %2477 = vmatprep.subr.bf16.mxu0 0
      %2478 = vmatpush1.bf16.msra.mxu0 0
      %2479 = vmatprep.subr.bf16.mxu0 0
      %2480 = vmatpush1.bf16.msra.mxu0 0
      %2481 = vmatprep.subr.bf16.mxu0 0
      %2482 = vmatpush1.bf16.msra.mxu0 0
      %2483 = vmatprep.subr.bf16.mxu0 0
      %2484 = vmatpush1.bf16.msra.mxu0 0
      %2485 = vmatprep.subr.bf16.mxu0 0
      %2486 = vmatpush1.bf16.msra.mxu0 0
      %2487 = vmatprep.subr.bf16.mxu0 0
      %2488 = vmatpush1.bf16.msra.mxu0 0
      %2489 = vmatprep.subr.bf16.mxu0 0
      %2490 = vmatpush1.bf16.msra.mxu0 0
      %2491 = vmatprep.subr.bf16.mxu0 0
      %2492 = vmatpush1.bf16.msra.mxu0 0
      %2493 = vmatprep.subr.bf16.mxu0 0
      %2494 = vmatpush1.bf16.msra.mxu0 0
      %2495 = vmatprep.mubr.bf16.mxu0 0
      %2496 = vmatmul.mubr.bf16.gmra.mrb[0].mxu0 %v2376
      %v2497 = vpop.f32.mrb[0].mxu0
      %v2498 = vadd.f32 0.0, %v2497
      %v2499 = vpop.f32.mrb[0].mxu0
      %v2500 = vadd.f32 0.0, %v2499
      %v2501 = vpop.f32.mrb[0].mxu0
      %v2502 = vpop.f32.mrb[0].mxu0
      %2503 = vdwg.mxu0
      %2504 = vmatprep.subr.bf16.mxu0 %v2379
      %2505 = vmatpush1.bf16.msra.mxu0 %v1833
      %2506 = vmatprep.subr.bf16.mxu0 0
      %2507 = vmatpush1.bf16.msra.mxu0 0
      %2508 = vmatprep.subr.bf16.mxu0 0
      %2509 = vmatpush1.bf16.msra.mxu0 0
      %2510 = vmatprep.subr.bf16.mxu0 0
      %2511 = vmatpush1.bf16.msra.mxu0 0
      %2512 = vmatprep.subr.bf16.mxu0 0
      %2513 = vmatpush1.bf16.msra.mxu0 0
      %2514 = vmatprep.subr.bf16.mxu0 0
      %2515 = vmatpush1.bf16.msra.mxu0 0
      %2516 = vmatprep.subr.bf16.mxu0 0
      %2517 = vmatpush1.bf16.msra.mxu0 0
      %2518 = vmatprep.subr.bf16.mxu0 0
      %2519 = vmatpush1.bf16.msra.mxu0 0
      %2520 = vmatprep.subr.bf16.mxu0 0
      %2521 = vmatpush1.bf16.msra.mxu0 0
      %2522 = vmatprep.subr.bf16.mxu0 0
      %2523 = vmatpush1.bf16.msra.mxu0 0
      %2524 = vmatprep.subr.bf16.mxu0 0
      %2525 = vmatpush1.bf16.msra.mxu0 0
      %2526 = vmatprep.subr.bf16.mxu0 0
      %2527 = vmatpush1.bf16.msra.mxu0 0
      %2528 = vmatprep.subr.bf16.mxu0 0
      %2529 = vmatpush1.bf16.msra.mxu0 0
      %2530 = vmatprep.subr.bf16.mxu0 0
      %2531 = vmatpush1.bf16.msra.mxu0 0
      %2532 = vmatprep.subr.bf16.mxu0 0
      %2533 = vmatpush1.bf16.msra.mxu0 0
      %2534 = vmatprep.subr.bf16.mxu0 0
      %2535 = vmatpush1.bf16.msra.mxu0 0
      %2536 = vmatprep.mubr.bf16.mxu0 0
      %2537 = vmatmul.mubr.bf16.gmra.mrb[0].mxu0 %v2376
      %v2538 = vpop.f32.mrb[0].mxu0
      %v2539 = vadd.f32 0.0, %v2538
      %v2540 = vpop.f32.mrb[0].mxu0
      %v2541 = vadd.f32 0.0, %v2540
      %v2542 = vpop.f32.mrb[0].mxu0
      %v2543 = vpop.f32.mrb[0].mxu0
      %2544 = vdwg.mxu0
      %v2545 = vadd.f32 %v2362, %v2416
      %v2546 = vadd.f32 %v2363, %v2418
      %v2547 = vadd.f32 %v2364, %v2457
      %v2548 = vadd.f32 %v2365, %v2459
      %v2549 = vadd.f32 %v2366, %v2498
      %v2550 = vadd.f32 %v2367, %v2500
      %v2551 = vadd.f32 %v2368, %v2539
      %v2552 = vadd.f32 %v2369, %v2541
      %v2553 = vld [vmem:[%s692] sm:$0x3]
      %v2554 = vmul.bf16 %v2553, %v756
      %v2555 = vld [vmem:[%s708] sm:$0x3]
      %v2556 = vmul.bf16 %v2555, %v775
      %v2557 = vld [vmem:[%s679] sm:$0xff]
      %v2558 = vld [vmem:[%s679 + $0x8] sm:$0xff]
      %v2561 = vcombine.high %v2557, %v2557
      %v2563 = vunpack.c.l.s4 1983009808
      %v2564 = vunpack.c.0.s8 %v2563
      %v2565 = vlaneseq
      %v2566 = vshrl.u32 %v2565, 7
      %v2567 = vsub.s32 %v2564, %v2566
      %v2568 = vrot.slane %v2557, %v2567
      %v2570 = vunpack.c.l.s4 1983009808
      %v2571 = vunpack.c.0.s8 %v2570
      %v2572 = vlaneseq
      %v2573 = vshrl.u32 %v2572, 7
      %v2574 = vsub.s32 %v2571, %v2573
      %v2575 = vrot.slane %v2561, %v2574
      %v2576 = vcombine.high %v2568, %v2568
      %v2577 = vcombine.high %v2575, %v2575
      %v2578 = vcombine.high %v2558, %v2558
      %v2580 = vunpack.c.l.s4 1983009808
      %v2581 = vunpack.c.0.s8 %v2580
      %v2582 = vlaneseq
      %v2583 = vshrl.u32 %v2582, 7
      %v2584 = vsub.s32 %v2581, %v2583
      %v2585 = vrot.slane %v2558, %v2584
      %v2587 = vunpack.c.l.s4 1983009808
      %v2588 = vunpack.c.0.s8 %v2587
      %v2589 = vlaneseq
      %v2590 = vshrl.u32 %v2589, 7
      %v2591 = vsub.s32 %v2588, %v2590
      %v2592 = vrot.slane %v2578, %v2591
      %v2593 = vcombine.high %v2585, %v2585
      %v2594 = vcombine.high %v2592, %v2592
      %v2595 = vld [vmem:[%s7] sm:$0x3]
      %s2596 = scalar_lea.vmem %s7, 2
      %v2597 = vld [vmem:[%s2596] sm:$0x3]
      %v2599 = vsel %vm819, %v2597, 0
      %v2602 = vsel %vm823, %v2554, 0
      %v2605 = vsel %vm823, %v2568, 0
      %v2608 = vsel %vm823, %v2576, 0
      %v2611 = vsel %vm823, %v2575, 0
      %v2614 = vsel %vm823, %v2577, 0
      %v2617 = vsel %vm823, %v2585, 0
      %v2620 = vsel %vm823, %v2593, 0
      %v2623 = vsel %vm823, %v2592, 0
      %2625 = vmatprep.subr.bf16.mxu0 %v2605
      %2626 = vmatpush1.bf16.msra.mxu0 %v2602
      %2627 = vmatprep.subr.bf16.mxu0 0
      %2628 = vmatpush1.bf16.msra.mxu0 0
      %2629 = vmatprep.subr.bf16.mxu0 0
      %2630 = vmatpush1.bf16.msra.mxu0 0
      %2631 = vmatprep.subr.bf16.mxu0 0
      %2632 = vmatpush1.bf16.msra.mxu0 0
      %2633 = vmatprep.subr.bf16.mxu0 0
      %2634 = vmatpush1.bf16.msra.mxu0 0
      %2635 = vmatprep.subr.bf16.mxu0 0
      %2636 = vmatpush1.bf16.msra.mxu0 0
      %2637 = vmatprep.subr.bf16.mxu0 0
      %2638 = vmatpush1.bf16.msra.mxu0 0
      %2639 = vmatprep.subr.bf16.mxu0 0
      %2640 = vmatpush1.bf16.msra.mxu0 0
      %2641 = vmatprep.subr.bf16.mxu0 0
      %2642 = vmatpush1.bf16.msra.mxu0 0
      %2643 = vmatprep.subr.bf16.mxu0 0
      %2644 = vmatpush1.bf16.msra.mxu0 0
      %2645 = vmatprep.subr.bf16.mxu0 0
      %2646 = vmatpush1.bf16.msra.mxu0 0
      %2647 = vmatprep.subr.bf16.mxu0 0
      %2648 = vmatpush1.bf16.msra.mxu0 0
      %2649 = vmatprep.subr.bf16.mxu0 0
      %2650 = vmatpush1.bf16.msra.mxu0 0
      %2651 = vmatprep.subr.bf16.mxu0 0
      %2652 = vmatpush1.bf16.msra.mxu0 0
      %2653 = vmatprep.subr.bf16.mxu0 0
      %2654 = vmatpush1.bf16.msra.mxu0 0
      %2655 = vmatprep.subr.bf16.mxu0 0
      %2656 = vmatpush1.bf16.msra.mxu0 0
      %2657 = vmatprep.mubr.bf16.mxu0 0
      %2658 = vmatmul.mubr.bf16.gmra.mrb[0].mxu0 %v2599
      %v2659 = vpop.f32.mrb[0].mxu0
      %v2660 = vadd.f32 0.0, %v2659
      %v2661 = vpop.f32.mrb[0].mxu0
      %v2662 = vadd.f32 0.0, %v2661
      %v2663 = vpop.f32.mrb[0].mxu0
      %v2664 = vpop.f32.mrb[0].mxu0
      %2665 = vdwg.mxu0
      %2666 = vmatprep.subr.bf16.mxu0 %v2611
      %2667 = vmatpush1.bf16.msra.mxu0 %v2608
      %2668 = vmatprep.subr.bf16.mxu0 0
      %2669 = vmatpush1.bf16.msra.mxu0 0
      %2670 = vmatprep.subr.bf16.mxu0 0
      %2671 = vmatpush1.bf16.msra.mxu0 0
      %2672 = vmatprep.subr.bf16.mxu0 0
      %2673 = vmatpush1.bf16.msra.mxu0 0
      %2674 = vmatprep.subr.bf16.mxu0 0
      %2675 = vmatpush1.bf16.msra.mxu0 0
      %2676 = vmatprep.subr.bf16.mxu0 0
      %2677 = vmatpush1.bf16.msra.mxu0 0
      %2678 = vmatprep.subr.bf16.mxu0 0
      %2679 = vmatpush1.bf16.msra.mxu0 0
      %2680 = vmatprep.subr.bf16.mxu0 0
      %2681 = vmatpush1.bf16.msra.mxu0 0
      %2682 = vmatprep.subr.bf16.mxu0 0
      %2683 = vmatpush1.bf16.msra.mxu0 0
      %2684 = vmatprep.subr.bf16.mxu0 0
      %2685 = vmatpush1.bf16.msra.mxu0 0
      %2686 = vmatprep.subr.bf16.mxu0 0
      %2687 = vmatpush1.bf16.msra.mxu0 0
      %2688 = vmatprep.subr.bf16.mxu0 0
      %2689 = vmatpush1.bf16.msra.mxu0 0
      %2690 = vmatprep.subr.bf16.mxu0 0
      %2691 = vmatpush1.bf16.msra.mxu0 0
      %2692 = vmatprep.subr.bf16.mxu0 0
      %2693 = vmatpush1.bf16.msra.mxu0 0
      %2694 = vmatprep.subr.bf16.mxu0 0
      %2695 = vmatpush1.bf16.msra.mxu0 0
      %2696 = vmatprep.subr.bf16.mxu0 0
      %2697 = vmatpush1.bf16.msra.mxu0 0
      %2698 = vmatprep.mubr.bf16.mxu0 0
      %2699 = vmatmul.mubr.bf16.gmra.mrb[0].mxu0 %v2599
      %v2700 = vpop.f32.mrb[0].mxu0
      %v2701 = vadd.f32 0.0, %v2700
      %v2702 = vpop.f32.mrb[0].mxu0
      %v2703 = vadd.f32 0.0, %v2702
      %v2704 = vpop.f32.mrb[0].mxu0
      %v2705 = vpop.f32.mrb[0].mxu0
      %2706 = vdwg.mxu0
      %2707 = vmatprep.subr.bf16.mxu0 %v2617
      %2708 = vmatpush1.bf16.msra.mxu0 %v2614
      %2709 = vmatprep.subr.bf16.mxu0 0
      %2710 = vmatpush1.bf16.msra.mxu0 0
      %2711 = vmatprep.subr.bf16.mxu0 0
      %2712 = vmatpush1.bf16.msra.mxu0 0
      %2713 = vmatprep.subr.bf16.mxu0 0
      %2714 = vmatpush1.bf16.msra.mxu0 0
      %2715 = vmatprep.subr.bf16.mxu0 0
      %2716 = vmatpush1.bf16.msra.mxu0 0
      %2717 = vmatprep.subr.bf16.mxu0 0
      %2718 = vmatpush1.bf16.msra.mxu0 0
      %2719 = vmatprep.subr.bf16.mxu0 0
      %2720 = vmatpush1.bf16.msra.mxu0 0
      %2721 = vmatprep.subr.bf16.mxu0 0
      %2722 = vmatpush1.bf16.msra.mxu0 0
      %2723 = vmatprep.subr.bf16.mxu0 0
      %2724 = vmatpush1.bf16.msra.mxu0 0
      %2725 = vmatprep.subr.bf16.mxu0 0
      %2726 = vmatpush1.bf16.msra.mxu0 0
      %2727 = vmatprep.subr.bf16.mxu0 0
      %2728 = vmatpush1.bf16.msra.mxu0 0
      %2729 = vmatprep.subr.bf16.mxu0 0
      %2730 = vmatpush1.bf16.msra.mxu0 0
      %2731 = vmatprep.subr.bf16.mxu0 0
      %2732 = vmatpush1.bf16.msra.mxu0 0
      %2733 = vmatprep.subr.bf16.mxu0 0
      %2734 = vmatpush1.bf16.msra.mxu0 0
      %2735 = vmatprep.subr.bf16.mxu0 0
      %2736 = vmatpush1.bf16.msra.mxu0 0
      %2737 = vmatprep.subr.bf16.mxu0 0
      %2738 = vmatpush1.bf16.msra.mxu0 0
      %2739 = vmatprep.mubr.bf16.mxu0 0
      %2740 = vmatmul.mubr.bf16.gmra.mrb[0].mxu0 %v2599
      %v2741 = vpop.f32.mrb[0].mxu0
      %v2742 = vadd.f32 0.0, %v2741
      %v2743 = vpop.f32.mrb[0].mxu0
      %v2744 = vadd.f32 0.0, %v2743
      %v2745 = vpop.f32.mrb[0].mxu0
      %v2746 = vpop.f32.mrb[0].mxu0
      %2747 = vdwg.mxu0
      %2748 = vmatprep.subr.bf16.mxu0 %v2623
      %2749 = vmatpush1.bf16.msra.mxu0 %v2620
      %2750 = vmatprep.subr.bf16.mxu0 0
      %2751 = vmatpush1.bf16.msra.mxu0 0
      %2752 = vmatprep.subr.bf16.mxu0 0
      %2753 = vmatpush1.bf16.msra.mxu0 0
      %2754 = vmatprep.subr.bf16.mxu0 0
      %2755 = vmatpush1.bf16.msra.mxu0 0
      %2756 = vmatprep.subr.bf16.mxu0 0
      %2757 = vmatpush1.bf16.msra.mxu0 0
      %2758 = vmatprep.subr.bf16.mxu0 0
      %2759 = vmatpush1.bf16.msra.mxu0 0
      %2760 = vmatprep.subr.bf16.mxu0 0
      %2761 = vmatpush1.bf16.msra.mxu0 0
      %2762 = vmatprep.subr.bf16.mxu0 0
      %2763 = vmatpush1.bf16.msra.mxu0 0
      %2764 = vmatprep.subr.bf16.mxu0 0
      %2765 = vmatpush1.bf16.msra.mxu0 0
      %2766 = vmatprep.subr.bf16.mxu0 0
      %2767 = vmatpush1.bf16.msra.mxu0 0
      %2768 = vmatprep.subr.bf16.mxu0 0
      %2769 = vmatpush1.bf16.msra.mxu0 0
      %2770 = vmatprep.subr.bf16.mxu0 0
      %2771 = vmatpush1.bf16.msra.mxu0 0
      %2772 = vmatprep.subr.bf16.mxu0 0
      %2773 = vmatpush1.bf16.msra.mxu0 0
      %2774 = vmatprep.subr.bf16.mxu0 0
      %2775 = vmatpush1.bf16.msra.mxu0 0
      %2776 = vmatprep.subr.bf16.mxu0 0
      %2777 = vmatpush1.bf16.msra.mxu0 0
      %2778 = vmatprep.subr.bf16.mxu0 0
      %2779 = vmatpush1.bf16.msra.mxu0 0
      %2780 = vmatprep.mubr.bf16.mxu0 0
      %2781 = vmatmul.mubr.bf16.gmra.mrb[0].mxu0 %v2599
      %v2782 = vpop.f32.mrb[0].mxu0
      %v2783 = vadd.f32 0.0, %v2782
      %v2784 = vpop.f32.mrb[0].mxu0
      %v2785 = vadd.f32 0.0, %v2784
      %v2786 = vpop.f32.mrb[0].mxu0
      %v2787 = vpop.f32.mrb[0].mxu0
      %2788 = vdwg.mxu0
      %2790 = vrot.lane.b32.xlu0 %v2554, 1
      %v2791 = vpop.permute.xlu0 %2790
      %2792 = vrot.lane.b32.xlu0 %v2568, 1
      %v2793 = vpop.permute.xlu0 %2792
      %2794 = vrot.lane.b32.xlu0 %v2576, 1
      %v2795 = vpop.permute.xlu0 %2794
      %2796 = vrot.lane.b32.xlu0 %v2575, 1
      %v2797 = vpop.permute.xlu0 %2796
      %2798 = vrot.lane.b32.xlu0 %v2577, 1
      %v2799 = vpop.permute.xlu0 %2798
      %2800 = vrot.lane.b32.xlu0 %v2585, 1
      %v2801 = vpop.permute.xlu0 %2800
      %2802 = vrot.lane.b32.xlu0 %v2593, 1
      %v2803 = vpop.permute.xlu0 %2802
      %2804 = vrot.lane.b32.xlu0 %v2592, 1
      %v2805 = vpop.permute.xlu0 %2804
      %v2806 = vsel %vm1032, %v1015, %v2791
      %v2807 = vsel %vm1032, %v2791, %v2793
      %v2808 = vsel %vm1032, %v2793, %v2795
      %v2809 = vsel %vm1032, %v2795, %v2797
      %v2810 = vsel %vm1032, %v2797, %v2799
      %v2811 = vsel %vm1032, %v2799, %v2801
      %v2812 = vsel %vm1032, %v2801, %v2803
      %v2813 = vsel %vm1032, %v2803, %v2805
      %v2815 = vsel %vm819, %v2595, 0
      %v2818 = vsel %vm823, %v2806, 0
      %v2821 = vsel %vm823, %v2807, 0
      %v2824 = vsel %vm823, %v2808, 0
      %v2827 = vsel %vm823, %v2809, 0
      %v2830 = vsel %vm823, %v2810, 0
      %v2833 = vsel %vm823, %v2811, 0
      %v2836 = vsel %vm823, %v2812, 0
      %v2839 = vsel %vm823, %v2813, 0
      %2841 = vmatprep.subr.bf16.mxu0 %v2821
      %2842 = vmatpush1.bf16.msra.mxu0 %v2818
      %2843 = vmatprep.subr.bf16.mxu0 0
      %2844 = vmatpush1.bf16.msra.mxu0 0
      %2845 = vmatprep.subr.bf16.mxu0 0
      %2846 = vmatpush1.bf16.msra.mxu0 0
      %2847 = vmatprep.subr.bf16.mxu0 0
      %2848 = vmatpush1.bf16.msra.mxu0 0
      %2849 = vmatprep.subr.bf16.mxu0 0
      %2850 = vmatpush1.bf16.msra.mxu0 0
      %2851 = vmatprep.subr.bf16.mxu0 0
      %2852 = vmatpush1.bf16.msra.mxu0 0
      %2853 = vmatprep.subr.bf16.mxu0 0
      %2854 = vmatpush1.bf16.msra.mxu0 0
      %2855 = vmatprep.subr.bf16.mxu0 0
      %2856 = vmatpush1.bf16.msra.mxu0 0
      %2857 = vmatprep.subr.bf16.mxu0 0
      %2858 = vmatpush1.bf16.msra.mxu0 0
      %2859 = vmatprep.subr.bf16.mxu0 0
      %2860 = vmatpush1.bf16.msra.mxu0 0
      %2861 = vmatprep.subr.bf16.mxu0 0
      %2862 = vmatpush1.bf16.msra.mxu0 0
      %2863 = vmatprep.subr.bf16.mxu0 0
      %2864 = vmatpush1.bf16.msra.mxu0 0
      %2865 = vmatprep.subr.bf16.mxu0 0
      %2866 = vmatpush1.bf16.msra.mxu0 0
      %2867 = vmatprep.subr.bf16.mxu0 0
      %2868 = vmatpush1.bf16.msra.mxu0 0
      %2869 = vmatprep.subr.bf16.mxu0 0
      %2870 = vmatpush1.bf16.msra.mxu0 0
      %2871 = vmatprep.subr.bf16.mxu0 0
      %2872 = vmatpush1.bf16.msra.mxu0 0
      %2873 = vmatprep.mubr.bf16.mxu0 0
      %2874 = vmatmul.mubr.bf16.gmra.mrb[0].mxu0 %v2815
      %v2875 = vpop.f32.mrb[0].mxu0
      %v2876 = vadd.f32 %v2660, %v2875
      %v2877 = vpop.f32.mrb[0].mxu0
      %v2878 = vadd.f32 %v2662, %v2877
      %v2879 = vpop.f32.mrb[0].mxu0
      %v2880 = vpop.f32.mrb[0].mxu0
      %2881 = vdwg.mxu0
      %2882 = vmatprep.subr.bf16.mxu0 %v2827
      %2883 = vmatpush1.bf16.msra.mxu0 %v2824
      %2884 = vmatprep.subr.bf16.mxu0 0
      %2885 = vmatpush1.bf16.msra.mxu0 0
      %2886 = vmatprep.subr.bf16.mxu0 0
      %2887 = vmatpush1.bf16.msra.mxu0 0
      %2888 = vmatprep.subr.bf16.mxu0 0
      %2889 = vmatpush1.bf16.msra.mxu0 0
      %2890 = vmatprep.subr.bf16.mxu0 0
      %2891 = vmatpush1.bf16.msra.mxu0 0
      %2892 = vmatprep.subr.bf16.mxu0 0
      %2893 = vmatpush1.bf16.msra.mxu0 0
      %2894 = vmatprep.subr.bf16.mxu0 0
      %2895 = vmatpush1.bf16.msra.mxu0 0
      %2896 = vmatprep.subr.bf16.mxu0 0
      %2897 = vmatpush1.bf16.msra.mxu0 0
      %2898 = vmatprep.subr.bf16.mxu0 0
      %2899 = vmatpush1.bf16.msra.mxu0 0
      %2900 = vmatprep.subr.bf16.mxu0 0
      %2901 = vmatpush1.bf16.msra.mxu0 0
      %2902 = vmatprep.subr.bf16.mxu0 0
      %2903 = vmatpush1.bf16.msra.mxu0 0
      %2904 = vmatprep.subr.bf16.mxu0 0
      %2905 = vmatpush1.bf16.msra.mxu0 0
      %2906 = vmatprep.subr.bf16.mxu0 0
      %2907 = vmatpush1.bf16.msra.mxu0 0
      %2908 = vmatprep.subr.bf16.mxu0 0
      %2909 = vmatpush1.bf16.msra.mxu0 0
      %2910 = vmatprep.subr.bf16.mxu0 0
      %2911 = vmatpush1.bf16.msra.mxu0 0
      %2912 = vmatprep.subr.bf16.mxu0 0
      %2913 = vmatpush1.bf16.msra.mxu0 0
      %2914 = vmatprep.mubr.bf16.mxu0 0
      %2915 = vmatmul.mubr.bf16.gmra.mrb[0].mxu0 %v2815
      %v2916 = vpop.f32.mrb[0].mxu0
      %v2917 = vadd.f32 %v2701, %v2916
      %v2918 = vpop.f32.mrb[0].mxu0
      %v2919 = vadd.f32 %v2703, %v2918
      %v2920 = vpop.f32.mrb[0].mxu0
      %v2921 = vpop.f32.mrb[0].mxu0
      %2922 = vdwg.mxu0
      %2923 = vmatprep.subr.bf16.mxu0 %v2833
      %2924 = vmatpush1.bf16.msra.mxu0 %v2830
      %2925 = vmatprep.subr.bf16.mxu0 0
      %2926 = vmatpush1.bf16.msra.mxu0 0
      %2927 = vmatprep.subr.bf16.mxu0 0
      %2928 = vmatpush1.bf16.msra.mxu0 0
      %2929 = vmatprep.subr.bf16.mxu0 0
      %2930 = vmatpush1.bf16.msra.mxu0 0
      %2931 = vmatprep.subr.bf16.mxu0 0
      %2932 = vmatpush1.bf16.msra.mxu0 0
      %2933 = vmatprep.subr.bf16.mxu0 0
      %2934 = vmatpush1.bf16.msra.mxu0 0
      %2935 = vmatprep.subr.bf16.mxu0 0
      %2936 = vmatpush1.bf16.msra.mxu0 0
      %2937 = vmatprep.subr.bf16.mxu0 0
      %2938 = vmatpush1.bf16.msra.mxu0 0
      %2939 = vmatprep.subr.bf16.mxu0 0
      %2940 = vmatpush1.bf16.msra.mxu0 0
      %2941 = vmatprep.subr.bf16.mxu0 0
      %2942 = vmatpush1.bf16.msra.mxu0 0
      %2943 = vmatprep.subr.bf16.mxu0 0
      %2944 = vmatpush1.bf16.msra.mxu0 0
      %2945 = vmatprep.subr.bf16.mxu0 0
      %2946 = vmatpush1.bf16.msra.mxu0 0
      %2947 = vmatprep.subr.bf16.mxu0 0
      %2948 = vmatpush1.bf16.msra.mxu0 0
      %2949 = vmatprep.subr.bf16.mxu0 0
      %2950 = vmatpush1.bf16.msra.mxu0 0
      %2951 = vmatprep.subr.bf16.mxu0 0
      %2952 = vmatpush1.bf16.msra.mxu0 0
      %2953 = vmatprep.subr.bf16.mxu0 0
      %2954 = vmatpush1.bf16.msra.mxu0 0
      %2955 = vmatprep.mubr.bf16.mxu0 0
      %2956 = vmatmul.mubr.bf16.gmra.mrb[0].mxu0 %v2815
      %v2957 = vpop.f32.mrb[0].mxu0
      %v2958 = vadd.f32 %v2742, %v2957
      %v2959 = vpop.f32.mrb[0].mxu0
      %v2960 = vadd.f32 %v2744, %v2959
      %v2961 = vpop.f32.mrb[0].mxu0
      %v2962 = vpop.f32.mrb[0].mxu0
      %2963 = vdwg.mxu0
      %2964 = vmatprep.subr.bf16.mxu0 %v2839
      %2965 = vmatpush1.bf16.msra.mxu0 %v2836
      %2966 = vmatprep.subr.bf16.mxu0 0
      %2967 = vmatpush1.bf16.msra.mxu0 0
      %2968 = vmatprep.subr.bf16.mxu0 0
      %2969 = vmatpush1.bf16.msra.mxu0 0
      %2970 = vmatprep.subr.bf16.mxu0 0
      %2971 = vmatpush1.bf16.msra.mxu0 0
      %2972 = vmatprep.subr.bf16.mxu0 0
      %2973 = vmatpush1.bf16.msra.mxu0 0
      %2974 = vmatprep.subr.bf16.mxu0 0
      %2975 = vmatpush1.bf16.msra.mxu0 0
      %2976 = vmatprep.subr.bf16.mxu0 0
      %2977 = vmatpush1.bf16.msra.mxu0 0
      %2978 = vmatprep.subr.bf16.mxu0 0
      %2979 = vmatpush1.bf16.msra.mxu0 0
      %2980 = vmatprep.subr.bf16.mxu0 0
      %2981 = vmatpush1.bf16.msra.mxu0 0
      %2982 = vmatprep.subr.bf16.mxu0 0
      %2983 = vmatpush1.bf16.msra.mxu0 0
      %2984 = vmatprep.subr.bf16.mxu0 0
      %2985 = vmatpush1.bf16.msra.mxu0 0
      %2986 = vmatprep.subr.bf16.mxu0 0
      %2987 = vmatpush1.bf16.msra.mxu0 0
      %2988 = vmatprep.subr.bf16.mxu0 0
      %2989 = vmatpush1.bf16.msra.mxu0 0
      %2990 = vmatprep.subr.bf16.mxu0 0
      %2991 = vmatpush1.bf16.msra.mxu0 0
      %2992 = vmatprep.subr.bf16.mxu0 0
      %2993 = vmatpush1.bf16.msra.mxu0 0
      %2994 = vmatprep.subr.bf16.mxu0 0
      %2995 = vmatpush1.bf16.msra.mxu0 0
      %2996 = vmatprep.mubr.bf16.mxu0 0
      %2997 = vmatmul.mubr.bf16.gmra.mrb[0].mxu0 %v2815
      %v2998 = vpop.f32.mrb[0].mxu0
      %v2999 = vadd.f32 %v2783, %v2998
      %v3000 = vpop.f32.mrb[0].mxu0
      %v3001 = vadd.f32 %v2785, %v3000
      %v3002 = vpop.f32.mrb[0].mxu0
      %v3003 = vpop.f32.mrb[0].mxu0
      %3004 = vdwg.mxu0
      %s3005 = scalar_lea.vmem %s7, 4
      %v3006 = vld [vmem:[%s3005] sm:$0x3]
      %3007 = vrot.lane.b32.xlu0 %v2554, 127
      %v3008 = vpop.permute.xlu0 %3007
      %3009 = vrot.lane.b32.xlu0 %v2568, 127
      %v3010 = vpop.permute.xlu0 %3009
      %3011 = vrot.lane.b32.xlu0 %v2576, 127
      %v3012 = vpop.permute.xlu0 %3011
      %3013 = vrot.lane.b32.xlu0 %v2575, 127
      %v3014 = vpop.permute.xlu0 %3013
      %3015 = vrot.lane.b32.xlu0 %v2577, 127
      %v3016 = vpop.permute.xlu0 %3015
      %3017 = vrot.lane.b32.xlu0 %v2585, 127
      %v3018 = vpop.permute.xlu0 %3017
      %3019 = vrot.lane.b32.xlu0 %v2593, 127
      %v3020 = vpop.permute.xlu0 %3019
      %3021 = vrot.lane.b32.xlu0 %v2592, 127
      %v3022 = vpop.permute.xlu0 %3021
      %3023 = vrot.lane.b32.xlu0 %v2594, 127
      %v3024 = vpop.permute.xlu0 %3023
      %v3025 = vsel %vm1252, %v3008, %v3010
      %v3026 = vsel %vm1252, %v3010, %v3012
      %v3027 = vsel %vm1252, %v3012, %v3014
      %v3028 = vsel %vm1252, %v3014, %v3016
      %v3029 = vsel %vm1252, %v3016, %v3018
      %v3030 = vsel %vm1252, %v3018, %v3020
      %v3031 = vsel %vm1252, %v3020, %v3022
      %v3032 = vsel %vm1252, %v3022, %v3024
      %v3034 = vsel %vm819, %v3006, 0
      %v3037 = vsel %vm823, %v3025, 0
      %v3040 = vsel %vm823, %v3026, 0
      %v3043 = vsel %vm823, %v3027, 0
      %v3046 = vsel %vm823, %v3028, 0
      %v3049 = vsel %vm823, %v3029, 0
      %v3052 = vsel %vm823, %v3030, 0
      %v3055 = vsel %vm823, %v3031, 0
      %v3058 = vsel %vm823, %v3032, 0
      %3060 = vmatprep.subr.bf16.mxu0 %v3040
      %3061 = vmatpush1.bf16.msra.mxu0 %v3037
      %3062 = vmatprep.subr.bf16.mxu0 0
      %3063 = vmatpush1.bf16.msra.mxu0 0
      %3064 = vmatprep.subr.bf16.mxu0 0
      %3065 = vmatpush1.bf16.msra.mxu0 0
      %3066 = vmatprep.subr.bf16.mxu0 0
      %3067 = vmatpush1.bf16.msra.mxu0 0
      %3068 = vmatprep.subr.bf16.mxu0 0
      %3069 = vmatpush1.bf16.msra.mxu0 0
      %3070 = vmatprep.subr.bf16.mxu0 0
      %3071 = vmatpush1.bf16.msra.mxu0 0
      %3072 = vmatprep.subr.bf16.mxu0 0
      %3073 = vmatpush1.bf16.msra.mxu0 0
      %3074 = vmatprep.subr.bf16.mxu0 0
      %3075 = vmatpush1.bf16.msra.mxu0 0
      %3076 = vmatprep.subr.bf16.mxu0 0
      %3077 = vmatpush1.bf16.msra.mxu0 0
      %3078 = vmatprep.subr.bf16.mxu0 0
      %3079 = vmatpush1.bf16.msra.mxu0 0
      %3080 = vmatprep.subr.bf16.mxu0 0
      %3081 = vmatpush1.bf16.msra.mxu0 0
      %3082 = vmatprep.subr.bf16.mxu0 0
      %3083 = vmatpush1.bf16.msra.mxu0 0
      %3084 = vmatprep.subr.bf16.mxu0 0
      %3085 = vmatpush1.bf16.msra.mxu0 0
      %3086 = vmatprep.subr.bf16.mxu0 0
      %3087 = vmatpush1.bf16.msra.mxu0 0
      %3088 = vmatprep.subr.bf16.mxu0 0
      %3089 = vmatpush1.bf16.msra.mxu0 0
      %3090 = vmatprep.subr.bf16.mxu0 0
      %3091 = vmatpush1.bf16.msra.mxu0 0
      %3092 = vmatprep.mubr.bf16.mxu0 0
      %3093 = vmatmul.mubr.bf16.gmra.mrb[0].mxu0 %v3034
      %v3094 = vpop.f32.mrb[0].mxu0
      %v3095 = vadd.f32 0.0, %v3094
      %v3096 = vpop.f32.mrb[0].mxu0
      %v3097 = vadd.f32 0.0, %v3096
      %v3098 = vpop.f32.mrb[0].mxu0
      %v3099 = vpop.f32.mrb[0].mxu0
      %3100 = vdwg.mxu0
      %3101 = vmatprep.subr.bf16.mxu0 %v3046
      %3102 = vmatpush1.bf16.msra.mxu0 %v3043
      %3103 = vmatprep.subr.bf16.mxu0 0
      %3104 = vmatpush1.bf16.msra.mxu0 0
      %3105 = vmatprep.subr.bf16.mxu0 0
      %3106 = vmatpush1.bf16.msra.mxu0 0
      %3107 = vmatprep.subr.bf16.mxu0 0
      %3108 = vmatpush1.bf16.msra.mxu0 0
      %3109 = vmatprep.subr.bf16.mxu0 0
      %3110 = vmatpush1.bf16.msra.mxu0 0
      %3111 = vmatprep.subr.bf16.mxu0 0
      %3112 = vmatpush1.bf16.msra.mxu0 0
      %3113 = vmatprep.subr.bf16.mxu0 0
      %3114 = vmatpush1.bf16.msra.mxu0 0
      %3115 = vmatprep.subr.bf16.mxu0 0
      %3116 = vmatpush1.bf16.msra.mxu0 0
      %3117 = vmatprep.subr.bf16.mxu0 0
      %3118 = vmatpush1.bf16.msra.mxu0 0
      %3119 = vmatprep.subr.bf16.mxu0 0
      %3120 = vmatpush1.bf16.msra.mxu0 0
      %3121 = vmatprep.subr.bf16.mxu0 0
      %3122 = vmatpush1.bf16.msra.mxu0 0
      %3123 = vmatprep.subr.bf16.mxu0 0
      %3124 = vmatpush1.bf16.msra.mxu0 0
      %3125 = vmatprep.subr.bf16.mxu0 0
      %3126 = vmatpush1.bf16.msra.mxu0 0
      %3127 = vmatprep.subr.bf16.mxu0 0
      %3128 = vmatpush1.bf16.msra.mxu0 0
      %3129 = vmatprep.subr.bf16.mxu0 0
      %3130 = vmatpush1.bf16.msra.mxu0 0
      %3131 = vmatprep.subr.bf16.mxu0 0
      %3132 = vmatpush1.bf16.msra.mxu0 0
      %3133 = vmatprep.mubr.bf16.mxu0 0
      %3134 = vmatmul.mubr.bf16.gmra.mrb[0].mxu0 %v3034
      %v3135 = vpop.f32.mrb[0].mxu0
      %v3136 = vadd.f32 0.0, %v3135
      %v3137 = vpop.f32.mrb[0].mxu0
      %v3138 = vadd.f32 0.0, %v3137
      %v3139 = vpop.f32.mrb[0].mxu0
      %v3140 = vpop.f32.mrb[0].mxu0
      %3141 = vdwg.mxu0
      %3142 = vmatprep.subr.bf16.mxu0 %v3052
      %3143 = vmatpush1.bf16.msra.mxu0 %v3049
      %3144 = vmatprep.subr.bf16.mxu0 0
      %3145 = vmatpush1.bf16.msra.mxu0 0
      %3146 = vmatprep.subr.bf16.mxu0 0
      %3147 = vmatpush1.bf16.msra.mxu0 0
      %3148 = vmatprep.subr.bf16.mxu0 0
      %3149 = vmatpush1.bf16.msra.mxu0 0
      %3150 = vmatprep.subr.bf16.mxu0 0
      %3151 = vmatpush1.bf16.msra.mxu0 0
      %3152 = vmatprep.subr.bf16.mxu0 0
      %3153 = vmatpush1.bf16.msra.mxu0 0
      %3154 = vmatprep.subr.bf16.mxu0 0
      %3155 = vmatpush1.bf16.msra.mxu0 0
      %3156 = vmatprep.subr.bf16.mxu0 0
      %3157 = vmatpush1.bf16.msra.mxu0 0
      %3158 = vmatprep.subr.bf16.mxu0 0
      %3159 = vmatpush1.bf16.msra.mxu0 0
      %3160 = vmatprep.subr.bf16.mxu0 0
      %3161 = vmatpush1.bf16.msra.mxu0 0
      %3162 = vmatprep.subr.bf16.mxu0 0
      %3163 = vmatpush1.bf16.msra.mxu0 0
      %3164 = vmatprep.subr.bf16.mxu0 0
      %3165 = vmatpush1.bf16.msra.mxu0 0
      %3166 = vmatprep.subr.bf16.mxu0 0
      %3167 = vmatpush1.bf16.msra.mxu0 0
      %3168 = vmatprep.subr.bf16.mxu0 0
      %3169 = vmatpush1.bf16.msra.mxu0 0
      %3170 = vmatprep.subr.bf16.mxu0 0
      %3171 = vmatpush1.bf16.msra.mxu0 0
      %3172 = vmatprep.subr.bf16.mxu0 0
      %3173 = vmatpush1.bf16.msra.mxu0 0
      %3174 = vmatprep.mubr.bf16.mxu0 0
      %3175 = vmatmul.mubr.bf16.gmra.mrb[0].mxu0 %v3034
      %v3176 = vpop.f32.mrb[0].mxu0
      %v3177 = vadd.f32 0.0, %v3176
      %v3178 = vpop.f32.mrb[0].mxu0
      %v3179 = vadd.f32 0.0, %v3178
      %v3180 = vpop.f32.mrb[0].mxu0
      %v3181 = vpop.f32.mrb[0].mxu0
      %3182 = vdwg.mxu0
      %3183 = vmatprep.subr.bf16.mxu0 %v3058
      %3184 = vmatpush1.bf16.msra.mxu0 %v3055
      %3185 = vmatprep.subr.bf16.mxu0 0
      %3186 = vmatpush1.bf16.msra.mxu0 0
      %3187 = vmatprep.subr.bf16.mxu0 0
      %3188 = vmatpush1.bf16.msra.mxu0 0
      %3189 = vmatprep.subr.bf16.mxu0 0
      %3190 = vmatpush1.bf16.msra.mxu0 0
      %3191 = vmatprep.subr.bf16.mxu0 0
      %3192 = vmatpush1.bf16.msra.mxu0 0
      %3193 = vmatprep.subr.bf16.mxu0 0
      %3194 = vmatpush1.bf16.msra.mxu0 0
      %3195 = vmatprep.subr.bf16.mxu0 0
      %3196 = vmatpush1.bf16.msra.mxu0 0
      %3197 = vmatprep.subr.bf16.mxu0 0
      %3198 = vmatpush1.bf16.msra.mxu0 0
      %3199 = vmatprep.subr.bf16.mxu0 0
      %3200 = vmatpush1.bf16.msra.mxu0 0
      %3201 = vmatprep.subr.bf16.mxu0 0
      %3202 = vmatpush1.bf16.msra.mxu0 0
      %3203 = vmatprep.subr.bf16.mxu0 0
      %3204 = vmatpush1.bf16.msra.mxu0 0
      %3205 = vmatprep.subr.bf16.mxu0 0
      %3206 = vmatpush1.bf16.msra.mxu0 0
      %3207 = vmatprep.subr.bf16.mxu0 0
      %3208 = vmatpush1.bf16.msra.mxu0 0
      %3209 = vmatprep.subr.bf16.mxu0 0
      %3210 = vmatpush1.bf16.msra.mxu0 0
      %3211 = vmatprep.subr.bf16.mxu0 0
      %3212 = vmatpush1.bf16.msra.mxu0 0
      %3213 = vmatprep.subr.bf16.mxu0 0
      %3214 = vmatpush1.bf16.msra.mxu0 0
      %3215 = vmatprep.mubr.bf16.mxu0 0
      %3216 = vmatmul.mubr.bf16.gmra.mrb[0].mxu0 %v3034
      %v3217 = vpop.f32.mrb[0].mxu0
      %v3218 = vadd.f32 0.0, %v3217
      %v3219 = vpop.f32.mrb[0].mxu0
      %v3220 = vadd.f32 0.0, %v3219
      %v3221 = vpop.f32.mrb[0].mxu0
      %v3222 = vpop.f32.mrb[0].mxu0
      %3223 = vdwg.mxu0
      %v3224 = vadd.f32 %v2876, %v3095
      %v3225 = vadd.f32 %v2878, %v3097
      %v3226 = vadd.f32 %v2917, %v3136
      %v3227 = vadd.f32 %v2919, %v3138
      %v3228 = vadd.f32 %v2958, %v3177
      %v3229 = vadd.f32 %v2960, %v3179
      %v3230 = vadd.f32 %v2999, %v3218
      %v3231 = vadd.f32 %v3001, %v3220
      %s3232 = scalar_lea.vmem %s7, 6
      %v3233 = vld [vmem:[%s3232] sm:$0x3]
      %3234 = vrot.lane.b32.xlu0 %v2594, 1
      %v3235 = vpop.permute.xlu0 %3234
      %v3236 = vsel %vm1032, %v2805, %v3235
      %v3238 = vsel %vm819, %v3233, 0
      %v3241 = vsel %vm823, %v3236, 0
      %3243 = vmatprep.subr.bf16.mxu0 %v2824
      %3244 = vmatpush1.bf16.msra.mxu0 %v2821
      %3245 = vmatprep.subr.bf16.mxu0 0
      %3246 = vmatpush1.bf16.msra.mxu0 0
      %3247 = vmatprep.subr.bf16.mxu0 0
      %3248 = vmatpush1.bf16.msra.mxu0 0
      %3249 = vmatprep.subr.bf16.mxu0 0
      %3250 = vmatpush1.bf16.msra.mxu0 0
      %3251 = vmatprep.subr.bf16.mxu0 0
      %3252 = vmatpush1.bf16.msra.mxu0 0
      %3253 = vmatprep.subr.bf16.mxu0 0
      %3254 = vmatpush1.bf16.msra.mxu0 0
      %3255 = vmatprep.subr.bf16.mxu0 0
      %3256 = vmatpush1.bf16.msra.mxu0 0
      %3257 = vmatprep.subr.bf16.mxu0 0
      %3258 = vmatpush1.bf16.msra.mxu0 0
      %3259 = vmatprep.subr.bf16.mxu0 0
      %3260 = vmatpush1.bf16.msra.mxu0 0
      %3261 = vmatprep.subr.bf16.mxu0 0
      %3262 = vmatpush1.bf16.msra.mxu0 0
      %3263 = vmatprep.subr.bf16.mxu0 0
      %3264 = vmatpush1.bf16.msra.mxu0 0
      %3265 = vmatprep.subr.bf16.mxu0 0
      %3266 = vmatpush1.bf16.msra.mxu0 0
      %3267 = vmatprep.subr.bf16.mxu0 0
      %3268 = vmatpush1.bf16.msra.mxu0 0
      %3269 = vmatprep.subr.bf16.mxu0 0
      %3270 = vmatpush1.bf16.msra.mxu0 0
      %3271 = vmatprep.subr.bf16.mxu0 0
      %3272 = vmatpush1.bf16.msra.mxu0 0
      %3273 = vmatprep.subr.bf16.mxu0 0
      %3274 = vmatpush1.bf16.msra.mxu0 0
      %3275 = vmatprep.mubr.bf16.mxu0 0
      %3276 = vmatmul.mubr.bf16.gmra.mrb[0].mxu0 %v3238
      %v3277 = vpop.f32.mrb[0].mxu0
      %v3278 = vadd.f32 0.0, %v3277
      %v3279 = vpop.f32.mrb[0].mxu0
      %v3280 = vadd.f32 0.0, %v3279
      %v3281 = vpop.f32.mrb[0].mxu0
      %v3282 = vpop.f32.mrb[0].mxu0
      %3283 = vdwg.mxu0
      %3284 = vmatprep.subr.bf16.mxu0 %v2830
      %3285 = vmatpush1.bf16.msra.mxu0 %v2827
      %3286 = vmatprep.subr.bf16.mxu0 0
      %3287 = vmatpush1.bf16.msra.mxu0 0
      %3288 = vmatprep.subr.bf16.mxu0 0
      %3289 = vmatpush1.bf16.msra.mxu0 0
      %3290 = vmatprep.subr.bf16.mxu0 0
      %3291 = vmatpush1.bf16.msra.mxu0 0
      %3292 = vmatprep.subr.bf16.mxu0 0
      %3293 = vmatpush1.bf16.msra.mxu0 0
      %3294 = vmatprep.subr.bf16.mxu0 0
      %3295 = vmatpush1.bf16.msra.mxu0 0
      %3296 = vmatprep.subr.bf16.mxu0 0
      %3297 = vmatpush1.bf16.msra.mxu0 0
      %3298 = vmatprep.subr.bf16.mxu0 0
      %3299 = vmatpush1.bf16.msra.mxu0 0
      %3300 = vmatprep.subr.bf16.mxu0 0
      %3301 = vmatpush1.bf16.msra.mxu0 0
      %3302 = vmatprep.subr.bf16.mxu0 0
      %3303 = vmatpush1.bf16.msra.mxu0 0
      %3304 = vmatprep.subr.bf16.mxu0 0
      %3305 = vmatpush1.bf16.msra.mxu0 0
      %3306 = vmatprep.subr.bf16.mxu0 0
      %3307 = vmatpush1.bf16.msra.mxu0 0
      %3308 = vmatprep.subr.bf16.mxu0 0
      %3309 = vmatpush1.bf16.msra.mxu0 0
      %3310 = vmatprep.subr.bf16.mxu0 0
      %3311 = vmatpush1.bf16.msra.mxu0 0
      %3312 = vmatprep.subr.bf16.mxu0 0
      %3313 = vmatpush1.bf16.msra.mxu0 0
      %3314 = vmatprep.subr.bf16.mxu0 0
      %3315 = vmatpush1.bf16.msra.mxu0 0
      %3316 = vmatprep.mubr.bf16.mxu0 0
      %3317 = vmatmul.mubr.bf16.gmra.mrb[0].mxu0 %v3238
      %v3318 = vpop.f32.mrb[0].mxu0
      %v3319 = vadd.f32 0.0, %v3318
      %v3320 = vpop.f32.mrb[0].mxu0
      %v3321 = vadd.f32 0.0, %v3320
      %v3322 = vpop.f32.mrb[0].mxu0
      %v3323 = vpop.f32.mrb[0].mxu0
      %3324 = vdwg.mxu0
      %3325 = vmatprep.subr.bf16.mxu0 %v2836
      %3326 = vmatpush1.bf16.msra.mxu0 %v2833
      %3327 = vmatprep.subr.bf16.mxu0 0
      %3328 = vmatpush1.bf16.msra.mxu0 0
      %3329 = vmatprep.subr.bf16.mxu0 0
      %3330 = vmatpush1.bf16.msra.mxu0 0
      %3331 = vmatprep.subr.bf16.mxu0 0
      %3332 = vmatpush1.bf16.msra.mxu0 0
      %3333 = vmatprep.subr.bf16.mxu0 0
      %3334 = vmatpush1.bf16.msra.mxu0 0
      %3335 = vmatprep.subr.bf16.mxu0 0
      %3336 = vmatpush1.bf16.msra.mxu0 0
      %3337 = vmatprep.subr.bf16.mxu0 0
      %3338 = vmatpush1.bf16.msra.mxu0 0
      %3339 = vmatprep.subr.bf16.mxu0 0
      %3340 = vmatpush1.bf16.msra.mxu0 0
      %3341 = vmatprep.subr.bf16.mxu0 0
      %3342 = vmatpush1.bf16.msra.mxu0 0
      %3343 = vmatprep.subr.bf16.mxu0 0
      %3344 = vmatpush1.bf16.msra.mxu0 0
      %3345 = vmatprep.subr.bf16.mxu0 0
      %3346 = vmatpush1.bf16.msra.mxu0 0
      %3347 = vmatprep.subr.bf16.mxu0 0
      %3348 = vmatpush1.bf16.msra.mxu0 0
      %3349 = vmatprep.subr.bf16.mxu0 0
      %3350 = vmatpush1.bf16.msra.mxu0 0
      %3351 = vmatprep.subr.bf16.mxu0 0
      %3352 = vmatpush1.bf16.msra.mxu0 0
      %3353 = vmatprep.subr.bf16.mxu0 0
      %3354 = vmatpush1.bf16.msra.mxu0 0
      %3355 = vmatprep.subr.bf16.mxu0 0
      %3356 = vmatpush1.bf16.msra.mxu0 0
      %3357 = vmatprep.mubr.bf16.mxu0 0
      %3358 = vmatmul.mubr.bf16.gmra.mrb[0].mxu0 %v3238
      %v3359 = vpop.f32.mrb[0].mxu0
      %v3360 = vadd.f32 0.0, %v3359
      %v3361 = vpop.f32.mrb[0].mxu0
      %v3362 = vadd.f32 0.0, %v3361
      %v3363 = vpop.f32.mrb[0].mxu0
      %v3364 = vpop.f32.mrb[0].mxu0
      %3365 = vdwg.mxu0
      %3366 = vmatprep.subr.bf16.mxu0 %v3241
      %3367 = vmatpush1.bf16.msra.mxu0 %v2839
      %3368 = vmatprep.subr.bf16.mxu0 0
      %3369 = vmatpush1.bf16.msra.mxu0 0
      %3370 = vmatprep.subr.bf16.mxu0 0
      %3371 = vmatpush1.bf16.msra.mxu0 0
      %3372 = vmatprep.subr.bf16.mxu0 0
      %3373 = vmatpush1.bf16.msra.mxu0 0
      %3374 = vmatprep.subr.bf16.mxu0 0
      %3375 = vmatpush1.bf16.msra.mxu0 0
      %3376 = vmatprep.subr.bf16.mxu0 0
      %3377 = vmatpush1.bf16.msra.mxu0 0
      %3378 = vmatprep.subr.bf16.mxu0 0
      %3379 = vmatpush1.bf16.msra.mxu0 0
      %3380 = vmatprep.subr.bf16.mxu0 0
      %3381 = vmatpush1.bf16.msra.mxu0 0
      %3382 = vmatprep.subr.bf16.mxu0 0
      %3383 = vmatpush1.bf16.msra.mxu0 0
      %3384 = vmatprep.subr.bf16.mxu0 0
      %3385 = vmatpush1.bf16.msra.mxu0 0
      %3386 = vmatprep.subr.bf16.mxu0 0
      %3387 = vmatpush1.bf16.msra.mxu0 0
      %3388 = vmatprep.subr.bf16.mxu0 0
      %3389 = vmatpush1.bf16.msra.mxu0 0
      %3390 = vmatprep.subr.bf16.mxu0 0
      %3391 = vmatpush1.bf16.msra.mxu0 0
      %3392 = vmatprep.subr.bf16.mxu0 0
      %3393 = vmatpush1.bf16.msra.mxu0 0
      %3394 = vmatprep.subr.bf16.mxu0 0
      %3395 = vmatpush1.bf16.msra.mxu0 0
      %3396 = vmatprep.subr.bf16.mxu0 0
      %3397 = vmatpush1.bf16.msra.mxu0 0
      %3398 = vmatprep.mubr.bf16.mxu0 0
      %3399 = vmatmul.mubr.bf16.gmra.mrb[0].mxu0 %v3238
      %v3400 = vpop.f32.mrb[0].mxu0
      %v3401 = vadd.f32 0.0, %v3400
      %v3402 = vpop.f32.mrb[0].mxu0
      %v3403 = vadd.f32 0.0, %v3402
      %v3404 = vpop.f32.mrb[0].mxu0
      %v3405 = vpop.f32.mrb[0].mxu0
      %3406 = vdwg.mxu0
      %v3407 = vadd.f32 %v3224, %v3278
      %v3408 = vadd.f32 %v3225, %v3280
      %v3409 = vadd.f32 %v3226, %v3319
      %v3410 = vadd.f32 %v3227, %v3321
      %v3411 = vadd.f32 %v3228, %v3360
      %v3412 = vadd.f32 %v3229, %v3362
      %v3413 = vadd.f32 %v3230, %v3401
      %v3414 = vadd.f32 %v3231, %v3403
      %s3415 = scalar_lea.vmem %s7, 8
      %v3416 = vld [vmem:[%s3415] sm:$0x3]
      %v3418 = vsel %vm819, %v3416, 0
      %v3421 = vsel %vm823, %v2594, 0
      %3423 = vmatprep.subr.bf16.mxu0 %v2608
      %3424 = vmatpush1.bf16.msra.mxu0 %v2605
      %3425 = vmatprep.subr.bf16.mxu0 0
      %3426 = vmatpush1.bf16.msra.mxu0 0
      %3427 = vmatprep.subr.bf16.mxu0 0
      %3428 = vmatpush1.bf16.msra.mxu0 0
      %3429 = vmatprep.subr.bf16.mxu0 0
      %3430 = vmatpush1.bf16.msra.mxu0 0
      %3431 = vmatprep.subr.bf16.mxu0 0
      %3432 = vmatpush1.bf16.msra.mxu0 0
      %3433 = vmatprep.subr.bf16.mxu0 0
      %3434 = vmatpush1.bf16.msra.mxu0 0
      %3435 = vmatprep.subr.bf16.mxu0 0
      %3436 = vmatpush1.bf16.msra.mxu0 0
      %3437 = vmatprep.subr.bf16.mxu0 0
      %3438 = vmatpush1.bf16.msra.mxu0 0
      %3439 = vmatprep.subr.bf16.mxu0 0
      %3440 = vmatpush1.bf16.msra.mxu0 0
      %3441 = vmatprep.subr.bf16.mxu0 0
      %3442 = vmatpush1.bf16.msra.mxu0 0
      %3443 = vmatprep.subr.bf16.mxu0 0
      %3444 = vmatpush1.bf16.msra.mxu0 0
      %3445 = vmatprep.subr.bf16.mxu0 0
      %3446 = vmatpush1.bf16.msra.mxu0 0
      %3447 = vmatprep.subr.bf16.mxu0 0
      %3448 = vmatpush1.bf16.msra.mxu0 0
      %3449 = vmatprep.subr.bf16.mxu0 0
      %3450 = vmatpush1.bf16.msra.mxu0 0
      %3451 = vmatprep.subr.bf16.mxu0 0
      %3452 = vmatpush1.bf16.msra.mxu0 0
      %3453 = vmatprep.subr.bf16.mxu0 0
      %3454 = vmatpush1.bf16.msra.mxu0 0
      %3455 = vmatprep.mubr.bf16.mxu0 0
      %3456 = vmatmul.mubr.bf16.gmra.mrb[0].mxu0 %v3418
      %v3457 = vpop.f32.mrb[0].mxu0
      %v3458 = vadd.f32 0.0, %v3457
      %v3459 = vpop.f32.mrb[0].mxu0
      %v3460 = vadd.f32 0.0, %v3459
      %v3461 = vpop.f32.mrb[0].mxu0
      %v3462 = vpop.f32.mrb[0].mxu0
      %3463 = vdwg.mxu0
      %3464 = vmatprep.subr.bf16.mxu0 %v2614
      %3465 = vmatpush1.bf16.msra.mxu0 %v2611
      %3466 = vmatprep.subr.bf16.mxu0 0
      %3467 = vmatpush1.bf16.msra.mxu0 0
      %3468 = vmatprep.subr.bf16.mxu0 0
      %3469 = vmatpush1.bf16.msra.mxu0 0
      %3470 = vmatprep.subr.bf16.mxu0 0
      %3471 = vmatpush1.bf16.msra.mxu0 0
      %3472 = vmatprep.subr.bf16.mxu0 0
      %3473 = vmatpush1.bf16.msra.mxu0 0
      %3474 = vmatprep.subr.bf16.mxu0 0
      %3475 = vmatpush1.bf16.msra.mxu0 0
      %3476 = vmatprep.subr.bf16.mxu0 0
      %3477 = vmatpush1.bf16.msra.mxu0 0
      %3478 = vmatprep.subr.bf16.mxu0 0
      %3479 = vmatpush1.bf16.msra.mxu0 0
      %3480 = vmatprep.subr.bf16.mxu0 0
      %3481 = vmatpush1.bf16.msra.mxu0 0
      %3482 = vmatprep.subr.bf16.mxu0 0
      %3483 = vmatpush1.bf16.msra.mxu0 0
      %3484 = vmatprep.subr.bf16.mxu0 0
      %3485 = vmatpush1.bf16.msra.mxu0 0
      %3486 = vmatprep.subr.bf16.mxu0 0
      %3487 = vmatpush1.bf16.msra.mxu0 0
      %3488 = vmatprep.subr.bf16.mxu0 0
      %3489 = vmatpush1.bf16.msra.mxu0 0
      %3490 = vmatprep.subr.bf16.mxu0 0
      %3491 = vmatpush1.bf16.msra.mxu0 0
      %3492 = vmatprep.subr.bf16.mxu0 0
      %3493 = vmatpush1.bf16.msra.mxu0 0
      %3494 = vmatprep.subr.bf16.mxu0 0
      %3495 = vmatpush1.bf16.msra.mxu0 0
      %3496 = vmatprep.mubr.bf16.mxu0 0
      %3497 = vmatmul.mubr.bf16.gmra.mrb[0].mxu0 %v3418
      %v3498 = vpop.f32.mrb[0].mxu0
      %v3499 = vadd.f32 0.0, %v3498
      %v3500 = vpop.f32.mrb[0].mxu0
      %v3501 = vadd.f32 0.0, %v3500
      %v3502 = vpop.f32.mrb[0].mxu0
      %v3503 = vpop.f32.mrb[0].mxu0
      %3504 = vdwg.mxu0
      %3505 = vmatprep.subr.bf16.mxu0 %v2620
      %3506 = vmatpush1.bf16.msra.mxu0 %v2617
      %3507 = vmatprep.subr.bf16.mxu0 0
      %3508 = vmatpush1.bf16.msra.mxu0 0
      %3509 = vmatprep.subr.bf16.mxu0 0
      %3510 = vmatpush1.bf16.msra.mxu0 0
      %3511 = vmatprep.subr.bf16.mxu0 0
      %3512 = vmatpush1.bf16.msra.mxu0 0
      %3513 = vmatprep.subr.bf16.mxu0 0
      %3514 = vmatpush1.bf16.msra.mxu0 0
      %3515 = vmatprep.subr.bf16.mxu0 0
      %3516 = vmatpush1.bf16.msra.mxu0 0
      %3517 = vmatprep.subr.bf16.mxu0 0
      %3518 = vmatpush1.bf16.msra.mxu0 0
      %3519 = vmatprep.subr.bf16.mxu0 0
      %3520 = vmatpush1.bf16.msra.mxu0 0
      %3521 = vmatprep.subr.bf16.mxu0 0
      %3522 = vmatpush1.bf16.msra.mxu0 0
      %3523 = vmatprep.subr.bf16.mxu0 0
      %3524 = vmatpush1.bf16.msra.mxu0 0
      %3525 = vmatprep.subr.bf16.mxu0 0
      %3526 = vmatpush1.bf16.msra.mxu0 0
      %3527 = vmatprep.subr.bf16.mxu0 0
      %3528 = vmatpush1.bf16.msra.mxu0 0
      %3529 = vmatprep.subr.bf16.mxu0 0
      %3530 = vmatpush1.bf16.msra.mxu0 0
      %3531 = vmatprep.subr.bf16.mxu0 0
      %3532 = vmatpush1.bf16.msra.mxu0 0
      %3533 = vmatprep.subr.bf16.mxu0 0
      %3534 = vmatpush1.bf16.msra.mxu0 0
      %3535 = vmatprep.subr.bf16.mxu0 0
      %3536 = vmatpush1.bf16.msra.mxu0 0
      %3537 = vmatprep.mubr.bf16.mxu0 0
      %3538 = vmatmul.mubr.bf16.gmra.mrb[0].mxu0 %v3418
      %v3539 = vpop.f32.mrb[0].mxu0
      %v3540 = vadd.f32 0.0, %v3539
      %v3541 = vpop.f32.mrb[0].mxu0
      %v3542 = vadd.f32 0.0, %v3541
      %v3543 = vpop.f32.mrb[0].mxu0
      %v3544 = vpop.f32.mrb[0].mxu0
      %3545 = vdwg.mxu0
      %3546 = vmatprep.subr.bf16.mxu0 %v3421
      %3547 = vmatpush1.bf16.msra.mxu0 %v2623
      %3548 = vmatprep.subr.bf16.mxu0 0
      %3549 = vmatpush1.bf16.msra.mxu0 0
      %3550 = vmatprep.subr.bf16.mxu0 0
      %3551 = vmatpush1.bf16.msra.mxu0 0
      %3552 = vmatprep.subr.bf16.mxu0 0
      %3553 = vmatpush1.bf16.msra.mxu0 0
      %3554 = vmatprep.subr.bf16.mxu0 0
      %3555 = vmatpush1.bf16.msra.mxu0 0
      %3556 = vmatprep.subr.bf16.mxu0 0
      %3557 = vmatpush1.bf16.msra.mxu0 0
      %3558 = vmatprep.subr.bf16.mxu0 0
      %3559 = vmatpush1.bf16.msra.mxu0 0
      %3560 = vmatprep.subr.bf16.mxu0 0
      %3561 = vmatpush1.bf16.msra.mxu0 0
      %3562 = vmatprep.subr.bf16.mxu0 0
      %3563 = vmatpush1.bf16.msra.mxu0 0
      %3564 = vmatprep.subr.bf16.mxu0 0
      %3565 = vmatpush1.bf16.msra.mxu0 0
      %3566 = vmatprep.subr.bf16.mxu0 0
      %3567 = vmatpush1.bf16.msra.mxu0 0
      %3568 = vmatprep.subr.bf16.mxu0 0
      %3569 = vmatpush1.bf16.msra.mxu0 0
      %3570 = vmatprep.subr.bf16.mxu0 0
      %3571 = vmatpush1.bf16.msra.mxu0 0
      %3572 = vmatprep.subr.bf16.mxu0 0
      %3573 = vmatpush1.bf16.msra.mxu0 0
      %3574 = vmatprep.subr.bf16.mxu0 0
      %3575 = vmatpush1.bf16.msra.mxu0 0
      %3576 = vmatprep.subr.bf16.mxu0 0
      %3577 = vmatpush1.bf16.msra.mxu0 0
      %3578 = vmatprep.mubr.bf16.mxu0 0
      %3579 = vmatmul.mubr.bf16.gmra.mrb[0].mxu0 %v3418
      %v3580 = vpop.f32.mrb[0].mxu0
      %v3581 = vadd.f32 0.0, %v3580
      %v3582 = vpop.f32.mrb[0].mxu0
      %v3583 = vadd.f32 0.0, %v3582
      %v3584 = vpop.f32.mrb[0].mxu0
      %v3585 = vpop.f32.mrb[0].mxu0
      %3586 = vdwg.mxu0
      %v3587 = vadd.f32 %v3407, %v3458
      %v3588 = vadd.f32 %v3408, %v3460
      %v3589 = vadd.f32 %v3409, %v3499
      %v3590 = vadd.f32 %v3410, %v3501
      %v3591 = vadd.f32 %v3411, %v3540
      %v3592 = vadd.f32 %v3412, %v3542
      %v3593 = vadd.f32 %v3413, %v3581
      %v3594 = vadd.f32 %v3414, %v3583
      %s3595 = scalar_lea.vmem %s7, 10
      %v3596 = vld [vmem:[%s3595] sm:$0x3]
      %3598 = vrot.lane.b32.xlu0 %v2556, 127
      %v3599 = vpop.permute.xlu0 %3598
      %v3600 = vsel %vm1252, %v3024, %v3599
      %v3602 = vsel %vm819, %v3596, 0
      %v3605 = vsel %vm823, %v3600, 0
      %3607 = vmatprep.subr.bf16.mxu0 %v3043
      %3608 = vmatpush1.bf16.msra.mxu0 %v3040
      %3609 = vmatprep.subr.bf16.mxu0 0
      %3610 = vmatpush1.bf16.msra.mxu0 0
      %3611 = vmatprep.subr.bf16.mxu0 0
      %3612 = vmatpush1.bf16.msra.mxu0 0
      %3613 = vmatprep.subr.bf16.mxu0 0
      %3614 = vmatpush1.bf16.msra.mxu0 0
      %3615 = vmatprep.subr.bf16.mxu0 0
      %3616 = vmatpush1.bf16.msra.mxu0 0
      %3617 = vmatprep.subr.bf16.mxu0 0
      %3618 = vmatpush1.bf16.msra.mxu0 0
      %3619 = vmatprep.subr.bf16.mxu0 0
      %3620 = vmatpush1.bf16.msra.mxu0 0
      %3621 = vmatprep.subr.bf16.mxu0 0
      %3622 = vmatpush1.bf16.msra.mxu0 0
      %3623 = vmatprep.subr.bf16.mxu0 0
      %3624 = vmatpush1.bf16.msra.mxu0 0
      %3625 = vmatprep.subr.bf16.mxu0 0
      %3626 = vmatpush1.bf16.msra.mxu0 0
      %3627 = vmatprep.subr.bf16.mxu0 0
      %3628 = vmatpush1.bf16.msra.mxu0 0
      %3629 = vmatprep.subr.bf16.mxu0 0
      %3630 = vmatpush1.bf16.msra.mxu0 0
      %3631 = vmatprep.subr.bf16.mxu0 0
      %3632 = vmatpush1.bf16.msra.mxu0 0
      %3633 = vmatprep.subr.bf16.mxu0 0
      %3634 = vmatpush1.bf16.msra.mxu0 0
      %3635 = vmatprep.subr.bf16.mxu0 0
      %3636 = vmatpush1.bf16.msra.mxu0 0
      %3637 = vmatprep.subr.bf16.mxu0 0
      %3638 = vmatpush1.bf16.msra.mxu0 0
      %3639 = vmatprep.mubr.bf16.mxu0 0
      %3640 = vmatmul.mubr.bf16.gmra.mrb[0].mxu0 %v3602
      %v3641 = vpop.f32.mrb[0].mxu0
      %v3642 = vadd.f32 0.0, %v3641
      %v3643 = vpop.f32.mrb[0].mxu0
      %v3644 = vadd.f32 0.0, %v3643
      %v3645 = vpop.f32.mrb[0].mxu0
      %v3646 = vpop.f32.mrb[0].mxu0
      %3647 = vdwg.mxu0
      %3648 = vmatprep.subr.bf16.mxu0 %v3049
      %3649 = vmatpush1.bf16.msra.mxu0 %v3046
      %3650 = vmatprep.subr.bf16.mxu0 0
      %3651 = vmatpush1.bf16.msra.mxu0 0
      %3652 = vmatprep.subr.bf16.mxu0 0
      %3653 = vmatpush1.bf16.msra.mxu0 0
      %3654 = vmatprep.subr.bf16.mxu0 0
      %3655 = vmatpush1.bf16.msra.mxu0 0
      %3656 = vmatprep.subr.bf16.mxu0 0
      %3657 = vmatpush1.bf16.msra.mxu0 0
      %3658 = vmatprep.subr.bf16.mxu0 0
      %3659 = vmatpush1.bf16.msra.mxu0 0
      %3660 = vmatprep.subr.bf16.mxu0 0
      %3661 = vmatpush1.bf16.msra.mxu0 0
      %3662 = vmatprep.subr.bf16.mxu0 0
      %3663 = vmatpush1.bf16.msra.mxu0 0
      %3664 = vmatprep.subr.bf16.mxu0 0
      %3665 = vmatpush1.bf16.msra.mxu0 0
      %3666 = vmatprep.subr.bf16.mxu0 0
      %3667 = vmatpush1.bf16.msra.mxu0 0
      %3668 = vmatprep.subr.bf16.mxu0 0
      %3669 = vmatpush1.bf16.msra.mxu0 0
      %3670 = vmatprep.subr.bf16.mxu0 0
      %3671 = vmatpush1.bf16.msra.mxu0 0
      %3672 = vmatprep.subr.bf16.mxu0 0
      %3673 = vmatpush1.bf16.msra.mxu0 0
      %3674 = vmatprep.subr.bf16.mxu0 0
      %3675 = vmatpush1.bf16.msra.mxu0 0
      %3676 = vmatprep.subr.bf16.mxu0 0
      %3677 = vmatpush1.bf16.msra.mxu0 0
      %3678 = vmatprep.subr.bf16.mxu0 0
      %3679 = vmatpush1.bf16.msra.mxu0 0
      %3680 = vmatprep.mubr.bf16.mxu0 0
      %3681 = vmatmul.mubr.bf16.gmra.mrb[0].mxu0 %v3602
      %v3682 = vpop.f32.mrb[0].mxu0
      %v3683 = vadd.f32 0.0, %v3682
      %v3684 = vpop.f32.mrb[0].mxu0
      %v3685 = vadd.f32 0.0, %v3684
      %v3686 = vpop.f32.mrb[0].mxu0
      %v3687 = vpop.f32.mrb[0].mxu0
      %3688 = vdwg.mxu0
      %3689 = vmatprep.subr.bf16.mxu0 %v3055
      %3690 = vmatpush1.bf16.msra.mxu0 %v3052
      %3691 = vmatprep.subr.bf16.mxu0 0
      %3692 = vmatpush1.bf16.msra.mxu0 0
      %3693 = vmatprep.subr.bf16.mxu0 0
      %3694 = vmatpush1.bf16.msra.mxu0 0
      %3695 = vmatprep.subr.bf16.mxu0 0
      %3696 = vmatpush1.bf16.msra.mxu0 0
      %3697 = vmatprep.subr.bf16.mxu0 0
      %3698 = vmatpush1.bf16.msra.mxu0 0
      %3699 = vmatprep.subr.bf16.mxu0 0
      %3700 = vmatpush1.bf16.msra.mxu0 0
      %3701 = vmatprep.subr.bf16.mxu0 0
      %3702 = vmatpush1.bf16.msra.mxu0 0
      %3703 = vmatprep.subr.bf16.mxu0 0
      %3704 = vmatpush1.bf16.msra.mxu0 0
      %3705 = vmatprep.subr.bf16.mxu0 0
      %3706 = vmatpush1.bf16.msra.mxu0 0
      %3707 = vmatprep.subr.bf16.mxu0 0
      %3708 = vmatpush1.bf16.msra.mxu0 0
      %3709 = vmatprep.subr.bf16.mxu0 0
      %3710 = vmatpush1.bf16.msra.mxu0 0
      %3711 = vmatprep.subr.bf16.mxu0 0
      %3712 = vmatpush1.bf16.msra.mxu0 0
      %3713 = vmatprep.subr.bf16.mxu0 0
      %3714 = vmatpush1.bf16.msra.mxu0 0
      %3715 = vmatprep.subr.bf16.mxu0 0
      %3716 = vmatpush1.bf16.msra.mxu0 0
      %3717 = vmatprep.subr.bf16.mxu0 0
      %3718 = vmatpush1.bf16.msra.mxu0 0
      %3719 = vmatprep.subr.bf16.mxu0 0
      %3720 = vmatpush1.bf16.msra.mxu0 0
      %3721 = vmatprep.mubr.bf16.mxu0 0
      %3722 = vmatmul.mubr.bf16.gmra.mrb[0].mxu0 %v3602
      %v3723 = vpop.f32.mrb[0].mxu0
      %v3724 = vadd.f32 0.0, %v3723
      %v3725 = vpop.f32.mrb[0].mxu0
      %v3726 = vadd.f32 0.0, %v3725
      %v3727 = vpop.f32.mrb[0].mxu0
      %v3728 = vpop.f32.mrb[0].mxu0
      %3729 = vdwg.mxu0
      %3730 = vmatprep.subr.bf16.mxu0 %v3605
      %3731 = vmatpush1.bf16.msra.mxu0 %v3058
      %3732 = vmatprep.subr.bf16.mxu0 0
      %3733 = vmatpush1.bf16.msra.mxu0 0
      %3734 = vmatprep.subr.bf16.mxu0 0
      %3735 = vmatpush1.bf16.msra.mxu0 0
      %3736 = vmatprep.subr.bf16.mxu0 0
      %3737 = vmatpush1.bf16.msra.mxu0 0
      %3738 = vmatprep.subr.bf16.mxu0 0
      %3739 = vmatpush1.bf16.msra.mxu0 0
      %3740 = vmatprep.subr.bf16.mxu0 0
      %3741 = vmatpush1.bf16.msra.mxu0 0
      %3742 = vmatprep.subr.bf16.mxu0 0
      %3743 = vmatpush1.bf16.msra.mxu0 0
      %3744 = vmatprep.subr.bf16.mxu0 0
      %3745 = vmatpush1.bf16.msra.mxu0 0
      %3746 = vmatprep.subr.bf16.mxu0 0
      %3747 = vmatpush1.bf16.msra.mxu0 0
      %3748 = vmatprep.subr.bf16.mxu0 0
      %3749 = vmatpush1.bf16.msra.mxu0 0
      %3750 = vmatprep.subr.bf16.mxu0 0
      %3751 = vmatpush1.bf16.msra.mxu0 0
      %3752 = vmatprep.subr.bf16.mxu0 0
      %3753 = vmatpush1.bf16.msra.mxu0 0
      %3754 = vmatprep.subr.bf16.mxu0 0
      %3755 = vmatpush1.bf16.msra.mxu0 0
      %3756 = vmatprep.subr.bf16.mxu0 0
      %3757 = vmatpush1.bf16.msra.mxu0 0
      %3758 = vmatprep.subr.bf16.mxu0 0
      %3759 = vmatpush1.bf16.msra.mxu0 0
      %3760 = vmatprep.subr.bf16.mxu0 0
      %3761 = vmatpush1.bf16.msra.mxu0 0
      %3762 = vmatprep.mubr.bf16.mxu0 0
      %3763 = vmatmul.mubr.bf16.gmra.mrb[0].mxu0 %v3602
      %v3764 = vpop.f32.mrb[0].mxu0
      %v3765 = vadd.f32 0.0, %v3764
      %v3766 = vpop.f32.mrb[0].mxu0
      %v3767 = vadd.f32 0.0, %v3766
      %v3768 = vpop.f32.mrb[0].mxu0
      %v3769 = vpop.f32.mrb[0].mxu0
      %3770 = vdwg.mxu0
      %v3771 = vadd.f32 %v3587, %v3642
      %v3772 = vadd.f32 %v3588, %v3644
      %v3773 = vadd.f32 %v3589, %v3683
      %v3774 = vadd.f32 %v3590, %v3685
      %v3775 = vadd.f32 %v3591, %v3724
      %v3776 = vadd.f32 %v3592, %v3726
      %v3777 = vadd.f32 %v3593, %v3765
      %v3778 = vadd.f32 %v3594, %v3767
      %s3779 = scalar_lea.vmem %s7, 12
      %v3780 = vld [vmem:[%s3779] sm:$0x3]
      %3781 = vrot.lane.b32.xlu0 %v2556, 1
      %v3782 = vpop.permute.xlu0 %3781
      %v3783 = vsel %vm1032, %v3235, %v3782
      %v3785 = vsel %vm819, %v3780, 0
      %v3788 = vsel %vm823, %v3783, 0
      %3790 = vmatprep.subr.bf16.mxu0 %v2827
      %3791 = vmatpush1.bf16.msra.mxu0 %v2824
      %3792 = vmatprep.subr.bf16.mxu0 0
      %3793 = vmatpush1.bf16.msra.mxu0 0
      %3794 = vmatprep.subr.bf16.mxu0 0
      %3795 = vmatpush1.bf16.msra.mxu0 0
      %3796 = vmatprep.subr.bf16.mxu0 0
      %3797 = vmatpush1.bf16.msra.mxu0 0
      %3798 = vmatprep.subr.bf16.mxu0 0
      %3799 = vmatpush1.bf16.msra.mxu0 0
      %3800 = vmatprep.subr.bf16.mxu0 0
      %3801 = vmatpush1.bf16.msra.mxu0 0
      %3802 = vmatprep.subr.bf16.mxu0 0
      %3803 = vmatpush1.bf16.msra.mxu0 0
      %3804 = vmatprep.subr.bf16.mxu0 0
      %3805 = vmatpush1.bf16.msra.mxu0 0
      %3806 = vmatprep.subr.bf16.mxu0 0
      %3807 = vmatpush1.bf16.msra.mxu0 0
      %3808 = vmatprep.subr.bf16.mxu0 0
      %3809 = vmatpush1.bf16.msra.mxu0 0
      %3810 = vmatprep.subr.bf16.mxu0 0
      %3811 = vmatpush1.bf16.msra.mxu0 0
      %3812 = vmatprep.subr.bf16.mxu0 0
      %3813 = vmatpush1.bf16.msra.mxu0 0
      %3814 = vmatprep.subr.bf16.mxu0 0
      %3815 = vmatpush1.bf16.msra.mxu0 0
      %3816 = vmatprep.subr.bf16.mxu0 0
      %3817 = vmatpush1.bf16.msra.mxu0 0
      %3818 = vmatprep.subr.bf16.mxu0 0
      %3819 = vmatpush1.bf16.msra.mxu0 0
      %3820 = vmatprep.subr.bf16.mxu0 0
      %3821 = vmatpush1.bf16.msra.mxu0 0
      %3822 = vmatprep.mubr.bf16.mxu0 0
      %3823 = vmatmul.mubr.bf16.gmra.mrb[0].mxu0 %v3785
      %v3824 = vpop.f32.mrb[0].mxu0
      %v3825 = vadd.f32 0.0, %v3824
      %v3826 = vpop.f32.mrb[0].mxu0
      %v3827 = vadd.f32 0.0, %v3826
      %v3828 = vpop.f32.mrb[0].mxu0
      %v3829 = vpop.f32.mrb[0].mxu0
      %3830 = vdwg.mxu0
      %3831 = vmatprep.subr.bf16.mxu0 %v2833
      %3832 = vmatpush1.bf16.msra.mxu0 %v2830
      %3833 = vmatprep.subr.bf16.mxu0 0
      %3834 = vmatpush1.bf16.msra.mxu0 0
      %3835 = vmatprep.subr.bf16.mxu0 0
      %3836 = vmatpush1.bf16.msra.mxu0 0
      %3837 = vmatprep.subr.bf16.mxu0 0
      %3838 = vmatpush1.bf16.msra.mxu0 0
      %3839 = vmatprep.subr.bf16.mxu0 0
      %3840 = vmatpush1.bf16.msra.mxu0 0
      %3841 = vmatprep.subr.bf16.mxu0 0
      %3842 = vmatpush1.bf16.msra.mxu0 0
      %3843 = vmatprep.subr.bf16.mxu0 0
      %3844 = vmatpush1.bf16.msra.mxu0 0
      %3845 = vmatprep.subr.bf16.mxu0 0
      %3846 = vmatpush1.bf16.msra.mxu0 0
      %3847 = vmatprep.subr.bf16.mxu0 0
      %3848 = vmatpush1.bf16.msra.mxu0 0
      %3849 = vmatprep.subr.bf16.mxu0 0
      %3850 = vmatpush1.bf16.msra.mxu0 0
      %3851 = vmatprep.subr.bf16.mxu0 0
      %3852 = vmatpush1.bf16.msra.mxu0 0
      %3853 = vmatprep.subr.bf16.mxu0 0
      %3854 = vmatpush1.bf16.msra.mxu0 0
      %3855 = vmatprep.subr.bf16.mxu0 0
      %3856 = vmatpush1.bf16.msra.mxu0 0
      %3857 = vmatprep.subr.bf16.mxu0 0
      %3858 = vmatpush1.bf16.msra.mxu0 0
      %3859 = vmatprep.subr.bf16.mxu0 0
      %3860 = vmatpush1.bf16.msra.mxu0 0
      %3861 = vmatprep.subr.bf16.mxu0 0
      %3862 = vmatpush1.bf16.msra.mxu0 0
      %3863 = vmatprep.mubr.bf16.mxu0 0
      %3864 = vmatmul.mubr.bf16.gmra.mrb[0].mxu0 %v3785
      %v3865 = vpop.f32.mrb[0].mxu0
      %v3866 = vadd.f32 0.0, %v3865
      %v3867 = vpop.f32.mrb[0].mxu0
      %v3868 = vadd.f32 0.0, %v3867
      %v3869 = vpop.f32.mrb[0].mxu0
      %v3870 = vpop.f32.mrb[0].mxu0
      %3871 = vdwg.mxu0
      %3872 = vmatprep.subr.bf16.mxu0 %v2839
      %3873 = vmatpush1.bf16.msra.mxu0 %v2836
      %3874 = vmatprep.subr.bf16.mxu0 0
      %3875 = vmatpush1.bf16.msra.mxu0 0
      %3876 = vmatprep.subr.bf16.mxu0 0
      %3877 = vmatpush1.bf16.msra.mxu0 0
      %3878 = vmatprep.subr.bf16.mxu0 0
      %3879 = vmatpush1.bf16.msra.mxu0 0
      %3880 = vmatprep.subr.bf16.mxu0 0
      %3881 = vmatpush1.bf16.msra.mxu0 0
      %3882 = vmatprep.subr.bf16.mxu0 0
      %3883 = vmatpush1.bf16.msra.mxu0 0
      %3884 = vmatprep.subr.bf16.mxu0 0
      %3885 = vmatpush1.bf16.msra.mxu0 0
      %3886 = vmatprep.subr.bf16.mxu0 0
      %3887 = vmatpush1.bf16.msra.mxu0 0
      %3888 = vmatprep.subr.bf16.mxu0 0
      %3889 = vmatpush1.bf16.msra.mxu0 0
      %3890 = vmatprep.subr.bf16.mxu0 0
      %3891 = vmatpush1.bf16.msra.mxu0 0
      %3892 = vmatprep.subr.bf16.mxu0 0
      %3893 = vmatpush1.bf16.msra.mxu0 0
      %3894 = vmatprep.subr.bf16.mxu0 0
      %3895 = vmatpush1.bf16.msra.mxu0 0
      %3896 = vmatprep.subr.bf16.mxu0 0
      %3897 = vmatpush1.bf16.msra.mxu0 0
      %3898 = vmatprep.subr.bf16.mxu0 0
      %3899 = vmatpush1.bf16.msra.mxu0 0
      %3900 = vmatprep.subr.bf16.mxu0 0
      %3901 = vmatpush1.bf16.msra.mxu0 0
      %3902 = vmatprep.subr.bf16.mxu0 0
      %3903 = vmatpush1.bf16.msra.mxu0 0
      %3904 = vmatprep.mubr.bf16.mxu0 0
      %3905 = vmatmul.mubr.bf16.gmra.mrb[0].mxu0 %v3785
      %v3906 = vpop.f32.mrb[0].mxu0
      %v3907 = vadd.f32 0.0, %v3906
      %v3908 = vpop.f32.mrb[0].mxu0
      %v3909 = vadd.f32 0.0, %v3908
      %v3910 = vpop.f32.mrb[0].mxu0
      %v3911 = vpop.f32.mrb[0].mxu0
      %3912 = vdwg.mxu0
      %3913 = vmatprep.subr.bf16.mxu0 %v3788
      %3914 = vmatpush1.bf16.msra.mxu0 %v3241
      %3915 = vmatprep.subr.bf16.mxu0 0
      %3916 = vmatpush1.bf16.msra.mxu0 0
      %3917 = vmatprep.subr.bf16.mxu0 0
      %3918 = vmatpush1.bf16.msra.mxu0 0
      %3919 = vmatprep.subr.bf16.mxu0 0
      %3920 = vmatpush1.bf16.msra.mxu0 0
      %3921 = vmatprep.subr.bf16.mxu0 0
      %3922 = vmatpush1.bf16.msra.mxu0 0
      %3923 = vmatprep.subr.bf16.mxu0 0
      %3924 = vmatpush1.bf16.msra.mxu0 0
      %3925 = vmatprep.subr.bf16.mxu0 0
      %3926 = vmatpush1.bf16.msra.mxu0 0
      %3927 = vmatprep.subr.bf16.mxu0 0
      %3928 = vmatpush1.bf16.msra.mxu0 0
      %3929 = vmatprep.subr.bf16.mxu0 0
      %3930 = vmatpush1.bf16.msra.mxu0 0
      %3931 = vmatprep.subr.bf16.mxu0 0
      %3932 = vmatpush1.bf16.msra.mxu0 0
      %3933 = vmatprep.subr.bf16.mxu0 0
      %3934 = vmatpush1.bf16.msra.mxu0 0
      %3935 = vmatprep.subr.bf16.mxu0 0
      %3936 = vmatpush1.bf16.msra.mxu0 0
      %3937 = vmatprep.subr.bf16.mxu0 0
      %3938 = vmatpush1.bf16.msra.mxu0 0
      %3939 = vmatprep.subr.bf16.mxu0 0
      %3940 = vmatpush1.bf16.msra.mxu0 0
      %3941 = vmatprep.subr.bf16.mxu0 0
      %3942 = vmatpush1.bf16.msra.mxu0 0
      %3943 = vmatprep.subr.bf16.mxu0 0
      %3944 = vmatpush1.bf16.msra.mxu0 0
      %3945 = vmatprep.mubr.bf16.mxu0 0
      %3946 = vmatmul.mubr.bf16.gmra.mrb[0].mxu0 %v3785
      %v3947 = vpop.f32.mrb[0].mxu0
      %v3948 = vadd.f32 0.0, %v3947
      %v3949 = vpop.f32.mrb[0].mxu0
      %v3950 = vadd.f32 0.0, %v3949
      %v3951 = vpop.f32.mrb[0].mxu0
      %v3952 = vpop.f32.mrb[0].mxu0
      %3953 = vdwg.mxu0
      %v3954 = vadd.f32 %v3771, %v3825
      %v3955 = vadd.f32 %v3772, %v3827
      %v3956 = vadd.f32 %v3773, %v3866
      %v3957 = vadd.f32 %v3774, %v3868
      %v3958 = vadd.f32 %v3775, %v3907
      %v3959 = vadd.f32 %v3776, %v3909
      %v3960 = vadd.f32 %v3777, %v3948
      %v3961 = vadd.f32 %v3778, %v3950
      %s3962 = scalar_lea.vmem %s7, 14
      %v3963 = vld [vmem:[%s3962] sm:$0x3]
      %v3965 = vsel %vm819, %v3963, 0
      %v3968 = vsel %vm823, %v2556, 0
      %3970 = vmatprep.subr.bf16.mxu0 %v2611
      %3971 = vmatpush1.bf16.msra.mxu0 %v2608
      %3972 = vmatprep.subr.bf16.mxu0 0
      %3973 = vmatpush1.bf16.msra.mxu0 0
      %3974 = vmatprep.subr.bf16.mxu0 0
      %3975 = vmatpush1.bf16.msra.mxu0 0
      %3976 = vmatprep.subr.bf16.mxu0 0
      %3977 = vmatpush1.bf16.msra.mxu0 0
      %3978 = vmatprep.subr.bf16.mxu0 0
      %3979 = vmatpush1.bf16.msra.mxu0 0
      %3980 = vmatprep.subr.bf16.mxu0 0
      %3981 = vmatpush1.bf16.msra.mxu0 0
      %3982 = vmatprep.subr.bf16.mxu0 0
      %3983 = vmatpush1.bf16.msra.mxu0 0
      %3984 = vmatprep.subr.bf16.mxu0 0
      %3985 = vmatpush1.bf16.msra.mxu0 0
      %3986 = vmatprep.subr.bf16.mxu0 0
      %3987 = vmatpush1.bf16.msra.mxu0 0
      %3988 = vmatprep.subr.bf16.mxu0 0
      %3989 = vmatpush1.bf16.msra.mxu0 0
      %3990 = vmatprep.subr.bf16.mxu0 0
      %3991 = vmatpush1.bf16.msra.mxu0 0
      %3992 = vmatprep.subr.bf16.mxu0 0
      %3993 = vmatpush1.bf16.msra.mxu0 0
      %3994 = vmatprep.subr.bf16.mxu0 0
      %3995 = vmatpush1.bf16.msra.mxu0 0
      %3996 = vmatprep.subr.bf16.mxu0 0
      %3997 = vmatpush1.bf16.msra.mxu0 0
      %3998 = vmatprep.subr.bf16.mxu0 0
      %3999 = vmatpush1.bf16.msra.mxu0 0
      %4000 = vmatprep.subr.bf16.mxu0 0
      %4001 = vmatpush1.bf16.msra.mxu0 0
      %4002 = vmatprep.mubr.bf16.mxu0 0
      %4003 = vmatmul.mubr.bf16.gmra.mrb[0].mxu0 %v3965
      %v4004 = vpop.f32.mrb[0].mxu0
      %v4005 = vadd.f32 0.0, %v4004
      %v4006 = vpop.f32.mrb[0].mxu0
      %v4007 = vadd.f32 0.0, %v4006
      %v4008 = vpop.f32.mrb[0].mxu0
      %v4009 = vpop.f32.mrb[0].mxu0
      %4010 = vdwg.mxu0
      %4011 = vmatprep.subr.bf16.mxu0 %v2617
      %4012 = vmatpush1.bf16.msra.mxu0 %v2614
      %4013 = vmatprep.subr.bf16.mxu0 0
      %4014 = vmatpush1.bf16.msra.mxu0 0
      %4015 = vmatprep.subr.bf16.mxu0 0
      %4016 = vmatpush1.bf16.msra.mxu0 0
      %4017 = vmatprep.subr.bf16.mxu0 0
      %4018 = vmatpush1.bf16.msra.mxu0 0
      %4019 = vmatprep.subr.bf16.mxu0 0
      %4020 = vmatpush1.bf16.msra.mxu0 0
      %4021 = vmatprep.subr.bf16.mxu0 0
      %4022 = vmatpush1.bf16.msra.mxu0 0
      %4023 = vmatprep.subr.bf16.mxu0 0
      %4024 = vmatpush1.bf16.msra.mxu0 0
      %4025 = vmatprep.subr.bf16.mxu0 0
      %4026 = vmatpush1.bf16.msra.mxu0 0
      %4027 = vmatprep.subr.bf16.mxu0 0
      %4028 = vmatpush1.bf16.msra.mxu0 0
      %4029 = vmatprep.subr.bf16.mxu0 0
      %4030 = vmatpush1.bf16.msra.mxu0 0
      %4031 = vmatprep.subr.bf16.mxu0 0
      %4032 = vmatpush1.bf16.msra.mxu0 0
      %4033 = vmatprep.subr.bf16.mxu0 0
      %4034 = vmatpush1.bf16.msra.mxu0 0
      %4035 = vmatprep.subr.bf16.mxu0 0
      %4036 = vmatpush1.bf16.msra.mxu0 0
      %4037 = vmatprep.subr.bf16.mxu0 0
      %4038 = vmatpush1.bf16.msra.mxu0 0
      %4039 = vmatprep.subr.bf16.mxu0 0
      %4040 = vmatpush1.bf16.msra.mxu0 0
      %4041 = vmatprep.subr.bf16.mxu0 0
      %4042 = vmatpush1.bf16.msra.mxu0 0
      %4043 = vmatprep.mubr.bf16.mxu0 0
      %4044 = vmatmul.mubr.bf16.gmra.mrb[0].mxu0 %v3965
      %v4045 = vpop.f32.mrb[0].mxu0
      %v4046 = vadd.f32 0.0, %v4045
      %v4047 = vpop.f32.mrb[0].mxu0
      %v4048 = vadd.f32 0.0, %v4047
      %v4049 = vpop.f32.mrb[0].mxu0
      %v4050 = vpop.f32.mrb[0].mxu0
      %4051 = vdwg.mxu0
      %4052 = vmatprep.subr.bf16.mxu0 %v2623
      %4053 = vmatpush1.bf16.msra.mxu0 %v2620
      %4054 = vmatprep.subr.bf16.mxu0 0
      %4055 = vmatpush1.bf16.msra.mxu0 0
      %4056 = vmatprep.subr.bf16.mxu0 0
      %4057 = vmatpush1.bf16.msra.mxu0 0
      %4058 = vmatprep.subr.bf16.mxu0 0
      %4059 = vmatpush1.bf16.msra.mxu0 0
      %4060 = vmatprep.subr.bf16.mxu0 0
      %4061 = vmatpush1.bf16.msra.mxu0 0
      %4062 = vmatprep.subr.bf16.mxu0 0
      %4063 = vmatpush1.bf16.msra.mxu0 0
      %4064 = vmatprep.subr.bf16.mxu0 0
      %4065 = vmatpush1.bf16.msra.mxu0 0
      %4066 = vmatprep.subr.bf16.mxu0 0
      %4067 = vmatpush1.bf16.msra.mxu0 0
      %4068 = vmatprep.subr.bf16.mxu0 0
      %4069 = vmatpush1.bf16.msra.mxu0 0
      %4070 = vmatprep.subr.bf16.mxu0 0
      %4071 = vmatpush1.bf16.msra.mxu0 0
      %4072 = vmatprep.subr.bf16.mxu0 0
      %4073 = vmatpush1.bf16.msra.mxu0 0
      %4074 = vmatprep.subr.bf16.mxu0 0
      %4075 = vmatpush1.bf16.msra.mxu0 0
      %4076 = vmatprep.subr.bf16.mxu0 0
      %4077 = vmatpush1.bf16.msra.mxu0 0
      %4078 = vmatprep.subr.bf16.mxu0 0
      %4079 = vmatpush1.bf16.msra.mxu0 0
      %4080 = vmatprep.subr.bf16.mxu0 0
      %4081 = vmatpush1.bf16.msra.mxu0 0
      %4082 = vmatprep.subr.bf16.mxu0 0
      %4083 = vmatpush1.bf16.msra.mxu0 0
      %4084 = vmatprep.mubr.bf16.mxu0 0
      %4085 = vmatmul.mubr.bf16.gmra.mrb[0].mxu0 %v3965
      %v4086 = vpop.f32.mrb[0].mxu0
      %v4087 = vadd.f32 0.0, %v4086
      %v4088 = vpop.f32.mrb[0].mxu0
      %v4089 = vadd.f32 0.0, %v4088
      %v4090 = vpop.f32.mrb[0].mxu0
      %v4091 = vpop.f32.mrb[0].mxu0
      %4092 = vdwg.mxu0
      %4093 = vmatprep.subr.bf16.mxu0 %v3968
      %4094 = vmatpush1.bf16.msra.mxu0 %v3421
      %4095 = vmatprep.subr.bf16.mxu0 0
      %4096 = vmatpush1.bf16.msra.mxu0 0
      %4097 = vmatprep.subr.bf16.mxu0 0
      %4098 = vmatpush1.bf16.msra.mxu0 0
      %4099 = vmatprep.subr.bf16.mxu0 0
      %4100 = vmatpush1.bf16.msra.mxu0 0
      %4101 = vmatprep.subr.bf16.mxu0 0
      %4102 = vmatpush1.bf16.msra.mxu0 0
      %4103 = vmatprep.subr.bf16.mxu0 0
      %4104 = vmatpush1.bf16.msra.mxu0 0
      %4105 = vmatprep.subr.bf16.mxu0 0
      %4106 = vmatpush1.bf16.msra.mxu0 0
      %4107 = vmatprep.subr.bf16.mxu0 0
      %4108 = vmatpush1.bf16.msra.mxu0 0
      %4109 = vmatprep.subr.bf16.mxu0 0
      %4110 = vmatpush1.bf16.msra.mxu0 0
      %4111 = vmatprep.subr.bf16.mxu0 0
      %4112 = vmatpush1.bf16.msra.mxu0 0
      %4113 = vmatprep.subr.bf16.mxu0 0
      %4114 = vmatpush1.bf16.msra.mxu0 0
      %4115 = vmatprep.subr.bf16.mxu0 0
      %4116 = vmatpush1.bf16.msra.mxu0 0
      %4117 = vmatprep.subr.bf16.mxu0 0
      %4118 = vmatpush1.bf16.msra.mxu0 0
      %4119 = vmatprep.subr.bf16.mxu0 0
      %4120 = vmatpush1.bf16.msra.mxu0 0
      %4121 = vmatprep.subr.bf16.mxu0 0
      %4122 = vmatpush1.bf16.msra.mxu0 0
      %4123 = vmatprep.subr.bf16.mxu0 0
      %4124 = vmatpush1.bf16.msra.mxu0 0
      %4125 = vmatprep.mubr.bf16.mxu0 0
      %4126 = vmatmul.mubr.bf16.gmra.mrb[0].mxu0 %v3965
      %v4127 = vpop.f32.mrb[0].mxu0
      %v4128 = vadd.f32 0.0, %v4127
      %v4129 = vpop.f32.mrb[0].mxu0
      %v4130 = vadd.f32 0.0, %v4129
      %v4131 = vpop.f32.mrb[0].mxu0
      %v4132 = vpop.f32.mrb[0].mxu0
      %4133 = vdwg.mxu0
      %v4134 = vadd.f32 %v3954, %v4005
      %v4135 = vadd.f32 %v3955, %v4007
      %v4136 = vadd.f32 %v3956, %v4046
      %v4137 = vadd.f32 %v3957, %v4048
      %v4138 = vadd.f32 %v3958, %v4087
      %v4139 = vadd.f32 %v3959, %v4089
      %v4140 = vadd.f32 %v3960, %v4128
      %v4141 = vadd.f32 %v3961, %v4130
      %s4142 = scalar_lea.vmem %s7, 16
      %v4143 = vld [vmem:[%s4142] sm:$0x3]
      %v4144 = vsel %vm1252, %v3599, %v2373
      %v4146 = vsel %vm819, %v4143, 0
      %v4149 = vsel %vm823, %v4144, 0
      %4151 = vmatprep.subr.bf16.mxu0 %v3046
      %4152 = vmatpush1.bf16.msra.mxu0 %v3043
      %4153 = vmatprep.subr.bf16.mxu0 0
      %4154 = vmatpush1.bf16.msra.mxu0 0
      %4155 = vmatprep.subr.bf16.mxu0 0
      %4156 = vmatpush1.bf16.msra.mxu0 0
      %4157 = vmatprep.subr.bf16.mxu0 0
      %4158 = vmatpush1.bf16.msra.mxu0 0
      %4159 = vmatprep.subr.bf16.mxu0 0
      %4160 = vmatpush1.bf16.msra.mxu0 0
      %4161 = vmatprep.subr.bf16.mxu0 0
      %4162 = vmatpush1.bf16.msra.mxu0 0
      %4163 = vmatprep.subr.bf16.mxu0 0
      %4164 = vmatpush1.bf16.msra.mxu0 0
      %4165 = vmatprep.subr.bf16.mxu0 0
      %4166 = vmatpush1.bf16.msra.mxu0 0
      %4167 = vmatprep.subr.bf16.mxu0 0
      %4168 = vmatpush1.bf16.msra.mxu0 0
      %4169 = vmatprep.subr.bf16.mxu0 0
      %4170 = vmatpush1.bf16.msra.mxu0 0
      %4171 = vmatprep.subr.bf16.mxu0 0
      %4172 = vmatpush1.bf16.msra.mxu0 0
      %4173 = vmatprep.subr.bf16.mxu0 0
      %4174 = vmatpush1.bf16.msra.mxu0 0
      %4175 = vmatprep.subr.bf16.mxu0 0
      %4176 = vmatpush1.bf16.msra.mxu0 0
      %4177 = vmatprep.subr.bf16.mxu0 0
      %4178 = vmatpush1.bf16.msra.mxu0 0
      %4179 = vmatprep.subr.bf16.mxu0 0
      %4180 = vmatpush1.bf16.msra.mxu0 0
      %4181 = vmatprep.subr.bf16.mxu0 0
      %4182 = vmatpush1.bf16.msra.mxu0 0
      %4183 = vmatprep.mubr.bf16.mxu0 0
      %4184 = vmatmul.mubr.bf16.gmra.mrb[0].mxu0 %v4146
      %v4185 = vpop.f32.mrb[0].mxu0
      %v4186 = vadd.f32 0.0, %v4185
      %v4187 = vpop.f32.mrb[0].mxu0
      %v4188 = vadd.f32 0.0, %v4187
      %v4189 = vpop.f32.mrb[0].mxu0
      %v4190 = vpop.f32.mrb[0].mxu0
      %4191 = vdwg.mxu0
      %4192 = vmatprep.subr.bf16.mxu0 %v3052
      %4193 = vmatpush1.bf16.msra.mxu0 %v3049
      %4194 = vmatprep.subr.bf16.mxu0 0
      %4195 = vmatpush1.bf16.msra.mxu0 0
      %4196 = vmatprep.subr.bf16.mxu0 0
      %4197 = vmatpush1.bf16.msra.mxu0 0
      %4198 = vmatprep.subr.bf16.mxu0 0
      %4199 = vmatpush1.bf16.msra.mxu0 0
      %4200 = vmatprep.subr.bf16.mxu0 0
      %4201 = vmatpush1.bf16.msra.mxu0 0
      %4202 = vmatprep.subr.bf16.mxu0 0
      %4203 = vmatpush1.bf16.msra.mxu0 0
      %4204 = vmatprep.subr.bf16.mxu0 0
      %4205 = vmatpush1.bf16.msra.mxu0 0
      %4206 = vmatprep.subr.bf16.mxu0 0
      %4207 = vmatpush1.bf16.msra.mxu0 0
      %4208 = vmatprep.subr.bf16.mxu0 0
      %4209 = vmatpush1.bf16.msra.mxu0 0
      %4210 = vmatprep.subr.bf16.mxu0 0
      %4211 = vmatpush1.bf16.msra.mxu0 0
      %4212 = vmatprep.subr.bf16.mxu0 0
      %4213 = vmatpush1.bf16.msra.mxu0 0
      %4214 = vmatprep.subr.bf16.mxu0 0
      %4215 = vmatpush1.bf16.msra.mxu0 0
      %4216 = vmatprep.subr.bf16.mxu0 0
      %4217 = vmatpush1.bf16.msra.mxu0 0
      %4218 = vmatprep.subr.bf16.mxu0 0
      %4219 = vmatpush1.bf16.msra.mxu0 0
      %4220 = vmatprep.subr.bf16.mxu0 0
      %4221 = vmatpush1.bf16.msra.mxu0 0
      %4222 = vmatprep.subr.bf16.mxu0 0
      %4223 = vmatpush1.bf16.msra.mxu0 0
      %4224 = vmatprep.mubr.bf16.mxu0 0
      %4225 = vmatmul.mubr.bf16.gmra.mrb[0].mxu0 %v4146
      %v4226 = vpop.f32.mrb[0].mxu0
      %v4227 = vadd.f32 0.0, %v4226
      %v4228 = vpop.f32.mrb[0].mxu0
      %v4229 = vadd.f32 0.0, %v4228
      %v4230 = vpop.f32.mrb[0].mxu0
      %v4231 = vpop.f32.mrb[0].mxu0
      %4232 = vdwg.mxu0
      %4233 = vmatprep.subr.bf16.mxu0 %v3058
      %4234 = vmatpush1.bf16.msra.mxu0 %v3055
      %4235 = vmatprep.subr.bf16.mxu0 0
      %4236 = vmatpush1.bf16.msra.mxu0 0
      %4237 = vmatprep.subr.bf16.mxu0 0
      %4238 = vmatpush1.bf16.msra.mxu0 0
      %4239 = vmatprep.subr.bf16.mxu0 0
      %4240 = vmatpush1.bf16.msra.mxu0 0
      %4241 = vmatprep.subr.bf16.mxu0 0
      %4242 = vmatpush1.bf16.msra.mxu0 0
      %4243 = vmatprep.subr.bf16.mxu0 0
      %4244 = vmatpush1.bf16.msra.mxu0 0
      %4245 = vmatprep.subr.bf16.mxu0 0
      %4246 = vmatpush1.bf16.msra.mxu0 0
      %4247 = vmatprep.subr.bf16.mxu0 0
      %4248 = vmatpush1.bf16.msra.mxu0 0
      %4249 = vmatprep.subr.bf16.mxu0 0
      %4250 = vmatpush1.bf16.msra.mxu0 0
      %4251 = vmatprep.subr.bf16.mxu0 0
      %4252 = vmatpush1.bf16.msra.mxu0 0
      %4253 = vmatprep.subr.bf16.mxu0 0
      %4254 = vmatpush1.bf16.msra.mxu0 0
      %4255 = vmatprep.subr.bf16.mxu0 0
      %4256 = vmatpush1.bf16.msra.mxu0 0
      %4257 = vmatprep.subr.bf16.mxu0 0
      %4258 = vmatpush1.bf16.msra.mxu0 0
      %4259 = vmatprep.subr.bf16.mxu0 0
      %4260 = vmatpush1.bf16.msra.mxu0 0
      %4261 = vmatprep.subr.bf16.mxu0 0
      %4262 = vmatpush1.bf16.msra.mxu0 0
      %4263 = vmatprep.subr.bf16.mxu0 0
      %4264 = vmatpush1.bf16.msra.mxu0 0
      %4265 = vmatprep.mubr.bf16.mxu0 0
      %4266 = vmatmul.mubr.bf16.gmra.mrb[0].mxu0 %v4146
      %v4267 = vpop.f32.mrb[0].mxu0
      %v4268 = vadd.f32 0.0, %v4267
      %v4269 = vpop.f32.mrb[0].mxu0
      %v4270 = vadd.f32 0.0, %v4269
      %v4271 = vpop.f32.mrb[0].mxu0
      %v4272 = vpop.f32.mrb[0].mxu0
      %4273 = vdwg.mxu0
      %4274 = vmatprep.subr.bf16.mxu0 %v4149
      %4275 = vmatpush1.bf16.msra.mxu0 %v3605
      %4276 = vmatprep.subr.bf16.mxu0 0
      %4277 = vmatpush1.bf16.msra.mxu0 0
      %4278 = vmatprep.subr.bf16.mxu0 0
      %4279 = vmatpush1.bf16.msra.mxu0 0
      %4280 = vmatprep.subr.bf16.mxu0 0
      %4281 = vmatpush1.bf16.msra.mxu0 0
      %4282 = vmatprep.subr.bf16.mxu0 0
      %4283 = vmatpush1.bf16.msra.mxu0 0
      %4284 = vmatprep.subr.bf16.mxu0 0
      %4285 = vmatpush1.bf16.msra.mxu0 0
      %4286 = vmatprep.subr.bf16.mxu0 0
      %4287 = vmatpush1.bf16.msra.mxu0 0
      %4288 = vmatprep.subr.bf16.mxu0 0
      %4289 = vmatpush1.bf16.msra.mxu0 0
      %4290 = vmatprep.subr.bf16.mxu0 0
      %4291 = vmatpush1.bf16.msra.mxu0 0
      %4292 = vmatprep.subr.bf16.mxu0 0
      %4293 = vmatpush1.bf16.msra.mxu0 0
      %4294 = vmatprep.subr.bf16.mxu0 0
      %4295 = vmatpush1.bf16.msra.mxu0 0
      %4296 = vmatprep.subr.bf16.mxu0 0
      %4297 = vmatpush1.bf16.msra.mxu0 0
      %4298 = vmatprep.subr.bf16.mxu0 0
      %4299 = vmatpush1.bf16.msra.mxu0 0
      %4300 = vmatprep.subr.bf16.mxu0 0
      %4301 = vmatpush1.bf16.msra.mxu0 0
      %4302 = vmatprep.subr.bf16.mxu0 0
      %4303 = vmatpush1.bf16.msra.mxu0 0
      %4304 = vmatprep.subr.bf16.mxu0 0
      %4305 = vmatpush1.bf16.msra.mxu0 0
      %4306 = vmatprep.mubr.bf16.mxu0 0
      %4307 = vmatmul.mubr.bf16.gmra.mrb[0].mxu0 %v4146
      %v4308 = vpop.f32.mrb[0].mxu0
      %v4309 = vadd.f32 0.0, %v4308
      %v4310 = vpop.f32.mrb[0].mxu0
      %v4311 = vadd.f32 0.0, %v4310
      %v4312 = vpop.f32.mrb[0].mxu0
      %v4313 = vpop.f32.mrb[0].mxu0
      %4314 = vdwg.mxu0
      %v4315 = vadd.f32 %v4134, %v4186
      %v4316 = vadd.f32 %v4135, %v4188
      %v4317 = vadd.f32 %v4136, %v4227
      %v4318 = vadd.f32 %v4137, %v4229
      %v4319 = vadd.f32 %v4138, %v4268
      %v4320 = vadd.f32 %v4139, %v4270
      %v4321 = vadd.f32 %v4140, %v4309
      %v4322 = vadd.f32 %v4141, %v4311
      %v4323 = vadd.f32 %v2545, %v4315
      %v4324 = vadd.f32 %v2546, %v4316
      %v4325 = vadd.f32 %v2547, %v4317
      %v4326 = vadd.f32 %v2548, %v4318
      %v4327 = vadd.f32 %v2549, %v4319
      %v4328 = vadd.f32 %v2550, %v4320
      %v4329 = vadd.f32 %v2551, %v4321
      %v4330 = vadd.f32 %v2552, %v4322
      %v4331 = vld [vmem:[%s8 + $0x1] sm:$0xff]
      %v4333 = vlaneseq
      %v4334 = vshrl.u32 %v4333, 7
      %v4335 = vsub.s32 0, %v4334
      %v4336 = vrot.slane %v4331, %v4335
      %v4337 = vlaneseq
      %v4338 = vshrl.u32 %v4337, 7
      %v4339 = vsub.s32 1, %v4338
      %v4340 = vrot.slane %v4331, %v4339
      %v4341 = vlaneseq
      %v4342 = vshrl.u32 %v4341, 7
      %v4343 = vsub.s32 2, %v4342
      %v4344 = vrot.slane %v4331, %v4343
      %v4345 = vlaneseq
      %v4346 = vshrl.u32 %v4345, 7
      %v4347 = vsub.s32 3, %v4346
      %v4348 = vrot.slane %v4331, %v4347
      %v4349 = vlaneseq
      %v4350 = vshrl.u32 %v4349, 7
      %v4351 = vsub.s32 4, %v4350
      %v4352 = vrot.slane %v4331, %v4351
      %v4353 = vlaneseq
      %v4354 = vshrl.u32 %v4353, 7
      %v4355 = vsub.s32 5, %v4354
      %v4356 = vrot.slane %v4331, %v4355
      %v4357 = vlaneseq
      %v4358 = vshrl.u32 %v4357, 7
      %v4359 = vsub.s32 6, %v4358
      %v4360 = vrot.slane %v4331, %v4359
      %v4361 = vlaneseq
      %v4362 = vshrl.u32 %v4361, 7
      %v4363 = vsub.s32 7, %v4362
      %v4364 = vrot.slane %v4331, %v4363
      %v4373 = vmul.f32 %v4323, %v4336
      %v4374 = vmul.f32 %v4324, %v4340
      %v4375 = vmul.f32 %v4325, %v4344
      %v4376 = vmul.f32 %v4326, %v4348
      %v4377 = vmul.f32 %v4327, %v4352
      %v4378 = vmul.f32 %v4328, %v4356
      %v4379 = vmul.f32 %v4329, %v4360
      %v4380 = vmul.f32 %v4330, %v4364
      %v4381 = vpack.c.bf16 %v4373, %v4373
      %v4382 = vpack.c.bf16 %v4374, %v4374
      %v4383 = vpack.c.bf16 %v4375, %v4375
      %v4384 = vpack.c.bf16 %v4376, %v4376
      %v4385 = vpack.c.bf16 %v4377, %v4377
      %v4386 = vpack.c.bf16 %v4378, %v4378
      %v4387 = vpack.c.bf16 %v4379, %v4379
      %v4388 = vpack.c.bf16 %v4380, %v4380
      %v4397 = vcombine.low %v4381, %v4382
      %v4398 = vcombine.low %v4383, %v4384
      %v4400 = vunpack.c.l.s4 1983009808
      %v4401 = vunpack.c.0.s8 %v4400
      %v4402 = vlaneseq
      %v4403 = vshrl.u32 %v4402, 7
      %v4404 = vsub.s32 %v4401, %v4403
      %v4405 = vrot.slane %v4397, %v4404
      %v4407 = vunpack.c.l.s4 1983009808
      %v4408 = vunpack.c.0.s8 %v4407
      %v4409 = vlaneseq
      %v4410 = vshrl.u32 %v4409, 7
      %v4411 = vsub.s32 %v4408, %v4410
      %v4412 = vrot.slane %v4398, %v4411
      %v4413 = vcombine.low %v4405, %v4412
      %v4414 = vcombine.low %v4385, %v4386
      %v4415 = vcombine.low %v4387, %v4388
      %v4417 = vunpack.c.l.s4 1983009808
      %v4418 = vunpack.c.0.s8 %v4417
      %v4419 = vlaneseq
      %v4420 = vshrl.u32 %v4419, 7
      %v4421 = vsub.s32 %v4418, %v4420
      %v4422 = vrot.slane %v4414, %v4421
      %v4424 = vunpack.c.l.s4 1983009808
      %v4425 = vunpack.c.0.s8 %v4424
      %v4426 = vlaneseq
      %v4427 = vshrl.u32 %v4426, 7
      %v4428 = vsub.s32 %v4425, %v4427
      %v4429 = vrot.slane %v4415, %v4428
      %v4430 = vcombine.low %v4422, %v4429
      %4433 = vst [vmem:[%s721] sm:$0xff] %v4413
      %4434 = vst [vmem:[%s721 + $0x8] sm:$0xff] %v4430
      %vm4435 = vcmask 1043456
      %v4436 = vsel %vm4435, %v4373, 0.0
      %v4437 = vsel %vm4435, %v4374, 0.0
      %v4438 = vadd.f32 %v4436, %v4437
      %v4439 = vsel %vm4435, %v4375, 0.0
      %v4440 = vadd.f32 %v4438, %v4439
      %v4441 = vsel %vm4435, %v4376, 0.0
      %v4442 = vadd.f32 %v4440, %v4441
      %v4443 = vsel %vm4435, %v4377, 0.0
      %v4444 = vadd.f32 %v4442, %v4443
      %v4445 = vsel %vm4435, %v4378, 0.0
      %v4446 = vadd.f32 %v4444, %v4445
      %v4447 = vsel %vm4435, %v4379, 0.0
      %v4448 = vadd.f32 %v4446, %v4447
      %v4449 = vsel %vm4435, %v4380, 0.0
      %v4450 = vadd.f32 %v4448, %v4449
      %4451 = vadd.xlane.f32.xlu0 %v4450
      %v4452 = vpop.xlane.xlu0 %4451
      %vm4453 = vcmask 3072
      %4454 = vst.msk [vmem:[%s730] sm:$0xf] %vm4453, %v4452
      %v4455 = vmul.f32 %v4373, %v4323
      %v4456 = vmul.f32 %v4374, %v4324
      %v4457 = vmul.f32 %v4375, %v4325
      %v4458 = vmul.f32 %v4376, %v4326
      %v4459 = vmul.f32 %v4377, %v4327
      %v4460 = vmul.f32 %v4378, %v4328
      %v4461 = vmul.f32 %v4379, %v4329
      %v4462 = vmul.f32 %v4380, %v4330
      %v4463 = vsel %vm4435, %v4455, 0.0
      %v4464 = vsel %vm4435, %v4456, 0.0
      %v4465 = vadd.f32 %v4463, %v4464
      %v4466 = vsel %vm4435, %v4457, 0.0
      %v4467 = vadd.f32 %v4465, %v4466
      %v4468 = vsel %vm4435, %v4458, 0.0
      %v4469 = vadd.f32 %v4467, %v4468
      %v4470 = vsel %vm4435, %v4459, 0.0
      %v4471 = vadd.f32 %v4469, %v4470
      %v4472 = vsel %vm4435, %v4460, 0.0
      %v4473 = vadd.f32 %v4471, %v4472
      %v4474 = vsel %vm4435, %v4461, 0.0
      %v4475 = vadd.f32 %v4473, %v4474
      %v4476 = vsel %vm4435, %v4462, 0.0
      %v4477 = vadd.f32 %v4475, %v4476
      %4478 = vadd.xlane.f32.xlu0 %v4477
      %v4479 = vpop.xlane.xlu0 %4478
      %4480 = vst.msk [vmem:[%s738] sm:$0xf] %vm4453, %v4479
      %s4481 = smul.u32 8, %s28
      %p4482 = scmp.lt.s32.totalorder %s27, 1
      %s4483 = scalar_select %p4482, %s27, 1
      %p4484 = scmp.lt.s32.totalorder %s4481, 15
      %s4485 = scalar_select %p4484, %s4481, 15
      %s4486 = smul.addr %s4483, 16
      %s4487 = sadd.s32 %s4485, %s4486
      %s4488 = smul.addr %s4487, 2
      %s4489 = scalar_lea.vmem %s9, %s4488
      %p4490 = scmp.lt.s32.totalorder %s27, 1
      %s4491 = scalar_select %p4490, %s27, 1
      %p4492 = scmp.lt.s32.totalorder %s28, 1
      %s4493 = scalar_select %p4492, %s28, 1
      %s4494 = smul.addr %s4491, 2
      %s4495 = sadd.s32 %s4493, %s4494
      %s4496 = smul.addr %s4495, 4
      %s4497 = scalar_lea.vmem %s10, %s4496
      %p4498 = scmp.lt.s32.totalorder %s27, 1
      %s4499 = scalar_select %p4498, %s27, 1
      %p4500 = scmp.lt.s32.totalorder %s28, 1
      %s4501 = scalar_select %p4500, %s28, 1
      %s4502 = smul.addr %s4499, 2
      %s4503 = sadd.s32 %s4501, %s4502
      %s4504 = smul.addr %s4503, 4
      %s4505 = scalar_lea.vmem %s11, %s4504
      // Predicated region
      $region57: #{decoder_block_forward.5} parent=55 // pred_check
        %p4506 = pneg %p318
      $region58: #{decoder_block_forward.5} parent=55 // pred_check_branch
        %4508 = sbr.rel (%p4506) target = $region60
      $region59: #{decoder_block_forward.5} parent=55 // pred_region
        %s4509 = smul.u32 8, %s28
      $region60: #{decoder_block_forward.5} parent=55 // pred_fallthru
        _
      // Predicated region
      $region61: #{decoder_block_forward.5} parent=55 // pred_check
        %p4510 = pneg %p346
      $region62: #{decoder_block_forward.5} parent=55 // pred_check_branch
        %4512 = sbr.rel (%p4510) target = $region64
      $region63: #{decoder_block_forward.5} parent=55 // pred_region
        _
      $region64: #{decoder_block_forward.5} parent=55 // pred_fallthru
        _
      // Predicated region
      $region65: #{decoder_block_forward.5} parent=55 // pred_check
        %p4513 = pneg %p374
      $region66: #{decoder_block_forward.5} parent=55 // pred_check_branch
        %4515 = sbr.rel (%p4513) target = $region68
      $region67: #{decoder_block_forward.5} parent=55 // pred_region
        _
      $region68: #{decoder_block_forward.5} parent=55 // pred_fallthru
        _
    $region56: #{decoder_block_forward.5} parent=5 // pred_fallthru
      _
    %p4516 = scmp.le.s32.totalorder 2, %s18
    // Predicated region
    $region69: #{decoder_block_forward.5} parent=5 // pred_check
      %p4517 = pneg %p4516
    $region70: #{decoder_block_forward.5} parent=5 // pred_check_branch
      %4519 = sbr.rel (%p4517) target = $region72
    $region71: #{decoder_block_forward.5} parent=5 // pred_region
      %s4520 = ssub.s32 %s18, 2
      // Predicated region
      $region73: #{decoder_block_forward.5} parent=71 // pred_check
        %p4521 = pneg %p324
      $region74: #{decoder_block_forward.5} parent=71 // pred_check_branch
        %4523 = sbr.rel (%p4521) target = $region76
      $region75: #{decoder_block_forward.5} parent=71 // pred_region
        %s4524 = smul.u32 8, %s30
        %p4525 = scmp.lt.s32.totalorder %s29, 1
        %s4526 = scalar_select %p4525, %s29, 1
        %p4527 = scmp.lt.s32.totalorder %s4524, 15
        %s4528 = scalar_select %p4527, %s4524, 15
        %s4529 = smul.addr %s4526, 16
        %s4530 = sadd.s32 %s4528, %s4529
        %s4531 = smul.addr %s4530, 2
        %s4532 = scalar_lea.vmem %s9, %s4531
      $region76: #{decoder_block_forward.5} parent=71 // pred_fallthru
        _
      // Predicated region
      $region77: #{decoder_block_forward.5} parent=71 // pred_check
        %p4533 = pneg %p352
      $region78: #{decoder_block_forward.5} parent=71 // pred_check_branch
        %4535 = sbr.rel (%p4533) target = $region80
      $region79: #{decoder_block_forward.5} parent=71 // pred_region
        %p4536 = scmp.lt.s32.totalorder %s29, 1
        %s4537 = scalar_select %p4536, %s29, 1
        %p4538 = scmp.lt.s32.totalorder %s30, 1
        %s4539 = scalar_select %p4538, %s30, 1
        %s4540 = smul.addr %s4537, 2
        %s4541 = sadd.s32 %s4539, %s4540
        %s4542 = smul.addr %s4541, 4
        %s4543 = scalar_lea.vmem %s10, %s4542
      $region80: #{decoder_block_forward.5} parent=71 // pred_fallthru
        _
      // Predicated region
      $region81: #{decoder_block_forward.5} parent=71 // pred_check
        %p4544 = pneg %p380
      $region82: #{decoder_block_forward.5} parent=71 // pred_check_branch
        %4546 = sbr.rel (%p4544) target = $region84
      $region83: #{decoder_block_forward.5} parent=71 // pred_region
        %p4547 = scmp.lt.s32.totalorder %s29, 1
        %s4548 = scalar_select %p4547, %s29, 1
        %p4549 = scmp.lt.s32.totalorder %s30, 1
        %s4550 = scalar_select %p4549, %s30, 1
        %s4551 = smul.addr %s4548, 2
        %s4552 = sadd.s32 %s4550, %s4551
        %s4553 = smul.addr %s4552, 4
        %s4554 = scalar_lea.vmem %s11, %s4553
      $region84: #{decoder_block_forward.5} parent=71 // pred_fallthru
        _
    $region72: #{decoder_block_forward.5} parent=5 // pred_fallthru
      _
  $region6: #{decoder_block_forward.5} parent=0 // loop_footer
    %s22 = sadd.s32 1, %s18
  $region7: #{decoder_block_forward.5} parent=0 // loop_footer_branch
    %17 = sbr.rel target = $region3
  $region8: #{decoder_block_forward.5} parent=0 // loop_exit
    _

</llo_original>
